<compile_context>
chip_gen: v7x
topology: tpu7x:2x2x1
jax: 0.10.0
libtpu: 0.0.40
codegen_flags: <defaults>
</compile_context>

<pallas_src>
import functools

import jax
import jax.numpy as jnp
from jax import lax
from jax.experimental import pallas as pl
from jax.experimental.pallas import tpu as pltpu


def _layernorm(z, gamma, beta, eps=1e-5):
    mu = jnp.mean(z, axis=-1, keepdims=True)
    d = z - mu
    var = jnp.mean(d * d, axis=-1, keepdims=True)
    return d * lax.rsqrt(var + eps) * gamma + beta


def relational_encoder_kernel(Bt, N, D, R, H, dh, F1, F2,
                              x_ref, adj_ref, wqkv_ref, wo_ref, wff_ref, vec_ref,
                              out_ref):
    f32 = jnp.float32
    bf16 = jnp.bfloat16
    RH = R * H
    BN = Bt * N

    x = x_ref[...]                                  # [Bt, N, D] f32
    x2 = x.reshape(BN, D)                           # leading-dim merge (free)
    xb = x2.astype(bf16)

    # ---- RelationalAttentionLayer -------------------------------------------
    # One fused, lane-dense QKV projection for ALL Bt graphs at once
    # (1/sqrt(dh) folded into Wq at pack time).
    qkv = jnp.dot(xb, wqkv_ref[...], preferred_element_type=f32)   # [BN, 3*RH*dh]

    def take(base, rh):
        off = base + rh * dh
        return qkv[:, off:off + dh].reshape(Bt, N, dh)             # static lane slice

    # Stack per (graph, relation*head): batch index = b*RH + (r*H + h).
    q = jnp.stack([take(0, rh) for rh in range(RH)], axis=1).reshape(Bt * RH, N, dh)
    k = jnp.stack([take(RH * dh, rh) for rh in range(RH)], axis=1).reshape(Bt * RH, N, dh)
    v = jnp.stack([take(2 * RH * dh, rh) for rh in range(RH)], axis=1).reshape(Bt * RH, N, dh)

    # Batched scores over all (graph, relation, head) triples.
    s = jnp.einsum("bnd,bmd->bnm", q.astype(bf16), k.astype(bf16),
                   preferred_element_type=f32)                     # [Bt*RH, N, N]

    # Mask by each relation's adjacency (same mask for every head of a relation).
    adj = adj_ref[...]                                             # [Bt, R, N, N]
    mask = jnp.broadcast_to((adj > 0.0)[:, :, None],
                            (Bt, R, H, N, N)).reshape(Bt * RH, N, N)
    s = jnp.where(mask, s, -1e9)

    # Stacked masked softmax.
    s = s - jnp.max(s, axis=-1, keepdims=True)
    p = jnp.exp(s)
    p = p * pl.reciprocal(jnp.sum(p, axis=-1, keepdims=True), approx=True)

    # Batched attention-weighted values.
    o = jnp.einsum("bnm,bmd->bnd", p.astype(bf16), v.astype(bf16),
                   preferred_element_type=f32)                     # [Bt*RH, N, dh]

    # Sum over relations per head, ReLU pooling (pooling_op='relu').
    heads = jnp.maximum(o.reshape(Bt, R, H, N, dh).sum(axis=1), 0.0)   # [Bt, H, N, dh]

    # Output projection accumulated per head (== concat(heads) @ Wo, without
    # the lane-axis concatenate / relayout).
    attn = jnp.zeros((BN, D), f32)
    for h in range(H):
        attn = attn + jnp.dot(heads[:, h].reshape(BN, dh).astype(bf16), wo_ref[h],
                              preferred_element_type=f32)          # [BN, D]

    # ---- AddNormLayer 1 ------------------------------------------------------
    g1 = vec_ref[0:1, 0:D]
    b1 = vec_ref[1:2, 0:D]
    h1 = _layernorm(x2 + attn, g1, b1)

    # ---- FeedForwardNeighbor (neighbor_degree=0): D -> F1 -> F2 -> D ---------
    c1 = vec_ref[2:3, 0:F1]
    c2 = vec_ref[3:4, 0:F2]
    c3 = vec_ref[4:5, 0:D]
    w1 = wff_ref[0:D, 0:F1]                       # [D,  F1]
    w2 = wff_ref[D:D + F1, 0:F2]                  # [F1, F2]
    w3 = wff_ref[D + F1:D + F1 + F2, 0:D]         # [F2, D]

    f = jnp.maximum(jnp.dot(h1.astype(bf16), w1, preferred_element_type=f32) + c1, 0.0)
    f = jnp.maximum(jnp.dot(f.astype(bf16), w2, preferred_element_type=f32) + c2, 0.0)
    ff = jnp.dot(f.astype(bf16), w3, preferred_element_type=f32) + c3

    # ---- AddNormLayer 2 ------------------------------------------------------
    g2 = vec_ref[5:6, 0:D]
    b2 = vec_ref[6:7, 0:D]
    out_ref[...] = _layernorm(h1 + ff, g2, b2).reshape(Bt, N, D)


def _pack_params(params):
    """Repack the per-(relation, head) weights into a few dense arrays."""
    wq, wk, wv = params["wq"], params["wk"], params["wv"]   # [R, H, D, dh]
    R, H, D, dh = wq.shape
    scale = 1.0 / (dh ** 0.5)

    def flat(w):  # [R,H,D,dh] -> [D, R*H*dh]  (column index = (r*H + h)*dh + d)
        return jnp.transpose(w, (2, 0, 1, 3)).reshape(D, R * H * dh)

    wqkv = jnp.concatenate([flat(wq * scale), flat(wk), flat(wv)],
                           axis=1).astype(jnp.bfloat16)             # [D, 3*R*H*dh]

    wo = params["wo"].reshape(H, dh, D).astype(jnp.bfloat16)        # [H, dh, D]

    # FF weights stacked on the sublane axis, lane-padded to a common width.
    w1, w2, w3 = params["w1"], params["w2"], params["w3"]
    F1, F2 = w1.shape[1], w2.shape[1]
    W = max(F1, F2, D)

    def pad_lanes(w):
        return jnp.pad(w, ((0, 0), (0, W - w.shape[1])))

    wff = jnp.concatenate([pad_lanes(w1), pad_lanes(w2), pad_lanes(w3)],
                          axis=0).astype(jnp.bfloat16)              # [D+F1+F2, W]

    # Small (1, n) vectors packed into one padded [8, W] f32 array.
    def pad_vec(v):
        return jnp.pad(v, ((0, 0), (0, W - v.shape[1])))

    vecs = jnp.concatenate([pad_vec(params[k]) for k in
                            ("g1", "b1", "c1", "c2", "c3", "g2", "b2")], axis=0)
    rows = vecs.shape[0]
    pad_rows = (-rows) % 8
    vecs = jnp.pad(vecs, ((0, pad_rows), (0, 0))).astype(jnp.float32)  # [8, W]

    return wqkv, wo, wff, vecs


def _choose_block_b(B, N, target_rows=256):
    """Largest divisor of B with block_b*N <= target_rows and >= 2 grid steps."""
    best = None
    for d in range(1, B + 1):
        if B % d:
            continue
        if d * N > target_rows and d != 1:
            continue
        if B // d >= 2:
            best = d
    if best is None:     # B == 1 (or nothing satisfies the >=2-step preference)
        best = B
    return best


def relational_encoder(node_feature, adj, params, *, num_head, block_b=None):
    """node_feature: [B, N, D] f32, adj: [B, R, N, N] f32 (self-loops included)."""
    B, N, D = node_feature.shape
    R = adj.shape[1]
    H = num_head
    dh = D // H
    assert dh * H == D, "model_dim must be divisible by num_head"
    F1 = params["w1"].shape[1]
    F2 = params["w2"].shape[1]

    if block_b is None:
        block_b = _choose_block_b(B, N)
    assert B % block_b == 0
    grid_b = B // block_b

    wqkv, wo, wff, vecs = _pack_params(params)

    kern = functools.partial(relational_encoder_kernel,
                             block_b, N, D, R, H, dh, F1, F2)

    in_specs = [
        pl.BlockSpec((block_b, N, D), lambda b: (b, 0, 0)),          # x (graph block)
        pl.BlockSpec((block_b, R, N, N), lambda b: (b, 0, 0, 0)),    # adj (graph block)
        pl.BlockSpec(wqkv.shape, lambda b: (0, 0)),                  # fused QKV weight
        pl.BlockSpec(wo.shape, lambda b: (0, 0, 0)),                 # Wo [H, dh, D]
        pl.BlockSpec(wff.shape, lambda b: (0, 0)),                   # stacked FF weights
        pl.BlockSpec(vecs.shape, lambda b: (0, 0)),                  # packed bias/LN vectors
    ]
    out_spec = pl.BlockSpec((block_b, N, D), lambda b: (b, 0, 0))

    return pl.pallas_call(
        kern,
        out_shape=jax.ShapeDtypeStruct((B, N, D), jnp.float32),
        grid=(grid_b,),
        in_specs=in_specs,
        out_specs=out_spec,
        compiler_params=pltpu.CompilerParams(dimension_semantics=("parallel",)),
    )(node_feature, adj, wqkv, wo, wff, vecs)


def init_params(key, model_dim, num_relations, num_head, num_neurons):
    dh = model_dim // num_head
    ks = jax.random.split(key, 8)
    s = 0.1
    f1, f2 = num_neurons
    return {
        "wq": s * jax.random.normal(ks[0], (num_relations, num_head, model_dim, dh), jnp.float32),
        "wk": s * jax.random.normal(ks[1], (num_relations, num_head, model_dim, dh), jnp.float32),
        "wv": s * jax.random.normal(ks[2], (num_relations, num_head, model_dim, dh), jnp.float32),
        "wo": s * jax.random.normal(ks[3], (model_dim, model_dim), jnp.float32),
        "g1": jnp.ones((1, model_dim), jnp.float32),
        "b1": jnp.zeros((1, model_dim), jnp.float32),
        "w1": s * jax.random.normal(ks[4], (model_dim, f1), jnp.float32),
        "c1": jnp.zeros((1, f1), jnp.float32),
        "w2": s * jax.random.normal(ks[5], (f1, f2), jnp.float32),
        "c2": jnp.zeros((1, f2), jnp.float32),
        "w3": s * jax.random.normal(ks[6], (f2, model_dim), jnp.float32),
        "c3": jnp.zeros((1, model_dim), jnp.float32),
        "g2": jnp.ones((1, model_dim), jnp.float32),
        "b2": jnp.zeros((1, model_dim), jnp.float32),
    }


if __name__ == "__main__":
    # model_dim=48, num_head=3 (default), num_relations=3, num_neurons=[128, 128],
    # N=16 nodes per graph, B=8 graphs (block_b graphs fused per grid step).
    B, N, D, R, H = 8, 16, 48, 3, 3
    NUM_NEURONS = [128, 128]

    key = jax.random.PRNGKey(0)
    k_x, k_adj, k_p = jax.random.split(key, 3)

    node_feature = jax.random.normal(k_x, (B, N, D), jnp.float32)

    # Dense per-relation adjacency with self-loops (so every row's softmax is valid).
    adj = (jax.random.uniform(k_adj, (B, R, N, N)) < 0.4).astype(jnp.float32)
    adj = jnp.maximum(adj, jnp.eye(N, dtype=jnp.float32)[None, None, :, :])

    params = init_params(k_p, D, R, H, NUM_NEURONS)

    out = relational_encoder(node_feature, adj, params, num_head=H)
    jax.block_until_ready(out)
    assert out.shape == (B, N, D) and out.dtype == jnp.float32
    assert bool(jnp.all(jnp.isfinite(out)))
    print("KERNEL_OK")
</pallas_src>

<mosaic_0001>
module attributes {stable_mosaic.version = 11 : i64} {
  func.func @relational_encoder_kernel(%arg0: i32, %arg1: memref<4x16x48xf32, #tpu.memory_space<vmem>>, %arg2: memref<4x3x16x16xf32, #tpu.memory_space<vmem>>, %arg3: memref<48x432xbf16, #tpu.memory_space<vmem>>, %arg4: memref<3x16x48xbf16, #tpu.memory_space<vmem>>, %arg5: memref<304x128xbf16, #tpu.memory_space<vmem>>, %arg6: memref<8x128xf32, #tpu.memory_space<vmem>>, %arg7: memref<4x16x48xf32, #tpu.memory_space<vmem>>) attributes {dimension_semantics = [#tpu.dimension_semantics<parallel>], iteration_bounds = array<i64: 2>, scalar_prefetch = 0 : i64, scratch_operands = 0 : i64, tpu.core_type = #tpu.core_type<tc>, window_params = [{transform_indices = @transform_0, window_bounds = array<i64: 4, 16, 48>}, {transform_indices = @transform_1, window_bounds = array<i64: 4, 3, 16, 16>}, {pipeline_mode = #tpu.pipeline_mode<synchronous>, transform_indices = @transform_2, window_bounds = array<i64: 48, 432>}, {pipeline_mode = #tpu.pipeline_mode<synchronous>, transform_indices = @transform_3, window_bounds = array<i64: 3, 16, 48>}, {pipeline_mode = #tpu.pipeline_mode<synchronous>, transform_indices = @transform_4, window_bounds = array<i64: 304, 128>}, {pipeline_mode = #tpu.pipeline_mode<synchronous>, transform_indices = @transform_5, window_bounds = array<i64: 8, 128>}, {transform_indices = @transform_6, window_bounds = array<i64: 4, 16, 48>}]} {
    %c0 = arith.constant 0 : index
    %c0_0 = arith.constant 0 : index
    %c0_1 = arith.constant 0 : index
    %0 = vector.load %arg1[%c0, %c0_0, %c0_1] : memref<4x16x48xf32, #tpu.memory_space<vmem>>, vector<4x16x48xf32>
    %1 = vector.shape_cast %0 : vector<4x16x48xf32> to vector<64x48xf32>
    %2 = arith.truncf %1 : vector<64x48xf32> to vector<64x48xbf16>
    %c0_2 = arith.constant 0 : index
    %c0_3 = arith.constant 0 : index
    %3 = vector.load %arg3[%c0_2, %c0_3] : memref<48x432xbf16, #tpu.memory_space<vmem>>, vector<48x432xbf16>
    %cst = arith.constant dense<0.000000e+00> : vector<64x432xf32>
    %4 = tpu.matmul %2, %3, %cst {dimension_numbers = #tpu.dot_dimension_numbers<[1], [0], [0], [1], [0, 0, 1, 1], [], []>} : vector<64x48xbf16>, vector<48x432xbf16>, vector<64x432xf32> -> vector<64x432xf32>
    %5 = vector.extract_strided_slice %4 {offsets = [0, 0], sizes = [64, 16], strides = [1, 1]} : vector<64x432xf32> to vector<64x16xf32>
    %6 = vector.shape_cast %5 : vector<64x16xf32> to vector<4x16x16xf32>
    %7 = vector.extract_strided_slice %4 {offsets = [0, 16], sizes = [64, 16], strides = [1, 1]} : vector<64x432xf32> to vector<64x16xf32>
    %8 = vector.shape_cast %7 : vector<64x16xf32> to vector<4x16x16xf32>
    %9 = vector.extract_strided_slice %4 {offsets = [0, 32], sizes = [64, 16], strides = [1, 1]} : vector<64x432xf32> to vector<64x16xf32>
    %10 = vector.shape_cast %9 : vector<64x16xf32> to vector<4x16x16xf32>
    %11 = vector.extract_strided_slice %4 {offsets = [0, 48], sizes = [64, 16], strides = [1, 1]} : vector<64x432xf32> to vector<64x16xf32>
    %12 = vector.shape_cast %11 : vector<64x16xf32> to vector<4x16x16xf32>
    %13 = vector.extract_strided_slice %4 {offsets = [0, 64], sizes = [64, 16], strides = [1, 1]} : vector<64x432xf32> to vector<64x16xf32>
    %14 = vector.shape_cast %13 : vector<64x16xf32> to vector<4x16x16xf32>
    %15 = vector.extract_strided_slice %4 {offsets = [0, 80], sizes = [64, 16], strides = [1, 1]} : vector<64x432xf32> to vector<64x16xf32>
    %16 = vector.shape_cast %15 : vector<64x16xf32> to vector<4x16x16xf32>
    %17 = vector.extract_strided_slice %4 {offsets = [0, 96], sizes = [64, 16], strides = [1, 1]} : vector<64x432xf32> to vector<64x16xf32>
    %18 = vector.shape_cast %17 : vector<64x16xf32> to vector<4x16x16xf32>
    %19 = vector.extract_strided_slice %4 {offsets = [0, 112], sizes = [64, 16], strides = [1, 1]} : vector<64x432xf32> to vector<64x16xf32>
    %20 = vector.shape_cast %19 : vector<64x16xf32> to vector<4x16x16xf32>
    %21 = vector.extract_strided_slice %4 {offsets = [0, 128], sizes = [64, 16], strides = [1, 1]} : vector<64x432xf32> to vector<64x16xf32>
    %22 = vector.shape_cast %21 : vector<64x16xf32> to vector<4x16x16xf32>
    %23 = vector.shape_cast %6 : vector<4x16x16xf32> to vector<4x1x16x16xf32>
    %24 = vector.shape_cast %8 : vector<4x16x16xf32> to vector<4x1x16x16xf32>
    %25 = vector.shape_cast %10 : vector<4x16x16xf32> to vector<4x1x16x16xf32>
    %26 = vector.shape_cast %12 : vector<4x16x16xf32> to vector<4x1x16x16xf32>
    %27 = vector.shape_cast %14 : vector<4x16x16xf32> to vector<4x1x16x16xf32>
    %28 = vector.shape_cast %16 : vector<4x16x16xf32> to vector<4x1x16x16xf32>
    %29 = vector.shape_cast %18 : vector<4x16x16xf32> to vector<4x1x16x16xf32>
    %30 = vector.shape_cast %20 : vector<4x16x16xf32> to vector<4x1x16x16xf32>
    %31 = vector.shape_cast %22 : vector<4x16x16xf32> to vector<4x1x16x16xf32>
    %32 = tpu.concatenate %23, %24, %25, %26, %27, %28, %29, %30, %31 in 1 : vector<4x1x16x16xf32>, vector<4x1x16x16xf32>, vector<4x1x16x16xf32>, vector<4x1x16x16xf32>, vector<4x1x16x16xf32>, vector<4x1x16x16xf32>, vector<4x1x16x16xf32>, vector<4x1x16x16xf32>, vector<4x1x16x16xf32> -> vector<4x9x16x16xf32>
    %33 = vector.shape_cast %32 : vector<4x9x16x16xf32> to vector<36x16x16xf32>
    %34 = vector.extract_strided_slice %4 {offsets = [0, 144], sizes = [64, 16], strides = [1, 1]} : vector<64x432xf32> to vector<64x16xf32>
    %35 = vector.shape_cast %34 : vector<64x16xf32> to vector<4x16x16xf32>
    %36 = vector.extract_strided_slice %4 {offsets = [0, 160], sizes = [64, 16], strides = [1, 1]} : vector<64x432xf32> to vector<64x16xf32>
    %37 = vector.shape_cast %36 : vector<64x16xf32> to vector<4x16x16xf32>
    %38 = vector.extract_strided_slice %4 {offsets = [0, 176], sizes = [64, 16], strides = [1, 1]} : vector<64x432xf32> to vector<64x16xf32>
    %39 = vector.shape_cast %38 : vector<64x16xf32> to vector<4x16x16xf32>
    %40 = vector.extract_strided_slice %4 {offsets = [0, 192], sizes = [64, 16], strides = [1, 1]} : vector<64x432xf32> to vector<64x16xf32>
    %41 = vector.shape_cast %40 : vector<64x16xf32> to vector<4x16x16xf32>
    %42 = vector.extract_strided_slice %4 {offsets = [0, 208], sizes = [64, 16], strides = [1, 1]} : vector<64x432xf32> to vector<64x16xf32>
    %43 = vector.shape_cast %42 : vector<64x16xf32> to vector<4x16x16xf32>
    %44 = vector.extract_strided_slice %4 {offsets = [0, 224], sizes = [64, 16], strides = [1, 1]} : vector<64x432xf32> to vector<64x16xf32>
    %45 = vector.shape_cast %44 : vector<64x16xf32> to vector<4x16x16xf32>
    %46 = vector.extract_strided_slice %4 {offsets = [0, 240], sizes = [64, 16], strides = [1, 1]} : vector<64x432xf32> to vector<64x16xf32>
    %47 = vector.shape_cast %46 : vector<64x16xf32> to vector<4x16x16xf32>
    %48 = vector.extract_strided_slice %4 {offsets = [0, 256], sizes = [64, 16], strides = [1, 1]} : vector<64x432xf32> to vector<64x16xf32>
    %49 = vector.shape_cast %48 : vector<64x16xf32> to vector<4x16x16xf32>
    %50 = vector.extract_strided_slice %4 {offsets = [0, 272], sizes = [64, 16], strides = [1, 1]} : vector<64x432xf32> to vector<64x16xf32>
    %51 = vector.shape_cast %50 : vector<64x16xf32> to vector<4x16x16xf32>
    %52 = vector.shape_cast %35 : vector<4x16x16xf32> to vector<4x1x16x16xf32>
    %53 = vector.shape_cast %37 : vector<4x16x16xf32> to vector<4x1x16x16xf32>
    %54 = vector.shape_cast %39 : vector<4x16x16xf32> to vector<4x1x16x16xf32>
    %55 = vector.shape_cast %41 : vector<4x16x16xf32> to vector<4x1x16x16xf32>
    %56 = vector.shape_cast %43 : vector<4x16x16xf32> to vector<4x1x16x16xf32>
    %57 = vector.shape_cast %45 : vector<4x16x16xf32> to vector<4x1x16x16xf32>
    %58 = vector.shape_cast %47 : vector<4x16x16xf32> to vector<4x1x16x16xf32>
    %59 = vector.shape_cast %49 : vector<4x16x16xf32> to vector<4x1x16x16xf32>
    %60 = vector.shape_cast %51 : vector<4x16x16xf32> to vector<4x1x16x16xf32>
    %61 = tpu.concatenate %52, %53, %54, %55, %56, %57, %58, %59, %60 in 1 : vector<4x1x16x16xf32>, vector<4x1x16x16xf32>, vector<4x1x16x16xf32>, vector<4x1x16x16xf32>, vector<4x1x16x16xf32>, vector<4x1x16x16xf32>, vector<4x1x16x16xf32>, vector<4x1x16x16xf32>, vector<4x1x16x16xf32> -> vector<4x9x16x16xf32>
    %62 = vector.shape_cast %61 : vector<4x9x16x16xf32> to vector<36x16x16xf32>
    %63 = vector.extract_strided_slice %4 {offsets = [0, 288], sizes = [64, 16], strides = [1, 1]} : vector<64x432xf32> to vector<64x16xf32>
    %64 = vector.shape_cast %63 : vector<64x16xf32> to vector<4x16x16xf32>
    %65 = vector.extract_strided_slice %4 {offsets = [0, 304], sizes = [64, 16], strides = [1, 1]} : vector<64x432xf32> to vector<64x16xf32>
    %66 = vector.shape_cast %65 : vector<64x16xf32> to vector<4x16x16xf32>
    %67 = vector.extract_strided_slice %4 {offsets = [0, 320], sizes = [64, 16], strides = [1, 1]} : vector<64x432xf32> to vector<64x16xf32>
    %68 = vector.shape_cast %67 : vector<64x16xf32> to vector<4x16x16xf32>
    %69 = vector.extract_strided_slice %4 {offsets = [0, 336], sizes = [64, 16], strides = [1, 1]} : vector<64x432xf32> to vector<64x16xf32>
    %70 = vector.shape_cast %69 : vector<64x16xf32> to vector<4x16x16xf32>
    %71 = vector.extract_strided_slice %4 {offsets = [0, 352], sizes = [64, 16], strides = [1, 1]} : vector<64x432xf32> to vector<64x16xf32>
    %72 = vector.shape_cast %71 : vector<64x16xf32> to vector<4x16x16xf32>
    %73 = vector.extract_strided_slice %4 {offsets = [0, 368], sizes = [64, 16], strides = [1, 1]} : vector<64x432xf32> to vector<64x16xf32>
    %74 = vector.shape_cast %73 : vector<64x16xf32> to vector<4x16x16xf32>
    %75 = vector.extract_strided_slice %4 {offsets = [0, 384], sizes = [64, 16], strides = [1, 1]} : vector<64x432xf32> to vector<64x16xf32>
    %76 = vector.shape_cast %75 : vector<64x16xf32> to vector<4x16x16xf32>
    %77 = vector.extract_strided_slice %4 {offsets = [0, 400], sizes = [64, 16], strides = [1, 1]} : vector<64x432xf32> to vector<64x16xf32>
    %78 = vector.shape_cast %77 : vector<64x16xf32> to vector<4x16x16xf32>
    %79 = vector.extract_strided_slice %4 {offsets = [0, 416], sizes = [64, 16], strides = [1, 1]} : vector<64x432xf32> to vector<64x16xf32>
    %80 = vector.shape_cast %79 : vector<64x16xf32> to vector<4x16x16xf32>
    %81 = vector.shape_cast %64 : vector<4x16x16xf32> to vector<4x1x16x16xf32>
    %82 = vector.shape_cast %66 : vector<4x16x16xf32> to vector<4x1x16x16xf32>
    %83 = vector.shape_cast %68 : vector<4x16x16xf32> to vector<4x1x16x16xf32>
    %84 = vector.shape_cast %70 : vector<4x16x16xf32> to vector<4x1x16x16xf32>
    %85 = vector.shape_cast %72 : vector<4x16x16xf32> to vector<4x1x16x16xf32>
    %86 = vector.shape_cast %74 : vector<4x16x16xf32> to vector<4x1x16x16xf32>
    %87 = vector.shape_cast %76 : vector<4x16x16xf32> to vector<4x1x16x16xf32>
    %88 = vector.shape_cast %78 : vector<4x16x16xf32> to vector<4x1x16x16xf32>
    %89 = vector.shape_cast %80 : vector<4x16x16xf32> to vector<4x1x16x16xf32>
    %90 = tpu.concatenate %81, %82, %83, %84, %85, %86, %87, %88, %89 in 1 : vector<4x1x16x16xf32>, vector<4x1x16x16xf32>, vector<4x1x16x16xf32>, vector<4x1x16x16xf32>, vector<4x1x16x16xf32>, vector<4x1x16x16xf32>, vector<4x1x16x16xf32>, vector<4x1x16x16xf32>, vector<4x1x16x16xf32> -> vector<4x9x16x16xf32>
    %91 = vector.shape_cast %90 : vector<4x9x16x16xf32> to vector<36x16x16xf32>
    %92 = arith.truncf %33 : vector<36x16x16xf32> to vector<36x16x16xbf16>
    %93 = arith.truncf %62 : vector<36x16x16xf32> to vector<36x16x16xbf16>
    "tpu.trace_start"() <{level = 10 : i32, message = "bnd,bmd->bnm"}> : () -> ()
    %cst_4 = arith.constant dense<0.000000e+00> : vector<36x16x16xf32>
    %94 = tpu.matmul %92, %93, %cst_4 {dimension_numbers = #tpu.dot_dimension_numbers<[2], [2], [1], [1], [0, 0, 0, 1, 1, 1], [0], [0]>} : vector<36x16x16xbf16>, vector<36x16x16xbf16>, vector<36x16x16xf32> -> vector<36x16x16xf32>
    "tpu.trace_stop"() : () -> ()
    %c0_5 = arith.constant 0 : index
    %c0_6 = arith.constant 0 : index
    %c0_7 = arith.constant 0 : index
    %c0_8 = arith.constant 0 : index
    %95 = vector.load %arg2[%c0_5, %c0_6, %c0_7, %c0_8] : memref<4x3x16x16xf32, #tpu.memory_space<vmem>>, vector<4x3x16x16xf32>
    %cst_9 = arith.constant 0.000000e+00 : f32
    %96 = vector.broadcast %cst_9 : f32 to vector<4x3x16x16xf32>
    %97 = arith.cmpf ogt, %95, %96 : vector<4x3x16x16xf32>
    %98 = vector.shape_cast %97 : vector<4x3x16x16xi1> to vector<4x3x1x16x16xi1>
    %99 = vector.shape_cast %98 : vector<4x3x1x16x16xi1> to vector<4x3x1x16x16xi1>
    %100 = vector.broadcast %99 : vector<4x3x1x16x16xi1> to vector<4x3x3x16x16xi1>
    %101 = vector.shape_cast %100 : vector<4x3x3x16x16xi1> to vector<36x16x16xi1>
    %cst_10 = arith.constant -1.000000e+09 : f32
    %102 = vector.broadcast %cst_10 : f32 to vector<36x16x16xf32>
    %103 = arith.select %101, %94, %102 : vector<36x16x16xi1>, vector<36x16x16xf32>
    %cst_11 = arith.constant dense<0xFF800000> : vector<36x16xf32>
    %104 = vector.multi_reduction <maximumf>, %103, %cst_11 [2] : vector<36x16x16xf32> to vector<36x16xf32>
    %105 = vector.shape_cast %104 : vector<36x16xf32> to vector<36x16x1xf32>
    %106 = vector.broadcast %105 : vector<36x16x1xf32> to vector<36x16x16xf32>
    %107 = arith.subf %103, %106 : vector<36x16x16xf32>
    %108 = math.exp %107 : vector<36x16x16xf32>
    %cst_12 = arith.constant dense<0.000000e+00> : vector<36x16xf32>
    %109 = vector.multi_reduction <add>, %108, %cst_12 [2] : vector<36x16x16xf32> to vector<36x16xf32>
    %110 = vector.shape_cast %109 : vector<36x16xf32> to vector<36x16x1xf32>
    %111 = tpu.reciprocal %110 {approx = true} : vector<36x16x1xf32> -> vector<36x16x1xf32>
    %112 = vector.broadcast %111 : vector<36x16x1xf32> to vector<36x16x16xf32>
    %113 = arith.mulf %108, %112 : vector<36x16x16xf32>
    %114 = arith.truncf %113 : vector<36x16x16xf32> to vector<36x16x16xbf16>
    %115 = arith.truncf %91 : vector<36x16x16xf32> to vector<36x16x16xbf16>
    "tpu.trace_start"() <{level = 10 : i32, message = "bnm,bmd->bnd"}> : () -> ()
    %cst_13 = arith.constant dense<0.000000e+00> : vector<36x16x16xf32>
    %116 = tpu.matmul %114, %115, %cst_13 {dimension_numbers = #tpu.dot_dimension_numbers<[2], [1], [1], [2], [0, 0, 0, 1, 1, 2], [0], [0]>} : vector<36x16x16xbf16>, vector<36x16x16xbf16>, vector<36x16x16xf32> -> vector<36x16x16xf32>
    "tpu.trace_stop"() : () -> ()
    %117 = vector.shape_cast %116 : vector<36x16x16xf32> to vector<4x3x3x16x16xf32>
    %cst_14 = arith.constant dense<0.000000e+00> : vector<4x3x16x16xf32>
    %118 = vector.multi_reduction <add>, %117, %cst_14 [1] : vector<4x3x3x16x16xf32> to vector<4x3x16x16xf32>
    %cst_15 = arith.constant 0.000000e+00 : f32
    %119 = vector.broadcast %cst_15 : f32 to vector<4x3x16x16xf32>
    %120 = arith.maximumf %118, %119 : vector<4x3x16x16xf32>
    %cst_16 = arith.constant 0.000000e+00 : f32
    %121 = vector.broadcast %cst_16 : f32 to vector<64x48xf32>
    %122 = vector.extract_strided_slice %120 {offsets = [0, 0, 0, 0], sizes = [4, 1, 16, 16], strides = [1, 1, 1, 1]} : vector<4x3x16x16xf32> to vector<4x1x16x16xf32>
    %123 = vector.shape_cast %122 : vector<4x1x16x16xf32> to vector<4x16x16xf32>
    %124 = vector.shape_cast %123 : vector<4x16x16xf32> to vector<64x16xf32>
    %125 = arith.truncf %124 : vector<64x16xf32> to vector<64x16xbf16>
    %c0_17 = arith.constant 0 : index
    %c0_18 = arith.constant 0 : index
    %c0_19 = arith.constant 0 : index
    %126 = vector.load %arg4[%c0_17, %c0_18, %c0_19] : memref<3x16x48xbf16, #tpu.memory_space<vmem>>, vector<1x16x48xbf16>
    %127 = vector.shape_cast %126 : vector<1x16x48xbf16> to vector<16x48xbf16>
    %cst_20 = arith.constant dense<0.000000e+00> : vector<64x48xf32>
    %128 = tpu.matmul %125, %127, %cst_20 {dimension_numbers = #tpu.dot_dimension_numbers<[1], [0], [0], [1], [0, 0, 1, 1], [], []>} : vector<64x16xbf16>, vector<16x48xbf16>, vector<64x48xf32> -> vector<64x48xf32>
    %129 = arith.addf %121, %128 : vector<64x48xf32>
    %130 = vector.extract_strided_slice %120 {offsets = [0, 1, 0, 0], sizes = [4, 1, 16, 16], strides = [1, 1, 1, 1]} : vector<4x3x16x16xf32> to vector<4x1x16x16xf32>
    %131 = vector.shape_cast %130 : vector<4x1x16x16xf32> to vector<4x16x16xf32>
    %132 = vector.shape_cast %131 : vector<4x16x16xf32> to vector<64x16xf32>
    %133 = arith.truncf %132 : vector<64x16xf32> to vector<64x16xbf16>
    %c1 = arith.constant 1 : index
    %c0_21 = arith.constant 0 : index
    %c0_22 = arith.constant 0 : index
    %134 = vector.load %arg4[%c1, %c0_21, %c0_22] : memref<3x16x48xbf16, #tpu.memory_space<vmem>>, vector<1x16x48xbf16>
    %135 = vector.shape_cast %134 : vector<1x16x48xbf16> to vector<16x48xbf16>
    %cst_23 = arith.constant dense<0.000000e+00> : vector<64x48xf32>
    %136 = tpu.matmul %133, %135, %cst_23 {dimension_numbers = #tpu.dot_dimension_numbers<[1], [0], [0], [1], [0, 0, 1, 1], [], []>} : vector<64x16xbf16>, vector<16x48xbf16>, vector<64x48xf32> -> vector<64x48xf32>
    %137 = arith.addf %129, %136 : vector<64x48xf32>
    %138 = vector.extract_strided_slice %120 {offsets = [0, 2, 0, 0], sizes = [4, 1, 16, 16], strides = [1, 1, 1, 1]} : vector<4x3x16x16xf32> to vector<4x1x16x16xf32>
    %139 = vector.shape_cast %138 : vector<4x1x16x16xf32> to vector<4x16x16xf32>
    %140 = vector.shape_cast %139 : vector<4x16x16xf32> to vector<64x16xf32>
    %141 = arith.truncf %140 : vector<64x16xf32> to vector<64x16xbf16>
    %c2 = arith.constant 2 : index
    %c0_24 = arith.constant 0 : index
    %c0_25 = arith.constant 0 : index
    %142 = vector.load %arg4[%c2, %c0_24, %c0_25] : memref<3x16x48xbf16, #tpu.memory_space<vmem>>, vector<1x16x48xbf16>
    %143 = vector.shape_cast %142 : vector<1x16x48xbf16> to vector<16x48xbf16>
    %cst_26 = arith.constant dense<0.000000e+00> : vector<64x48xf32>
    %144 = tpu.matmul %141, %143, %cst_26 {dimension_numbers = #tpu.dot_dimension_numbers<[1], [0], [0], [1], [0, 0, 1, 1], [], []>} : vector<64x16xbf16>, vector<16x48xbf16>, vector<64x48xf32> -> vector<64x48xf32>
    %145 = arith.addf %137, %144 : vector<64x48xf32>
    %c0_27 = arith.constant 0 : index
    %c0_28 = arith.constant 0 : index
    %146 = vector.load %arg6[%c0_27, %c0_28] : memref<8x128xf32, #tpu.memory_space<vmem>>, vector<1x48xf32>
    %c1_29 = arith.constant 1 : index
    %c0_30 = arith.constant 0 : index
    %147 = vector.load %arg6[%c1_29, %c0_30] : memref<8x128xf32, #tpu.memory_space<vmem>>, vector<1x48xf32>
    %148 = arith.addf %1, %145 : vector<64x48xf32>
    %cst_31 = arith.constant dense<0.000000e+00> : vector<64xf32>
    %149 = vector.multi_reduction <add>, %148, %cst_31 [1] : vector<64x48xf32> to vector<64xf32>
    %150 = vector.shape_cast %149 : vector<64xf32> to vector<64x1xf32>
    %cst_32 = arith.constant 4.800000e+01 : f32
    %151 = vector.broadcast %cst_32 : f32 to vector<64x1xf32>
    %152 = arith.divf %150, %151 : vector<64x1xf32>
    %153 = vector.broadcast %152 : vector<64x1xf32> to vector<64x48xf32>
    %154 = arith.subf %148, %153 : vector<64x48xf32>
    %155 = arith.mulf %154, %154 : vector<64x48xf32>
    %cst_33 = arith.constant dense<0.000000e+00> : vector<64xf32>
    %156 = vector.multi_reduction <add>, %155, %cst_33 [1] : vector<64x48xf32> to vector<64xf32>
    %157 = vector.shape_cast %156 : vector<64xf32> to vector<64x1xf32>
    %cst_34 = arith.constant 4.800000e+01 : f32
    %158 = vector.broadcast %cst_34 : f32 to vector<64x1xf32>
    %159 = arith.divf %157, %158 : vector<64x1xf32>
    %cst_35 = arith.constant 9.99999974E-6 : f32
    %160 = vector.broadcast %cst_35 : f32 to vector<64x1xf32>
    %161 = arith.addf %159, %160 : vector<64x1xf32>
    %162 = math.rsqrt %161 : vector<64x1xf32>
    %163 = vector.broadcast %162 : vector<64x1xf32> to vector<64x48xf32>
    %164 = arith.mulf %154, %163 : vector<64x48xf32>
    %165 = vector.broadcast %146 : vector<1x48xf32> to vector<64x48xf32>
    %166 = arith.mulf %164, %165 : vector<64x48xf32>
    %167 = vector.broadcast %147 : vector<1x48xf32> to vector<64x48xf32>
    %168 = arith.addf %166, %167 : vector<64x48xf32>
    %c2_36 = arith.constant 2 : index
    %c0_37 = arith.constant 0 : index
    %169 = vector.load %arg6[%c2_36, %c0_37] : memref<8x128xf32, #tpu.memory_space<vmem>>, vector<1x128xf32>
    %c3 = arith.constant 3 : index
    %c0_38 = arith.constant 0 : index
    %170 = vector.load %arg6[%c3, %c0_38] : memref<8x128xf32, #tpu.memory_space<vmem>>, vector<1x128xf32>
    %c4 = arith.constant 4 : index
    %c0_39 = arith.constant 0 : index
    %171 = vector.load %arg6[%c4, %c0_39] : memref<8x128xf32, #tpu.memory_space<vmem>>, vector<1x48xf32>
    %c0_40 = arith.constant 0 : index
    %c0_41 = arith.constant 0 : index
    %172 = vector.load %arg5[%c0_40, %c0_41] : memref<304x128xbf16, #tpu.memory_space<vmem>>, vector<48x128xbf16>
    %c48 = arith.constant 48 : index
    %c0_42 = arith.constant 0 : index
    %173 = vector.load %arg5[%c48, %c0_42] : memref<304x128xbf16, #tpu.memory_space<vmem>>, vector<128x128xbf16>
    %c176 = arith.constant 176 : index
    %c0_43 = arith.constant 0 : index
    %174 = vector.load %arg5[%c176, %c0_43] : memref<304x128xbf16, #tpu.memory_space<vmem>>, vector<128x48xbf16>
    %175 = arith.truncf %168 : vector<64x48xf32> to vector<64x48xbf16>
    %cst_44 = arith.constant dense<0.000000e+00> : vector<64x128xf32>
    %176 = tpu.matmul %175, %172, %cst_44 {dimension_numbers = #tpu.dot_dimension_numbers<[1], [0], [0], [1], [0, 0, 1, 1], [], []>} : vector<64x48xbf16>, vector<48x128xbf16>, vector<64x128xf32> -> vector<64x128xf32>
    %177 = vector.broadcast %169 : vector<1x128xf32> to vector<64x128xf32>
    %178 = arith.addf %176, %177 : vector<64x128xf32>
    %cst_45 = arith.constant 0.000000e+00 : f32
    %179 = vector.broadcast %cst_45 : f32 to vector<64x128xf32>
    %180 = arith.maximumf %178, %179 : vector<64x128xf32>
    %181 = arith.truncf %180 : vector<64x128xf32> to vector<64x128xbf16>
    %cst_46 = arith.constant dense<0.000000e+00> : vector<64x128xf32>
    %182 = tpu.matmul %181, %173, %cst_46 {dimension_numbers = #tpu.dot_dimension_numbers<[1], [0], [0], [1], [0, 0, 1, 1], [], []>} : vector<64x128xbf16>, vector<128x128xbf16>, vector<64x128xf32> -> vector<64x128xf32>
    %183 = vector.broadcast %170 : vector<1x128xf32> to vector<64x128xf32>
    %184 = arith.addf %182, %183 : vector<64x128xf32>
    %cst_47 = arith.constant 0.000000e+00 : f32
    %185 = vector.broadcast %cst_47 : f32 to vector<64x128xf32>
    %186 = arith.maximumf %184, %185 : vector<64x128xf32>
    %187 = arith.truncf %186 : vector<64x128xf32> to vector<64x128xbf16>
    %cst_48 = arith.constant dense<0.000000e+00> : vector<64x48xf32>
    %188 = tpu.matmul %187, %174, %cst_48 {dimension_numbers = #tpu.dot_dimension_numbers<[1], [0], [0], [1], [0, 0, 1, 1], [], []>} : vector<64x128xbf16>, vector<128x48xbf16>, vector<64x48xf32> -> vector<64x48xf32>
    %189 = vector.broadcast %171 : vector<1x48xf32> to vector<64x48xf32>
    %190 = arith.addf %188, %189 : vector<64x48xf32>
    %c5 = arith.constant 5 : index
    %c0_49 = arith.constant 0 : index
    %191 = vector.load %arg6[%c5, %c0_49] : memref<8x128xf32, #tpu.memory_space<vmem>>, vector<1x48xf32>
    %c6 = arith.constant 6 : index
    %c0_50 = arith.constant 0 : index
    %192 = vector.load %arg6[%c6, %c0_50] : memref<8x128xf32, #tpu.memory_space<vmem>>, vector<1x48xf32>
    %193 = arith.addf %168, %190 : vector<64x48xf32>
    %cst_51 = arith.constant dense<0.000000e+00> : vector<64xf32>
    %194 = vector.multi_reduction <add>, %193, %cst_51 [1] : vector<64x48xf32> to vector<64xf32>
    %195 = vector.shape_cast %194 : vector<64xf32> to vector<64x1xf32>
    %cst_52 = arith.constant 4.800000e+01 : f32
    %196 = vector.broadcast %cst_52 : f32 to vector<64x1xf32>
    %197 = arith.divf %195, %196 : vector<64x1xf32>
    %198 = vector.broadcast %197 : vector<64x1xf32> to vector<64x48xf32>
    %199 = arith.subf %193, %198 : vector<64x48xf32>
    %200 = arith.mulf %199, %199 : vector<64x48xf32>
    %cst_53 = arith.constant dense<0.000000e+00> : vector<64xf32>
    %201 = vector.multi_reduction <add>, %200, %cst_53 [1] : vector<64x48xf32> to vector<64xf32>
    %202 = vector.shape_cast %201 : vector<64xf32> to vector<64x1xf32>
    %cst_54 = arith.constant 4.800000e+01 : f32
    %203 = vector.broadcast %cst_54 : f32 to vector<64x1xf32>
    %204 = arith.divf %202, %203 : vector<64x1xf32>
    %cst_55 = arith.constant 9.99999974E-6 : f32
    %205 = vector.broadcast %cst_55 : f32 to vector<64x1xf32>
    %206 = arith.addf %204, %205 : vector<64x1xf32>
    %207 = math.rsqrt %206 : vector<64x1xf32>
    %208 = vector.broadcast %207 : vector<64x1xf32> to vector<64x48xf32>
    %209 = arith.mulf %199, %208 : vector<64x48xf32>
    %210 = vector.broadcast %191 : vector<1x48xf32> to vector<64x48xf32>
    %211 = arith.mulf %209, %210 : vector<64x48xf32>
    %212 = vector.broadcast %192 : vector<1x48xf32> to vector<64x48xf32>
    %213 = arith.addf %211, %212 : vector<64x48xf32>
    %214 = vector.shape_cast %213 : vector<64x48xf32> to vector<4x16x48xf32>
    %c0_56 = arith.constant 0 : index
    %c0_57 = arith.constant 0 : index
    %c0_58 = arith.constant 0 : index
    %215 = vector.load %arg7[%c0_56, %c0_57, %c0_58] : memref<4x16x48xf32, #tpu.memory_space<vmem>>, vector<4x16x48xf32>
    tpu.vector_store %arg7[%c0_56, %c0_57, %c0_58], %214 {strides = array<i32>} : memref<4x16x48xf32, #tpu.memory_space<vmem>>, vector<4x16x48xf32>,
    return
  }
  func.func @transform_0(%arg0: i32) -> (i32, i32, i32) {
    %c0_i32 = arith.constant 0 : i32
    %c0_i32_0 = arith.constant 0 : i32
    %c0_i32_1 = arith.constant 0 : i32
    return %arg0, %c0_i32, %c0_i32_0 : i32, i32, i32
  }
  func.func @transform_1(%arg0: i32) -> (i32, i32, i32, i32) {
    %c0_i32 = arith.constant 0 : i32
    %c0_i32_0 = arith.constant 0 : i32
    %c0_i32_1 = arith.constant 0 : i32
    %c0_i32_2 = arith.constant 0 : i32
    return %arg0, %c0_i32, %c0_i32_0, %c0_i32_1 : i32, i32, i32, i32
  }
  func.func @transform_2(%arg0: i32) -> (i32, i32) {
    %c0_i32 = arith.constant 0 : i32
    %c0_i32_0 = arith.constant 0 : i32
    %c0_i32_1 = arith.constant 0 : i32
    return %c0_i32, %c0_i32_0 : i32, i32
  }
  func.func @transform_3(%arg0: i32) -> (i32, i32, i32) {
    %c0_i32 = arith.constant 0 : i32
    %c0_i32_0 = arith.constant 0 : i32
    %c0_i32_1 = arith.constant 0 : i32
    %c0_i32_2 = arith.constant 0 : i32
    return %c0_i32, %c0_i32_0, %c0_i32_1 : i32, i32, i32
  }
  func.func @transform_4(%arg0: i32) -> (i32, i32) {
    %c0_i32 = arith.constant 0 : i32
    %c0_i32_0 = arith.constant 0 : i32
    %c0_i32_1 = arith.constant 0 : i32
    return %c0_i32, %c0_i32_0 : i32, i32
  }
  func.func @transform_5(%arg0: i32) -> (i32, i32) {
    %c0_i32 = arith.constant 0 : i32
    %c0_i32_0 = arith.constant 0 : i32
    %c0_i32_1 = arith.constant 0 : i32
    return %c0_i32, %c0_i32_0 : i32, i32
  }
  func.func @transform_6(%arg0: i32) -> (i32, i32, i32) {
    %c0_i32 = arith.constant 0 : i32
    %c0_i32_0 = arith.constant 0 : i32
    %c0_i32_1 = arith.constant 0 : i32
    return %arg0, %c0_i32, %c0_i32_0 : i32, i32, i32
  }
}

</mosaic_0001>

<llo_original>
// kernel: tpu_custom_call.1
$region0: #{tpu_custom_call.1}
  #allocation0 [shape = 'u32[]', space=smem, size = 0x4, offset = 0x4, fixed_abs, tag = 'smem constant byte address 0x4 - core index']
  #allocation1 [shape = 'u32[144,128]{1,0:T(1,128)}', space=vmem, size = 0x12000, scoped, tag = 'internal scratch']
  %s0 = inlined_call_operand.hbm [shape: f32[8,16,48], index: 0, kind: input, shape index: {}]
  %s1 = inlined_call_operand.hbm [shape: f32[8,3,16,16], index: 1, kind: input, shape index: {}]
  %s2 = inlined_call_operand.hbm [shape: bf16[48,432], index: 2, kind: input, shape index: {}]
  %s3 = inlined_call_operand.hbm [shape: bf16[3,16,48], index: 3, kind: input, shape index: {}]
  %s4 = inlined_call_operand.hbm [shape: bf16[304,128], index: 4, kind: input, shape index: {}]
  %s5 = inlined_call_operand.vmem [shape: f32[8,128], index: 5, kind: input, shape index: {}]
  %s6 = inlined_call_operand.hbm [shape: f32[8,16,48], index: 6, kind: output, shape index: {}]
  %s7 = sld [smem:[#allocation0]]
  $region77: #{tpu_custom_call.1} parent=0
    _
  %s9 = ssub.s32 1, %s7
  %s10 = scalar_select 0, %s9, %s7
  $region1: #{tpu_custom_call.1} parent=0
    #allocation2 [shape = 'u8[65536]{0}', space=vmem, size = 0x10000, scoped, tag = 'input window, operand 0']
    #allocation3 [shape = 's32[2]{0}', space=sflag, size = 0x8, scoped, tag = 'scoped memory for tpu_custom_call.1']
    #allocation4 [shape = 's32[2]{0}', space=sflag, size = 0x8, scoped, tag = 'scoped memory for tpu_custom_call.1']
    #allocation5 [shape = 'u8[196608]{0}', space=vmem, size = 0x30000, scoped, tag = 'input window, operand 1']
    #allocation6 [shape = 's32[2]{0}', space=sflag, size = 0x8, scoped, tag = 'scoped memory for tpu_custom_call.1']
    #allocation7 [shape = 'u8[49152]{0}', space=vmem, size = 0xc000, scoped, tag = 'input window, operand 2, single buffered']
    #allocation8 [shape = 'u8[12288]{0}', space=vmem, size = 0x3000, scoped, tag = 'input window, operand 3, single buffered']
    #allocation9 [shape = 's32[1]{0}', space=sflag, size = 0x4, scoped, tag = 'scoped memory for tpu_custom_call.1']
    #allocation10 [shape = 'u8[77824]{0}', space=vmem, size = 0x13000, scoped, tag = 'input window, operand 4, single buffered']
    #allocation11 [shape = 'u8[65536]{0}', space=vmem, size = 0x10000, scoped, tag = 'output window, operand 0']
    %11 = vsyncpa [#allocation3], 0
    %s12 = scalar_lea.sflag [#allocation3], 1
    %13 = vsyncpa %s12, 0
    %14 = vsyncpa [#allocation6], 0
    %s15 = scalar_lea.sflag [#allocation6], 1
    %16 = vsyncpa %s15, 0
    %17 = vsyncpa [#allocation9], 0
    %18 = vsyncpa [#allocation4], 0
    %s19 = scalar_lea.sflag [#allocation4], 1
    %20 = vsyncpa %s19, 0
    loop: start=0, step=1, limit=4
    $region2: #{tpu_custom_call.1} parent=1 // loop_pre_header
      _
    $region3: #{tpu_custom_call.1} parent=1 // loop_header
      %s22 = sphi 0, %s26
      %p23 = scmp.ge.s32.totalorder %s22, 4
      %s32 = sphi 0, %s34
      %s35 = sphi 0, %s32
      %s36 = sphi 0, %s35
      %s52 = sphi 0, %s36
      %s58 = sphi 0, %s60
      %s61 = sphi 0, %s58
      %s62 = sphi 0, %s61
      %s78 = sphi 0, %s62
      %s82 = sphi 0, %s82
      %s84 = sphi 0, %s82
      %s85 = sphi 0, %s84
      %s99 = sphi 0, %s85
      %s103 = sphi 0, %s103
      %s105 = sphi 0, %s103
      %s106 = sphi 0, %s105
      %s120 = sphi 0, %s106
      %s124 = sphi 0, %s124
      %s126 = sphi 0, %s124
      %s127 = sphi 0, %s126
      %s141 = sphi 0, %s127
      %s145 = sphi 0, %s145
      %s147 = sphi 0, %s145
      %s148 = sphi 0, %s147
      %s162 = sphi 0, %s148
      %s168 = sphi 0, %s170
      %s171 = sphi 0, %s168
      %s172 = sphi 0, %s171
      %s188 = sphi 0, %s172
    $region4: #{tpu_custom_call.1} parent=1 // loop_header_branch
      %25 = sbr.rel (%p23) target = $region8
    $region5: #{tpu_custom_call.1} parent=1 // loop_body
      %s27 = ssub.s32 %s22, 1
      %s28 = ssub.s32 %s22, 2
      %s29 = sadd.s32 %s22, 1
      %s30 = ssub.s32 %s22, %s29
      %p31 = scmp.eq.s32.totalorder %s30, 0
      %s33 = sadd.s32 %s32, 1
      %s34 = scalar_select %p31, %s32, %s33
      %p37 = pneg %p31
      %p38 = scmp.eq.s32.totalorder %s22, 1
      %p39 = por %p37, %p38
      %p40 = scmp.ne.s32.totalorder %s32, %s35
      %p41 = scmp.eq.s32.totalorder %s22, 0
      %p42 = por %p40, %p41
      %p43 = scmp.ne.s32.totalorder %s32, %s35
      %p44 = scmp.eq.s32.totalorder %s27, 1
      %p45 = por %p43, %p44
      %p46 = scmp.ne.s32.totalorder %s35, %s36
      %p47 = scmp.eq.s32.totalorder %s27, 0
      %p48 = por %p46, %p47
      %p49 = scmp.ne.s32.totalorder %s35, %s36
      %p50 = scmp.eq.s32.totalorder %s28, 1
      %p51 = por %p49, %p50
      %p53 = scmp.ne.s32.totalorder %s36, %s52
      %p54 = scmp.eq.s32.totalorder %s28, 0
      %p55 = por %p53, %p54
      %s56 = ssub.s32 %s22, %s29
      %p57 = scmp.eq.s32.totalorder %s56, 0
      %s59 = sadd.s32 %s58, 1
      %s60 = scalar_select %p57, %s58, %s59
      %p63 = pneg %p57
      %p64 = scmp.eq.s32.totalorder %s22, 1
      %p65 = por %p63, %p64
      %p66 = scmp.ne.s32.totalorder %s58, %s61
      %p67 = scmp.eq.s32.totalorder %s22, 0
      %p68 = por %p66, %p67
      %p69 = scmp.ne.s32.totalorder %s58, %s61
      %p70 = scmp.eq.s32.totalorder %s27, 1
      %p71 = por %p69, %p70
      %p72 = scmp.ne.s32.totalorder %s61, %s62
      %p73 = scmp.eq.s32.totalorder %s27, 0
      %p74 = por %p72, %p73
      %p75 = scmp.ne.s32.totalorder %s61, %s62
      %p76 = scmp.eq.s32.totalorder %s28, 1
      %p77 = por %p75, %p76
      %p79 = scmp.ne.s32.totalorder %s62, %s78
      %p80 = scmp.eq.s32.totalorder %s28, 0
      %p81 = por %p79, %p80
      %s83 = sadd.s32 %s82, 1
      %p86 = scmp.eq.s32.totalorder %s22, 1
      %p87 = scmp.ne.s32.totalorder %s82, %s84
      %p88 = scmp.eq.s32.totalorder %s22, 0
      %p89 = por %p87, %p88
      %p90 = scmp.ne.s32.totalorder %s82, %s84
      %p91 = scmp.eq.s32.totalorder %s27, 1
      %p92 = por %p90, %p91
      %p93 = scmp.ne.s32.totalorder %s84, %s85
      %p94 = scmp.eq.s32.totalorder %s27, 0
      %p95 = por %p93, %p94
      %p96 = scmp.ne.s32.totalorder %s84, %s85
      %p97 = scmp.eq.s32.totalorder %s28, 1
      %p98 = por %p96, %p97
      %p100 = scmp.ne.s32.totalorder %s85, %s99
      %p101 = scmp.eq.s32.totalorder %s28, 0
      %p102 = por %p100, %p101
      %s104 = sadd.s32 %s103, 1
      %p107 = scmp.eq.s32.totalorder %s22, 1
      %p108 = scmp.ne.s32.totalorder %s103, %s105
      %p109 = scmp.eq.s32.totalorder %s22, 0
      %p110 = por %p108, %p109
      %p111 = scmp.ne.s32.totalorder %s103, %s105
      %p112 = scmp.eq.s32.totalorder %s27, 1
      %p113 = por %p111, %p112
      %p114 = scmp.ne.s32.totalorder %s105, %s106
      %p115 = scmp.eq.s32.totalorder %s27, 0
      %p116 = por %p114, %p115
      %p117 = scmp.ne.s32.totalorder %s105, %s106
      %p118 = scmp.eq.s32.totalorder %s28, 1
      %p119 = por %p117, %p118
      %p121 = scmp.ne.s32.totalorder %s106, %s120
      %p122 = scmp.eq.s32.totalorder %s28, 0
      %p123 = por %p121, %p122
      %s125 = sadd.s32 %s124, 1
      %p128 = scmp.eq.s32.totalorder %s22, 1
      %p129 = scmp.ne.s32.totalorder %s124, %s126
      %p130 = scmp.eq.s32.totalorder %s22, 0
      %p131 = por %p129, %p130
      %p132 = scmp.ne.s32.totalorder %s124, %s126
      %p133 = scmp.eq.s32.totalorder %s27, 1
      %p134 = por %p132, %p133
      %p135 = scmp.ne.s32.totalorder %s126, %s127
      %p136 = scmp.eq.s32.totalorder %s27, 0
      %p137 = por %p135, %p136
      %p138 = scmp.ne.s32.totalorder %s126, %s127
      %p139 = scmp.eq.s32.totalorder %s28, 1
      %p140 = por %p138, %p139
      %p142 = scmp.ne.s32.totalorder %s127, %s141
      %p143 = scmp.eq.s32.totalorder %s28, 0
      %p144 = por %p142, %p143
      %s146 = sadd.s32 %s145, 1
      %p149 = scmp.eq.s32.totalorder %s22, 1
      %p150 = scmp.ne.s32.totalorder %s145, %s147
      %p151 = scmp.eq.s32.totalorder %s22, 0
      %p152 = por %p150, %p151
      %p153 = scmp.ne.s32.totalorder %s145, %s147
      %p154 = scmp.eq.s32.totalorder %s27, 1
      %p155 = por %p153, %p154
      %p156 = scmp.ne.s32.totalorder %s147, %s148
      %p157 = scmp.eq.s32.totalorder %s27, 0
      %p158 = por %p156, %p157
      %p159 = scmp.ne.s32.totalorder %s147, %s148
      %p160 = scmp.eq.s32.totalorder %s28, 1
      %p161 = por %p159, %p160
      %p163 = scmp.ne.s32.totalorder %s148, %s162
      %p164 = scmp.eq.s32.totalorder %s28, 0
      %p165 = por %p163, %p164
      %s166 = ssub.s32 %s22, %s29
      %p167 = scmp.eq.s32.totalorder %s166, 0
      %s169 = sadd.s32 %s168, 1
      %s170 = scalar_select %p167, %s168, %s169
      %p173 = pneg %p167
      %p174 = scmp.eq.s32.totalorder %s22, 1
      %p175 = por %p173, %p174
      %p176 = scmp.ne.s32.totalorder %s168, %s171
      %p177 = scmp.eq.s32.totalorder %s22, 0
      %p178 = por %p176, %p177
      %p179 = scmp.ne.s32.totalorder %s168, %s171
      %p180 = scmp.eq.s32.totalorder %s27, 1
      %p181 = por %p179, %p180
      %p182 = scmp.ne.s32.totalorder %s171, %s172
      %p183 = scmp.eq.s32.totalorder %s27, 0
      %p184 = por %p182, %p183
      %p185 = scmp.ne.s32.totalorder %s171, %s172
      %p186 = scmp.eq.s32.totalorder %s28, 1
      %p187 = por %p185, %p186
      %p189 = scmp.ne.s32.totalorder %s172, %s188
      %p190 = scmp.eq.s32.totalorder %s28, 0
      %p191 = por %p189, %p190
      %p192 = scmp.le.s32.totalorder 1, %s22
      %p193 = scmp.lt.s32.totalorder %s22, 3
      %p194 = pnand %p192, %p193
      %p195 = pneg %p194
      // Predicated region
      $region9: #{tpu_custom_call.1} parent=5 // pred_check
        _
      $region10: #{tpu_custom_call.1} parent=5 // pred_check_branch
        %197 = sbr.rel (%p194) target = $region12
      $region11: #{tpu_custom_call.1} parent=5 // pred_region
        %s198 = ssub.s32 %s22, 1
        // Predicated region
        $region13: #{tpu_custom_call.1} parent=11 // pred_check
          %p199 = pneg %p95
        $region14: #{tpu_custom_call.1} parent=11 // pred_check_branch
          %201 = sbr.rel (%p199) target = $region16
        $region15: #{tpu_custom_call.1} parent=11 // pred_region
          %s203 = ssub.s32 1536, 1536
          %204 = vsyncadd [#allocation6], %s203
          %s205 = sshll.u32 [#allocation7], 4
          %s206 = int_to_ptr.vmem [resolvable:$true] %s205
          %211 = dma.hbm_to_vmem [thread:$0]  %s2, 1536, %s206, [#allocation6], 256, 256, 16
        $region16: #{tpu_custom_call.1} parent=11 // pred_fallthru
          _
        // Predicated region
        $region17: #{tpu_custom_call.1} parent=11 // pred_check
          %p212 = pneg %p116
        $region18: #{tpu_custom_call.1} parent=11 // pred_check_branch
          %214 = sbr.rel (%p212) target = $region20
        $region19: #{tpu_custom_call.1} parent=11 // pred_region
          %s216 = ssub.s32 384, 384
          %217 = vsyncadd [#allocation9], %s216
          %s218 = sshll.u32 [#allocation8], 4
          %s219 = int_to_ptr.vmem [resolvable:$true] %s218
          %224 = dma.hbm_to_vmem [thread:$0]  %s3, 384, %s219, [#allocation9], 64, 64, 4
        $region20: #{tpu_custom_call.1} parent=11 // pred_fallthru
          _
        // Predicated region
        $region21: #{tpu_custom_call.1} parent=11 // pred_check
          %p225 = pneg %p137
        $region22: #{tpu_custom_call.1} parent=11 // pred_check_branch
          %227 = sbr.rel (%p225) target = $region24
        $region23: #{tpu_custom_call.1} parent=11 // pred_region
          %s229 = ssub.s32 2432, 2432
          %230 = vsyncadd [#allocation9], %s229
          %s231 = sshll.u32 [#allocation10], 4
          %s232 = int_to_ptr.vmem [resolvable:$true] %s231
          %237 = dma.hbm_to_vmem [thread:$0]  %s4, 2432, %s232, [#allocation9], 64, 64, 4
        $region24: #{tpu_custom_call.1} parent=11 // pred_fallthru
          _
        // Predicated region
        $region25: #{tpu_custom_call.1} parent=11 // pred_check
          %p238 = pneg %p158
        $region26: #{tpu_custom_call.1} parent=11 // pred_check_branch
          %240 = sbr.rel (%p238) target = $region28
        $region27: #{tpu_custom_call.1} parent=11 // pred_region
          _
        $region28: #{tpu_custom_call.1} parent=11 // pred_fallthru
          _
      $region12: #{tpu_custom_call.1} parent=5 // pred_fallthru
        _
      %p241 = scmp.lt.s32.totalorder %s22, 2
      // Predicated region
      $region29: #{tpu_custom_call.1} parent=5 // pred_check
        %p242 = pneg %p241
      $region30: #{tpu_custom_call.1} parent=5 // pred_check_branch
        %244 = sbr.rel (%p242) target = $region32
      $region31: #{tpu_custom_call.1} parent=5 // pred_region
        // Predicated region
        $region33: #{tpu_custom_call.1} parent=31 // pred_check
          %p245 = pneg %p42
        $region34: #{tpu_custom_call.1} parent=31 // pred_check_branch
          %247 = sbr.rel (%p245) target = $region36
        $region35: #{tpu_custom_call.1} parent=31 // pred_region
          %s248 = sand.u32 %s32, 1
          %s249 = scalar_lea.sflag [#allocation3], %s248
          %s250 = sand.u32 %s32, 1
          %s251 = smul.addr %s250, 64
          %s252 = scalar_lea.vmem [#allocation2], %s251
          %s253 = smul.u32 4, %s22
          %s255 = ssub.s32 1024, 1024
          %256 = vsyncadd %s249, %s255
          %s257 = smul.addr %s253, 2
          %s258 = smul.addr %s257, 128
          %s259 = scalar_lea.hbm %s0, %s258
          %s260 = sshll.u32 %s252, 4
          %s261 = int_to_ptr.vmem [resolvable:$true] %s260
          %266 = dma.hbm_to_vmem [thread:$0]  %s259, 1024, %s261, %s249, 128, 128, 8
        $region36: #{tpu_custom_call.1} parent=31 // pred_fallthru
          _
        // Predicated region
        $region37: #{tpu_custom_call.1} parent=31 // pred_check
          %p267 = pneg %p68
        $region38: #{tpu_custom_call.1} parent=31 // pred_check_branch
          %269 = sbr.rel (%p267) target = $region40
        $region39: #{tpu_custom_call.1} parent=31 // pred_region
          %s270 = sand.u32 %s22, 1
          %s271 = scalar_lea.sflag [#allocation6], %s270
          %s272 = sand.u32 %s58, 1
          %s273 = smul.addr %s272, 192
          %s274 = scalar_lea.vmem [#allocation5], %s273
          %s275 = smul.u32 4, %s22
          %s277 = ssub.s32 3072, 3072
          %278 = vsyncadd %s271, %s277
          %s279 = smul.addr %s275, 6
          %s280 = smul.addr %s279, 128
          %s281 = scalar_lea.hbm %s1, %s280
          %s282 = sshll.u32 %s274, 4
          %s283 = int_to_ptr.vmem [resolvable:$true] %s282
          %288 = dma.hbm_to_vmem [thread:$0]  %s281, 3072, %s283, %s271, 128, 128, 8
        $region40: #{tpu_custom_call.1} parent=31 // pred_fallthru
          _
      $region32: #{tpu_custom_call.1} parent=5 // pred_fallthru
        _
      %p289 = scmp.le.s32.totalorder 1, %s22
      %p290 = scmp.lt.s32.totalorder %s22, 3
      %p291 = pnand %p289, %p290
      %p292 = pneg %p291
      // Predicated region
      $region41: #{tpu_custom_call.1} parent=5 // pred_check
        _
      $region42: #{tpu_custom_call.1} parent=5 // pred_check_branch
        %294 = sbr.rel (%p291) target = $region44
      $region43: #{tpu_custom_call.1} parent=5 // pred_region
        %s295 = ssub.s32 %s22, 1
        %s296 = sand.u32 %s35, 1
        %s297 = scalar_lea.sflag [#allocation3], %s296
        %s298 = sand.u32 %s35, 1
        %s299 = smul.addr %s298, 64
        %s300 = scalar_lea.vmem [#allocation2], %s299
        // Predicated region
        $region45: #{tpu_custom_call.1} parent=43 // pred_check
          %p301 = pneg %p48
        $region46: #{tpu_custom_call.1} parent=43 // pred_check_branch
          %303 = sbr.rel (%p301) target = $region48
        $region47: #{tpu_custom_call.1} parent=43 // pred_region
          %304 = dma.done %s297, 1024
        $region48: #{tpu_custom_call.1} parent=43 // pred_fallthru
          _
        %s305 = sand.u32 %s27, 1
        %s306 = scalar_lea.sflag [#allocation6], %s305
        %s307 = sand.u32 %s61, 1
        %s308 = smul.addr %s307, 192
        %s309 = scalar_lea.vmem [#allocation5], %s308
        // Predicated region
        $region49: #{tpu_custom_call.1} parent=43 // pred_check
          %p310 = pneg %p74
        $region50: #{tpu_custom_call.1} parent=43 // pred_check_branch
          %312 = sbr.rel (%p310) target = $region52
        $region51: #{tpu_custom_call.1} parent=43 // pred_region
          %313 = dma.done %s306, 3072
        $region52: #{tpu_custom_call.1} parent=43 // pred_fallthru
          _
        // Predicated region
        $region53: #{tpu_custom_call.1} parent=43 // pred_check
          %p314 = pneg %p95
        $region54: #{tpu_custom_call.1} parent=43 // pred_check_branch
          %316 = sbr.rel (%p314) target = $region56
        $region55: #{tpu_custom_call.1} parent=43 // pred_region
          %317 = dma.done [#allocation6], 1536
        $region56: #{tpu_custom_call.1} parent=43 // pred_fallthru
          _
        // Predicated region
        $region57: #{tpu_custom_call.1} parent=43 // pred_check
          %p318 = pneg %p116
        $region58: #{tpu_custom_call.1} parent=43 // pred_check_branch
          %320 = sbr.rel (%p318) target = $region60
        $region59: #{tpu_custom_call.1} parent=43 // pred_region
          %321 = dma.done [#allocation9], 384
        $region60: #{tpu_custom_call.1} parent=43 // pred_fallthru
          _
        // Predicated region
        $region61: #{tpu_custom_call.1} parent=43 // pred_check
          %p322 = pneg %p137
        $region62: #{tpu_custom_call.1} parent=43 // pred_check_branch
          %324 = sbr.rel (%p322) target = $region64
        $region63: #{tpu_custom_call.1} parent=43 // pred_region
          %325 = dma.done [#allocation9], 2432
        $region64: #{tpu_custom_call.1} parent=43 // pred_fallthru
          _
        %s326 = sand.u32 %s35, 1
        %s327 = scalar_lea.sflag [#allocation3], %s326
        %s328 = sand.u32 %s35, 1
        %s329 = smul.addr %s328, 64
        %s330 = scalar_lea.vmem [#allocation2], %s329
        %p331 = pneg %p48
        %p332 = pneg %p45
        %s333 = sand.u32 %s27, 1
        %s334 = scalar_lea.sflag [#allocation6], %s333
        %s335 = sand.u32 %s61, 1
        %s336 = smul.addr %s335, 192
        %s337 = scalar_lea.vmem [#allocation5], %s336
        %p338 = pneg %p74
        %p339 = pneg %p71
        %p340 = pneg %p95
        %p341 = pneg %p92
        %p342 = pneg %p116
        %p343 = pneg %p113
        %p344 = pneg %p137
        %p345 = pneg %p134
        %p346 = pneg %p158
        %p347 = pneg %p155
        %p348 = pneg %p184
        %p349 = pneg %p181
        %s350 = sand.u32 %s171, 1
        %s351 = scalar_lea.sflag [#allocation4], %s350
        %s352 = sand.u32 %s171, 1
        %s353 = smul.addr %s352, 64
        %s354 = scalar_lea.vmem [#allocation11], %s353
        %s355 = smul.u32 4, %s27
        %s356 = smul.u32 4, %s27
        %s357 = smul.u32 4, %s27
        %v359 = vld [vmem:[%s300] sm:$0xff]
        %v360 = vld [vmem:[%s300 + $0x8] sm:$0xff]
        %v361 = vld [vmem:[%s300 + $0x10] sm:$0xff]
        %v362 = vld [vmem:[%s300 + $0x18] sm:$0xff]
        %v363 = vld [vmem:[%s300 + $0x20] sm:$0xff]
        %v364 = vld [vmem:[%s300 + $0x28] sm:$0xff]
        %v365 = vld [vmem:[%s300 + $0x30] sm:$0xff]
        %v366 = vld [vmem:[%s300 + $0x38] sm:$0xff]
        %v367 = vpack.c.bf16 %v360, %v359
        %v368 = vpack.c.bf16 %v362, %v361
        %v369 = vpack.c.bf16 %v364, %v363
        %v370 = vpack.c.bf16 %v366, %v365
        %v371 = vld [vmem:[#allocation7] sm:$0xff]
        %v372 = vld [vmem:[#allocation7 + $0x8] sm:$0xff]
        %v373 = vld [vmem:[#allocation7 + $0x10] sm:$0xff]
        %v374 = vld [vmem:[#allocation7 + $0x18] sm:$0xff]
        %v375 = vld [vmem:[#allocation7 + $0x20] sm:$0xff]
        %v376 = vld [vmem:[#allocation7 + $0x28] sm:$0xff]
        %v377 = vld [vmem:[#allocation7 + $0x30] sm:$0xff]
        %v378 = vld [vmem:[#allocation7 + $0x38] sm:$0xff]
        %v379 = vld [vmem:[#allocation7 + $0x40] sm:$0xff]
        %v380 = vld [vmem:[#allocation7 + $0x48] sm:$0xff]
        %v381 = vld [vmem:[#allocation7 + $0x50] sm:$0xff]
        %v382 = vld [vmem:[#allocation7 + $0x58] sm:$0xff]
        %v395 = vunpack.c.l.b16 %v371
        %v396 = vunpack.c.h.b16 %v371
        %v397 = vunpack.c.l.b16 %v372
        %v398 = vunpack.c.h.b16 %v372
        %v399 = vunpack.c.l.b16 %v373
        %v400 = vunpack.c.h.b16 %v373
        %v401 = vunpack.c.l.b16 %v374
        %v402 = vunpack.c.h.b16 %v374
        %v403 = vunpack.c.l.b16 %v375
        %v404 = vunpack.c.h.b16 %v375
        %v405 = vunpack.c.l.b16 %v376
        %v406 = vunpack.c.h.b16 %v376
        %v407 = vunpack.c.l.b16 %v377
        %v408 = vunpack.c.h.b16 %v377
        %v409 = vunpack.c.l.b16 %v378
        %v410 = vunpack.c.h.b16 %v378
        %v411 = vunpack.c.l.b16 %v379
        %v412 = vunpack.c.h.b16 %v379
        %v413 = vunpack.c.l.b16 %v380
        %v414 = vunpack.c.h.b16 %v380
        %v415 = vunpack.c.l.b16 %v381
        %v416 = vunpack.c.h.b16 %v381
        %v417 = vunpack.c.l.b16 %v382
        %v418 = vunpack.c.h.b16 %v382
        %v419 = vpack.c.b16 %v399, %v395
        %v420 = vpack.c.b16 %v400, %v396
        %v421 = vpack.c.b16 %v401, %v397
        %v422 = vpack.c.b16 %v402, %v398
        %v423 = vpack.c.b16 %v407, %v403
        %v424 = vpack.c.b16 %v408, %v404
        %v425 = vpack.c.b16 %v409, %v405
        %v426 = vpack.c.b16 %v410, %v406
        %v427 = vpack.c.b16 %v415, %v411
        %v428 = vpack.c.b16 %v416, %v412
        %v429 = vpack.c.b16 %v417, %v413
        %v430 = vpack.c.b16 %v418, %v414
        %vm443 = vcmask 392192
        %v445 = vsel %vm443, %v367, 0
        %v448 = vsel %vm443, %v368, 0
        %v451 = vsel %vm443, %v369, 0
        %v454 = vsel %vm443, %v370, 0
        %456 = vmatprep.subr.bf16.mxu0 %v420
        %457 = vmatpush1.bf16.msra.mxu0 %v419
        %458 = vmatprep.subr.bf16.mxu0 %v424
        %459 = vmatpush1.bf16.msra.mxu0 %v423
        %460 = vmatprep.subr.bf16.mxu0 %v428
        %461 = vmatpush1.bf16.msra.mxu0 %v427
        %462 = vmatprep.subr.bf16.mxu0 0
        %463 = vmatpush1.bf16.msra.mxu0 0
        %464 = vmatprep.subr.bf16.mxu0 0
        %465 = vmatpush1.bf16.msra.mxu0 0
        %466 = vmatprep.subr.bf16.mxu0 0
        %467 = vmatpush1.bf16.msra.mxu0 0
        %468 = vmatprep.subr.bf16.mxu0 0
        %469 = vmatpush1.bf16.msra.mxu0 0
        %470 = vmatprep.subr.bf16.mxu0 0
        %471 = vmatpush1.bf16.msra.mxu0 0
        %472 = vmatprep.subr.bf16.mxu0 0
        %473 = vmatpush1.bf16.msra.mxu0 0
        %474 = vmatprep.subr.bf16.mxu0 0
        %475 = vmatpush1.bf16.msra.mxu0 0
        %476 = vmatprep.subr.bf16.mxu0 0
        %477 = vmatpush1.bf16.msra.mxu0 0
        %478 = vmatprep.subr.bf16.mxu0 0
        %479 = vmatpush1.bf16.msra.mxu0 0
        %480 = vmatprep.subr.bf16.mxu0 0
        %481 = vmatpush1.bf16.msra.mxu0 0
        %482 = vmatprep.subr.bf16.mxu0 0
        %483 = vmatpush1.bf16.msra.mxu0 0
        %484 = vmatprep.subr.bf16.mxu0 0
        %485 = vmatpush1.bf16.msra.mxu0 0
        %486 = vmatprep.subr.bf16.mxu0 0
        %487 = vmatpush1.bf16.msra.mxu0 0
        %488 = vmatprep.mubr.bf16.mxu0 0
        %489 = vmatmul.mubr.bf16.gmra.mrb[0].mxu0 %v445
        %v490 = vpop.f32.mrb[0].mxu0
        %v491 = vadd.f32 0.0, %v490
        %v492 = vpop.f32.mrb[0].mxu0
        %v493 = vadd.f32 0.0, %v492
        %v494 = vpop.f32.mrb[0].mxu0
        %v495 = vadd.f32 0.0, %v494
        %v496 = vpop.f32.mrb[0].mxu0
        %v497 = vadd.f32 0.0, %v496
        %498 = vmatprep.mubr.bf16.mxu0 0
        %499 = vmatmul.mubr.bf16.gmra.mrb[0].mxu0 %v448
        %v500 = vpop.f32.mrb[0].mxu0
        %v501 = vadd.f32 0.0, %v500
        %v502 = vpop.f32.mrb[0].mxu0
        %v503 = vadd.f32 0.0, %v502
        %v504 = vpop.f32.mrb[0].mxu0
        %v505 = vadd.f32 0.0, %v504
        %v506 = vpop.f32.mrb[0].mxu0
        %v507 = vadd.f32 0.0, %v506
        %508 = vmatprep.mubr.bf16.mxu0 0
        %509 = vmatmul.mubr.bf16.gmra.mrb[0].mxu0 %v451
        %v510 = vpop.f32.mrb[0].mxu0
        %v511 = vadd.f32 0.0, %v510
        %v512 = vpop.f32.mrb[0].mxu0
        %v513 = vadd.f32 0.0, %v512
        %v514 = vpop.f32.mrb[0].mxu0
        %v515 = vadd.f32 0.0, %v514
        %v516 = vpop.f32.mrb[0].mxu0
        %v517 = vadd.f32 0.0, %v516
        %518 = vmatprep.mubr.bf16.mxu0 0
        %519 = vmatmul.mubr.bf16.gmra.mrb[0].mxu0 %v454
        %v520 = vpop.f32.mrb[0].mxu0
        %v521 = vadd.f32 0.0, %v520
        %v522 = vpop.f32.mrb[0].mxu0
        %v523 = vadd.f32 0.0, %v522
        %v524 = vpop.f32.mrb[0].mxu0
        %v525 = vadd.f32 0.0, %v524
        %v526 = vpop.f32.mrb[0].mxu0
        %v527 = vadd.f32 0.0, %v526
        %528 = vdwg.mxu0
        %529 = vmatprep.subr.bf16.mxu0 %v422
        %530 = vmatpush1.bf16.msra.mxu0 %v421
        %531 = vmatprep.subr.bf16.mxu0 %v426
        %532 = vmatpush1.bf16.msra.mxu0 %v425
        %533 = vmatprep.subr.bf16.mxu0 %v430
        %534 = vmatpush1.bf16.msra.mxu0 %v429
        %535 = vmatprep.subr.bf16.mxu0 0
        %536 = vmatpush1.bf16.msra.mxu0 0
        %537 = vmatprep.subr.bf16.mxu0 0
        %538 = vmatpush1.bf16.msra.mxu0 0
        %539 = vmatprep.subr.bf16.mxu0 0
        %540 = vmatpush1.bf16.msra.mxu0 0
        %541 = vmatprep.subr.bf16.mxu0 0
        %542 = vmatpush1.bf16.msra.mxu0 0
        %543 = vmatprep.subr.bf16.mxu0 0
        %544 = vmatpush1.bf16.msra.mxu0 0
        %545 = vmatprep.subr.bf16.mxu0 0
        %546 = vmatpush1.bf16.msra.mxu0 0
        %547 = vmatprep.subr.bf16.mxu0 0
        %548 = vmatpush1.bf16.msra.mxu0 0
        %549 = vmatprep.subr.bf16.mxu0 0
        %550 = vmatpush1.bf16.msra.mxu0 0
        %551 = vmatprep.subr.bf16.mxu0 0
        %552 = vmatpush1.bf16.msra.mxu0 0
        %553 = vmatprep.subr.bf16.mxu0 0
        %554 = vmatpush1.bf16.msra.mxu0 0
        %555 = vmatprep.subr.bf16.mxu0 0
        %556 = vmatpush1.bf16.msra.mxu0 0
        %557 = vmatprep.subr.bf16.mxu0 0
        %558 = vmatpush1.bf16.msra.mxu0 0
        %559 = vmatprep.subr.bf16.mxu0 0
        %560 = vmatpush1.bf16.msra.mxu0 0
        %561 = vmatprep.mubr.bf16.mxu0 0
        %562 = vmatmul.mubr.bf16.gmra.mrb[0].mxu0 %v445
        %v563 = vpop.f32.mrb[0].mxu0
        %v564 = vadd.f32 0.0, %v563
        %v565 = vpop.f32.mrb[0].mxu0
        %v566 = vadd.f32 0.0, %v565
        %v567 = vpop.f32.mrb[0].mxu0
        %v568 = vadd.f32 0.0, %v567
        %v569 = vpop.f32.mrb[0].mxu0
        %v570 = vadd.f32 0.0, %v569
        %571 = vmatprep.mubr.bf16.mxu0 0
        %572 = vmatmul.mubr.bf16.gmra.mrb[0].mxu0 %v448
        %v573 = vpop.f32.mrb[0].mxu0
        %v574 = vadd.f32 0.0, %v573
        %v575 = vpop.f32.mrb[0].mxu0
        %v576 = vadd.f32 0.0, %v575
        %v577 = vpop.f32.mrb[0].mxu0
        %v578 = vadd.f32 0.0, %v577
        %v579 = vpop.f32.mrb[0].mxu0
        %v580 = vadd.f32 0.0, %v579
        %581 = vmatprep.mubr.bf16.mxu0 0
        %582 = vmatmul.mubr.bf16.gmra.mrb[0].mxu0 %v451
        %v583 = vpop.f32.mrb[0].mxu0
        %v584 = vadd.f32 0.0, %v583
        %v585 = vpop.f32.mrb[0].mxu0
        %v586 = vadd.f32 0.0, %v585
        %v587 = vpop.f32.mrb[0].mxu0
        %v588 = vadd.f32 0.0, %v587
        %v589 = vpop.f32.mrb[0].mxu0
        %v590 = vadd.f32 0.0, %v589
        %591 = vmatprep.mubr.bf16.mxu0 0
        %592 = vmatmul.mubr.bf16.gmra.mrb[0].mxu0 %v454
        %v593 = vpop.f32.mrb[0].mxu0
        %v594 = vadd.f32 0.0, %v593
        %v595 = vpop.f32.mrb[0].mxu0
        %v596 = vadd.f32 0.0, %v595
        %v597 = vpop.f32.mrb[0].mxu0
        %v598 = vadd.f32 0.0, %v597
        %v599 = vpop.f32.mrb[0].mxu0
        %v600 = vadd.f32 0.0, %v599
        %601 = vdwg.mxu0
        %610 = vrot.lane.b32.xlu0 %v491, 112
        %v611 = vpop.permute.xlu0 %610
        %612 = vrot.lane.b32.xlu0 %v495, 112
        %v613 = vpop.permute.xlu0 %612
        %614 = vrot.lane.b32.xlu0 %v501, 112
        %v615 = vpop.permute.xlu0 %614
        %616 = vrot.lane.b32.xlu0 %v505, 112
        %v617 = vpop.permute.xlu0 %616
        %618 = vrot.lane.b32.xlu0 %v511, 112
        %v619 = vpop.permute.xlu0 %618
        %620 = vrot.lane.b32.xlu0 %v515, 112
        %v621 = vpop.permute.xlu0 %620
        %622 = vrot.lane.b32.xlu0 %v521, 112
        %v623 = vpop.permute.xlu0 %622
        %624 = vrot.lane.b32.xlu0 %v525, 112
        %v625 = vpop.permute.xlu0 %624
        %634 = vrot.lane.b32.xlu0 %v491, 96
        %v635 = vpop.permute.xlu0 %634
        %636 = vrot.lane.b32.xlu0 %v495, 96
        %v637 = vpop.permute.xlu0 %636
        %638 = vrot.lane.b32.xlu0 %v501, 96
        %v639 = vpop.permute.xlu0 %638
        %640 = vrot.lane.b32.xlu0 %v505, 96
        %v641 = vpop.permute.xlu0 %640
        %642 = vrot.lane.b32.xlu0 %v511, 96
        %v643 = vpop.permute.xlu0 %642
        %644 = vrot.lane.b32.xlu0 %v515, 96
        %v645 = vpop.permute.xlu0 %644
        %646 = vrot.lane.b32.xlu0 %v521, 96
        %v647 = vpop.permute.xlu0 %646
        %648 = vrot.lane.b32.xlu0 %v525, 96
        %v649 = vpop.permute.xlu0 %648
        %658 = vrot.lane.b32.xlu0 %v491, 80
        %v659 = vpop.permute.xlu0 %658
        %660 = vrot.lane.b32.xlu0 %v495, 80
        %v661 = vpop.permute.xlu0 %660
        %662 = vrot.lane.b32.xlu0 %v501, 80
        %v663 = vpop.permute.xlu0 %662
        %664 = vrot.lane.b32.xlu0 %v505, 80
        %v665 = vpop.permute.xlu0 %664
        %666 = vrot.lane.b32.xlu0 %v511, 80
        %v667 = vpop.permute.xlu0 %666
        %668 = vrot.lane.b32.xlu0 %v515, 80
        %v669 = vpop.permute.xlu0 %668
        %670 = vrot.lane.b32.xlu0 %v521, 80
        %v671 = vpop.permute.xlu0 %670
        %672 = vrot.lane.b32.xlu0 %v525, 80
        %v673 = vpop.permute.xlu0 %672
        %682 = vrot.lane.b32.xlu0 %v491, 64
        %v683 = vpop.permute.xlu0 %682
        %684 = vrot.lane.b32.xlu0 %v495, 64
        %v685 = vpop.permute.xlu0 %684
        %686 = vrot.lane.b32.xlu0 %v501, 64
        %v687 = vpop.permute.xlu0 %686
        %688 = vrot.lane.b32.xlu0 %v505, 64
        %v689 = vpop.permute.xlu0 %688
        %690 = vrot.lane.b32.xlu0 %v511, 64
        %v691 = vpop.permute.xlu0 %690
        %692 = vrot.lane.b32.xlu0 %v515, 64
        %v693 = vpop.permute.xlu0 %692
        %694 = vrot.lane.b32.xlu0 %v521, 64
        %v695 = vpop.permute.xlu0 %694
        %696 = vrot.lane.b32.xlu0 %v525, 64
        %v697 = vpop.permute.xlu0 %696
        %706 = vrot.lane.b32.xlu0 %v491, 48
        %v707 = vpop.permute.xlu0 %706
        %708 = vrot.lane.b32.xlu0 %v495, 48
        %v709 = vpop.permute.xlu0 %708
        %710 = vrot.lane.b32.xlu0 %v501, 48
        %v711 = vpop.permute.xlu0 %710
        %712 = vrot.lane.b32.xlu0 %v505, 48
        %v713 = vpop.permute.xlu0 %712
        %714 = vrot.lane.b32.xlu0 %v511, 48
        %v715 = vpop.permute.xlu0 %714
        %716 = vrot.lane.b32.xlu0 %v515, 48
        %v717 = vpop.permute.xlu0 %716
        %718 = vrot.lane.b32.xlu0 %v521, 48
        %v719 = vpop.permute.xlu0 %718
        %720 = vrot.lane.b32.xlu0 %v525, 48
        %v721 = vpop.permute.xlu0 %720
        %730 = vrot.lane.b32.xlu0 %v491, 32
        %v731 = vpop.permute.xlu0 %730
        %732 = vrot.lane.b32.xlu0 %v495, 32
        %v733 = vpop.permute.xlu0 %732
        %734 = vrot.lane.b32.xlu0 %v501, 32
        %v735 = vpop.permute.xlu0 %734
        %736 = vrot.lane.b32.xlu0 %v505, 32
        %v737 = vpop.permute.xlu0 %736
        %738 = vrot.lane.b32.xlu0 %v511, 32
        %v739 = vpop.permute.xlu0 %738
        %740 = vrot.lane.b32.xlu0 %v515, 32
        %v741 = vpop.permute.xlu0 %740
        %742 = vrot.lane.b32.xlu0 %v521, 32
        %v743 = vpop.permute.xlu0 %742
        %744 = vrot.lane.b32.xlu0 %v525, 32
        %v745 = vpop.permute.xlu0 %744
        %754 = vrot.lane.b32.xlu0 %v491, 16
        %v755 = vpop.permute.xlu0 %754
        %756 = vrot.lane.b32.xlu0 %v495, 16
        %v757 = vpop.permute.xlu0 %756
        %758 = vrot.lane.b32.xlu0 %v501, 16
        %v759 = vpop.permute.xlu0 %758
        %760 = vrot.lane.b32.xlu0 %v505, 16
        %v761 = vpop.permute.xlu0 %760
        %762 = vrot.lane.b32.xlu0 %v511, 16
        %v763 = vpop.permute.xlu0 %762
        %764 = vrot.lane.b32.xlu0 %v515, 16
        %v765 = vpop.permute.xlu0 %764
        %766 = vrot.lane.b32.xlu0 %v521, 16
        %v767 = vpop.permute.xlu0 %766
        %768 = vrot.lane.b32.xlu0 %v525, 16
        %v769 = vpop.permute.xlu0 %768
        %786 = vrot.lane.b32.xlu0 %v493, 112
        %v787 = vpop.permute.xlu0 %786
        %788 = vrot.lane.b32.xlu0 %v497, 112
        %v789 = vpop.permute.xlu0 %788
        %790 = vrot.lane.b32.xlu0 %v503, 112
        %v791 = vpop.permute.xlu0 %790
        %792 = vrot.lane.b32.xlu0 %v507, 112
        %v793 = vpop.permute.xlu0 %792
        %794 = vrot.lane.b32.xlu0 %v513, 112
        %v795 = vpop.permute.xlu0 %794
        %796 = vrot.lane.b32.xlu0 %v517, 112
        %v797 = vpop.permute.xlu0 %796
        %798 = vrot.lane.b32.xlu0 %v523, 112
        %v799 = vpop.permute.xlu0 %798
        %800 = vrot.lane.b32.xlu0 %v527, 112
        %v801 = vpop.permute.xlu0 %800
        %810 = vrot.lane.b32.xlu0 %v493, 96
        %v811 = vpop.permute.xlu0 %810
        %812 = vrot.lane.b32.xlu0 %v497, 96
        %v813 = vpop.permute.xlu0 %812
        %814 = vrot.lane.b32.xlu0 %v503, 96
        %v815 = vpop.permute.xlu0 %814
        %816 = vrot.lane.b32.xlu0 %v507, 96
        %v817 = vpop.permute.xlu0 %816
        %818 = vrot.lane.b32.xlu0 %v513, 96
        %v819 = vpop.permute.xlu0 %818
        %820 = vrot.lane.b32.xlu0 %v517, 96
        %v821 = vpop.permute.xlu0 %820
        %822 = vrot.lane.b32.xlu0 %v523, 96
        %v823 = vpop.permute.xlu0 %822
        %824 = vrot.lane.b32.xlu0 %v527, 96
        %v825 = vpop.permute.xlu0 %824
        %834 = vrot.lane.b32.xlu0 %v493, 80
        %v835 = vpop.permute.xlu0 %834
        %836 = vrot.lane.b32.xlu0 %v497, 80
        %v837 = vpop.permute.xlu0 %836
        %838 = vrot.lane.b32.xlu0 %v503, 80
        %v839 = vpop.permute.xlu0 %838
        %840 = vrot.lane.b32.xlu0 %v507, 80
        %v841 = vpop.permute.xlu0 %840
        %842 = vrot.lane.b32.xlu0 %v513, 80
        %v843 = vpop.permute.xlu0 %842
        %844 = vrot.lane.b32.xlu0 %v517, 80
        %v845 = vpop.permute.xlu0 %844
        %846 = vrot.lane.b32.xlu0 %v523, 80
        %v847 = vpop.permute.xlu0 %846
        %848 = vrot.lane.b32.xlu0 %v527, 80
        %v849 = vpop.permute.xlu0 %848
        %858 = vrot.lane.b32.xlu0 %v493, 64
        %v859 = vpop.permute.xlu0 %858
        %860 = vrot.lane.b32.xlu0 %v497, 64
        %v861 = vpop.permute.xlu0 %860
        %862 = vrot.lane.b32.xlu0 %v503, 64
        %v863 = vpop.permute.xlu0 %862
        %864 = vrot.lane.b32.xlu0 %v507, 64
        %v865 = vpop.permute.xlu0 %864
        %866 = vrot.lane.b32.xlu0 %v513, 64
        %v867 = vpop.permute.xlu0 %866
        %868 = vrot.lane.b32.xlu0 %v517, 64
        %v869 = vpop.permute.xlu0 %868
        %870 = vrot.lane.b32.xlu0 %v523, 64
        %v871 = vpop.permute.xlu0 %870
        %872 = vrot.lane.b32.xlu0 %v527, 64
        %v873 = vpop.permute.xlu0 %872
        %882 = vrot.lane.b32.xlu0 %v493, 48
        %v883 = vpop.permute.xlu0 %882
        %884 = vrot.lane.b32.xlu0 %v497, 48
        %v885 = vpop.permute.xlu0 %884
        %886 = vrot.lane.b32.xlu0 %v503, 48
        %v887 = vpop.permute.xlu0 %886
        %888 = vrot.lane.b32.xlu0 %v507, 48
        %v889 = vpop.permute.xlu0 %888
        %890 = vrot.lane.b32.xlu0 %v513, 48
        %v891 = vpop.permute.xlu0 %890
        %892 = vrot.lane.b32.xlu0 %v517, 48
        %v893 = vpop.permute.xlu0 %892
        %894 = vrot.lane.b32.xlu0 %v523, 48
        %v895 = vpop.permute.xlu0 %894
        %896 = vrot.lane.b32.xlu0 %v527, 48
        %v897 = vpop.permute.xlu0 %896
        %906 = vrot.lane.b32.xlu0 %v493, 32
        %v907 = vpop.permute.xlu0 %906
        %908 = vrot.lane.b32.xlu0 %v497, 32
        %v909 = vpop.permute.xlu0 %908
        %910 = vrot.lane.b32.xlu0 %v503, 32
        %v911 = vpop.permute.xlu0 %910
        %912 = vrot.lane.b32.xlu0 %v507, 32
        %v913 = vpop.permute.xlu0 %912
        %914 = vrot.lane.b32.xlu0 %v513, 32
        %v915 = vpop.permute.xlu0 %914
        %916 = vrot.lane.b32.xlu0 %v517, 32
        %v917 = vpop.permute.xlu0 %916
        %918 = vrot.lane.b32.xlu0 %v523, 32
        %v919 = vpop.permute.xlu0 %918
        %920 = vrot.lane.b32.xlu0 %v527, 32
        %v921 = vpop.permute.xlu0 %920
        %938 = vrot.lane.b32.xlu0 %v564, 16
        %v939 = vpop.permute.xlu0 %938
        %940 = vrot.lane.b32.xlu0 %v568, 16
        %v941 = vpop.permute.xlu0 %940
        %942 = vrot.lane.b32.xlu0 %v574, 16
        %v943 = vpop.permute.xlu0 %942
        %944 = vrot.lane.b32.xlu0 %v578, 16
        %v945 = vpop.permute.xlu0 %944
        %946 = vrot.lane.b32.xlu0 %v584, 16
        %v947 = vpop.permute.xlu0 %946
        %948 = vrot.lane.b32.xlu0 %v588, 16
        %v949 = vpop.permute.xlu0 %948
        %950 = vrot.lane.b32.xlu0 %v594, 16
        %v951 = vpop.permute.xlu0 %950
        %952 = vrot.lane.b32.xlu0 %v598, 16
        %v953 = vpop.permute.xlu0 %952
        %962 = vrot.lane.b32.xlu0 %v564, 112
        %v963 = vpop.permute.xlu0 %962
        %964 = vrot.lane.b32.xlu0 %v568, 112
        %v965 = vpop.permute.xlu0 %964
        %966 = vrot.lane.b32.xlu0 %v574, 112
        %v967 = vpop.permute.xlu0 %966
        %968 = vrot.lane.b32.xlu0 %v578, 112
        %v969 = vpop.permute.xlu0 %968
        %970 = vrot.lane.b32.xlu0 %v584, 112
        %v971 = vpop.permute.xlu0 %970
        %972 = vrot.lane.b32.xlu0 %v588, 112
        %v973 = vpop.permute.xlu0 %972
        %974 = vrot.lane.b32.xlu0 %v594, 112
        %v975 = vpop.permute.xlu0 %974
        %976 = vrot.lane.b32.xlu0 %v598, 112
        %v977 = vpop.permute.xlu0 %976
        %986 = vrot.lane.b32.xlu0 %v564, 96
        %v987 = vpop.permute.xlu0 %986
        %988 = vrot.lane.b32.xlu0 %v568, 96
        %v989 = vpop.permute.xlu0 %988
        %990 = vrot.lane.b32.xlu0 %v574, 96
        %v991 = vpop.permute.xlu0 %990
        %992 = vrot.lane.b32.xlu0 %v578, 96
        %v993 = vpop.permute.xlu0 %992
        %994 = vrot.lane.b32.xlu0 %v584, 96
        %v995 = vpop.permute.xlu0 %994
        %996 = vrot.lane.b32.xlu0 %v588, 96
        %v997 = vpop.permute.xlu0 %996
        %998 = vrot.lane.b32.xlu0 %v594, 96
        %v999 = vpop.permute.xlu0 %998
        %1000 = vrot.lane.b32.xlu0 %v598, 96
        %v1001 = vpop.permute.xlu0 %1000
        %1010 = vrot.lane.b32.xlu0 %v564, 80
        %v1011 = vpop.permute.xlu0 %1010
        %1012 = vrot.lane.b32.xlu0 %v568, 80
        %v1013 = vpop.permute.xlu0 %1012
        %1014 = vrot.lane.b32.xlu0 %v574, 80
        %v1015 = vpop.permute.xlu0 %1014
        %1016 = vrot.lane.b32.xlu0 %v578, 80
        %v1017 = vpop.permute.xlu0 %1016
        %1018 = vrot.lane.b32.xlu0 %v584, 80
        %v1019 = vpop.permute.xlu0 %1018
        %1020 = vrot.lane.b32.xlu0 %v588, 80
        %v1021 = vpop.permute.xlu0 %1020
        %1022 = vrot.lane.b32.xlu0 %v594, 80
        %v1023 = vpop.permute.xlu0 %1022
        %1024 = vrot.lane.b32.xlu0 %v598, 80
        %v1025 = vpop.permute.xlu0 %1024
        %1034 = vrot.lane.b32.xlu0 %v564, 64
        %v1035 = vpop.permute.xlu0 %1034
        %1036 = vrot.lane.b32.xlu0 %v568, 64
        %v1037 = vpop.permute.xlu0 %1036
        %1038 = vrot.lane.b32.xlu0 %v574, 64
        %v1039 = vpop.permute.xlu0 %1038
        %1040 = vrot.lane.b32.xlu0 %v578, 64
        %v1041 = vpop.permute.xlu0 %1040
        %1042 = vrot.lane.b32.xlu0 %v584, 64
        %v1043 = vpop.permute.xlu0 %1042
        %1044 = vrot.lane.b32.xlu0 %v588, 64
        %v1045 = vpop.permute.xlu0 %1044
        %1046 = vrot.lane.b32.xlu0 %v594, 64
        %v1047 = vpop.permute.xlu0 %1046
        %1048 = vrot.lane.b32.xlu0 %v598, 64
        %v1049 = vpop.permute.xlu0 %1048
        %1058 = vrot.lane.b32.xlu0 %v564, 48
        %v1059 = vpop.permute.xlu0 %1058
        %1060 = vrot.lane.b32.xlu0 %v568, 48
        %v1061 = vpop.permute.xlu0 %1060
        %1062 = vrot.lane.b32.xlu0 %v574, 48
        %v1063 = vpop.permute.xlu0 %1062
        %1064 = vrot.lane.b32.xlu0 %v578, 48
        %v1065 = vpop.permute.xlu0 %1064
        %1066 = vrot.lane.b32.xlu0 %v584, 48
        %v1067 = vpop.permute.xlu0 %1066
        %1068 = vrot.lane.b32.xlu0 %v588, 48
        %v1069 = vpop.permute.xlu0 %1068
        %1070 = vrot.lane.b32.xlu0 %v594, 48
        %v1071 = vpop.permute.xlu0 %1070
        %1072 = vrot.lane.b32.xlu0 %v598, 48
        %v1073 = vpop.permute.xlu0 %1072
        %1090 = vrot.lane.b32.xlu0 %v566, 32
        %v1091 = vpop.permute.xlu0 %1090
        %1092 = vrot.lane.b32.xlu0 %v570, 32
        %v1093 = vpop.permute.xlu0 %1092
        %1094 = vrot.lane.b32.xlu0 %v576, 32
        %v1095 = vpop.permute.xlu0 %1094
        %1096 = vrot.lane.b32.xlu0 %v580, 32
        %v1097 = vpop.permute.xlu0 %1096
        %1098 = vrot.lane.b32.xlu0 %v586, 32
        %v1099 = vpop.permute.xlu0 %1098
        %1100 = vrot.lane.b32.xlu0 %v590, 32
        %v1101 = vpop.permute.xlu0 %1100
        %1102 = vrot.lane.b32.xlu0 %v596, 32
        %v1103 = vpop.permute.xlu0 %1102
        %1104 = vrot.lane.b32.xlu0 %v600, 32
        %v1105 = vpop.permute.xlu0 %1104
        %1114 = vrot.lane.b32.xlu0 %v566, 16
        %v1115 = vpop.permute.xlu0 %1114
        %1116 = vrot.lane.b32.xlu0 %v570, 16
        %v1117 = vpop.permute.xlu0 %1116
        %1118 = vrot.lane.b32.xlu0 %v576, 16
        %v1119 = vpop.permute.xlu0 %1118
        %1120 = vrot.lane.b32.xlu0 %v580, 16
        %v1121 = vpop.permute.xlu0 %1120
        %1122 = vrot.lane.b32.xlu0 %v586, 16
        %v1123 = vpop.permute.xlu0 %1122
        %1124 = vrot.lane.b32.xlu0 %v590, 16
        %v1125 = vpop.permute.xlu0 %1124
        %1126 = vrot.lane.b32.xlu0 %v596, 16
        %v1127 = vpop.permute.xlu0 %1126
        %1128 = vrot.lane.b32.xlu0 %v600, 16
        %v1129 = vpop.permute.xlu0 %1128
        %v1138 = vpack.c.bf16 %v495, %v491
        %v1139 = vpack.c.bf16 %v613, %v611
        %v1140 = vpack.c.bf16 %v637, %v635
        %v1141 = vpack.c.bf16 %v661, %v659
        %v1142 = vpack.c.bf16 %v685, %v683
        %v1143 = vpack.c.bf16 %v709, %v707
        %v1144 = vpack.c.bf16 %v733, %v731
        %v1145 = vpack.c.bf16 %v757, %v755
        %v1146 = vpack.c.bf16 %v497, %v493
        %v1147 = vpack.c.bf16 %v505, %v501
        %v1148 = vpack.c.bf16 %v617, %v615
        %v1149 = vpack.c.bf16 %v641, %v639
        %v1150 = vpack.c.bf16 %v665, %v663
        %v1151 = vpack.c.bf16 %v689, %v687
        %v1152 = vpack.c.bf16 %v713, %v711
        %v1153 = vpack.c.bf16 %v737, %v735
        %v1154 = vpack.c.bf16 %v761, %v759
        %v1155 = vpack.c.bf16 %v507, %v503
        %v1156 = vpack.c.bf16 %v515, %v511
        %v1157 = vpack.c.bf16 %v621, %v619
        %v1158 = vpack.c.bf16 %v645, %v643
        %v1159 = vpack.c.bf16 %v669, %v667
        %v1160 = vpack.c.bf16 %v693, %v691
        %v1161 = vpack.c.bf16 %v717, %v715
        %v1162 = vpack.c.bf16 %v741, %v739
        %v1163 = vpack.c.bf16 %v765, %v763
        %v1164 = vpack.c.bf16 %v517, %v513
        %v1165 = vpack.c.bf16 %v525, %v521
        %v1166 = vpack.c.bf16 %v625, %v623
        %v1167 = vpack.c.bf16 %v649, %v647
        %v1168 = vpack.c.bf16 %v673, %v671
        %v1169 = vpack.c.bf16 %v697, %v695
        %v1170 = vpack.c.bf16 %v721, %v719
        %v1171 = vpack.c.bf16 %v745, %v743
        %v1172 = vpack.c.bf16 %v769, %v767
        %v1173 = vpack.c.bf16 %v527, %v523
        %v1174 = vpack.c.bf16 %v789, %v787
        %v1175 = vpack.c.bf16 %v813, %v811
        %v1176 = vpack.c.bf16 %v837, %v835
        %v1177 = vpack.c.bf16 %v861, %v859
        %v1178 = vpack.c.bf16 %v885, %v883
        %v1179 = vpack.c.bf16 %v909, %v907
        %v1180 = vpack.c.bf16 %v941, %v939
        %v1181 = vpack.c.bf16 %v568, %v564
        %v1182 = vpack.c.bf16 %v793, %v791
        %v1183 = vpack.c.bf16 %v817, %v815
        %v1184 = vpack.c.bf16 %v841, %v839
        %v1185 = vpack.c.bf16 %v865, %v863
        %v1186 = vpack.c.bf16 %v889, %v887
        %v1187 = vpack.c.bf16 %v913, %v911
        %v1188 = vpack.c.bf16 %v945, %v943
        %v1189 = vpack.c.bf16 %v578, %v574
        %v1190 = vpack.c.bf16 %v797, %v795
        %v1191 = vpack.c.bf16 %v821, %v819
        %v1192 = vpack.c.bf16 %v845, %v843
        %v1193 = vpack.c.bf16 %v869, %v867
        %v1194 = vpack.c.bf16 %v893, %v891
        %v1195 = vpack.c.bf16 %v917, %v915
        %v1196 = vpack.c.bf16 %v949, %v947
        %v1197 = vpack.c.bf16 %v588, %v584
        %v1198 = vpack.c.bf16 %v801, %v799
        %v1199 = vpack.c.bf16 %v825, %v823
        %v1200 = vpack.c.bf16 %v849, %v847
        %v1201 = vpack.c.bf16 %v873, %v871
        %v1202 = vpack.c.bf16 %v897, %v895
        %v1203 = vpack.c.bf16 %v921, %v919
        %v1204 = vpack.c.bf16 %v953, %v951
        %v1205 = vpack.c.bf16 %v598, %v594
        %1207 = vrot.lane.b32.xlu0 %v1146, 112
        %v1208 = vpop.permute.xlu0 %1207
        %vm1209 = vcmask 130048
        %v1211 = vsel %vm1209, %v1138, 0
        %v1214 = vsel %vm1209, %v1208, 0
        %1216 = vmatprep.subr.bf16.mxu0 0
        %1217 = vmatpush1.bf16.xpose.msra.mxu0 %v1214
        %1218 = vmatprep.subr.bf16.mxu0 0
        %1219 = vmatpush1.bf16.xpose.msra.mxu0 0
        %1220 = vmatprep.subr.bf16.mxu0 0
        %1221 = vmatpush1.bf16.xpose.msra.mxu0 0
        %1222 = vmatprep.subr.bf16.mxu0 0
        %1223 = vmatpush1.bf16.xpose.msra.mxu0 0
        %1224 = vmatprep.subr.bf16.mxu0 0
        %1225 = vmatpush1.bf16.xpose.msra.mxu0 0
        %1226 = vmatprep.subr.bf16.mxu0 0
        %1227 = vmatpush1.bf16.xpose.msra.mxu0 0
        %1228 = vmatprep.subr.bf16.mxu0 0
        %1229 = vmatpush1.bf16.xpose.msra.mxu0 0
        %1230 = vmatprep.subr.bf16.mxu0 0
        %1231 = vmatpush1.bf16.xpose.msra.mxu0 0
        %1232 = vmatprep.subr.bf16.mxu0 0
        %1233 = vmatpush1.bf16.xpose.msra.mxu0 0
        %1234 = vmatprep.subr.bf16.mxu0 0
        %1235 = vmatpush1.bf16.xpose.msra.mxu0 0
        %1236 = vmatprep.subr.bf16.mxu0 0
        %1237 = vmatpush1.bf16.xpose.msra.mxu0 0
        %1238 = vmatprep.subr.bf16.mxu0 0
        %1239 = vmatpush1.bf16.xpose.msra.mxu0 0
        %1240 = vmatprep.subr.bf16.mxu0 0
        %1241 = vmatpush1.bf16.xpose.msra.mxu0 0
        %1242 = vmatprep.subr.bf16.mxu0 0
        %1243 = vmatpush1.bf16.xpose.msra.mxu0 0
        %1244 = vmatprep.subr.bf16.mxu0 0
        %1245 = vmatpush1.bf16.xpose.msra.mxu0 0
        %1246 = vmatprep.subr.bf16.mxu0 0
        %1247 = vmatpush1.bf16.xpose.msra.mxu0 0
        %1248 = vmatprep.mubr.bf16.mxu0 0
        %1249 = vmatmul.mubr.bf16.gmra.mrb[0].mxu0 %v1211
        %v1250 = vpop.f32.mrb[0].mxu0
        %v1251 = vadd.f32 0.0, %v1250
        %v1252 = vpop.f32.mrb[0].mxu0
        %v1253 = vpop.f32.mrb[0].mxu0
        %v1254 = vadd.f32 0.0, %v1253
        %v1255 = vpop.f32.mrb[0].mxu0
        %1256 = vdwg.mxu0
        %1258 = vrot.lane.b32.xlu0 %v1174, 112
        %v1259 = vpop.permute.xlu0 %1258
        %v1261 = vsel %vm1209, %v1139, 0
        %v1264 = vsel %vm1209, %v1259, 0
        %1266 = vmatprep.subr.bf16.mxu0 0
        %1267 = vmatpush1.bf16.xpose.msra.mxu0 %v1264
        %1268 = vmatprep.subr.bf16.mxu0 0
        %1269 = vmatpush1.bf16.xpose.msra.mxu0 0
        %1270 = vmatprep.subr.bf16.mxu0 0
        %1271 = vmatpush1.bf16.xpose.msra.mxu0 0
        %1272 = vmatprep.subr.bf16.mxu0 0
        %1273 = vmatpush1.bf16.xpose.msra.mxu0 0
        %1274 = vmatprep.subr.bf16.mxu0 0
        %1275 = vmatpush1.bf16.xpose.msra.mxu0 0
        %1276 = vmatprep.subr.bf16.mxu0 0
        %1277 = vmatpush1.bf16.xpose.msra.mxu0 0
        %1278 = vmatprep.subr.bf16.mxu0 0
        %1279 = vmatpush1.bf16.xpose.msra.mxu0 0
        %1280 = vmatprep.subr.bf16.mxu0 0
        %1281 = vmatpush1.bf16.xpose.msra.mxu0 0
        %1282 = vmatprep.subr.bf16.mxu0 0
        %1283 = vmatpush1.bf16.xpose.msra.mxu0 0
        %1284 = vmatprep.subr.bf16.mxu0 0
        %1285 = vmatpush1.bf16.xpose.msra.mxu0 0
        %1286 = vmatprep.subr.bf16.mxu0 0
        %1287 = vmatpush1.bf16.xpose.msra.mxu0 0
        %1288 = vmatprep.subr.bf16.mxu0 0
        %1289 = vmatpush1.bf16.xpose.msra.mxu0 0
        %1290 = vmatprep.subr.bf16.mxu0 0
        %1291 = vmatpush1.bf16.xpose.msra.mxu0 0
        %1292 = vmatprep.subr.bf16.mxu0 0
        %1293 = vmatpush1.bf16.xpose.msra.mxu0 0
        %1294 = vmatprep.subr.bf16.mxu0 0
        %1295 = vmatpush1.bf16.xpose.msra.mxu0 0
        %1296 = vmatprep.subr.bf16.mxu0 0
        %1297 = vmatpush1.bf16.xpose.msra.mxu0 0
        %1298 = vmatprep.mubr.bf16.mxu0 0
        %1299 = vmatmul.mubr.bf16.gmra.mrb[0].mxu0 %v1261
        %v1300 = vpop.f32.mrb[0].mxu0
        %v1301 = vadd.f32 0.0, %v1300
        %v1302 = vpop.f32.mrb[0].mxu0
        %v1303 = vpop.f32.mrb[0].mxu0
        %v1304 = vadd.f32 0.0, %v1303
        %v1305 = vpop.f32.mrb[0].mxu0
        %1306 = vdwg.mxu0
        %1308 = vrot.lane.b32.xlu0 %v1175, 112
        %v1309 = vpop.permute.xlu0 %1308
        %v1311 = vsel %vm1209, %v1140, 0
        %v1314 = vsel %vm1209, %v1309, 0
        %1316 = vmatprep.subr.bf16.mxu0 0
        %1317 = vmatpush1.bf16.xpose.msra.mxu0 %v1314
        %1318 = vmatprep.subr.bf16.mxu0 0
        %1319 = vmatpush1.bf16.xpose.msra.mxu0 0
        %1320 = vmatprep.subr.bf16.mxu0 0
        %1321 = vmatpush1.bf16.xpose.msra.mxu0 0
        %1322 = vmatprep.subr.bf16.mxu0 0
        %1323 = vmatpush1.bf16.xpose.msra.mxu0 0
        %1324 = vmatprep.subr.bf16.mxu0 0
        %1325 = vmatpush1.bf16.xpose.msra.mxu0 0
        %1326 = vmatprep.subr.bf16.mxu0 0
        %1327 = vmatpush1.bf16.xpose.msra.mxu0 0
        %1328 = vmatprep.subr.bf16.mxu0 0
        %1329 = vmatpush1.bf16.xpose.msra.mxu0 0
        %1330 = vmatprep.subr.bf16.mxu0 0
        %1331 = vmatpush1.bf16.xpose.msra.mxu0 0
        %1332 = vmatprep.subr.bf16.mxu0 0
        %1333 = vmatpush1.bf16.xpose.msra.mxu0 0
        %1334 = vmatprep.subr.bf16.mxu0 0
        %1335 = vmatpush1.bf16.xpose.msra.mxu0 0
        %1336 = vmatprep.subr.bf16.mxu0 0
        %1337 = vmatpush1.bf16.xpose.msra.mxu0 0
        %1338 = vmatprep.subr.bf16.mxu0 0
        %1339 = vmatpush1.bf16.xpose.msra.mxu0 0
        %1340 = vmatprep.subr.bf16.mxu0 0
        %1341 = vmatpush1.bf16.xpose.msra.mxu0 0
        %1342 = vmatprep.subr.bf16.mxu0 0
        %1343 = vmatpush1.bf16.xpose.msra.mxu0 0
        %1344 = vmatprep.subr.bf16.mxu0 0
        %1345 = vmatpush1.bf16.xpose.msra.mxu0 0
        %1346 = vmatprep.subr.bf16.mxu0 0
        %1347 = vmatpush1.bf16.xpose.msra.mxu0 0
        %1348 = vmatprep.mubr.bf16.mxu0 0
        %1349 = vmatmul.mubr.bf16.gmra.mrb[0].mxu0 %v1311
        %v1350 = vpop.f32.mrb[0].mxu0
        %v1351 = vadd.f32 0.0, %v1350
        %v1352 = vpop.f32.mrb[0].mxu0
        %v1353 = vpop.f32.mrb[0].mxu0
        %v1354 = vadd.f32 0.0, %v1353
        %v1355 = vpop.f32.mrb[0].mxu0
        %1356 = vdwg.mxu0
        %1358 = vrot.lane.b32.xlu0 %v1176, 112
        %v1359 = vpop.permute.xlu0 %1358
        %v1361 = vsel %vm1209, %v1141, 0
        %v1364 = vsel %vm1209, %v1359, 0
        %1366 = vmatprep.subr.bf16.mxu0 0
        %1367 = vmatpush1.bf16.xpose.msra.mxu0 %v1364
        %1368 = vmatprep.subr.bf16.mxu0 0
        %1369 = vmatpush1.bf16.xpose.msra.mxu0 0
        %1370 = vmatprep.subr.bf16.mxu0 0
        %1371 = vmatpush1.bf16.xpose.msra.mxu0 0
        %1372 = vmatprep.subr.bf16.mxu0 0
        %1373 = vmatpush1.bf16.xpose.msra.mxu0 0
        %1374 = vmatprep.subr.bf16.mxu0 0
        %1375 = vmatpush1.bf16.xpose.msra.mxu0 0
        %1376 = vmatprep.subr.bf16.mxu0 0
        %1377 = vmatpush1.bf16.xpose.msra.mxu0 0
        %1378 = vmatprep.subr.bf16.mxu0 0
        %1379 = vmatpush1.bf16.xpose.msra.mxu0 0
        %1380 = vmatprep.subr.bf16.mxu0 0
        %1381 = vmatpush1.bf16.xpose.msra.mxu0 0
        %1382 = vmatprep.subr.bf16.mxu0 0
        %1383 = vmatpush1.bf16.xpose.msra.mxu0 0
        %1384 = vmatprep.subr.bf16.mxu0 0
        %1385 = vmatpush1.bf16.xpose.msra.mxu0 0
        %1386 = vmatprep.subr.bf16.mxu0 0
        %1387 = vmatpush1.bf16.xpose.msra.mxu0 0
        %1388 = vmatprep.subr.bf16.mxu0 0
        %1389 = vmatpush1.bf16.xpose.msra.mxu0 0
        %1390 = vmatprep.subr.bf16.mxu0 0
        %1391 = vmatpush1.bf16.xpose.msra.mxu0 0
        %1392 = vmatprep.subr.bf16.mxu0 0
        %1393 = vmatpush1.bf16.xpose.msra.mxu0 0
        %1394 = vmatprep.subr.bf16.mxu0 0
        %1395 = vmatpush1.bf16.xpose.msra.mxu0 0
        %1396 = vmatprep.subr.bf16.mxu0 0
        %1397 = vmatpush1.bf16.xpose.msra.mxu0 0
        %1398 = vmatprep.mubr.bf16.mxu0 0
        %1399 = vmatmul.mubr.bf16.gmra.mrb[0].mxu0 %v1361
        %v1400 = vpop.f32.mrb[0].mxu0
        %v1401 = vadd.f32 0.0, %v1400
        %v1402 = vpop.f32.mrb[0].mxu0
        %v1403 = vpop.f32.mrb[0].mxu0
        %v1404 = vadd.f32 0.0, %v1403
        %v1405 = vpop.f32.mrb[0].mxu0
        %1406 = vdwg.mxu0
        %1408 = vrot.lane.b32.xlu0 %v1177, 112
        %v1409 = vpop.permute.xlu0 %1408
        %v1411 = vsel %vm1209, %v1142, 0
        %v1414 = vsel %vm1209, %v1409, 0
        %1416 = vmatprep.subr.bf16.mxu0 0
        %1417 = vmatpush1.bf16.xpose.msra.mxu0 %v1414
        %1418 = vmatprep.subr.bf16.mxu0 0
        %1419 = vmatpush1.bf16.xpose.msra.mxu0 0
        %1420 = vmatprep.subr.bf16.mxu0 0
        %1421 = vmatpush1.bf16.xpose.msra.mxu0 0
        %1422 = vmatprep.subr.bf16.mxu0 0
        %1423 = vmatpush1.bf16.xpose.msra.mxu0 0
        %1424 = vmatprep.subr.bf16.mxu0 0
        %1425 = vmatpush1.bf16.xpose.msra.mxu0 0
        %1426 = vmatprep.subr.bf16.mxu0 0
        %1427 = vmatpush1.bf16.xpose.msra.mxu0 0
        %1428 = vmatprep.subr.bf16.mxu0 0
        %1429 = vmatpush1.bf16.xpose.msra.mxu0 0
        %1430 = vmatprep.subr.bf16.mxu0 0
        %1431 = vmatpush1.bf16.xpose.msra.mxu0 0
        %1432 = vmatprep.subr.bf16.mxu0 0
        %1433 = vmatpush1.bf16.xpose.msra.mxu0 0
        %1434 = vmatprep.subr.bf16.mxu0 0
        %1435 = vmatpush1.bf16.xpose.msra.mxu0 0
        %1436 = vmatprep.subr.bf16.mxu0 0
        %1437 = vmatpush1.bf16.xpose.msra.mxu0 0
        %1438 = vmatprep.subr.bf16.mxu0 0
        %1439 = vmatpush1.bf16.xpose.msra.mxu0 0
        %1440 = vmatprep.subr.bf16.mxu0 0
        %1441 = vmatpush1.bf16.xpose.msra.mxu0 0
        %1442 = vmatprep.subr.bf16.mxu0 0
        %1443 = vmatpush1.bf16.xpose.msra.mxu0 0
        %1444 = vmatprep.subr.bf16.mxu0 0
        %1445 = vmatpush1.bf16.xpose.msra.mxu0 0
        %1446 = vmatprep.subr.bf16.mxu0 0
        %1447 = vmatpush1.bf16.xpose.msra.mxu0 0
        %1448 = vmatprep.mubr.bf16.mxu0 0
        %1449 = vmatmul.mubr.bf16.gmra.mrb[0].mxu0 %v1411
        %v1450 = vpop.f32.mrb[0].mxu0
        %v1451 = vadd.f32 0.0, %v1450
        %v1452 = vpop.f32.mrb[0].mxu0
        %v1453 = vpop.f32.mrb[0].mxu0
        %v1454 = vadd.f32 0.0, %v1453
        %v1455 = vpop.f32.mrb[0].mxu0
        %1456 = vdwg.mxu0
        %1458 = vrot.lane.b32.xlu0 %v1178, 112
        %v1459 = vpop.permute.xlu0 %1458
        %v1461 = vsel %vm1209, %v1143, 0
        %v1464 = vsel %vm1209, %v1459, 0
        %1466 = vmatprep.subr.bf16.mxu0 0
        %1467 = vmatpush1.bf16.xpose.msra.mxu0 %v1464
        %1468 = vmatprep.subr.bf16.mxu0 0
        %1469 = vmatpush1.bf16.xpose.msra.mxu0 0
        %1470 = vmatprep.subr.bf16.mxu0 0
        %1471 = vmatpush1.bf16.xpose.msra.mxu0 0
        %1472 = vmatprep.subr.bf16.mxu0 0
        %1473 = vmatpush1.bf16.xpose.msra.mxu0 0
        %1474 = vmatprep.subr.bf16.mxu0 0
        %1475 = vmatpush1.bf16.xpose.msra.mxu0 0
        %1476 = vmatprep.subr.bf16.mxu0 0
        %1477 = vmatpush1.bf16.xpose.msra.mxu0 0
        %1478 = vmatprep.subr.bf16.mxu0 0
        %1479 = vmatpush1.bf16.xpose.msra.mxu0 0
        %1480 = vmatprep.subr.bf16.mxu0 0
        %1481 = vmatpush1.bf16.xpose.msra.mxu0 0
        %1482 = vmatprep.subr.bf16.mxu0 0
        %1483 = vmatpush1.bf16.xpose.msra.mxu0 0
        %1484 = vmatprep.subr.bf16.mxu0 0
        %1485 = vmatpush1.bf16.xpose.msra.mxu0 0
        %1486 = vmatprep.subr.bf16.mxu0 0
        %1487 = vmatpush1.bf16.xpose.msra.mxu0 0
        %1488 = vmatprep.subr.bf16.mxu0 0
        %1489 = vmatpush1.bf16.xpose.msra.mxu0 0
        %1490 = vmatprep.subr.bf16.mxu0 0
        %1491 = vmatpush1.bf16.xpose.msra.mxu0 0
        %1492 = vmatprep.subr.bf16.mxu0 0
        %1493 = vmatpush1.bf16.xpose.msra.mxu0 0
        %1494 = vmatprep.subr.bf16.mxu0 0
        %1495 = vmatpush1.bf16.xpose.msra.mxu0 0
        %1496 = vmatprep.subr.bf16.mxu0 0
        %1497 = vmatpush1.bf16.xpose.msra.mxu0 0
        %1498 = vmatprep.mubr.bf16.mxu0 0
        %1499 = vmatmul.mubr.bf16.gmra.mrb[0].mxu0 %v1461
        %v1500 = vpop.f32.mrb[0].mxu0
        %v1501 = vadd.f32 0.0, %v1500
        %v1502 = vpop.f32.mrb[0].mxu0
        %v1503 = vpop.f32.mrb[0].mxu0
        %v1504 = vadd.f32 0.0, %v1503
        %v1505 = vpop.f32.mrb[0].mxu0
        %1506 = vdwg.mxu0
        %1508 = vrot.lane.b32.xlu0 %v1179, 112
        %v1509 = vpop.permute.xlu0 %1508
        %v1511 = vsel %vm1209, %v1144, 0
        %v1514 = vsel %vm1209, %v1509, 0
        %1516 = vmatprep.subr.bf16.mxu0 0
        %1517 = vmatpush1.bf16.xpose.msra.mxu0 %v1514
        %1518 = vmatprep.subr.bf16.mxu0 0
        %1519 = vmatpush1.bf16.xpose.msra.mxu0 0
        %1520 = vmatprep.subr.bf16.mxu0 0
        %1521 = vmatpush1.bf16.xpose.msra.mxu0 0
        %1522 = vmatprep.subr.bf16.mxu0 0
        %1523 = vmatpush1.bf16.xpose.msra.mxu0 0
        %1524 = vmatprep.subr.bf16.mxu0 0
        %1525 = vmatpush1.bf16.xpose.msra.mxu0 0
        %1526 = vmatprep.subr.bf16.mxu0 0
        %1527 = vmatpush1.bf16.xpose.msra.mxu0 0
        %1528 = vmatprep.subr.bf16.mxu0 0
        %1529 = vmatpush1.bf16.xpose.msra.mxu0 0
        %1530 = vmatprep.subr.bf16.mxu0 0
        %1531 = vmatpush1.bf16.xpose.msra.mxu0 0
        %1532 = vmatprep.subr.bf16.mxu0 0
        %1533 = vmatpush1.bf16.xpose.msra.mxu0 0
        %1534 = vmatprep.subr.bf16.mxu0 0
        %1535 = vmatpush1.bf16.xpose.msra.mxu0 0
        %1536 = vmatprep.subr.bf16.mxu0 0
        %1537 = vmatpush1.bf16.xpose.msra.mxu0 0
        %1538 = vmatprep.subr.bf16.mxu0 0
        %1539 = vmatpush1.bf16.xpose.msra.mxu0 0
        %1540 = vmatprep.subr.bf16.mxu0 0
        %1541 = vmatpush1.bf16.xpose.msra.mxu0 0
        %1542 = vmatprep.subr.bf16.mxu0 0
        %1543 = vmatpush1.bf16.xpose.msra.mxu0 0
        %1544 = vmatprep.subr.bf16.mxu0 0
        %1545 = vmatpush1.bf16.xpose.msra.mxu0 0
        %1546 = vmatprep.subr.bf16.mxu0 0
        %1547 = vmatpush1.bf16.xpose.msra.mxu0 0
        %1548 = vmatprep.mubr.bf16.mxu0 0
        %1549 = vmatmul.mubr.bf16.gmra.mrb[0].mxu0 %v1511
        %v1550 = vpop.f32.mrb[0].mxu0
        %v1551 = vadd.f32 0.0, %v1550
        %v1552 = vpop.f32.mrb[0].mxu0
        %v1553 = vpop.f32.mrb[0].mxu0
        %v1554 = vadd.f32 0.0, %v1553
        %v1555 = vpop.f32.mrb[0].mxu0
        %1556 = vdwg.mxu0
        %1558 = vrot.lane.b32.xlu0 %v1180, 112
        %v1559 = vpop.permute.xlu0 %1558
        %v1561 = vsel %vm1209, %v1145, 0
        %v1564 = vsel %vm1209, %v1559, 0
        %1566 = vmatprep.subr.bf16.mxu0 0
        %1567 = vmatpush1.bf16.xpose.msra.mxu0 %v1564
        %1568 = vmatprep.subr.bf16.mxu0 0
        %1569 = vmatpush1.bf16.xpose.msra.mxu0 0
        %1570 = vmatprep.subr.bf16.mxu0 0
        %1571 = vmatpush1.bf16.xpose.msra.mxu0 0
        %1572 = vmatprep.subr.bf16.mxu0 0
        %1573 = vmatpush1.bf16.xpose.msra.mxu0 0
        %1574 = vmatprep.subr.bf16.mxu0 0
        %1575 = vmatpush1.bf16.xpose.msra.mxu0 0
        %1576 = vmatprep.subr.bf16.mxu0 0
        %1577 = vmatpush1.bf16.xpose.msra.mxu0 0
        %1578 = vmatprep.subr.bf16.mxu0 0
        %1579 = vmatpush1.bf16.xpose.msra.mxu0 0
        %1580 = vmatprep.subr.bf16.mxu0 0
        %1581 = vmatpush1.bf16.xpose.msra.mxu0 0
        %1582 = vmatprep.subr.bf16.mxu0 0
        %1583 = vmatpush1.bf16.xpose.msra.mxu0 0
        %1584 = vmatprep.subr.bf16.mxu0 0
        %1585 = vmatpush1.bf16.xpose.msra.mxu0 0
        %1586 = vmatprep.subr.bf16.mxu0 0
        %1587 = vmatpush1.bf16.xpose.msra.mxu0 0
        %1588 = vmatprep.subr.bf16.mxu0 0
        %1589 = vmatpush1.bf16.xpose.msra.mxu0 0
        %1590 = vmatprep.subr.bf16.mxu0 0
        %1591 = vmatpush1.bf16.xpose.msra.mxu0 0
        %1592 = vmatprep.subr.bf16.mxu0 0
        %1593 = vmatpush1.bf16.xpose.msra.mxu0 0
        %1594 = vmatprep.subr.bf16.mxu0 0
        %1595 = vmatpush1.bf16.xpose.msra.mxu0 0
        %1596 = vmatprep.subr.bf16.mxu0 0
        %1597 = vmatpush1.bf16.xpose.msra.mxu0 0
        %1598 = vmatprep.mubr.bf16.mxu0 0
        %1599 = vmatmul.mubr.bf16.gmra.mrb[0].mxu0 %v1561
        %v1600 = vpop.f32.mrb[0].mxu0
        %v1601 = vadd.f32 0.0, %v1600
        %v1602 = vpop.f32.mrb[0].mxu0
        %v1603 = vpop.f32.mrb[0].mxu0
        %v1604 = vadd.f32 0.0, %v1603
        %v1605 = vpop.f32.mrb[0].mxu0
        %1606 = vdwg.mxu0
        %1608 = vrot.lane.b32.xlu0 %v1181, 112
        %v1609 = vpop.permute.xlu0 %1608
        %v1611 = vsel %vm1209, %v1146, 0
        %v1614 = vsel %vm1209, %v1609, 0
        %1616 = vmatprep.subr.bf16.mxu0 0
        %1617 = vmatpush1.bf16.xpose.msra.mxu0 %v1614
        %1618 = vmatprep.subr.bf16.mxu0 0
        %1619 = vmatpush1.bf16.xpose.msra.mxu0 0
        %1620 = vmatprep.subr.bf16.mxu0 0
        %1621 = vmatpush1.bf16.xpose.msra.mxu0 0
        %1622 = vmatprep.subr.bf16.mxu0 0
        %1623 = vmatpush1.bf16.xpose.msra.mxu0 0
        %1624 = vmatprep.subr.bf16.mxu0 0
        %1625 = vmatpush1.bf16.xpose.msra.mxu0 0
        %1626 = vmatprep.subr.bf16.mxu0 0
        %1627 = vmatpush1.bf16.xpose.msra.mxu0 0
        %1628 = vmatprep.subr.bf16.mxu0 0
        %1629 = vmatpush1.bf16.xpose.msra.mxu0 0
        %1630 = vmatprep.subr.bf16.mxu0 0
        %1631 = vmatpush1.bf16.xpose.msra.mxu0 0
        %1632 = vmatprep.subr.bf16.mxu0 0
        %1633 = vmatpush1.bf16.xpose.msra.mxu0 0
        %1634 = vmatprep.subr.bf16.mxu0 0
        %1635 = vmatpush1.bf16.xpose.msra.mxu0 0
        %1636 = vmatprep.subr.bf16.mxu0 0
        %1637 = vmatpush1.bf16.xpose.msra.mxu0 0
        %1638 = vmatprep.subr.bf16.mxu0 0
        %1639 = vmatpush1.bf16.xpose.msra.mxu0 0
        %1640 = vmatprep.subr.bf16.mxu0 0
        %1641 = vmatpush1.bf16.xpose.msra.mxu0 0
        %1642 = vmatprep.subr.bf16.mxu0 0
        %1643 = vmatpush1.bf16.xpose.msra.mxu0 0
        %1644 = vmatprep.subr.bf16.mxu0 0
        %1645 = vmatpush1.bf16.xpose.msra.mxu0 0
        %1646 = vmatprep.subr.bf16.mxu0 0
        %1647 = vmatpush1.bf16.xpose.msra.mxu0 0
        %1648 = vmatprep.mubr.bf16.mxu0 0
        %1649 = vmatmul.mubr.bf16.gmra.mrb[0].mxu0 %v1611
        %v1650 = vpop.f32.mrb[0].mxu0
        %v1651 = vadd.f32 0.0, %v1650
        %v1652 = vpop.f32.mrb[0].mxu0
        %v1653 = vpop.f32.mrb[0].mxu0
        %v1654 = vadd.f32 0.0, %v1653
        %v1655 = vpop.f32.mrb[0].mxu0
        %1656 = vdwg.mxu0
        %1658 = vrot.lane.b32.xlu0 %v1155, 112
        %v1659 = vpop.permute.xlu0 %1658
        %v1661 = vsel %vm1209, %v1147, 0
        %v1664 = vsel %vm1209, %v1659, 0
        %1666 = vmatprep.subr.bf16.mxu0 0
        %1667 = vmatpush1.bf16.xpose.msra.mxu0 %v1664
        %1668 = vmatprep.subr.bf16.mxu0 0
        %1669 = vmatpush1.bf16.xpose.msra.mxu0 0
        %1670 = vmatprep.subr.bf16.mxu0 0
        %1671 = vmatpush1.bf16.xpose.msra.mxu0 0
        %1672 = vmatprep.subr.bf16.mxu0 0
        %1673 = vmatpush1.bf16.xpose.msra.mxu0 0
        %1674 = vmatprep.subr.bf16.mxu0 0
        %1675 = vmatpush1.bf16.xpose.msra.mxu0 0
        %1676 = vmatprep.subr.bf16.mxu0 0
        %1677 = vmatpush1.bf16.xpose.msra.mxu0 0
        %1678 = vmatprep.subr.bf16.mxu0 0
        %1679 = vmatpush1.bf16.xpose.msra.mxu0 0
        %1680 = vmatprep.subr.bf16.mxu0 0
        %1681 = vmatpush1.bf16.xpose.msra.mxu0 0
        %1682 = vmatprep.subr.bf16.mxu0 0
        %1683 = vmatpush1.bf16.xpose.msra.mxu0 0
        %1684 = vmatprep.subr.bf16.mxu0 0
        %1685 = vmatpush1.bf16.xpose.msra.mxu0 0
        %1686 = vmatprep.subr.bf16.mxu0 0
        %1687 = vmatpush1.bf16.xpose.msra.mxu0 0
        %1688 = vmatprep.subr.bf16.mxu0 0
        %1689 = vmatpush1.bf16.xpose.msra.mxu0 0
        %1690 = vmatprep.subr.bf16.mxu0 0
        %1691 = vmatpush1.bf16.xpose.msra.mxu0 0
        %1692 = vmatprep.subr.bf16.mxu0 0
        %1693 = vmatpush1.bf16.xpose.msra.mxu0 0
        %1694 = vmatprep.subr.bf16.mxu0 0
        %1695 = vmatpush1.bf16.xpose.msra.mxu0 0
        %1696 = vmatprep.subr.bf16.mxu0 0
        %1697 = vmatpush1.bf16.xpose.msra.mxu0 0
        %1698 = vmatprep.mubr.bf16.mxu0 0
        %1699 = vmatmul.mubr.bf16.gmra.mrb[0].mxu0 %v1661
        %v1700 = vpop.f32.mrb[0].mxu0
        %v1701 = vadd.f32 0.0, %v1700
        %v1702 = vpop.f32.mrb[0].mxu0
        %v1703 = vpop.f32.mrb[0].mxu0
        %v1704 = vadd.f32 0.0, %v1703
        %v1705 = vpop.f32.mrb[0].mxu0
        %1706 = vdwg.mxu0
        %1708 = vrot.lane.b32.xlu0 %v1182, 112
        %v1709 = vpop.permute.xlu0 %1708
        %v1711 = vsel %vm1209, %v1148, 0
        %v1714 = vsel %vm1209, %v1709, 0
        %1716 = vmatprep.subr.bf16.mxu0 0
        %1717 = vmatpush1.bf16.xpose.msra.mxu0 %v1714
        %1718 = vmatprep.subr.bf16.mxu0 0
        %1719 = vmatpush1.bf16.xpose.msra.mxu0 0
        %1720 = vmatprep.subr.bf16.mxu0 0
        %1721 = vmatpush1.bf16.xpose.msra.mxu0 0
        %1722 = vmatprep.subr.bf16.mxu0 0
        %1723 = vmatpush1.bf16.xpose.msra.mxu0 0
        %1724 = vmatprep.subr.bf16.mxu0 0
        %1725 = vmatpush1.bf16.xpose.msra.mxu0 0
        %1726 = vmatprep.subr.bf16.mxu0 0
        %1727 = vmatpush1.bf16.xpose.msra.mxu0 0
        %1728 = vmatprep.subr.bf16.mxu0 0
        %1729 = vmatpush1.bf16.xpose.msra.mxu0 0
        %1730 = vmatprep.subr.bf16.mxu0 0
        %1731 = vmatpush1.bf16.xpose.msra.mxu0 0
        %1732 = vmatprep.subr.bf16.mxu0 0
        %1733 = vmatpush1.bf16.xpose.msra.mxu0 0
        %1734 = vmatprep.subr.bf16.mxu0 0
        %1735 = vmatpush1.bf16.xpose.msra.mxu0 0
        %1736 = vmatprep.subr.bf16.mxu0 0
        %1737 = vmatpush1.bf16.xpose.msra.mxu0 0
        %1738 = vmatprep.subr.bf16.mxu0 0
        %1739 = vmatpush1.bf16.xpose.msra.mxu0 0
        %1740 = vmatprep.subr.bf16.mxu0 0
        %1741 = vmatpush1.bf16.xpose.msra.mxu0 0
        %1742 = vmatprep.subr.bf16.mxu0 0
        %1743 = vmatpush1.bf16.xpose.msra.mxu0 0
        %1744 = vmatprep.subr.bf16.mxu0 0
        %1745 = vmatpush1.bf16.xpose.msra.mxu0 0
        %1746 = vmatprep.subr.bf16.mxu0 0
        %1747 = vmatpush1.bf16.xpose.msra.mxu0 0
        %1748 = vmatprep.mubr.bf16.mxu0 0
        %1749 = vmatmul.mubr.bf16.gmra.mrb[0].mxu0 %v1711
        %v1750 = vpop.f32.mrb[0].mxu0
        %v1751 = vadd.f32 0.0, %v1750
        %v1752 = vpop.f32.mrb[0].mxu0
        %v1753 = vpop.f32.mrb[0].mxu0
        %v1754 = vadd.f32 0.0, %v1753
        %v1755 = vpop.f32.mrb[0].mxu0
        %1756 = vdwg.mxu0
        %1758 = vrot.lane.b32.xlu0 %v1183, 112
        %v1759 = vpop.permute.xlu0 %1758
        %v1761 = vsel %vm1209, %v1149, 0
        %v1764 = vsel %vm1209, %v1759, 0
        %1766 = vmatprep.subr.bf16.mxu0 0
        %1767 = vmatpush1.bf16.xpose.msra.mxu0 %v1764
        %1768 = vmatprep.subr.bf16.mxu0 0
        %1769 = vmatpush1.bf16.xpose.msra.mxu0 0
        %1770 = vmatprep.subr.bf16.mxu0 0
        %1771 = vmatpush1.bf16.xpose.msra.mxu0 0
        %1772 = vmatprep.subr.bf16.mxu0 0
        %1773 = vmatpush1.bf16.xpose.msra.mxu0 0
        %1774 = vmatprep.subr.bf16.mxu0 0
        %1775 = vmatpush1.bf16.xpose.msra.mxu0 0
        %1776 = vmatprep.subr.bf16.mxu0 0
        %1777 = vmatpush1.bf16.xpose.msra.mxu0 0
        %1778 = vmatprep.subr.bf16.mxu0 0
        %1779 = vmatpush1.bf16.xpose.msra.mxu0 0
        %1780 = vmatprep.subr.bf16.mxu0 0
        %1781 = vmatpush1.bf16.xpose.msra.mxu0 0
        %1782 = vmatprep.subr.bf16.mxu0 0
        %1783 = vmatpush1.bf16.xpose.msra.mxu0 0
        %1784 = vmatprep.subr.bf16.mxu0 0
        %1785 = vmatpush1.bf16.xpose.msra.mxu0 0
        %1786 = vmatprep.subr.bf16.mxu0 0
        %1787 = vmatpush1.bf16.xpose.msra.mxu0 0
        %1788 = vmatprep.subr.bf16.mxu0 0
        %1789 = vmatpush1.bf16.xpose.msra.mxu0 0
        %1790 = vmatprep.subr.bf16.mxu0 0
        %1791 = vmatpush1.bf16.xpose.msra.mxu0 0
        %1792 = vmatprep.subr.bf16.mxu0 0
        %1793 = vmatpush1.bf16.xpose.msra.mxu0 0
        %1794 = vmatprep.subr.bf16.mxu0 0
        %1795 = vmatpush1.bf16.xpose.msra.mxu0 0
        %1796 = vmatprep.subr.bf16.mxu0 0
        %1797 = vmatpush1.bf16.xpose.msra.mxu0 0
        %1798 = vmatprep.mubr.bf16.mxu0 0
        %1799 = vmatmul.mubr.bf16.gmra.mrb[0].mxu0 %v1761
        %v1800 = vpop.f32.mrb[0].mxu0
        %v1801 = vadd.f32 0.0, %v1800
        %v1802 = vpop.f32.mrb[0].mxu0
        %v1803 = vpop.f32.mrb[0].mxu0
        %v1804 = vadd.f32 0.0, %v1803
        %v1805 = vpop.f32.mrb[0].mxu0
        %1806 = vdwg.mxu0
        %1808 = vrot.lane.b32.xlu0 %v1184, 112
        %v1809 = vpop.permute.xlu0 %1808
        %v1811 = vsel %vm1209, %v1150, 0
        %v1814 = vsel %vm1209, %v1809, 0
        %1816 = vmatprep.subr.bf16.mxu0 0
        %1817 = vmatpush1.bf16.xpose.msra.mxu0 %v1814
        %1818 = vmatprep.subr.bf16.mxu0 0
        %1819 = vmatpush1.bf16.xpose.msra.mxu0 0
        %1820 = vmatprep.subr.bf16.mxu0 0
        %1821 = vmatpush1.bf16.xpose.msra.mxu0 0
        %1822 = vmatprep.subr.bf16.mxu0 0
        %1823 = vmatpush1.bf16.xpose.msra.mxu0 0
        %1824 = vmatprep.subr.bf16.mxu0 0
        %1825 = vmatpush1.bf16.xpose.msra.mxu0 0
        %1826 = vmatprep.subr.bf16.mxu0 0
        %1827 = vmatpush1.bf16.xpose.msra.mxu0 0
        %1828 = vmatprep.subr.bf16.mxu0 0
        %1829 = vmatpush1.bf16.xpose.msra.mxu0 0
        %1830 = vmatprep.subr.bf16.mxu0 0
        %1831 = vmatpush1.bf16.xpose.msra.mxu0 0
        %1832 = vmatprep.subr.bf16.mxu0 0
        %1833 = vmatpush1.bf16.xpose.msra.mxu0 0
        %1834 = vmatprep.subr.bf16.mxu0 0
        %1835 = vmatpush1.bf16.xpose.msra.mxu0 0
        %1836 = vmatprep.subr.bf16.mxu0 0
        %1837 = vmatpush1.bf16.xpose.msra.mxu0 0
        %1838 = vmatprep.subr.bf16.mxu0 0
        %1839 = vmatpush1.bf16.xpose.msra.mxu0 0
        %1840 = vmatprep.subr.bf16.mxu0 0
        %1841 = vmatpush1.bf16.xpose.msra.mxu0 0
        %1842 = vmatprep.subr.bf16.mxu0 0
        %1843 = vmatpush1.bf16.xpose.msra.mxu0 0
        %1844 = vmatprep.subr.bf16.mxu0 0
        %1845 = vmatpush1.bf16.xpose.msra.mxu0 0
        %1846 = vmatprep.subr.bf16.mxu0 0
        %1847 = vmatpush1.bf16.xpose.msra.mxu0 0
        %1848 = vmatprep.mubr.bf16.mxu0 0
        %1849 = vmatmul.mubr.bf16.gmra.mrb[0].mxu0 %v1811
        %v1850 = vpop.f32.mrb[0].mxu0
        %v1851 = vadd.f32 0.0, %v1850
        %v1852 = vpop.f32.mrb[0].mxu0
        %v1853 = vpop.f32.mrb[0].mxu0
        %v1854 = vadd.f32 0.0, %v1853
        %v1855 = vpop.f32.mrb[0].mxu0
        %1856 = vdwg.mxu0
        %1858 = vrot.lane.b32.xlu0 %v1185, 112
        %v1859 = vpop.permute.xlu0 %1858
        %v1861 = vsel %vm1209, %v1151, 0
        %v1864 = vsel %vm1209, %v1859, 0
        %1866 = vmatprep.subr.bf16.mxu0 0
        %1867 = vmatpush1.bf16.xpose.msra.mxu0 %v1864
        %1868 = vmatprep.subr.bf16.mxu0 0
        %1869 = vmatpush1.bf16.xpose.msra.mxu0 0
        %1870 = vmatprep.subr.bf16.mxu0 0
        %1871 = vmatpush1.bf16.xpose.msra.mxu0 0
        %1872 = vmatprep.subr.bf16.mxu0 0
        %1873 = vmatpush1.bf16.xpose.msra.mxu0 0
        %1874 = vmatprep.subr.bf16.mxu0 0
        %1875 = vmatpush1.bf16.xpose.msra.mxu0 0
        %1876 = vmatprep.subr.bf16.mxu0 0
        %1877 = vmatpush1.bf16.xpose.msra.mxu0 0
        %1878 = vmatprep.subr.bf16.mxu0 0
        %1879 = vmatpush1.bf16.xpose.msra.mxu0 0
        %1880 = vmatprep.subr.bf16.mxu0 0
        %1881 = vmatpush1.bf16.xpose.msra.mxu0 0
        %1882 = vmatprep.subr.bf16.mxu0 0
        %1883 = vmatpush1.bf16.xpose.msra.mxu0 0
        %1884 = vmatprep.subr.bf16.mxu0 0
        %1885 = vmatpush1.bf16.xpose.msra.mxu0 0
        %1886 = vmatprep.subr.bf16.mxu0 0
        %1887 = vmatpush1.bf16.xpose.msra.mxu0 0
        %1888 = vmatprep.subr.bf16.mxu0 0
        %1889 = vmatpush1.bf16.xpose.msra.mxu0 0
        %1890 = vmatprep.subr.bf16.mxu0 0
        %1891 = vmatpush1.bf16.xpose.msra.mxu0 0
        %1892 = vmatprep.subr.bf16.mxu0 0
        %1893 = vmatpush1.bf16.xpose.msra.mxu0 0
        %1894 = vmatprep.subr.bf16.mxu0 0
        %1895 = vmatpush1.bf16.xpose.msra.mxu0 0
        %1896 = vmatprep.subr.bf16.mxu0 0
        %1897 = vmatpush1.bf16.xpose.msra.mxu0 0
        %1898 = vmatprep.mubr.bf16.mxu0 0
        %1899 = vmatmul.mubr.bf16.gmra.mrb[0].mxu0 %v1861
        %v1900 = vpop.f32.mrb[0].mxu0
        %v1901 = vadd.f32 0.0, %v1900
        %v1902 = vpop.f32.mrb[0].mxu0
        %v1903 = vpop.f32.mrb[0].mxu0
        %v1904 = vadd.f32 0.0, %v1903
        %v1905 = vpop.f32.mrb[0].mxu0
        %1906 = vdwg.mxu0
        %1908 = vrot.lane.b32.xlu0 %v1186, 112
        %v1909 = vpop.permute.xlu0 %1908
        %v1911 = vsel %vm1209, %v1152, 0
        %v1914 = vsel %vm1209, %v1909, 0
        %1916 = vmatprep.subr.bf16.mxu0 0
        %1917 = vmatpush1.bf16.xpose.msra.mxu0 %v1914
        %1918 = vmatprep.subr.bf16.mxu0 0
        %1919 = vmatpush1.bf16.xpose.msra.mxu0 0
        %1920 = vmatprep.subr.bf16.mxu0 0
        %1921 = vmatpush1.bf16.xpose.msra.mxu0 0
        %1922 = vmatprep.subr.bf16.mxu0 0
        %1923 = vmatpush1.bf16.xpose.msra.mxu0 0
        %1924 = vmatprep.subr.bf16.mxu0 0
        %1925 = vmatpush1.bf16.xpose.msra.mxu0 0
        %1926 = vmatprep.subr.bf16.mxu0 0
        %1927 = vmatpush1.bf16.xpose.msra.mxu0 0
        %1928 = vmatprep.subr.bf16.mxu0 0
        %1929 = vmatpush1.bf16.xpose.msra.mxu0 0
        %1930 = vmatprep.subr.bf16.mxu0 0
        %1931 = vmatpush1.bf16.xpose.msra.mxu0 0
        %1932 = vmatprep.subr.bf16.mxu0 0
        %1933 = vmatpush1.bf16.xpose.msra.mxu0 0
        %1934 = vmatprep.subr.bf16.mxu0 0
        %1935 = vmatpush1.bf16.xpose.msra.mxu0 0
        %1936 = vmatprep.subr.bf16.mxu0 0
        %1937 = vmatpush1.bf16.xpose.msra.mxu0 0
        %1938 = vmatprep.subr.bf16.mxu0 0
        %1939 = vmatpush1.bf16.xpose.msra.mxu0 0
        %1940 = vmatprep.subr.bf16.mxu0 0
        %1941 = vmatpush1.bf16.xpose.msra.mxu0 0
        %1942 = vmatprep.subr.bf16.mxu0 0
        %1943 = vmatpush1.bf16.xpose.msra.mxu0 0
        %1944 = vmatprep.subr.bf16.mxu0 0
        %1945 = vmatpush1.bf16.xpose.msra.mxu0 0
        %1946 = vmatprep.subr.bf16.mxu0 0
        %1947 = vmatpush1.bf16.xpose.msra.mxu0 0
        %1948 = vmatprep.mubr.bf16.mxu0 0
        %1949 = vmatmul.mubr.bf16.gmra.mrb[0].mxu0 %v1911
        %v1950 = vpop.f32.mrb[0].mxu0
        %v1951 = vadd.f32 0.0, %v1950
        %v1952 = vpop.f32.mrb[0].mxu0
        %v1953 = vpop.f32.mrb[0].mxu0
        %v1954 = vadd.f32 0.0, %v1953
        %v1955 = vpop.f32.mrb[0].mxu0
        %1956 = vdwg.mxu0
        %1958 = vrot.lane.b32.xlu0 %v1187, 112
        %v1959 = vpop.permute.xlu0 %1958
        %v1961 = vsel %vm1209, %v1153, 0
        %v1964 = vsel %vm1209, %v1959, 0
        %1966 = vmatprep.subr.bf16.mxu0 0
        %1967 = vmatpush1.bf16.xpose.msra.mxu0 %v1964
        %1968 = vmatprep.subr.bf16.mxu0 0
        %1969 = vmatpush1.bf16.xpose.msra.mxu0 0
        %1970 = vmatprep.subr.bf16.mxu0 0
        %1971 = vmatpush1.bf16.xpose.msra.mxu0 0
        %1972 = vmatprep.subr.bf16.mxu0 0
        %1973 = vmatpush1.bf16.xpose.msra.mxu0 0
        %1974 = vmatprep.subr.bf16.mxu0 0
        %1975 = vmatpush1.bf16.xpose.msra.mxu0 0
        %1976 = vmatprep.subr.bf16.mxu0 0
        %1977 = vmatpush1.bf16.xpose.msra.mxu0 0
        %1978 = vmatprep.subr.bf16.mxu0 0
        %1979 = vmatpush1.bf16.xpose.msra.mxu0 0
        %1980 = vmatprep.subr.bf16.mxu0 0
        %1981 = vmatpush1.bf16.xpose.msra.mxu0 0
        %1982 = vmatprep.subr.bf16.mxu0 0
        %1983 = vmatpush1.bf16.xpose.msra.mxu0 0
        %1984 = vmatprep.subr.bf16.mxu0 0
        %1985 = vmatpush1.bf16.xpose.msra.mxu0 0
        %1986 = vmatprep.subr.bf16.mxu0 0
        %1987 = vmatpush1.bf16.xpose.msra.mxu0 0
        %1988 = vmatprep.subr.bf16.mxu0 0
        %1989 = vmatpush1.bf16.xpose.msra.mxu0 0
        %1990 = vmatprep.subr.bf16.mxu0 0
        %1991 = vmatpush1.bf16.xpose.msra.mxu0 0
        %1992 = vmatprep.subr.bf16.mxu0 0
        %1993 = vmatpush1.bf16.xpose.msra.mxu0 0
        %1994 = vmatprep.subr.bf16.mxu0 0
        %1995 = vmatpush1.bf16.xpose.msra.mxu0 0
        %1996 = vmatprep.subr.bf16.mxu0 0
        %1997 = vmatpush1.bf16.xpose.msra.mxu0 0
        %1998 = vmatprep.mubr.bf16.mxu0 0
        %1999 = vmatmul.mubr.bf16.gmra.mrb[0].mxu0 %v1961
        %v2000 = vpop.f32.mrb[0].mxu0
        %v2001 = vadd.f32 0.0, %v2000
        %v2002 = vpop.f32.mrb[0].mxu0
        %v2003 = vpop.f32.mrb[0].mxu0
        %v2004 = vadd.f32 0.0, %v2003
        %v2005 = vpop.f32.mrb[0].mxu0
        %2006 = vdwg.mxu0
        %2008 = vrot.lane.b32.xlu0 %v1188, 112
        %v2009 = vpop.permute.xlu0 %2008
        %v2011 = vsel %vm1209, %v1154, 0
        %v2014 = vsel %vm1209, %v2009, 0
        %2016 = vmatprep.subr.bf16.mxu0 0
        %2017 = vmatpush1.bf16.xpose.msra.mxu0 %v2014
        %2018 = vmatprep.subr.bf16.mxu0 0
        %2019 = vmatpush1.bf16.xpose.msra.mxu0 0
        %2020 = vmatprep.subr.bf16.mxu0 0
        %2021 = vmatpush1.bf16.xpose.msra.mxu0 0
        %2022 = vmatprep.subr.bf16.mxu0 0
        %2023 = vmatpush1.bf16.xpose.msra.mxu0 0
        %2024 = vmatprep.subr.bf16.mxu0 0
        %2025 = vmatpush1.bf16.xpose.msra.mxu0 0
        %2026 = vmatprep.subr.bf16.mxu0 0
        %2027 = vmatpush1.bf16.xpose.msra.mxu0 0
        %2028 = vmatprep.subr.bf16.mxu0 0
        %2029 = vmatpush1.bf16.xpose.msra.mxu0 0
        %2030 = vmatprep.subr.bf16.mxu0 0
        %2031 = vmatpush1.bf16.xpose.msra.mxu0 0
        %2032 = vmatprep.subr.bf16.mxu0 0
        %2033 = vmatpush1.bf16.xpose.msra.mxu0 0
        %2034 = vmatprep.subr.bf16.mxu0 0
        %2035 = vmatpush1.bf16.xpose.msra.mxu0 0
        %2036 = vmatprep.subr.bf16.mxu0 0
        %2037 = vmatpush1.bf16.xpose.msra.mxu0 0
        %2038 = vmatprep.subr.bf16.mxu0 0
        %2039 = vmatpush1.bf16.xpose.msra.mxu0 0
        %2040 = vmatprep.subr.bf16.mxu0 0
        %2041 = vmatpush1.bf16.xpose.msra.mxu0 0
        %2042 = vmatprep.subr.bf16.mxu0 0
        %2043 = vmatpush1.bf16.xpose.msra.mxu0 0
        %2044 = vmatprep.subr.bf16.mxu0 0
        %2045 = vmatpush1.bf16.xpose.msra.mxu0 0
        %2046 = vmatprep.subr.bf16.mxu0 0
        %2047 = vmatpush1.bf16.xpose.msra.mxu0 0
        %2048 = vmatprep.mubr.bf16.mxu0 0
        %2049 = vmatmul.mubr.bf16.gmra.mrb[0].mxu0 %v2011
        %v2050 = vpop.f32.mrb[0].mxu0
        %v2051 = vadd.f32 0.0, %v2050
        %v2052 = vpop.f32.mrb[0].mxu0
        %v2053 = vpop.f32.mrb[0].mxu0
        %v2054 = vadd.f32 0.0, %v2053
        %v2055 = vpop.f32.mrb[0].mxu0
        %2056 = vdwg.mxu0
        %2058 = vrot.lane.b32.xlu0 %v1189, 112
        %v2059 = vpop.permute.xlu0 %2058
        %v2061 = vsel %vm1209, %v1155, 0
        %v2064 = vsel %vm1209, %v2059, 0
        %2066 = vmatprep.subr.bf16.mxu0 0
        %2067 = vmatpush1.bf16.xpose.msra.mxu0 %v2064
        %2068 = vmatprep.subr.bf16.mxu0 0
        %2069 = vmatpush1.bf16.xpose.msra.mxu0 0
        %2070 = vmatprep.subr.bf16.mxu0 0
        %2071 = vmatpush1.bf16.xpose.msra.mxu0 0
        %2072 = vmatprep.subr.bf16.mxu0 0
        %2073 = vmatpush1.bf16.xpose.msra.mxu0 0
        %2074 = vmatprep.subr.bf16.mxu0 0
        %2075 = vmatpush1.bf16.xpose.msra.mxu0 0
        %2076 = vmatprep.subr.bf16.mxu0 0
        %2077 = vmatpush1.bf16.xpose.msra.mxu0 0
        %2078 = vmatprep.subr.bf16.mxu0 0
        %2079 = vmatpush1.bf16.xpose.msra.mxu0 0
        %2080 = vmatprep.subr.bf16.mxu0 0
        %2081 = vmatpush1.bf16.xpose.msra.mxu0 0
        %2082 = vmatprep.subr.bf16.mxu0 0
        %2083 = vmatpush1.bf16.xpose.msra.mxu0 0
        %2084 = vmatprep.subr.bf16.mxu0 0
        %2085 = vmatpush1.bf16.xpose.msra.mxu0 0
        %2086 = vmatprep.subr.bf16.mxu0 0
        %2087 = vmatpush1.bf16.xpose.msra.mxu0 0
        %2088 = vmatprep.subr.bf16.mxu0 0
        %2089 = vmatpush1.bf16.xpose.msra.mxu0 0
        %2090 = vmatprep.subr.bf16.mxu0 0
        %2091 = vmatpush1.bf16.xpose.msra.mxu0 0
        %2092 = vmatprep.subr.bf16.mxu0 0
        %2093 = vmatpush1.bf16.xpose.msra.mxu0 0
        %2094 = vmatprep.subr.bf16.mxu0 0
        %2095 = vmatpush1.bf16.xpose.msra.mxu0 0
        %2096 = vmatprep.subr.bf16.mxu0 0
        %2097 = vmatpush1.bf16.xpose.msra.mxu0 0
        %2098 = vmatprep.mubr.bf16.mxu0 0
        %2099 = vmatmul.mubr.bf16.gmra.mrb[0].mxu0 %v2061
        %v2100 = vpop.f32.mrb[0].mxu0
        %v2101 = vadd.f32 0.0, %v2100
        %v2102 = vpop.f32.mrb[0].mxu0
        %v2103 = vpop.f32.mrb[0].mxu0
        %v2104 = vadd.f32 0.0, %v2103
        %v2105 = vpop.f32.mrb[0].mxu0
        %2106 = vdwg.mxu0
        %2108 = vrot.lane.b32.xlu0 %v1164, 112
        %v2109 = vpop.permute.xlu0 %2108
        %v2111 = vsel %vm1209, %v1156, 0
        %v2114 = vsel %vm1209, %v2109, 0
        %2116 = vmatprep.subr.bf16.mxu0 0
        %2117 = vmatpush1.bf16.xpose.msra.mxu0 %v2114
        %2118 = vmatprep.subr.bf16.mxu0 0
        %2119 = vmatpush1.bf16.xpose.msra.mxu0 0
        %2120 = vmatprep.subr.bf16.mxu0 0
        %2121 = vmatpush1.bf16.xpose.msra.mxu0 0
        %2122 = vmatprep.subr.bf16.mxu0 0
        %2123 = vmatpush1.bf16.xpose.msra.mxu0 0
        %2124 = vmatprep.subr.bf16.mxu0 0
        %2125 = vmatpush1.bf16.xpose.msra.mxu0 0
        %2126 = vmatprep.subr.bf16.mxu0 0
        %2127 = vmatpush1.bf16.xpose.msra.mxu0 0
        %2128 = vmatprep.subr.bf16.mxu0 0
        %2129 = vmatpush1.bf16.xpose.msra.mxu0 0
        %2130 = vmatprep.subr.bf16.mxu0 0
        %2131 = vmatpush1.bf16.xpose.msra.mxu0 0
        %2132 = vmatprep.subr.bf16.mxu0 0
        %2133 = vmatpush1.bf16.xpose.msra.mxu0 0
        %2134 = vmatprep.subr.bf16.mxu0 0
        %2135 = vmatpush1.bf16.xpose.msra.mxu0 0
        %2136 = vmatprep.subr.bf16.mxu0 0
        %2137 = vmatpush1.bf16.xpose.msra.mxu0 0
        %2138 = vmatprep.subr.bf16.mxu0 0
        %2139 = vmatpush1.bf16.xpose.msra.mxu0 0
        %2140 = vmatprep.subr.bf16.mxu0 0
        %2141 = vmatpush1.bf16.xpose.msra.mxu0 0
        %2142 = vmatprep.subr.bf16.mxu0 0
        %2143 = vmatpush1.bf16.xpose.msra.mxu0 0
        %2144 = vmatprep.subr.bf16.mxu0 0
        %2145 = vmatpush1.bf16.xpose.msra.mxu0 0
        %2146 = vmatprep.subr.bf16.mxu0 0
        %2147 = vmatpush1.bf16.xpose.msra.mxu0 0
        %2148 = vmatprep.mubr.bf16.mxu0 0
        %2149 = vmatmul.mubr.bf16.gmra.mrb[0].mxu0 %v2111
        %v2150 = vpop.f32.mrb[0].mxu0
        %v2151 = vadd.f32 0.0, %v2150
        %v2152 = vpop.f32.mrb[0].mxu0
        %v2153 = vpop.f32.mrb[0].mxu0
        %v2154 = vadd.f32 0.0, %v2153
        %v2155 = vpop.f32.mrb[0].mxu0
        %2156 = vdwg.mxu0
        %2158 = vrot.lane.b32.xlu0 %v1190, 112
        %v2159 = vpop.permute.xlu0 %2158
        %v2161 = vsel %vm1209, %v1157, 0
        %v2164 = vsel %vm1209, %v2159, 0
        %2166 = vmatprep.subr.bf16.mxu0 0
        %2167 = vmatpush1.bf16.xpose.msra.mxu0 %v2164
        %2168 = vmatprep.subr.bf16.mxu0 0
        %2169 = vmatpush1.bf16.xpose.msra.mxu0 0
        %2170 = vmatprep.subr.bf16.mxu0 0
        %2171 = vmatpush1.bf16.xpose.msra.mxu0 0
        %2172 = vmatprep.subr.bf16.mxu0 0
        %2173 = vmatpush1.bf16.xpose.msra.mxu0 0
        %2174 = vmatprep.subr.bf16.mxu0 0
        %2175 = vmatpush1.bf16.xpose.msra.mxu0 0
        %2176 = vmatprep.subr.bf16.mxu0 0
        %2177 = vmatpush1.bf16.xpose.msra.mxu0 0
        %2178 = vmatprep.subr.bf16.mxu0 0
        %2179 = vmatpush1.bf16.xpose.msra.mxu0 0
        %2180 = vmatprep.subr.bf16.mxu0 0
        %2181 = vmatpush1.bf16.xpose.msra.mxu0 0
        %2182 = vmatprep.subr.bf16.mxu0 0
        %2183 = vmatpush1.bf16.xpose.msra.mxu0 0
        %2184 = vmatprep.subr.bf16.mxu0 0
        %2185 = vmatpush1.bf16.xpose.msra.mxu0 0
        %2186 = vmatprep.subr.bf16.mxu0 0
        %2187 = vmatpush1.bf16.xpose.msra.mxu0 0
        %2188 = vmatprep.subr.bf16.mxu0 0
        %2189 = vmatpush1.bf16.xpose.msra.mxu0 0
        %2190 = vmatprep.subr.bf16.mxu0 0
        %2191 = vmatpush1.bf16.xpose.msra.mxu0 0
        %2192 = vmatprep.subr.bf16.mxu0 0
        %2193 = vmatpush1.bf16.xpose.msra.mxu0 0
        %2194 = vmatprep.subr.bf16.mxu0 0
        %2195 = vmatpush1.bf16.xpose.msra.mxu0 0
        %2196 = vmatprep.subr.bf16.mxu0 0
        %2197 = vmatpush1.bf16.xpose.msra.mxu0 0
        %2198 = vmatprep.mubr.bf16.mxu0 0
        %2199 = vmatmul.mubr.bf16.gmra.mrb[0].mxu0 %v2161
        %v2200 = vpop.f32.mrb[0].mxu0
        %v2201 = vadd.f32 0.0, %v2200
        %v2202 = vpop.f32.mrb[0].mxu0
        %v2203 = vpop.f32.mrb[0].mxu0
        %v2204 = vadd.f32 0.0, %v2203
        %v2205 = vpop.f32.mrb[0].mxu0
        %2206 = vdwg.mxu0
        %2208 = vrot.lane.b32.xlu0 %v1191, 112
        %v2209 = vpop.permute.xlu0 %2208
        %v2211 = vsel %vm1209, %v1158, 0
        %v2214 = vsel %vm1209, %v2209, 0
        %2216 = vmatprep.subr.bf16.mxu0 0
        %2217 = vmatpush1.bf16.xpose.msra.mxu0 %v2214
        %2218 = vmatprep.subr.bf16.mxu0 0
        %2219 = vmatpush1.bf16.xpose.msra.mxu0 0
        %2220 = vmatprep.subr.bf16.mxu0 0
        %2221 = vmatpush1.bf16.xpose.msra.mxu0 0
        %2222 = vmatprep.subr.bf16.mxu0 0
        %2223 = vmatpush1.bf16.xpose.msra.mxu0 0
        %2224 = vmatprep.subr.bf16.mxu0 0
        %2225 = vmatpush1.bf16.xpose.msra.mxu0 0
        %2226 = vmatprep.subr.bf16.mxu0 0
        %2227 = vmatpush1.bf16.xpose.msra.mxu0 0
        %2228 = vmatprep.subr.bf16.mxu0 0
        %2229 = vmatpush1.bf16.xpose.msra.mxu0 0
        %2230 = vmatprep.subr.bf16.mxu0 0
        %2231 = vmatpush1.bf16.xpose.msra.mxu0 0
        %2232 = vmatprep.subr.bf16.mxu0 0
        %2233 = vmatpush1.bf16.xpose.msra.mxu0 0
        %2234 = vmatprep.subr.bf16.mxu0 0
        %2235 = vmatpush1.bf16.xpose.msra.mxu0 0
        %2236 = vmatprep.subr.bf16.mxu0 0
        %2237 = vmatpush1.bf16.xpose.msra.mxu0 0
        %2238 = vmatprep.subr.bf16.mxu0 0
        %2239 = vmatpush1.bf16.xpose.msra.mxu0 0
        %2240 = vmatprep.subr.bf16.mxu0 0
        %2241 = vmatpush1.bf16.xpose.msra.mxu0 0
        %2242 = vmatprep.subr.bf16.mxu0 0
        %2243 = vmatpush1.bf16.xpose.msra.mxu0 0
        %2244 = vmatprep.subr.bf16.mxu0 0
        %2245 = vmatpush1.bf16.xpose.msra.mxu0 0
        %2246 = vmatprep.subr.bf16.mxu0 0
        %2247 = vmatpush1.bf16.xpose.msra.mxu0 0
        %2248 = vmatprep.mubr.bf16.mxu0 0
        %2249 = vmatmul.mubr.bf16.gmra.mrb[0].mxu0 %v2211
        %v2250 = vpop.f32.mrb[0].mxu0
        %v2251 = vadd.f32 0.0, %v2250
        %v2252 = vpop.f32.mrb[0].mxu0
        %v2253 = vpop.f32.mrb[0].mxu0
        %v2254 = vadd.f32 0.0, %v2253
        %v2255 = vpop.f32.mrb[0].mxu0
        %2256 = vdwg.mxu0
        %2258 = vrot.lane.b32.xlu0 %v1192, 112
        %v2259 = vpop.permute.xlu0 %2258
        %v2261 = vsel %vm1209, %v1159, 0
        %v2264 = vsel %vm1209, %v2259, 0
        %2266 = vmatprep.subr.bf16.mxu0 0
        %2267 = vmatpush1.bf16.xpose.msra.mxu0 %v2264
        %2268 = vmatprep.subr.bf16.mxu0 0
        %2269 = vmatpush1.bf16.xpose.msra.mxu0 0
        %2270 = vmatprep.subr.bf16.mxu0 0
        %2271 = vmatpush1.bf16.xpose.msra.mxu0 0
        %2272 = vmatprep.subr.bf16.mxu0 0
        %2273 = vmatpush1.bf16.xpose.msra.mxu0 0
        %2274 = vmatprep.subr.bf16.mxu0 0
        %2275 = vmatpush1.bf16.xpose.msra.mxu0 0
        %2276 = vmatprep.subr.bf16.mxu0 0
        %2277 = vmatpush1.bf16.xpose.msra.mxu0 0
        %2278 = vmatprep.subr.bf16.mxu0 0
        %2279 = vmatpush1.bf16.xpose.msra.mxu0 0
        %2280 = vmatprep.subr.bf16.mxu0 0
        %2281 = vmatpush1.bf16.xpose.msra.mxu0 0
        %2282 = vmatprep.subr.bf16.mxu0 0
        %2283 = vmatpush1.bf16.xpose.msra.mxu0 0
        %2284 = vmatprep.subr.bf16.mxu0 0
        %2285 = vmatpush1.bf16.xpose.msra.mxu0 0
        %2286 = vmatprep.subr.bf16.mxu0 0
        %2287 = vmatpush1.bf16.xpose.msra.mxu0 0
        %2288 = vmatprep.subr.bf16.mxu0 0
        %2289 = vmatpush1.bf16.xpose.msra.mxu0 0
        %2290 = vmatprep.subr.bf16.mxu0 0
        %2291 = vmatpush1.bf16.xpose.msra.mxu0 0
        %2292 = vmatprep.subr.bf16.mxu0 0
        %2293 = vmatpush1.bf16.xpose.msra.mxu0 0
        %2294 = vmatprep.subr.bf16.mxu0 0
        %2295 = vmatpush1.bf16.xpose.msra.mxu0 0
        %2296 = vmatprep.subr.bf16.mxu0 0
        %2297 = vmatpush1.bf16.xpose.msra.mxu0 0
        %2298 = vmatprep.mubr.bf16.mxu0 0
        %2299 = vmatmul.mubr.bf16.gmra.mrb[0].mxu0 %v2261
        %v2300 = vpop.f32.mrb[0].mxu0
        %v2301 = vadd.f32 0.0, %v2300
        %v2302 = vpop.f32.mrb[0].mxu0
        %v2303 = vpop.f32.mrb[0].mxu0
        %v2304 = vadd.f32 0.0, %v2303
        %v2305 = vpop.f32.mrb[0].mxu0
        %2306 = vdwg.mxu0
        %2308 = vrot.lane.b32.xlu0 %v1193, 112
        %v2309 = vpop.permute.xlu0 %2308
        %v2311 = vsel %vm1209, %v1160, 0
        %v2314 = vsel %vm1209, %v2309, 0
        %2316 = vmatprep.subr.bf16.mxu0 0
        %2317 = vmatpush1.bf16.xpose.msra.mxu0 %v2314
        %2318 = vmatprep.subr.bf16.mxu0 0
        %2319 = vmatpush1.bf16.xpose.msra.mxu0 0
        %2320 = vmatprep.subr.bf16.mxu0 0
        %2321 = vmatpush1.bf16.xpose.msra.mxu0 0
        %2322 = vmatprep.subr.bf16.mxu0 0
        %2323 = vmatpush1.bf16.xpose.msra.mxu0 0
        %2324 = vmatprep.subr.bf16.mxu0 0
        %2325 = vmatpush1.bf16.xpose.msra.mxu0 0
        %2326 = vmatprep.subr.bf16.mxu0 0
        %2327 = vmatpush1.bf16.xpose.msra.mxu0 0
        %2328 = vmatprep.subr.bf16.mxu0 0
        %2329 = vmatpush1.bf16.xpose.msra.mxu0 0
        %2330 = vmatprep.subr.bf16.mxu0 0
        %2331 = vmatpush1.bf16.xpose.msra.mxu0 0
        %2332 = vmatprep.subr.bf16.mxu0 0
        %2333 = vmatpush1.bf16.xpose.msra.mxu0 0
        %2334 = vmatprep.subr.bf16.mxu0 0
        %2335 = vmatpush1.bf16.xpose.msra.mxu0 0
        %2336 = vmatprep.subr.bf16.mxu0 0
        %2337 = vmatpush1.bf16.xpose.msra.mxu0 0
        %2338 = vmatprep.subr.bf16.mxu0 0
        %2339 = vmatpush1.bf16.xpose.msra.mxu0 0
        %2340 = vmatprep.subr.bf16.mxu0 0
        %2341 = vmatpush1.bf16.xpose.msra.mxu0 0
        %2342 = vmatprep.subr.bf16.mxu0 0
        %2343 = vmatpush1.bf16.xpose.msra.mxu0 0
        %2344 = vmatprep.subr.bf16.mxu0 0
        %2345 = vmatpush1.bf16.xpose.msra.mxu0 0
        %2346 = vmatprep.subr.bf16.mxu0 0
        %2347 = vmatpush1.bf16.xpose.msra.mxu0 0
        %2348 = vmatprep.mubr.bf16.mxu0 0
        %2349 = vmatmul.mubr.bf16.gmra.mrb[0].mxu0 %v2311
        %v2350 = vpop.f32.mrb[0].mxu0
        %v2351 = vadd.f32 0.0, %v2350
        %v2352 = vpop.f32.mrb[0].mxu0
        %v2353 = vpop.f32.mrb[0].mxu0
        %v2354 = vadd.f32 0.0, %v2353
        %v2355 = vpop.f32.mrb[0].mxu0
        %2356 = vdwg.mxu0
        %2358 = vrot.lane.b32.xlu0 %v1194, 112
        %v2359 = vpop.permute.xlu0 %2358
        %v2361 = vsel %vm1209, %v1161, 0
        %v2364 = vsel %vm1209, %v2359, 0
        %2366 = vmatprep.subr.bf16.mxu0 0
        %2367 = vmatpush1.bf16.xpose.msra.mxu0 %v2364
        %2368 = vmatprep.subr.bf16.mxu0 0
        %2369 = vmatpush1.bf16.xpose.msra.mxu0 0
        %2370 = vmatprep.subr.bf16.mxu0 0
        %2371 = vmatpush1.bf16.xpose.msra.mxu0 0
        %2372 = vmatprep.subr.bf16.mxu0 0
        %2373 = vmatpush1.bf16.xpose.msra.mxu0 0
        %2374 = vmatprep.subr.bf16.mxu0 0
        %2375 = vmatpush1.bf16.xpose.msra.mxu0 0
        %2376 = vmatprep.subr.bf16.mxu0 0
        %2377 = vmatpush1.bf16.xpose.msra.mxu0 0
        %2378 = vmatprep.subr.bf16.mxu0 0
        %2379 = vmatpush1.bf16.xpose.msra.mxu0 0
        %2380 = vmatprep.subr.bf16.mxu0 0
        %2381 = vmatpush1.bf16.xpose.msra.mxu0 0
        %2382 = vmatprep.subr.bf16.mxu0 0
        %2383 = vmatpush1.bf16.xpose.msra.mxu0 0
        %2384 = vmatprep.subr.bf16.mxu0 0
        %2385 = vmatpush1.bf16.xpose.msra.mxu0 0
        %2386 = vmatprep.subr.bf16.mxu0 0
        %2387 = vmatpush1.bf16.xpose.msra.mxu0 0
        %2388 = vmatprep.subr.bf16.mxu0 0
        %2389 = vmatpush1.bf16.xpose.msra.mxu0 0
        %2390 = vmatprep.subr.bf16.mxu0 0
        %2391 = vmatpush1.bf16.xpose.msra.mxu0 0
        %2392 = vmatprep.subr.bf16.mxu0 0
        %2393 = vmatpush1.bf16.xpose.msra.mxu0 0
        %2394 = vmatprep.subr.bf16.mxu0 0
        %2395 = vmatpush1.bf16.xpose.msra.mxu0 0
        %2396 = vmatprep.subr.bf16.mxu0 0
        %2397 = vmatpush1.bf16.xpose.msra.mxu0 0
        %2398 = vmatprep.mubr.bf16.mxu0 0
        %2399 = vmatmul.mubr.bf16.gmra.mrb[0].mxu0 %v2361
        %v2400 = vpop.f32.mrb[0].mxu0
        %v2401 = vadd.f32 0.0, %v2400
        %v2402 = vpop.f32.mrb[0].mxu0
        %v2403 = vpop.f32.mrb[0].mxu0
        %v2404 = vadd.f32 0.0, %v2403
        %v2405 = vpop.f32.mrb[0].mxu0
        %2406 = vdwg.mxu0
        %2408 = vrot.lane.b32.xlu0 %v1195, 112
        %v2409 = vpop.permute.xlu0 %2408
        %v2411 = vsel %vm1209, %v1162, 0
        %v2414 = vsel %vm1209, %v2409, 0
        %2416 = vmatprep.subr.bf16.mxu0 0
        %2417 = vmatpush1.bf16.xpose.msra.mxu0 %v2414
        %2418 = vmatprep.subr.bf16.mxu0 0
        %2419 = vmatpush1.bf16.xpose.msra.mxu0 0
        %2420 = vmatprep.subr.bf16.mxu0 0
        %2421 = vmatpush1.bf16.xpose.msra.mxu0 0
        %2422 = vmatprep.subr.bf16.mxu0 0
        %2423 = vmatpush1.bf16.xpose.msra.mxu0 0
        %2424 = vmatprep.subr.bf16.mxu0 0
        %2425 = vmatpush1.bf16.xpose.msra.mxu0 0
        %2426 = vmatprep.subr.bf16.mxu0 0
        %2427 = vmatpush1.bf16.xpose.msra.mxu0 0
        %2428 = vmatprep.subr.bf16.mxu0 0
        %2429 = vmatpush1.bf16.xpose.msra.mxu0 0
        %2430 = vmatprep.subr.bf16.mxu0 0
        %2431 = vmatpush1.bf16.xpose.msra.mxu0 0
        %2432 = vmatprep.subr.bf16.mxu0 0
        %2433 = vmatpush1.bf16.xpose.msra.mxu0 0
        %2434 = vmatprep.subr.bf16.mxu0 0
        %2435 = vmatpush1.bf16.xpose.msra.mxu0 0
        %2436 = vmatprep.subr.bf16.mxu0 0
        %2437 = vmatpush1.bf16.xpose.msra.mxu0 0
        %2438 = vmatprep.subr.bf16.mxu0 0
        %2439 = vmatpush1.bf16.xpose.msra.mxu0 0
        %2440 = vmatprep.subr.bf16.mxu0 0
        %2441 = vmatpush1.bf16.xpose.msra.mxu0 0
        %2442 = vmatprep.subr.bf16.mxu0 0
        %2443 = vmatpush1.bf16.xpose.msra.mxu0 0
        %2444 = vmatprep.subr.bf16.mxu0 0
        %2445 = vmatpush1.bf16.xpose.msra.mxu0 0
        %2446 = vmatprep.subr.bf16.mxu0 0
        %2447 = vmatpush1.bf16.xpose.msra.mxu0 0
        %2448 = vmatprep.mubr.bf16.mxu0 0
        %2449 = vmatmul.mubr.bf16.gmra.mrb[0].mxu0 %v2411
        %v2450 = vpop.f32.mrb[0].mxu0
        %v2451 = vadd.f32 0.0, %v2450
        %v2452 = vpop.f32.mrb[0].mxu0
        %v2453 = vpop.f32.mrb[0].mxu0
        %v2454 = vadd.f32 0.0, %v2453
        %v2455 = vpop.f32.mrb[0].mxu0
        %2456 = vdwg.mxu0
        %2458 = vrot.lane.b32.xlu0 %v1196, 112
        %v2459 = vpop.permute.xlu0 %2458
        %v2461 = vsel %vm1209, %v1163, 0
        %v2464 = vsel %vm1209, %v2459, 0
        %2466 = vmatprep.subr.bf16.mxu0 0
        %2467 = vmatpush1.bf16.xpose.msra.mxu0 %v2464
        %2468 = vmatprep.subr.bf16.mxu0 0
        %2469 = vmatpush1.bf16.xpose.msra.mxu0 0
        %2470 = vmatprep.subr.bf16.mxu0 0
        %2471 = vmatpush1.bf16.xpose.msra.mxu0 0
        %2472 = vmatprep.subr.bf16.mxu0 0
        %2473 = vmatpush1.bf16.xpose.msra.mxu0 0
        %2474 = vmatprep.subr.bf16.mxu0 0
        %2475 = vmatpush1.bf16.xpose.msra.mxu0 0
        %2476 = vmatprep.subr.bf16.mxu0 0
        %2477 = vmatpush1.bf16.xpose.msra.mxu0 0
        %2478 = vmatprep.subr.bf16.mxu0 0
        %2479 = vmatpush1.bf16.xpose.msra.mxu0 0
        %2480 = vmatprep.subr.bf16.mxu0 0
        %2481 = vmatpush1.bf16.xpose.msra.mxu0 0
        %2482 = vmatprep.subr.bf16.mxu0 0
        %2483 = vmatpush1.bf16.xpose.msra.mxu0 0
        %2484 = vmatprep.subr.bf16.mxu0 0
        %2485 = vmatpush1.bf16.xpose.msra.mxu0 0
        %2486 = vmatprep.subr.bf16.mxu0 0
        %2487 = vmatpush1.bf16.xpose.msra.mxu0 0
        %2488 = vmatprep.subr.bf16.mxu0 0
        %2489 = vmatpush1.bf16.xpose.msra.mxu0 0
        %2490 = vmatprep.subr.bf16.mxu0 0
        %2491 = vmatpush1.bf16.xpose.msra.mxu0 0
        %2492 = vmatprep.subr.bf16.mxu0 0
        %2493 = vmatpush1.bf16.xpose.msra.mxu0 0
        %2494 = vmatprep.subr.bf16.mxu0 0
        %2495 = vmatpush1.bf16.xpose.msra.mxu0 0
        %2496 = vmatprep.subr.bf16.mxu0 0
        %2497 = vmatpush1.bf16.xpose.msra.mxu0 0
        %2498 = vmatprep.mubr.bf16.mxu0 0
        %2499 = vmatmul.mubr.bf16.gmra.mrb[0].mxu0 %v2461
        %v2500 = vpop.f32.mrb[0].mxu0
        %v2501 = vadd.f32 0.0, %v2500
        %v2502 = vpop.f32.mrb[0].mxu0
        %v2503 = vpop.f32.mrb[0].mxu0
        %v2504 = vadd.f32 0.0, %v2503
        %v2505 = vpop.f32.mrb[0].mxu0
        %2506 = vdwg.mxu0
        %2508 = vrot.lane.b32.xlu0 %v1197, 112
        %v2509 = vpop.permute.xlu0 %2508
        %v2511 = vsel %vm1209, %v1164, 0
        %v2514 = vsel %vm1209, %v2509, 0
        %2516 = vmatprep.subr.bf16.mxu0 0
        %2517 = vmatpush1.bf16.xpose.msra.mxu0 %v2514
        %2518 = vmatprep.subr.bf16.mxu0 0
        %2519 = vmatpush1.bf16.xpose.msra.mxu0 0
        %2520 = vmatprep.subr.bf16.mxu0 0
        %2521 = vmatpush1.bf16.xpose.msra.mxu0 0
        %2522 = vmatprep.subr.bf16.mxu0 0
        %2523 = vmatpush1.bf16.xpose.msra.mxu0 0
        %2524 = vmatprep.subr.bf16.mxu0 0
        %2525 = vmatpush1.bf16.xpose.msra.mxu0 0
        %2526 = vmatprep.subr.bf16.mxu0 0
        %2527 = vmatpush1.bf16.xpose.msra.mxu0 0
        %2528 = vmatprep.subr.bf16.mxu0 0
        %2529 = vmatpush1.bf16.xpose.msra.mxu0 0
        %2530 = vmatprep.subr.bf16.mxu0 0
        %2531 = vmatpush1.bf16.xpose.msra.mxu0 0
        %2532 = vmatprep.subr.bf16.mxu0 0
        %2533 = vmatpush1.bf16.xpose.msra.mxu0 0
        %2534 = vmatprep.subr.bf16.mxu0 0
        %2535 = vmatpush1.bf16.xpose.msra.mxu0 0
        %2536 = vmatprep.subr.bf16.mxu0 0
        %2537 = vmatpush1.bf16.xpose.msra.mxu0 0
        %2538 = vmatprep.subr.bf16.mxu0 0
        %2539 = vmatpush1.bf16.xpose.msra.mxu0 0
        %2540 = vmatprep.subr.bf16.mxu0 0
        %2541 = vmatpush1.bf16.xpose.msra.mxu0 0
        %2542 = vmatprep.subr.bf16.mxu0 0
        %2543 = vmatpush1.bf16.xpose.msra.mxu0 0
        %2544 = vmatprep.subr.bf16.mxu0 0
        %2545 = vmatpush1.bf16.xpose.msra.mxu0 0
        %2546 = vmatprep.subr.bf16.mxu0 0
        %2547 = vmatpush1.bf16.xpose.msra.mxu0 0
        %2548 = vmatprep.mubr.bf16.mxu0 0
        %2549 = vmatmul.mubr.bf16.gmra.mrb[0].mxu0 %v2511
        %v2550 = vpop.f32.mrb[0].mxu0
        %v2551 = vadd.f32 0.0, %v2550
        %v2552 = vpop.f32.mrb[0].mxu0
        %v2553 = vpop.f32.mrb[0].mxu0
        %v2554 = vadd.f32 0.0, %v2553
        %v2555 = vpop.f32.mrb[0].mxu0
        %2556 = vdwg.mxu0
        %2558 = vrot.lane.b32.xlu0 %v1173, 112
        %v2559 = vpop.permute.xlu0 %2558
        %v2561 = vsel %vm1209, %v1165, 0
        %v2564 = vsel %vm1209, %v2559, 0
        %2566 = vmatprep.subr.bf16.mxu0 0
        %2567 = vmatpush1.bf16.xpose.msra.mxu0 %v2564
        %2568 = vmatprep.subr.bf16.mxu0 0
        %2569 = vmatpush1.bf16.xpose.msra.mxu0 0
        %2570 = vmatprep.subr.bf16.mxu0 0
        %2571 = vmatpush1.bf16.xpose.msra.mxu0 0
        %2572 = vmatprep.subr.bf16.mxu0 0
        %2573 = vmatpush1.bf16.xpose.msra.mxu0 0
        %2574 = vmatprep.subr.bf16.mxu0 0
        %2575 = vmatpush1.bf16.xpose.msra.mxu0 0
        %2576 = vmatprep.subr.bf16.mxu0 0
        %2577 = vmatpush1.bf16.xpose.msra.mxu0 0
        %2578 = vmatprep.subr.bf16.mxu0 0
        %2579 = vmatpush1.bf16.xpose.msra.mxu0 0
        %2580 = vmatprep.subr.bf16.mxu0 0
        %2581 = vmatpush1.bf16.xpose.msra.mxu0 0
        %2582 = vmatprep.subr.bf16.mxu0 0
        %2583 = vmatpush1.bf16.xpose.msra.mxu0 0
        %2584 = vmatprep.subr.bf16.mxu0 0
        %2585 = vmatpush1.bf16.xpose.msra.mxu0 0
        %2586 = vmatprep.subr.bf16.mxu0 0
        %2587 = vmatpush1.bf16.xpose.msra.mxu0 0
        %2588 = vmatprep.subr.bf16.mxu0 0
        %2589 = vmatpush1.bf16.xpose.msra.mxu0 0
        %2590 = vmatprep.subr.bf16.mxu0 0
        %2591 = vmatpush1.bf16.xpose.msra.mxu0 0
        %2592 = vmatprep.subr.bf16.mxu0 0
        %2593 = vmatpush1.bf16.xpose.msra.mxu0 0
        %2594 = vmatprep.subr.bf16.mxu0 0
        %2595 = vmatpush1.bf16.xpose.msra.mxu0 0
        %2596 = vmatprep.subr.bf16.mxu0 0
        %2597 = vmatpush1.bf16.xpose.msra.mxu0 0
        %2598 = vmatprep.mubr.bf16.mxu0 0
        %2599 = vmatmul.mubr.bf16.gmra.mrb[0].mxu0 %v2561
        %v2600 = vpop.f32.mrb[0].mxu0
        %v2601 = vadd.f32 0.0, %v2600
        %v2602 = vpop.f32.mrb[0].mxu0
        %v2603 = vpop.f32.mrb[0].mxu0
        %v2604 = vadd.f32 0.0, %v2603
        %v2605 = vpop.f32.mrb[0].mxu0
        %2606 = vdwg.mxu0
        %2608 = vrot.lane.b32.xlu0 %v1198, 112
        %v2609 = vpop.permute.xlu0 %2608
        %v2611 = vsel %vm1209, %v1166, 0
        %v2614 = vsel %vm1209, %v2609, 0
        %2616 = vmatprep.subr.bf16.mxu0 0
        %2617 = vmatpush1.bf16.xpose.msra.mxu0 %v2614
        %2618 = vmatprep.subr.bf16.mxu0 0
        %2619 = vmatpush1.bf16.xpose.msra.mxu0 0
        %2620 = vmatprep.subr.bf16.mxu0 0
        %2621 = vmatpush1.bf16.xpose.msra.mxu0 0
        %2622 = vmatprep.subr.bf16.mxu0 0
        %2623 = vmatpush1.bf16.xpose.msra.mxu0 0
        %2624 = vmatprep.subr.bf16.mxu0 0
        %2625 = vmatpush1.bf16.xpose.msra.mxu0 0
        %2626 = vmatprep.subr.bf16.mxu0 0
        %2627 = vmatpush1.bf16.xpose.msra.mxu0 0
        %2628 = vmatprep.subr.bf16.mxu0 0
        %2629 = vmatpush1.bf16.xpose.msra.mxu0 0
        %2630 = vmatprep.subr.bf16.mxu0 0
        %2631 = vmatpush1.bf16.xpose.msra.mxu0 0
        %2632 = vmatprep.subr.bf16.mxu0 0
        %2633 = vmatpush1.bf16.xpose.msra.mxu0 0
        %2634 = vmatprep.subr.bf16.mxu0 0
        %2635 = vmatpush1.bf16.xpose.msra.mxu0 0
        %2636 = vmatprep.subr.bf16.mxu0 0
        %2637 = vmatpush1.bf16.xpose.msra.mxu0 0
        %2638 = vmatprep.subr.bf16.mxu0 0
        %2639 = vmatpush1.bf16.xpose.msra.mxu0 0
        %2640 = vmatprep.subr.bf16.mxu0 0
        %2641 = vmatpush1.bf16.xpose.msra.mxu0 0
        %2642 = vmatprep.subr.bf16.mxu0 0
        %2643 = vmatpush1.bf16.xpose.msra.mxu0 0
        %2644 = vmatprep.subr.bf16.mxu0 0
        %2645 = vmatpush1.bf16.xpose.msra.mxu0 0
        %2646 = vmatprep.subr.bf16.mxu0 0
        %2647 = vmatpush1.bf16.xpose.msra.mxu0 0
        %2648 = vmatprep.mubr.bf16.mxu0 0
        %2649 = vmatmul.mubr.bf16.gmra.mrb[0].mxu0 %v2611
        %v2650 = vpop.f32.mrb[0].mxu0
        %v2651 = vadd.f32 0.0, %v2650
        %v2652 = vpop.f32.mrb[0].mxu0
        %v2653 = vpop.f32.mrb[0].mxu0
        %v2654 = vadd.f32 0.0, %v2653
        %v2655 = vpop.f32.mrb[0].mxu0
        %2656 = vdwg.mxu0
        %2658 = vrot.lane.b32.xlu0 %v1199, 112
        %v2659 = vpop.permute.xlu0 %2658
        %v2661 = vsel %vm1209, %v1167, 0
        %v2664 = vsel %vm1209, %v2659, 0
        %2666 = vmatprep.subr.bf16.mxu0 0
        %2667 = vmatpush1.bf16.xpose.msra.mxu0 %v2664
        %2668 = vmatprep.subr.bf16.mxu0 0
        %2669 = vmatpush1.bf16.xpose.msra.mxu0 0
        %2670 = vmatprep.subr.bf16.mxu0 0
        %2671 = vmatpush1.bf16.xpose.msra.mxu0 0
        %2672 = vmatprep.subr.bf16.mxu0 0
        %2673 = vmatpush1.bf16.xpose.msra.mxu0 0
        %2674 = vmatprep.subr.bf16.mxu0 0
        %2675 = vmatpush1.bf16.xpose.msra.mxu0 0
        %2676 = vmatprep.subr.bf16.mxu0 0
        %2677 = vmatpush1.bf16.xpose.msra.mxu0 0
        %2678 = vmatprep.subr.bf16.mxu0 0
        %2679 = vmatpush1.bf16.xpose.msra.mxu0 0
        %2680 = vmatprep.subr.bf16.mxu0 0
        %2681 = vmatpush1.bf16.xpose.msra.mxu0 0
        %2682 = vmatprep.subr.bf16.mxu0 0
        %2683 = vmatpush1.bf16.xpose.msra.mxu0 0
        %2684 = vmatprep.subr.bf16.mxu0 0
        %2685 = vmatpush1.bf16.xpose.msra.mxu0 0
        %2686 = vmatprep.subr.bf16.mxu0 0
        %2687 = vmatpush1.bf16.xpose.msra.mxu0 0
        %2688 = vmatprep.subr.bf16.mxu0 0
        %2689 = vmatpush1.bf16.xpose.msra.mxu0 0
        %2690 = vmatprep.subr.bf16.mxu0 0
        %2691 = vmatpush1.bf16.xpose.msra.mxu0 0
        %2692 = vmatprep.subr.bf16.mxu0 0
        %2693 = vmatpush1.bf16.xpose.msra.mxu0 0
        %2694 = vmatprep.subr.bf16.mxu0 0
        %2695 = vmatpush1.bf16.xpose.msra.mxu0 0
        %2696 = vmatprep.subr.bf16.mxu0 0
        %2697 = vmatpush1.bf16.xpose.msra.mxu0 0
        %2698 = vmatprep.mubr.bf16.mxu0 0
        %2699 = vmatmul.mubr.bf16.gmra.mrb[0].mxu0 %v2661
        %v2700 = vpop.f32.mrb[0].mxu0
        %v2701 = vadd.f32 0.0, %v2700
        %v2702 = vpop.f32.mrb[0].mxu0
        %v2703 = vpop.f32.mrb[0].mxu0
        %v2704 = vadd.f32 0.0, %v2703
        %v2705 = vpop.f32.mrb[0].mxu0
        %2706 = vdwg.mxu0
        %2708 = vrot.lane.b32.xlu0 %v1200, 112
        %v2709 = vpop.permute.xlu0 %2708
        %v2711 = vsel %vm1209, %v1168, 0
        %v2714 = vsel %vm1209, %v2709, 0
        %2716 = vmatprep.subr.bf16.mxu0 0
        %2717 = vmatpush1.bf16.xpose.msra.mxu0 %v2714
        %2718 = vmatprep.subr.bf16.mxu0 0
        %2719 = vmatpush1.bf16.xpose.msra.mxu0 0
        %2720 = vmatprep.subr.bf16.mxu0 0
        %2721 = vmatpush1.bf16.xpose.msra.mxu0 0
        %2722 = vmatprep.subr.bf16.mxu0 0
        %2723 = vmatpush1.bf16.xpose.msra.mxu0 0
        %2724 = vmatprep.subr.bf16.mxu0 0
        %2725 = vmatpush1.bf16.xpose.msra.mxu0 0
        %2726 = vmatprep.subr.bf16.mxu0 0
        %2727 = vmatpush1.bf16.xpose.msra.mxu0 0
        %2728 = vmatprep.subr.bf16.mxu0 0
        %2729 = vmatpush1.bf16.xpose.msra.mxu0 0
        %2730 = vmatprep.subr.bf16.mxu0 0
        %2731 = vmatpush1.bf16.xpose.msra.mxu0 0
        %2732 = vmatprep.subr.bf16.mxu0 0
        %2733 = vmatpush1.bf16.xpose.msra.mxu0 0
        %2734 = vmatprep.subr.bf16.mxu0 0
        %2735 = vmatpush1.bf16.xpose.msra.mxu0 0
        %2736 = vmatprep.subr.bf16.mxu0 0
        %2737 = vmatpush1.bf16.xpose.msra.mxu0 0
        %2738 = vmatprep.subr.bf16.mxu0 0
        %2739 = vmatpush1.bf16.xpose.msra.mxu0 0
        %2740 = vmatprep.subr.bf16.mxu0 0
        %2741 = vmatpush1.bf16.xpose.msra.mxu0 0
        %2742 = vmatprep.subr.bf16.mxu0 0
        %2743 = vmatpush1.bf16.xpose.msra.mxu0 0
        %2744 = vmatprep.subr.bf16.mxu0 0
        %2745 = vmatpush1.bf16.xpose.msra.mxu0 0
        %2746 = vmatprep.subr.bf16.mxu0 0
        %2747 = vmatpush1.bf16.xpose.msra.mxu0 0
        %2748 = vmatprep.mubr.bf16.mxu0 0
        %2749 = vmatmul.mubr.bf16.gmra.mrb[0].mxu0 %v2711
        %v2750 = vpop.f32.mrb[0].mxu0
        %v2751 = vadd.f32 0.0, %v2750
        %v2752 = vpop.f32.mrb[0].mxu0
        %v2753 = vpop.f32.mrb[0].mxu0
        %v2754 = vadd.f32 0.0, %v2753
        %v2755 = vpop.f32.mrb[0].mxu0
        %2756 = vdwg.mxu0
        %2758 = vrot.lane.b32.xlu0 %v1201, 112
        %v2759 = vpop.permute.xlu0 %2758
        %v2761 = vsel %vm1209, %v1169, 0
        %v2764 = vsel %vm1209, %v2759, 0
        %2766 = vmatprep.subr.bf16.mxu0 0
        %2767 = vmatpush1.bf16.xpose.msra.mxu0 %v2764
        %2768 = vmatprep.subr.bf16.mxu0 0
        %2769 = vmatpush1.bf16.xpose.msra.mxu0 0
        %2770 = vmatprep.subr.bf16.mxu0 0
        %2771 = vmatpush1.bf16.xpose.msra.mxu0 0
        %2772 = vmatprep.subr.bf16.mxu0 0
        %2773 = vmatpush1.bf16.xpose.msra.mxu0 0
        %2774 = vmatprep.subr.bf16.mxu0 0
        %2775 = vmatpush1.bf16.xpose.msra.mxu0 0
        %2776 = vmatprep.subr.bf16.mxu0 0
        %2777 = vmatpush1.bf16.xpose.msra.mxu0 0
        %2778 = vmatprep.subr.bf16.mxu0 0
        %2779 = vmatpush1.bf16.xpose.msra.mxu0 0
        %2780 = vmatprep.subr.bf16.mxu0 0
        %2781 = vmatpush1.bf16.xpose.msra.mxu0 0
        %2782 = vmatprep.subr.bf16.mxu0 0
        %2783 = vmatpush1.bf16.xpose.msra.mxu0 0
        %2784 = vmatprep.subr.bf16.mxu0 0
        %2785 = vmatpush1.bf16.xpose.msra.mxu0 0
        %2786 = vmatprep.subr.bf16.mxu0 0
        %2787 = vmatpush1.bf16.xpose.msra.mxu0 0
        %2788 = vmatprep.subr.bf16.mxu0 0
        %2789 = vmatpush1.bf16.xpose.msra.mxu0 0
        %2790 = vmatprep.subr.bf16.mxu0 0
        %2791 = vmatpush1.bf16.xpose.msra.mxu0 0
        %2792 = vmatprep.subr.bf16.mxu0 0
        %2793 = vmatpush1.bf16.xpose.msra.mxu0 0
        %2794 = vmatprep.subr.bf16.mxu0 0
        %2795 = vmatpush1.bf16.xpose.msra.mxu0 0
        %2796 = vmatprep.subr.bf16.mxu0 0
        %2797 = vmatpush1.bf16.xpose.msra.mxu0 0
        %2798 = vmatprep.mubr.bf16.mxu0 0
        %2799 = vmatmul.mubr.bf16.gmra.mrb[0].mxu0 %v2761
        %v2800 = vpop.f32.mrb[0].mxu0
        %v2801 = vadd.f32 0.0, %v2800
        %v2802 = vpop.f32.mrb[0].mxu0
        %v2803 = vpop.f32.mrb[0].mxu0
        %v2804 = vadd.f32 0.0, %v2803
        %v2805 = vpop.f32.mrb[0].mxu0
        %2806 = vdwg.mxu0
        %2808 = vrot.lane.b32.xlu0 %v1202, 112
        %v2809 = vpop.permute.xlu0 %2808
        %v2811 = vsel %vm1209, %v1170, 0
        %v2814 = vsel %vm1209, %v2809, 0
        %2816 = vmatprep.subr.bf16.mxu0 0
        %2817 = vmatpush1.bf16.xpose.msra.mxu0 %v2814
        %2818 = vmatprep.subr.bf16.mxu0 0
        %2819 = vmatpush1.bf16.xpose.msra.mxu0 0
        %2820 = vmatprep.subr.bf16.mxu0 0
        %2821 = vmatpush1.bf16.xpose.msra.mxu0 0
        %2822 = vmatprep.subr.bf16.mxu0 0
        %2823 = vmatpush1.bf16.xpose.msra.mxu0 0
        %2824 = vmatprep.subr.bf16.mxu0 0
        %2825 = vmatpush1.bf16.xpose.msra.mxu0 0
        %2826 = vmatprep.subr.bf16.mxu0 0
        %2827 = vmatpush1.bf16.xpose.msra.mxu0 0
        %2828 = vmatprep.subr.bf16.mxu0 0
        %2829 = vmatpush1.bf16.xpose.msra.mxu0 0
        %2830 = vmatprep.subr.bf16.mxu0 0
        %2831 = vmatpush1.bf16.xpose.msra.mxu0 0
        %2832 = vmatprep.subr.bf16.mxu0 0
        %2833 = vmatpush1.bf16.xpose.msra.mxu0 0
        %2834 = vmatprep.subr.bf16.mxu0 0
        %2835 = vmatpush1.bf16.xpose.msra.mxu0 0
        %2836 = vmatprep.subr.bf16.mxu0 0
        %2837 = vmatpush1.bf16.xpose.msra.mxu0 0
        %2838 = vmatprep.subr.bf16.mxu0 0
        %2839 = vmatpush1.bf16.xpose.msra.mxu0 0
        %2840 = vmatprep.subr.bf16.mxu0 0
        %2841 = vmatpush1.bf16.xpose.msra.mxu0 0
        %2842 = vmatprep.subr.bf16.mxu0 0
        %2843 = vmatpush1.bf16.xpose.msra.mxu0 0
        %2844 = vmatprep.subr.bf16.mxu0 0
        %2845 = vmatpush1.bf16.xpose.msra.mxu0 0
        %2846 = vmatprep.subr.bf16.mxu0 0
        %2847 = vmatpush1.bf16.xpose.msra.mxu0 0
        %2848 = vmatprep.mubr.bf16.mxu0 0
        %2849 = vmatmul.mubr.bf16.gmra.mrb[0].mxu0 %v2811
        %v2850 = vpop.f32.mrb[0].mxu0
        %v2851 = vadd.f32 0.0, %v2850
        %v2852 = vpop.f32.mrb[0].mxu0
        %v2853 = vpop.f32.mrb[0].mxu0
        %v2854 = vadd.f32 0.0, %v2853
        %v2855 = vpop.f32.mrb[0].mxu0
        %2856 = vdwg.mxu0
        %2858 = vrot.lane.b32.xlu0 %v1203, 112
        %v2859 = vpop.permute.xlu0 %2858
        %v2861 = vsel %vm1209, %v1171, 0
        %v2864 = vsel %vm1209, %v2859, 0
        %2866 = vmatprep.subr.bf16.mxu0 0
        %2867 = vmatpush1.bf16.xpose.msra.mxu0 %v2864
        %2868 = vmatprep.subr.bf16.mxu0 0
        %2869 = vmatpush1.bf16.xpose.msra.mxu0 0
        %2870 = vmatprep.subr.bf16.mxu0 0
        %2871 = vmatpush1.bf16.xpose.msra.mxu0 0
        %2872 = vmatprep.subr.bf16.mxu0 0
        %2873 = vmatpush1.bf16.xpose.msra.mxu0 0
        %2874 = vmatprep.subr.bf16.mxu0 0
        %2875 = vmatpush1.bf16.xpose.msra.mxu0 0
        %2876 = vmatprep.subr.bf16.mxu0 0
        %2877 = vmatpush1.bf16.xpose.msra.mxu0 0
        %2878 = vmatprep.subr.bf16.mxu0 0
        %2879 = vmatpush1.bf16.xpose.msra.mxu0 0
        %2880 = vmatprep.subr.bf16.mxu0 0
        %2881 = vmatpush1.bf16.xpose.msra.mxu0 0
        %2882 = vmatprep.subr.bf16.mxu0 0
        %2883 = vmatpush1.bf16.xpose.msra.mxu0 0
        %2884 = vmatprep.subr.bf16.mxu0 0
        %2885 = vmatpush1.bf16.xpose.msra.mxu0 0
        %2886 = vmatprep.subr.bf16.mxu0 0
        %2887 = vmatpush1.bf16.xpose.msra.mxu0 0
        %2888 = vmatprep.subr.bf16.mxu0 0
        %2889 = vmatpush1.bf16.xpose.msra.mxu0 0
        %2890 = vmatprep.subr.bf16.mxu0 0
        %2891 = vmatpush1.bf16.xpose.msra.mxu0 0
        %2892 = vmatprep.subr.bf16.mxu0 0
        %2893 = vmatpush1.bf16.xpose.msra.mxu0 0
        %2894 = vmatprep.subr.bf16.mxu0 0
        %2895 = vmatpush1.bf16.xpose.msra.mxu0 0
        %2896 = vmatprep.subr.bf16.mxu0 0
        %2897 = vmatpush1.bf16.xpose.msra.mxu0 0
        %2898 = vmatprep.mubr.bf16.mxu0 0
        %2899 = vmatmul.mubr.bf16.gmra.mrb[0].mxu0 %v2861
        %v2900 = vpop.f32.mrb[0].mxu0
        %v2901 = vadd.f32 0.0, %v2900
        %v2902 = vpop.f32.mrb[0].mxu0
        %v2903 = vpop.f32.mrb[0].mxu0
        %v2904 = vadd.f32 0.0, %v2903
        %v2905 = vpop.f32.mrb[0].mxu0
        %2906 = vdwg.mxu0
        %2908 = vrot.lane.b32.xlu0 %v1204, 112
        %v2909 = vpop.permute.xlu0 %2908
        %v2911 = vsel %vm1209, %v1172, 0
        %v2914 = vsel %vm1209, %v2909, 0
        %2916 = vmatprep.subr.bf16.mxu0 0
        %2917 = vmatpush1.bf16.xpose.msra.mxu0 %v2914
        %2918 = vmatprep.subr.bf16.mxu0 0
        %2919 = vmatpush1.bf16.xpose.msra.mxu0 0
        %2920 = vmatprep.subr.bf16.mxu0 0
        %2921 = vmatpush1.bf16.xpose.msra.mxu0 0
        %2922 = vmatprep.subr.bf16.mxu0 0
        %2923 = vmatpush1.bf16.xpose.msra.mxu0 0
        %2924 = vmatprep.subr.bf16.mxu0 0
        %2925 = vmatpush1.bf16.xpose.msra.mxu0 0
        %2926 = vmatprep.subr.bf16.mxu0 0
        %2927 = vmatpush1.bf16.xpose.msra.mxu0 0
        %2928 = vmatprep.subr.bf16.mxu0 0
        %2929 = vmatpush1.bf16.xpose.msra.mxu0 0
        %2930 = vmatprep.subr.bf16.mxu0 0
        %2931 = vmatpush1.bf16.xpose.msra.mxu0 0
        %2932 = vmatprep.subr.bf16.mxu0 0
        %2933 = vmatpush1.bf16.xpose.msra.mxu0 0
        %2934 = vmatprep.subr.bf16.mxu0 0
        %2935 = vmatpush1.bf16.xpose.msra.mxu0 0
        %2936 = vmatprep.subr.bf16.mxu0 0
        %2937 = vmatpush1.bf16.xpose.msra.mxu0 0
        %2938 = vmatprep.subr.bf16.mxu0 0
        %2939 = vmatpush1.bf16.xpose.msra.mxu0 0
        %2940 = vmatprep.subr.bf16.mxu0 0
        %2941 = vmatpush1.bf16.xpose.msra.mxu0 0
        %2942 = vmatprep.subr.bf16.mxu0 0
        %2943 = vmatpush1.bf16.xpose.msra.mxu0 0
        %2944 = vmatprep.subr.bf16.mxu0 0
        %2945 = vmatpush1.bf16.xpose.msra.mxu0 0
        %2946 = vmatprep.subr.bf16.mxu0 0
        %2947 = vmatpush1.bf16.xpose.msra.mxu0 0
        %2948 = vmatprep.mubr.bf16.mxu0 0
        %2949 = vmatmul.mubr.bf16.gmra.mrb[0].mxu0 %v2911
        %v2950 = vpop.f32.mrb[0].mxu0
        %v2951 = vadd.f32 0.0, %v2950
        %v2952 = vpop.f32.mrb[0].mxu0
        %v2953 = vpop.f32.mrb[0].mxu0
        %v2954 = vadd.f32 0.0, %v2953
        %v2955 = vpop.f32.mrb[0].mxu0
        %2956 = vdwg.mxu0
        %2958 = vrot.lane.b32.xlu0 %v1205, 112
        %v2959 = vpop.permute.xlu0 %2958
        %v2961 = vsel %vm1209, %v1173, 0
        %v2964 = vsel %vm1209, %v2959, 0
        %2966 = vmatprep.subr.bf16.mxu0 0
        %2967 = vmatpush1.bf16.xpose.msra.mxu0 %v2964
        %2968 = vmatprep.subr.bf16.mxu0 0
        %2969 = vmatpush1.bf16.xpose.msra.mxu0 0
        %2970 = vmatprep.subr.bf16.mxu0 0
        %2971 = vmatpush1.bf16.xpose.msra.mxu0 0
        %2972 = vmatprep.subr.bf16.mxu0 0
        %2973 = vmatpush1.bf16.xpose.msra.mxu0 0
        %2974 = vmatprep.subr.bf16.mxu0 0
        %2975 = vmatpush1.bf16.xpose.msra.mxu0 0
        %2976 = vmatprep.subr.bf16.mxu0 0
        %2977 = vmatpush1.bf16.xpose.msra.mxu0 0
        %2978 = vmatprep.subr.bf16.mxu0 0
        %2979 = vmatpush1.bf16.xpose.msra.mxu0 0
        %2980 = vmatprep.subr.bf16.mxu0 0
        %2981 = vmatpush1.bf16.xpose.msra.mxu0 0
        %2982 = vmatprep.subr.bf16.mxu0 0
        %2983 = vmatpush1.bf16.xpose.msra.mxu0 0
        %2984 = vmatprep.subr.bf16.mxu0 0
        %2985 = vmatpush1.bf16.xpose.msra.mxu0 0
        %2986 = vmatprep.subr.bf16.mxu0 0
        %2987 = vmatpush1.bf16.xpose.msra.mxu0 0
        %2988 = vmatprep.subr.bf16.mxu0 0
        %2989 = vmatpush1.bf16.xpose.msra.mxu0 0
        %2990 = vmatprep.subr.bf16.mxu0 0
        %2991 = vmatpush1.bf16.xpose.msra.mxu0 0
        %2992 = vmatprep.subr.bf16.mxu0 0
        %2993 = vmatpush1.bf16.xpose.msra.mxu0 0
        %2994 = vmatprep.subr.bf16.mxu0 0
        %2995 = vmatpush1.bf16.xpose.msra.mxu0 0
        %2996 = vmatprep.subr.bf16.mxu0 0
        %2997 = vmatpush1.bf16.xpose.msra.mxu0 0
        %2998 = vmatprep.mubr.bf16.mxu0 0
        %2999 = vmatmul.mubr.bf16.gmra.mrb[0].mxu0 %v2961
        %v3000 = vpop.f32.mrb[0].mxu0
        %v3001 = vadd.f32 0.0, %v3000
        %v3002 = vpop.f32.mrb[0].mxu0
        %v3003 = vpop.f32.mrb[0].mxu0
        %v3004 = vadd.f32 0.0, %v3003
        %v3005 = vpop.f32.mrb[0].mxu0
        %3006 = vdwg.mxu0
        %v3007 = vld [vmem:[%s309] sm:$0xff]
        %v3008 = vld [vmem:[%s309 + $0x8] sm:$0xff]
        %v3009 = vld [vmem:[%s309 + $0x10] sm:$0xff]
        %v3010 = vld [vmem:[%s309 + $0x18] sm:$0xff]
        %v3011 = vld [vmem:[%s309 + $0x20] sm:$0xff]
        %v3012 = vld [vmem:[%s309 + $0x28] sm:$0xff]
        %v3013 = vld [vmem:[%s309 + $0x30] sm:$0xff]
        %v3014 = vld [vmem:[%s309 + $0x38] sm:$0xff]
        %v3015 = vld [vmem:[%s309 + $0x40] sm:$0xff]
        %v3016 = vld [vmem:[%s309 + $0x48] sm:$0xff]
        %v3017 = vld [vmem:[%s309 + $0x50] sm:$0xff]
        %v3018 = vld [vmem:[%s309 + $0x58] sm:$0xff]
        %v3019 = vld [vmem:[%s309 + $0x60] sm:$0xff]
        %v3020 = vld [vmem:[%s309 + $0x68] sm:$0xff]
        %v3021 = vld [vmem:[%s309 + $0x70] sm:$0xff]
        %v3022 = vld [vmem:[%s309 + $0x78] sm:$0xff]
        %v3023 = vld [vmem:[%s309 + $0x80] sm:$0xff]
        %v3024 = vld [vmem:[%s309 + $0x88] sm:$0xff]
        %v3025 = vld [vmem:[%s309 + $0x90] sm:$0xff]
        %v3026 = vld [vmem:[%s309 + $0x98] sm:$0xff]
        %v3027 = vld [vmem:[%s309 + $0xa0] sm:$0xff]
        %v3028 = vld [vmem:[%s309 + $0xa8] sm:$0xff]
        %v3029 = vld [vmem:[%s309 + $0xb0] sm:$0xff]
        %v3030 = vld [vmem:[%s309 + $0xb8] sm:$0xff]
        %vm3031 = vcmp.gt.f32.partialorder %v3007, 0.0
        %vm3032 = vcmp.gt.f32.partialorder %v3008, 0.0
        %vm3033 = vcmp.gt.f32.partialorder %v3009, 0.0
        %vm3034 = vcmp.gt.f32.partialorder %v3010, 0.0
        %vm3035 = vcmp.gt.f32.partialorder %v3011, 0.0
        %vm3036 = vcmp.gt.f32.partialorder %v3012, 0.0
        %vm3037 = vcmp.gt.f32.partialorder %v3013, 0.0
        %vm3038 = vcmp.gt.f32.partialorder %v3014, 0.0
        %vm3039 = vcmp.gt.f32.partialorder %v3015, 0.0
        %vm3040 = vcmp.gt.f32.partialorder %v3016, 0.0
        %vm3041 = vcmp.gt.f32.partialorder %v3017, 0.0
        %vm3042 = vcmp.gt.f32.partialorder %v3018, 0.0
        %vm3043 = vcmp.gt.f32.partialorder %v3019, 0.0
        %vm3044 = vcmp.gt.f32.partialorder %v3020, 0.0
        %vm3045 = vcmp.gt.f32.partialorder %v3021, 0.0
        %vm3046 = vcmp.gt.f32.partialorder %v3022, 0.0
        %vm3047 = vcmp.gt.f32.partialorder %v3023, 0.0
        %vm3048 = vcmp.gt.f32.partialorder %v3024, 0.0
        %vm3049 = vcmp.gt.f32.partialorder %v3025, 0.0
        %vm3050 = vcmp.gt.f32.partialorder %v3026, 0.0
        %vm3051 = vcmp.gt.f32.partialorder %v3027, 0.0
        %vm3052 = vcmp.gt.f32.partialorder %v3028, 0.0
        %vm3053 = vcmp.gt.f32.partialorder %v3029, 0.0
        %vm3054 = vcmp.gt.f32.partialorder %v3030, 0.0
        %v3055 = vsel %vm3031, 1, 0
        %v3056 = vsel %vm3032, 1, 0
        %v3057 = vsel %vm3033, 1, 0
        %v3058 = vsel %vm3034, 1, 0
        %v3059 = vsel %vm3035, 1, 0
        %v3060 = vsel %vm3036, 1, 0
        %v3061 = vsel %vm3037, 1, 0
        %v3062 = vsel %vm3038, 1, 0
        %v3063 = vsel %vm3039, 1, 0
        %v3064 = vsel %vm3040, 1, 0
        %v3065 = vsel %vm3041, 1, 0
        %v3066 = vsel %vm3042, 1, 0
        %v3067 = vsel %vm3043, 1, 0
        %v3068 = vsel %vm3044, 1, 0
        %v3069 = vsel %vm3045, 1, 0
        %v3070 = vsel %vm3046, 1, 0
        %v3071 = vsel %vm3047, 1, 0
        %v3072 = vsel %vm3048, 1, 0
        %v3073 = vsel %vm3049, 1, 0
        %v3074 = vsel %vm3050, 1, 0
        %v3075 = vsel %vm3051, 1, 0
        %v3076 = vsel %vm3052, 1, 0
        %v3077 = vsel %vm3053, 1, 0
        %v3078 = vsel %vm3054, 1, 0
        %vm3079 = vcmp.eq.s32.totalorder %v3055, 1
        %vm3080 = vcmp.eq.s32.totalorder %v3056, 1
        %vm3081 = vcmp.eq.s32.totalorder %v3057, 1
        %vm3082 = vcmp.eq.s32.totalorder %v3058, 1
        %vm3083 = vcmp.eq.s32.totalorder %v3059, 1
        %vm3084 = vcmp.eq.s32.totalorder %v3060, 1
        %vm3085 = vcmp.eq.s32.totalorder %v3061, 1
        %vm3086 = vcmp.eq.s32.totalorder %v3062, 1
        %vm3087 = vcmp.eq.s32.totalorder %v3063, 1
        %vm3088 = vcmp.eq.s32.totalorder %v3064, 1
        %vm3089 = vcmp.eq.s32.totalorder %v3065, 1
        %vm3090 = vcmp.eq.s32.totalorder %v3066, 1
        %vm3091 = vcmp.eq.s32.totalorder %v3067, 1
        %vm3092 = vcmp.eq.s32.totalorder %v3068, 1
        %vm3093 = vcmp.eq.s32.totalorder %v3069, 1
        %vm3094 = vcmp.eq.s32.totalorder %v3070, 1
        %vm3095 = vcmp.eq.s32.totalorder %v3071, 1
        %vm3096 = vcmp.eq.s32.totalorder %v3072, 1
        %vm3097 = vcmp.eq.s32.totalorder %v3073, 1
        %vm3098 = vcmp.eq.s32.totalorder %v3074, 1
        %vm3099 = vcmp.eq.s32.totalorder %v3075, 1
        %vm3100 = vcmp.eq.s32.totalorder %v3076, 1
        %vm3101 = vcmp.eq.s32.totalorder %v3077, 1
        %vm3102 = vcmp.eq.s32.totalorder %v3078, 1
        %v3103 = vsel %vm3079, %v1251, -1e+09
        %v3104 = vsel %vm3080, %v1254, -1e+09
        %v3105 = vsel %vm3079, %v1301, -1e+09
        %v3106 = vsel %vm3080, %v1304, -1e+09
        %v3107 = vsel %vm3079, %v1351, -1e+09
        %v3108 = vsel %vm3080, %v1354, -1e+09
        %v3109 = vsel %vm3081, %v1401, -1e+09
        %v3110 = vsel %vm3082, %v1404, -1e+09
        %v3111 = vsel %vm3081, %v1451, -1e+09
        %v3112 = vsel %vm3082, %v1454, -1e+09
        %v3113 = vsel %vm3081, %v1501, -1e+09
        %v3114 = vsel %vm3082, %v1504, -1e+09
        %v3115 = vsel %vm3083, %v1551, -1e+09
        %v3116 = vsel %vm3084, %v1554, -1e+09
        %v3117 = vsel %vm3083, %v1601, -1e+09
        %v3118 = vsel %vm3084, %v1604, -1e+09
        %v3119 = vsel %vm3083, %v1651, -1e+09
        %v3120 = vsel %vm3084, %v1654, -1e+09
        %v3121 = vsel %vm3085, %v1701, -1e+09
        %v3122 = vsel %vm3086, %v1704, -1e+09
        %v3123 = vsel %vm3085, %v1751, -1e+09
        %v3124 = vsel %vm3086, %v1754, -1e+09
        %v3125 = vsel %vm3085, %v1801, -1e+09
        %v3126 = vsel %vm3086, %v1804, -1e+09
        %v3127 = vsel %vm3087, %v1851, -1e+09
        %v3128 = vsel %vm3088, %v1854, -1e+09
        %v3129 = vsel %vm3087, %v1901, -1e+09
        %v3130 = vsel %vm3088, %v1904, -1e+09
        %v3131 = vsel %vm3087, %v1951, -1e+09
        %v3132 = vsel %vm3088, %v1954, -1e+09
        %v3133 = vsel %vm3089, %v2001, -1e+09
        %v3134 = vsel %vm3090, %v2004, -1e+09
        %v3135 = vsel %vm3089, %v2051, -1e+09
        %v3136 = vsel %vm3090, %v2054, -1e+09
        %v3137 = vsel %vm3089, %v2101, -1e+09
        %v3138 = vsel %vm3090, %v2104, -1e+09
        %v3139 = vsel %vm3091, %v2151, -1e+09
        %v3140 = vsel %vm3092, %v2154, -1e+09
        %v3141 = vsel %vm3091, %v2201, -1e+09
        %v3142 = vsel %vm3092, %v2204, -1e+09
        %v3143 = vsel %vm3091, %v2251, -1e+09
        %v3144 = vsel %vm3092, %v2254, -1e+09
        %v3145 = vsel %vm3093, %v2301, -1e+09
        %v3146 = vsel %vm3094, %v2304, -1e+09
        %v3147 = vsel %vm3093, %v2351, -1e+09
        %v3148 = vsel %vm3094, %v2354, -1e+09
        %v3149 = vsel %vm3093, %v2401, -1e+09
        %v3150 = vsel %vm3094, %v2404, -1e+09
        %v3151 = vsel %vm3095, %v2451, -1e+09
        %v3152 = vsel %vm3096, %v2454, -1e+09
        %v3153 = vsel %vm3095, %v2501, -1e+09
        %v3154 = vsel %vm3096, %v2504, -1e+09
        %v3155 = vsel %vm3095, %v2551, -1e+09
        %v3156 = vsel %vm3096, %v2554, -1e+09
        %v3157 = vsel %vm3097, %v2601, -1e+09
        %v3158 = vsel %vm3098, %v2604, -1e+09
        %v3159 = vsel %vm3097, %v2651, -1e+09
        %v3160 = vsel %vm3098, %v2654, -1e+09
        %v3161 = vsel %vm3097, %v2701, -1e+09
        %v3162 = vsel %vm3098, %v2704, -1e+09
        %v3163 = vsel %vm3099, %v2751, -1e+09
        %v3164 = vsel %vm3100, %v2754, -1e+09
        %v3165 = vsel %vm3099, %v2801, -1e+09
        %v3166 = vsel %vm3100, %v2804, -1e+09
        %v3167 = vsel %vm3099, %v2851, -1e+09
        %v3168 = vsel %vm3100, %v2854, -1e+09
        %v3169 = vsel %vm3101, %v2901, -1e+09
        %v3170 = vsel %vm3102, %v2904, -1e+09
        %v3171 = vsel %vm3101, %v2951, -1e+09
        %v3172 = vsel %vm3102, %v2954, -1e+09
        %v3173 = vsel %vm3101, %v3001, -1e+09
        %v3174 = vsel %vm3102, %v3004, -1e+09
        %v3175 = vsel %vm1209, %v3103, -inf
        %3176 = vmax.xlane.f32.xlu0 %v3175
        %v3177 = vpop.xlane.xlu0 %3176
        %v3178 = vsel %vm1209, %v3104, -inf
        %3179 = vmax.xlane.f32.xlu0 %v3178
        %v3180 = vpop.xlane.xlu0 %3179
        %v3181 = vsel %vm1209, %v3105, -inf
        %3182 = vmax.xlane.f32.xlu0 %v3181
        %v3183 = vpop.xlane.xlu0 %3182
        %v3184 = vsel %vm1209, %v3106, -inf
        %3185 = vmax.xlane.f32.xlu0 %v3184
        %v3186 = vpop.xlane.xlu0 %3185
        %v3187 = vsel %vm1209, %v3107, -inf
        %3188 = vmax.xlane.f32.xlu0 %v3187
        %v3189 = vpop.xlane.xlu0 %3188
        %v3190 = vsel %vm1209, %v3108, -inf
        %3191 = vmax.xlane.f32.xlu0 %v3190
        %v3192 = vpop.xlane.xlu0 %3191
        %v3193 = vsel %vm1209, %v3109, -inf
        %3194 = vmax.xlane.f32.xlu0 %v3193
        %v3195 = vpop.xlane.xlu0 %3194
        %v3196 = vsel %vm1209, %v3110, -inf
        %3197 = vmax.xlane.f32.xlu0 %v3196
        %v3198 = vpop.xlane.xlu0 %3197
        %v3199 = vsel %vm1209, %v3111, -inf
        %3200 = vmax.xlane.f32.xlu0 %v3199
        %v3201 = vpop.xlane.xlu0 %3200
        %v3202 = vsel %vm1209, %v3112, -inf
        %3203 = vmax.xlane.f32.xlu0 %v3202
        %v3204 = vpop.xlane.xlu0 %3203
        %v3205 = vsel %vm1209, %v3113, -inf
        %3206 = vmax.xlane.f32.xlu0 %v3205
        %v3207 = vpop.xlane.xlu0 %3206
        %v3208 = vsel %vm1209, %v3114, -inf
        %3209 = vmax.xlane.f32.xlu0 %v3208
        %v3210 = vpop.xlane.xlu0 %3209
        %v3211 = vsel %vm1209, %v3115, -inf
        %3212 = vmax.xlane.f32.xlu0 %v3211
        %v3213 = vpop.xlane.xlu0 %3212
        %v3214 = vsel %vm1209, %v3116, -inf
        %3215 = vmax.xlane.f32.xlu0 %v3214
        %v3216 = vpop.xlane.xlu0 %3215
        %v3217 = vsel %vm1209, %v3117, -inf
        %3218 = vmax.xlane.f32.xlu0 %v3217
        %v3219 = vpop.xlane.xlu0 %3218
        %v3220 = vsel %vm1209, %v3118, -inf
        %3221 = vmax.xlane.f32.xlu0 %v3220
        %v3222 = vpop.xlane.xlu0 %3221
        %v3223 = vsel %vm1209, %v3119, -inf
        %3224 = vmax.xlane.f32.xlu0 %v3223
        %v3225 = vpop.xlane.xlu0 %3224
        %v3226 = vsel %vm1209, %v3120, -inf
        %3227 = vmax.xlane.f32.xlu0 %v3226
        %v3228 = vpop.xlane.xlu0 %3227
        %v3229 = vsel %vm1209, %v3121, -inf
        %3230 = vmax.xlane.f32.xlu0 %v3229
        %v3231 = vpop.xlane.xlu0 %3230
        %v3232 = vsel %vm1209, %v3122, -inf
        %3233 = vmax.xlane.f32.xlu0 %v3232
        %v3234 = vpop.xlane.xlu0 %3233
        %v3235 = vsel %vm1209, %v3123, -inf
        %3236 = vmax.xlane.f32.xlu0 %v3235
        %v3237 = vpop.xlane.xlu0 %3236
        %v3238 = vsel %vm1209, %v3124, -inf
        %3239 = vmax.xlane.f32.xlu0 %v3238
        %v3240 = vpop.xlane.xlu0 %3239
        %v3241 = vsel %vm1209, %v3125, -inf
        %3242 = vmax.xlane.f32.xlu0 %v3241
        %v3243 = vpop.xlane.xlu0 %3242
        %v3244 = vsel %vm1209, %v3126, -inf
        %3245 = vmax.xlane.f32.xlu0 %v3244
        %v3246 = vpop.xlane.xlu0 %3245
        %v3247 = vsel %vm1209, %v3127, -inf
        %3248 = vmax.xlane.f32.xlu0 %v3247
        %v3249 = vpop.xlane.xlu0 %3248
        %v3250 = vsel %vm1209, %v3128, -inf
        %3251 = vmax.xlane.f32.xlu0 %v3250
        %v3252 = vpop.xlane.xlu0 %3251
        %v3253 = vsel %vm1209, %v3129, -inf
        %3254 = vmax.xlane.f32.xlu0 %v3253
        %v3255 = vpop.xlane.xlu0 %3254
        %v3256 = vsel %vm1209, %v3130, -inf
        %3257 = vmax.xlane.f32.xlu0 %v3256
        %v3258 = vpop.xlane.xlu0 %3257
        %v3259 = vsel %vm1209, %v3131, -inf
        %3260 = vmax.xlane.f32.xlu0 %v3259
        %v3261 = vpop.xlane.xlu0 %3260
        %v3262 = vsel %vm1209, %v3132, -inf
        %3263 = vmax.xlane.f32.xlu0 %v3262
        %v3264 = vpop.xlane.xlu0 %3263
        %v3265 = vsel %vm1209, %v3133, -inf
        %3266 = vmax.xlane.f32.xlu0 %v3265
        %v3267 = vpop.xlane.xlu0 %3266
        %v3268 = vsel %vm1209, %v3134, -inf
        %3269 = vmax.xlane.f32.xlu0 %v3268
        %v3270 = vpop.xlane.xlu0 %3269
        %v3271 = vsel %vm1209, %v3135, -inf
        %3272 = vmax.xlane.f32.xlu0 %v3271
        %v3273 = vpop.xlane.xlu0 %3272
        %v3274 = vsel %vm1209, %v3136, -inf
        %3275 = vmax.xlane.f32.xlu0 %v3274
        %v3276 = vpop.xlane.xlu0 %3275
        %v3277 = vsel %vm1209, %v3137, -inf
        %3278 = vmax.xlane.f32.xlu0 %v3277
        %v3279 = vpop.xlane.xlu0 %3278
        %v3280 = vsel %vm1209, %v3138, -inf
        %3281 = vmax.xlane.f32.xlu0 %v3280
        %v3282 = vpop.xlane.xlu0 %3281
        %v3283 = vsel %vm1209, %v3139, -inf
        %3284 = vmax.xlane.f32.xlu0 %v3283
        %v3285 = vpop.xlane.xlu0 %3284
        %v3286 = vsel %vm1209, %v3140, -inf
        %3287 = vmax.xlane.f32.xlu0 %v3286
        %v3288 = vpop.xlane.xlu0 %3287
        %v3289 = vsel %vm1209, %v3141, -inf
        %3290 = vmax.xlane.f32.xlu0 %v3289
        %v3291 = vpop.xlane.xlu0 %3290
        %v3292 = vsel %vm1209, %v3142, -inf
        %3293 = vmax.xlane.f32.xlu0 %v3292
        %v3294 = vpop.xlane.xlu0 %3293
        %v3295 = vsel %vm1209, %v3143, -inf
        %3296 = vmax.xlane.f32.xlu0 %v3295
        %v3297 = vpop.xlane.xlu0 %3296
        %v3298 = vsel %vm1209, %v3144, -inf
        %3299 = vmax.xlane.f32.xlu0 %v3298
        %v3300 = vpop.xlane.xlu0 %3299
        %v3301 = vsel %vm1209, %v3145, -inf
        %3302 = vmax.xlane.f32.xlu0 %v3301
        %v3303 = vpop.xlane.xlu0 %3302
        %v3304 = vsel %vm1209, %v3146, -inf
        %3305 = vmax.xlane.f32.xlu0 %v3304
        %v3306 = vpop.xlane.xlu0 %3305
        %v3307 = vsel %vm1209, %v3147, -inf
        %3308 = vmax.xlane.f32.xlu0 %v3307
        %v3309 = vpop.xlane.xlu0 %3308
        %v3310 = vsel %vm1209, %v3148, -inf
        %3311 = vmax.xlane.f32.xlu0 %v3310
        %v3312 = vpop.xlane.xlu0 %3311
        %v3313 = vsel %vm1209, %v3149, -inf
        %3314 = vmax.xlane.f32.xlu0 %v3313
        %v3315 = vpop.xlane.xlu0 %3314
        %v3316 = vsel %vm1209, %v3150, -inf
        %3317 = vmax.xlane.f32.xlu0 %v3316
        %v3318 = vpop.xlane.xlu0 %3317
        %v3319 = vsel %vm1209, %v3151, -inf
        %3320 = vmax.xlane.f32.xlu0 %v3319
        %v3321 = vpop.xlane.xlu0 %3320
        %v3322 = vsel %vm1209, %v3152, -inf
        %3323 = vmax.xlane.f32.xlu0 %v3322
        %v3324 = vpop.xlane.xlu0 %3323
        %v3325 = vsel %vm1209, %v3153, -inf
        %3326 = vmax.xlane.f32.xlu0 %v3325
        %v3327 = vpop.xlane.xlu0 %3326
        %v3328 = vsel %vm1209, %v3154, -inf
        %3329 = vmax.xlane.f32.xlu0 %v3328
        %v3330 = vpop.xlane.xlu0 %3329
        %v3331 = vsel %vm1209, %v3155, -inf
        %3332 = vmax.xlane.f32.xlu0 %v3331
        %v3333 = vpop.xlane.xlu0 %3332
        %v3334 = vsel %vm1209, %v3156, -inf
        %3335 = vmax.xlane.f32.xlu0 %v3334
        %v3336 = vpop.xlane.xlu0 %3335
        %v3337 = vsel %vm1209, %v3157, -inf
        %3338 = vmax.xlane.f32.xlu0 %v3337
        %v3339 = vpop.xlane.xlu0 %3338
        %v3340 = vsel %vm1209, %v3158, -inf
        %3341 = vmax.xlane.f32.xlu0 %v3340
        %v3342 = vpop.xlane.xlu0 %3341
        %v3343 = vsel %vm1209, %v3159, -inf
        %3344 = vmax.xlane.f32.xlu0 %v3343
        %v3345 = vpop.xlane.xlu0 %3344
        %v3346 = vsel %vm1209, %v3160, -inf
        %3347 = vmax.xlane.f32.xlu0 %v3346
        %v3348 = vpop.xlane.xlu0 %3347
        %v3349 = vsel %vm1209, %v3161, -inf
        %3350 = vmax.xlane.f32.xlu0 %v3349
        %v3351 = vpop.xlane.xlu0 %3350
        %v3352 = vsel %vm1209, %v3162, -inf
        %3353 = vmax.xlane.f32.xlu0 %v3352
        %v3354 = vpop.xlane.xlu0 %3353
        %v3355 = vsel %vm1209, %v3163, -inf
        %3356 = vmax.xlane.f32.xlu0 %v3355
        %v3357 = vpop.xlane.xlu0 %3356
        %v3358 = vsel %vm1209, %v3164, -inf
        %3359 = vmax.xlane.f32.xlu0 %v3358
        %v3360 = vpop.xlane.xlu0 %3359
        %v3361 = vsel %vm1209, %v3165, -inf
        %3362 = vmax.xlane.f32.xlu0 %v3361
        %v3363 = vpop.xlane.xlu0 %3362
        %v3364 = vsel %vm1209, %v3166, -inf
        %3365 = vmax.xlane.f32.xlu0 %v3364
        %v3366 = vpop.xlane.xlu0 %3365
        %v3367 = vsel %vm1209, %v3167, -inf
        %3368 = vmax.xlane.f32.xlu0 %v3367
        %v3369 = vpop.xlane.xlu0 %3368
        %v3370 = vsel %vm1209, %v3168, -inf
        %3371 = vmax.xlane.f32.xlu0 %v3370
        %v3372 = vpop.xlane.xlu0 %3371
        %v3373 = vsel %vm1209, %v3169, -inf
        %3374 = vmax.xlane.f32.xlu0 %v3373
        %v3375 = vpop.xlane.xlu0 %3374
        %v3376 = vsel %vm1209, %v3170, -inf
        %3377 = vmax.xlane.f32.xlu0 %v3376
        %v3378 = vpop.xlane.xlu0 %3377
        %v3379 = vsel %vm1209, %v3171, -inf
        %3380 = vmax.xlane.f32.xlu0 %v3379
        %v3381 = vpop.xlane.xlu0 %3380
        %v3382 = vsel %vm1209, %v3172, -inf
        %3383 = vmax.xlane.f32.xlu0 %v3382
        %v3384 = vpop.xlane.xlu0 %3383
        %v3385 = vsel %vm1209, %v3173, -inf
        %3386 = vmax.xlane.f32.xlu0 %v3385
        %v3387 = vpop.xlane.xlu0 %3386
        %v3388 = vsel %vm1209, %v3174, -inf
        %3389 = vmax.xlane.f32.xlu0 %v3388
        %v3390 = vpop.xlane.xlu0 %3389
        %v3391 = vsub.f32 %v3103, %v3177
        %v3392 = vsub.f32 %v3104, %v3180
        %v3393 = vsub.f32 %v3105, %v3183
        %v3394 = vsub.f32 %v3106, %v3186
        %v3395 = vsub.f32 %v3107, %v3189
        %v3396 = vsub.f32 %v3108, %v3192
        %v3397 = vsub.f32 %v3109, %v3195
        %v3398 = vsub.f32 %v3110, %v3198
        %v3399 = vsub.f32 %v3111, %v3201
        %v3400 = vsub.f32 %v3112, %v3204
        %v3401 = vsub.f32 %v3113, %v3207
        %v3402 = vsub.f32 %v3114, %v3210
        %v3403 = vsub.f32 %v3115, %v3213
        %v3404 = vsub.f32 %v3116, %v3216
        %v3405 = vsub.f32 %v3117, %v3219
        %v3406 = vsub.f32 %v3118, %v3222
        %v3407 = vsub.f32 %v3119, %v3225
        %v3408 = vsub.f32 %v3120, %v3228
        %v3409 = vsub.f32 %v3121, %v3231
        %v3410 = vsub.f32 %v3122, %v3234
        %v3411 = vsub.f32 %v3123, %v3237
        %v3412 = vsub.f32 %v3124, %v3240
        %v3413 = vsub.f32 %v3125, %v3243
        %v3414 = vsub.f32 %v3126, %v3246
        %v3415 = vsub.f32 %v3127, %v3249
        %v3416 = vsub.f32 %v3128, %v3252
        %v3417 = vsub.f32 %v3129, %v3255
        %v3418 = vsub.f32 %v3130, %v3258
        %v3419 = vsub.f32 %v3131, %v3261
        %v3420 = vsub.f32 %v3132, %v3264
        %v3421 = vsub.f32 %v3133, %v3267
        %v3422 = vsub.f32 %v3134, %v3270
        %v3423 = vsub.f32 %v3135, %v3273
        %v3424 = vsub.f32 %v3136, %v3276
        %v3425 = vsub.f32 %v3137, %v3279
        %v3426 = vsub.f32 %v3138, %v3282
        %v3427 = vsub.f32 %v3139, %v3285
        %v3428 = vsub.f32 %v3140, %v3288
        %v3429 = vsub.f32 %v3141, %v3291
        %v3430 = vsub.f32 %v3142, %v3294
        %v3431 = vsub.f32 %v3143, %v3297
        %v3432 = vsub.f32 %v3144, %v3300
        %v3433 = vsub.f32 %v3145, %v3303
        %v3434 = vsub.f32 %v3146, %v3306
        %v3435 = vsub.f32 %v3147, %v3309
        %v3436 = vsub.f32 %v3148, %v3312
        %v3437 = vsub.f32 %v3149, %v3315
        %v3438 = vsub.f32 %v3150, %v3318
        %v3439 = vsub.f32 %v3151, %v3321
        %v3440 = vsub.f32 %v3152, %v3324
        %v3441 = vsub.f32 %v3153, %v3327
        %v3442 = vsub.f32 %v3154, %v3330
        %v3443 = vsub.f32 %v3155, %v3333
        %v3444 = vsub.f32 %v3156, %v3336
        %v3445 = vsub.f32 %v3157, %v3339
        %v3446 = vsub.f32 %v3158, %v3342
        %v3447 = vsub.f32 %v3159, %v3345
        %v3448 = vsub.f32 %v3160, %v3348
        %v3449 = vsub.f32 %v3161, %v3351
        %v3450 = vsub.f32 %v3162, %v3354
        %v3451 = vsub.f32 %v3163, %v3357
        %v3452 = vsub.f32 %v3164, %v3360
        %v3453 = vsub.f32 %v3165, %v3363
        %v3454 = vsub.f32 %v3166, %v3366
        %v3455 = vsub.f32 %v3167, %v3369
        %v3456 = vsub.f32 %v3168, %v3372
        %v3457 = vsub.f32 %v3169, %v3375
        %v3458 = vsub.f32 %v3170, %v3378
        %v3459 = vsub.f32 %v3171, %v3381
        %v3460 = vsub.f32 %v3172, %v3384
        %v3461 = vsub.f32 %v3173, %v3387
        %v3462 = vsub.f32 %v3174, %v3390
        %v3463 = vmul.f32 %v3391, 1.442695
        %v3464 = vpow.pop %v3463
        %v3465 = vmul.f32 %v3392, 1.442695
        %v3466 = vpow.pop %v3465
        %v3467 = vmul.f32 %v3393, 1.442695
        %v3468 = vpow.pop %v3467
        %v3469 = vmul.f32 %v3394, 1.442695
        %v3470 = vpow.pop %v3469
        %v3471 = vmul.f32 %v3395, 1.442695
        %v3472 = vpow.pop %v3471
        %v3473 = vmul.f32 %v3396, 1.442695
        %v3474 = vpow.pop %v3473
        %v3475 = vmul.f32 %v3397, 1.442695
        %v3476 = vpow.pop %v3475
        %v3477 = vmul.f32 %v3398, 1.442695
        %v3478 = vpow.pop %v3477
        %v3479 = vmul.f32 %v3399, 1.442695
        %v3480 = vpow.pop %v3479
        %v3481 = vmul.f32 %v3400, 1.442695
        %v3482 = vpow.pop %v3481
        %v3483 = vmul.f32 %v3401, 1.442695
        %v3484 = vpow.pop %v3483
        %v3485 = vmul.f32 %v3402, 1.442695
        %v3486 = vpow.pop %v3485
        %v3487 = vmul.f32 %v3403, 1.442695
        %v3488 = vpow.pop %v3487
        %v3489 = vmul.f32 %v3404, 1.442695
        %v3490 = vpow.pop %v3489
        %v3491 = vmul.f32 %v3405, 1.442695
        %v3492 = vpow.pop %v3491
        %v3493 = vmul.f32 %v3406, 1.442695
        %v3494 = vpow.pop %v3493
        %v3495 = vmul.f32 %v3407, 1.442695
        %v3496 = vpow.pop %v3495
        %v3497 = vmul.f32 %v3408, 1.442695
        %v3498 = vpow.pop %v3497
        %v3499 = vmul.f32 %v3409, 1.442695
        %v3500 = vpow.pop %v3499
        %v3501 = vmul.f32 %v3410, 1.442695
        %v3502 = vpow.pop %v3501
        %v3503 = vmul.f32 %v3411, 1.442695
        %v3504 = vpow.pop %v3503
        %v3505 = vmul.f32 %v3412, 1.442695
        %v3506 = vpow.pop %v3505
        %v3507 = vmul.f32 %v3413, 1.442695
        %v3508 = vpow.pop %v3507
        %v3509 = vmul.f32 %v3414, 1.442695
        %v3510 = vpow.pop %v3509
        %v3511 = vmul.f32 %v3415, 1.442695
        %v3512 = vpow.pop %v3511
        %v3513 = vmul.f32 %v3416, 1.442695
        %v3514 = vpow.pop %v3513
        %v3515 = vmul.f32 %v3417, 1.442695
        %v3516 = vpow.pop %v3515
        %v3517 = vmul.f32 %v3418, 1.442695
        %v3518 = vpow.pop %v3517
        %v3519 = vmul.f32 %v3419, 1.442695
        %v3520 = vpow.pop %v3519
        %v3521 = vmul.f32 %v3420, 1.442695
        %v3522 = vpow.pop %v3521
        %v3523 = vmul.f32 %v3421, 1.442695
        %v3524 = vpow.pop %v3523
        %v3525 = vmul.f32 %v3422, 1.442695
        %v3526 = vpow.pop %v3525
        %v3527 = vmul.f32 %v3423, 1.442695
        %v3528 = vpow.pop %v3527
        %v3529 = vmul.f32 %v3424, 1.442695
        %v3530 = vpow.pop %v3529
        %v3531 = vmul.f32 %v3425, 1.442695
        %v3532 = vpow.pop %v3531
        %v3533 = vmul.f32 %v3426, 1.442695
        %v3534 = vpow.pop %v3533
        %v3535 = vmul.f32 %v3427, 1.442695
        %v3536 = vpow.pop %v3535
        %v3537 = vmul.f32 %v3428, 1.442695
        %v3538 = vpow.pop %v3537
        %v3539 = vmul.f32 %v3429, 1.442695
        %v3540 = vpow.pop %v3539
        %v3541 = vmul.f32 %v3430, 1.442695
        %v3542 = vpow.pop %v3541
        %v3543 = vmul.f32 %v3431, 1.442695
        %v3544 = vpow.pop %v3543
        %v3545 = vmul.f32 %v3432, 1.442695
        %v3546 = vpow.pop %v3545
        %v3547 = vmul.f32 %v3433, 1.442695
        %v3548 = vpow.pop %v3547
        %v3549 = vmul.f32 %v3434, 1.442695
        %v3550 = vpow.pop %v3549
        %v3551 = vmul.f32 %v3435, 1.442695
        %v3552 = vpow.pop %v3551
        %v3553 = vmul.f32 %v3436, 1.442695
        %v3554 = vpow.pop %v3553
        %v3555 = vmul.f32 %v3437, 1.442695
        %v3556 = vpow.pop %v3555
        %v3557 = vmul.f32 %v3438, 1.442695
        %v3558 = vpow.pop %v3557
        %v3559 = vmul.f32 %v3439, 1.442695
        %v3560 = vpow.pop %v3559
        %v3561 = vmul.f32 %v3440, 1.442695
        %v3562 = vpow.pop %v3561
        %v3563 = vmul.f32 %v3441, 1.442695
        %v3564 = vpow.pop %v3563
        %v3565 = vmul.f32 %v3442, 1.442695
        %v3566 = vpow.pop %v3565
        %v3567 = vmul.f32 %v3443, 1.442695
        %v3568 = vpow.pop %v3567
        %v3569 = vmul.f32 %v3444, 1.442695
        %v3570 = vpow.pop %v3569
        %v3571 = vmul.f32 %v3445, 1.442695
        %v3572 = vpow.pop %v3571
        %v3573 = vmul.f32 %v3446, 1.442695
        %v3574 = vpow.pop %v3573
        %v3575 = vmul.f32 %v3447, 1.442695
        %v3576 = vpow.pop %v3575
        %v3577 = vmul.f32 %v3448, 1.442695
        %v3578 = vpow.pop %v3577
        %v3579 = vmul.f32 %v3449, 1.442695
        %v3580 = vpow.pop %v3579
        %v3581 = vmul.f32 %v3450, 1.442695
        %v3582 = vpow.pop %v3581
        %v3583 = vmul.f32 %v3451, 1.442695
        %v3584 = vpow.pop %v3583
        %v3585 = vmul.f32 %v3452, 1.442695
        %v3586 = vpow.pop %v3585
        %v3587 = vmul.f32 %v3453, 1.442695
        %v3588 = vpow.pop %v3587
        %v3589 = vmul.f32 %v3454, 1.442695
        %v3590 = vpow.pop %v3589
        %v3591 = vmul.f32 %v3455, 1.442695
        %v3592 = vpow.pop %v3591
        %v3593 = vmul.f32 %v3456, 1.442695
        %v3594 = vpow.pop %v3593
        %v3595 = vmul.f32 %v3457, 1.442695
        %v3596 = vpow.pop %v3595
        %v3597 = vmul.f32 %v3458, 1.442695
        %v3598 = vpow.pop %v3597
        %v3599 = vmul.f32 %v3459, 1.442695
        %v3600 = vpow.pop %v3599
        %v3601 = vmul.f32 %v3460, 1.442695
        %v3602 = vpow.pop %v3601
        %v3603 = vmul.f32 %v3461, 1.442695
        %v3604 = vpow.pop %v3603
        %v3605 = vmul.f32 %v3462, 1.442695
        %v3606 = vpow.pop %v3605
        %v3607 = vsel %vm1209, %v3464, 0.0
        %3608 = vadd.xlane.f32.xlu0 %v3607
        %v3609 = vpop.xlane.xlu0 %3608
        %v3610 = vsel %vm1209, %v3466, 0.0
        %3611 = vadd.xlane.f32.xlu0 %v3610
        %v3612 = vpop.xlane.xlu0 %3611
        %v3613 = vsel %vm1209, %v3468, 0.0
        %3614 = vadd.xlane.f32.xlu0 %v3613
        %v3615 = vpop.xlane.xlu0 %3614
        %v3616 = vsel %vm1209, %v3470, 0.0
        %3617 = vadd.xlane.f32.xlu0 %v3616
        %v3618 = vpop.xlane.xlu0 %3617
        %v3619 = vsel %vm1209, %v3472, 0.0
        %3620 = vadd.xlane.f32.xlu0 %v3619
        %v3621 = vpop.xlane.xlu0 %3620
        %v3622 = vsel %vm1209, %v3474, 0.0
        %3623 = vadd.xlane.f32.xlu0 %v3622
        %v3624 = vpop.xlane.xlu0 %3623
        %v3625 = vsel %vm1209, %v3476, 0.0
        %3626 = vadd.xlane.f32.xlu0 %v3625
        %v3627 = vpop.xlane.xlu0 %3626
        %v3628 = vsel %vm1209, %v3478, 0.0
        %3629 = vadd.xlane.f32.xlu0 %v3628
        %v3630 = vpop.xlane.xlu0 %3629
        %v3631 = vsel %vm1209, %v3480, 0.0
        %3632 = vadd.xlane.f32.xlu0 %v3631
        %v3633 = vpop.xlane.xlu0 %3632
        %v3634 = vsel %vm1209, %v3482, 0.0
        %3635 = vadd.xlane.f32.xlu0 %v3634
        %v3636 = vpop.xlane.xlu0 %3635
        %v3637 = vsel %vm1209, %v3484, 0.0
        %3638 = vadd.xlane.f32.xlu0 %v3637
        %v3639 = vpop.xlane.xlu0 %3638
        %v3640 = vsel %vm1209, %v3486, 0.0
        %3641 = vadd.xlane.f32.xlu0 %v3640
        %v3642 = vpop.xlane.xlu0 %3641
        %v3643 = vsel %vm1209, %v3488, 0.0
        %3644 = vadd.xlane.f32.xlu0 %v3643
        %v3645 = vpop.xlane.xlu0 %3644
        %v3646 = vsel %vm1209, %v3490, 0.0
        %3647 = vadd.xlane.f32.xlu0 %v3646
        %v3648 = vpop.xlane.xlu0 %3647
        %v3649 = vsel %vm1209, %v3492, 0.0
        %3650 = vadd.xlane.f32.xlu0 %v3649
        %v3651 = vpop.xlane.xlu0 %3650
        %v3652 = vsel %vm1209, %v3494, 0.0
        %3653 = vadd.xlane.f32.xlu0 %v3652
        %v3654 = vpop.xlane.xlu0 %3653
        %v3655 = vsel %vm1209, %v3496, 0.0
        %3656 = vadd.xlane.f32.xlu0 %v3655
        %v3657 = vpop.xlane.xlu0 %3656
        %v3658 = vsel %vm1209, %v3498, 0.0
        %3659 = vadd.xlane.f32.xlu0 %v3658
        %v3660 = vpop.xlane.xlu0 %3659
        %v3661 = vsel %vm1209, %v3500, 0.0
        %3662 = vadd.xlane.f32.xlu0 %v3661
        %v3663 = vpop.xlane.xlu0 %3662
        %v3664 = vsel %vm1209, %v3502, 0.0
        %3665 = vadd.xlane.f32.xlu0 %v3664
        %v3666 = vpop.xlane.xlu0 %3665
        %v3667 = vsel %vm1209, %v3504, 0.0
        %3668 = vadd.xlane.f32.xlu0 %v3667
        %v3669 = vpop.xlane.xlu0 %3668
        %v3670 = vsel %vm1209, %v3506, 0.0
        %3671 = vadd.xlane.f32.xlu0 %v3670
        %v3672 = vpop.xlane.xlu0 %3671
        %v3673 = vsel %vm1209, %v3508, 0.0
        %3674 = vadd.xlane.f32.xlu0 %v3673
        %v3675 = vpop.xlane.xlu0 %3674
        %v3676 = vsel %vm1209, %v3510, 0.0
        %3677 = vadd.xlane.f32.xlu0 %v3676
        %v3678 = vpop.xlane.xlu0 %3677
        %v3679 = vsel %vm1209, %v3512, 0.0
        %3680 = vadd.xlane.f32.xlu0 %v3679
        %v3681 = vpop.xlane.xlu0 %3680
        %v3682 = vsel %vm1209, %v3514, 0.0
        %3683 = vadd.xlane.f32.xlu0 %v3682
        %v3684 = vpop.xlane.xlu0 %3683
        %v3685 = vsel %vm1209, %v3516, 0.0
        %3686 = vadd.xlane.f32.xlu0 %v3685
        %v3687 = vpop.xlane.xlu0 %3686
        %v3688 = vsel %vm1209, %v3518, 0.0
        %3689 = vadd.xlane.f32.xlu0 %v3688
        %v3690 = vpop.xlane.xlu0 %3689
        %v3691 = vsel %vm1209, %v3520, 0.0
        %3692 = vadd.xlane.f32.xlu0 %v3691
        %v3693 = vpop.xlane.xlu0 %3692
        %v3694 = vsel %vm1209, %v3522, 0.0
        %3695 = vadd.xlane.f32.xlu0 %v3694
        %v3696 = vpop.xlane.xlu0 %3695
        %v3697 = vsel %vm1209, %v3524, 0.0
        %3698 = vadd.xlane.f32.xlu0 %v3697
        %v3699 = vpop.xlane.xlu0 %3698
        %v3700 = vsel %vm1209, %v3526, 0.0
        %3701 = vadd.xlane.f32.xlu0 %v3700
        %v3702 = vpop.xlane.xlu0 %3701
        %v3703 = vsel %vm1209, %v3528, 0.0
        %3704 = vadd.xlane.f32.xlu0 %v3703
        %v3705 = vpop.xlane.xlu0 %3704
        %v3706 = vsel %vm1209, %v3530, 0.0
        %3707 = vadd.xlane.f32.xlu0 %v3706
        %v3708 = vpop.xlane.xlu0 %3707
        %v3709 = vsel %vm1209, %v3532, 0.0
        %3710 = vadd.xlane.f32.xlu0 %v3709
        %v3711 = vpop.xlane.xlu0 %3710
        %v3712 = vsel %vm1209, %v3534, 0.0
        %3713 = vadd.xlane.f32.xlu0 %v3712
        %v3714 = vpop.xlane.xlu0 %3713
        %v3715 = vsel %vm1209, %v3536, 0.0
        %3716 = vadd.xlane.f32.xlu0 %v3715
        %v3717 = vpop.xlane.xlu0 %3716
        %v3718 = vsel %vm1209, %v3538, 0.0
        %3719 = vadd.xlane.f32.xlu0 %v3718
        %v3720 = vpop.xlane.xlu0 %3719
        %v3721 = vsel %vm1209, %v3540, 0.0
        %3722 = vadd.xlane.f32.xlu0 %v3721
        %v3723 = vpop.xlane.xlu0 %3722
        %v3724 = vsel %vm1209, %v3542, 0.0
        %3725 = vadd.xlane.f32.xlu0 %v3724
        %v3726 = vpop.xlane.xlu0 %3725
        %v3727 = vsel %vm1209, %v3544, 0.0
        %3728 = vadd.xlane.f32.xlu0 %v3727
        %v3729 = vpop.xlane.xlu0 %3728
        %v3730 = vsel %vm1209, %v3546, 0.0
        %3731 = vadd.xlane.f32.xlu0 %v3730
        %v3732 = vpop.xlane.xlu0 %3731
        %v3733 = vsel %vm1209, %v3548, 0.0
        %3734 = vadd.xlane.f32.xlu0 %v3733
        %v3735 = vpop.xlane.xlu0 %3734
        %v3736 = vsel %vm1209, %v3550, 0.0
        %3737 = vadd.xlane.f32.xlu0 %v3736
        %v3738 = vpop.xlane.xlu0 %3737
        %v3739 = vsel %vm1209, %v3552, 0.0
        %3740 = vadd.xlane.f32.xlu0 %v3739
        %v3741 = vpop.xlane.xlu0 %3740
        %v3742 = vsel %vm1209, %v3554, 0.0
        %3743 = vadd.xlane.f32.xlu0 %v3742
        %v3744 = vpop.xlane.xlu0 %3743
        %v3745 = vsel %vm1209, %v3556, 0.0
        %3746 = vadd.xlane.f32.xlu0 %v3745
        %v3747 = vpop.xlane.xlu0 %3746
        %v3748 = vsel %vm1209, %v3558, 0.0
        %3749 = vadd.xlane.f32.xlu0 %v3748
        %v3750 = vpop.xlane.xlu0 %3749
        %v3751 = vsel %vm1209, %v3560, 0.0
        %3752 = vadd.xlane.f32.xlu0 %v3751
        %v3753 = vpop.xlane.xlu0 %3752
        %v3754 = vsel %vm1209, %v3562, 0.0
        %3755 = vadd.xlane.f32.xlu0 %v3754
        %v3756 = vpop.xlane.xlu0 %3755
        %v3757 = vsel %vm1209, %v3564, 0.0
        %3758 = vadd.xlane.f32.xlu0 %v3757
        %v3759 = vpop.xlane.xlu0 %3758
        %v3760 = vsel %vm1209, %v3566, 0.0
        %3761 = vadd.xlane.f32.xlu0 %v3760
        %v3762 = vpop.xlane.xlu0 %3761
        %v3763 = vsel %vm1209, %v3568, 0.0
        %3764 = vadd.xlane.f32.xlu0 %v3763
        %v3765 = vpop.xlane.xlu0 %3764
        %v3766 = vsel %vm1209, %v3570, 0.0
        %3767 = vadd.xlane.f32.xlu0 %v3766
        %v3768 = vpop.xlane.xlu0 %3767
        %v3769 = vsel %vm1209, %v3572, 0.0
        %3770 = vadd.xlane.f32.xlu0 %v3769
        %v3771 = vpop.xlane.xlu0 %3770
        %v3772 = vsel %vm1209, %v3574, 0.0
        %3773 = vadd.xlane.f32.xlu0 %v3772
        %v3774 = vpop.xlane.xlu0 %3773
        %v3775 = vsel %vm1209, %v3576, 0.0
        %3776 = vadd.xlane.f32.xlu0 %v3775
        %v3777 = vpop.xlane.xlu0 %3776
        %v3778 = vsel %vm1209, %v3578, 0.0
        %3779 = vadd.xlane.f32.xlu0 %v3778
        %v3780 = vpop.xlane.xlu0 %3779
        %v3781 = vsel %vm1209, %v3580, 0.0
        %3782 = vadd.xlane.f32.xlu0 %v3781
        %v3783 = vpop.xlane.xlu0 %3782
        %v3784 = vsel %vm1209, %v3582, 0.0
        %3785 = vadd.xlane.f32.xlu0 %v3784
        %v3786 = vpop.xlane.xlu0 %3785
        %v3787 = vsel %vm1209, %v3584, 0.0
        %3788 = vadd.xlane.f32.xlu0 %v3787
        %v3789 = vpop.xlane.xlu0 %3788
        %v3790 = vsel %vm1209, %v3586, 0.0
        %3791 = vadd.xlane.f32.xlu0 %v3790
        %v3792 = vpop.xlane.xlu0 %3791
        %v3793 = vsel %vm1209, %v3588, 0.0
        %3794 = vadd.xlane.f32.xlu0 %v3793
        %v3795 = vpop.xlane.xlu0 %3794
        %v3796 = vsel %vm1209, %v3590, 0.0
        %3797 = vadd.xlane.f32.xlu0 %v3796
        %v3798 = vpop.xlane.xlu0 %3797
        %v3799 = vsel %vm1209, %v3592, 0.0
        %3800 = vadd.xlane.f32.xlu0 %v3799
        %v3801 = vpop.xlane.xlu0 %3800
        %v3802 = vsel %vm1209, %v3594, 0.0
        %3803 = vadd.xlane.f32.xlu0 %v3802
        %v3804 = vpop.xlane.xlu0 %3803
        %v3805 = vsel %vm1209, %v3596, 0.0
        %3806 = vadd.xlane.f32.xlu0 %v3805
        %v3807 = vpop.xlane.xlu0 %3806
        %v3808 = vsel %vm1209, %v3598, 0.0
        %3809 = vadd.xlane.f32.xlu0 %v3808
        %v3810 = vpop.xlane.xlu0 %3809
        %v3811 = vsel %vm1209, %v3600, 0.0
        %3812 = vadd.xlane.f32.xlu0 %v3811
        %v3813 = vpop.xlane.xlu0 %3812
        %v3814 = vsel %vm1209, %v3602, 0.0
        %3815 = vadd.xlane.f32.xlu0 %v3814
        %v3816 = vpop.xlane.xlu0 %3815
        %v3817 = vsel %vm1209, %v3604, 0.0
        %3818 = vadd.xlane.f32.xlu0 %v3817
        %v3819 = vpop.xlane.xlu0 %3818
        %v3820 = vsel %vm1209, %v3606, 0.0
        %3821 = vadd.xlane.f32.xlu0 %v3820
        %v3822 = vpop.xlane.xlu0 %3821
        %v3823 = vrcp.pop %v3609
        %v3824 = vrcp.pop %v3612
        %v3825 = vrcp.pop %v3615
        %v3826 = vrcp.pop %v3618
        %v3827 = vrcp.pop %v3621
        %v3828 = vrcp.pop %v3624
        %v3829 = vrcp.pop %v3627
        %v3830 = vrcp.pop %v3630
        %v3831 = vrcp.pop %v3633
        %v3832 = vrcp.pop %v3636
        %v3833 = vrcp.pop %v3639
        %v3834 = vrcp.pop %v3642
        %v3835 = vrcp.pop %v3645
        %v3836 = vrcp.pop %v3648
        %v3837 = vrcp.pop %v3651
        %v3838 = vrcp.pop %v3654
        %v3839 = vrcp.pop %v3657
        %v3840 = vrcp.pop %v3660
        %v3841 = vrcp.pop %v3663
        %v3842 = vrcp.pop %v3666
        %v3843 = vrcp.pop %v3669
        %v3844 = vrcp.pop %v3672
        %v3845 = vrcp.pop %v3675
        %v3846 = vrcp.pop %v3678
        %v3847 = vrcp.pop %v3681
        %v3848 = vrcp.pop %v3684
        %v3849 = vrcp.pop %v3687
        %v3850 = vrcp.pop %v3690
        %v3851 = vrcp.pop %v3693
        %v3852 = vrcp.pop %v3696
        %v3853 = vrcp.pop %v3699
        %v3854 = vrcp.pop %v3702
        %v3855 = vrcp.pop %v3705
        %v3856 = vrcp.pop %v3708
        %v3857 = vrcp.pop %v3711
        %v3858 = vrcp.pop %v3714
        %v3859 = vrcp.pop %v3717
        %v3860 = vrcp.pop %v3720
        %v3861 = vrcp.pop %v3723
        %v3862 = vrcp.pop %v3726
        %v3863 = vrcp.pop %v3729
        %v3864 = vrcp.pop %v3732
        %v3865 = vrcp.pop %v3735
        %v3866 = vrcp.pop %v3738
        %v3867 = vrcp.pop %v3741
        %v3868 = vrcp.pop %v3744
        %v3869 = vrcp.pop %v3747
        %v3870 = vrcp.pop %v3750
        %v3871 = vrcp.pop %v3753
        %v3872 = vrcp.pop %v3756
        %v3873 = vrcp.pop %v3759
        %v3874 = vrcp.pop %v3762
        %v3875 = vrcp.pop %v3765
        %v3876 = vrcp.pop %v3768
        %v3877 = vrcp.pop %v3771
        %v3878 = vrcp.pop %v3774
        %v3879 = vrcp.pop %v3777
        %v3880 = vrcp.pop %v3780
        %v3881 = vrcp.pop %v3783
        %v3882 = vrcp.pop %v3786
        %v3883 = vrcp.pop %v3789
        %v3884 = vrcp.pop %v3792
        %v3885 = vrcp.pop %v3795
        %v3886 = vrcp.pop %v3798
        %v3887 = vrcp.pop %v3801
        %v3888 = vrcp.pop %v3804
        %v3889 = vrcp.pop %v3807
        %v3890 = vrcp.pop %v3810
        %v3891 = vrcp.pop %v3813
        %v3892 = vrcp.pop %v3816
        %v3893 = vrcp.pop %v3819
        %v3894 = vrcp.pop %v3822
        %v3895 = vmul.f32 %v3464, %v3823
        %v3896 = vmul.f32 %v3466, %v3824
        %v3897 = vmul.f32 %v3468, %v3825
        %v3898 = vmul.f32 %v3470, %v3826
        %v3899 = vmul.f32 %v3472, %v3827
        %v3900 = vmul.f32 %v3474, %v3828
        %v3901 = vmul.f32 %v3476, %v3829
        %v3902 = vmul.f32 %v3478, %v3830
        %v3903 = vmul.f32 %v3480, %v3831
        %v3904 = vmul.f32 %v3482, %v3832
        %v3905 = vmul.f32 %v3484, %v3833
        %v3906 = vmul.f32 %v3486, %v3834
        %v3907 = vmul.f32 %v3488, %v3835
        %v3908 = vmul.f32 %v3490, %v3836
        %v3909 = vmul.f32 %v3492, %v3837
        %v3910 = vmul.f32 %v3494, %v3838
        %v3911 = vmul.f32 %v3496, %v3839
        %v3912 = vmul.f32 %v3498, %v3840
        %v3913 = vmul.f32 %v3500, %v3841
        %v3914 = vmul.f32 %v3502, %v3842
        %v3915 = vmul.f32 %v3504, %v3843
        %v3916 = vmul.f32 %v3506, %v3844
        %v3917 = vmul.f32 %v3508, %v3845
        %v3918 = vmul.f32 %v3510, %v3846
        %v3919 = vmul.f32 %v3512, %v3847
        %v3920 = vmul.f32 %v3514, %v3848
        %v3921 = vmul.f32 %v3516, %v3849
        %v3922 = vmul.f32 %v3518, %v3850
        %v3923 = vmul.f32 %v3520, %v3851
        %v3924 = vmul.f32 %v3522, %v3852
        %v3925 = vmul.f32 %v3524, %v3853
        %v3926 = vmul.f32 %v3526, %v3854
        %v3927 = vmul.f32 %v3528, %v3855
        %v3928 = vmul.f32 %v3530, %v3856
        %v3929 = vmul.f32 %v3532, %v3857
        %v3930 = vmul.f32 %v3534, %v3858
        %v3931 = vmul.f32 %v3536, %v3859
        %v3932 = vmul.f32 %v3538, %v3860
        %v3933 = vmul.f32 %v3540, %v3861
        %v3934 = vmul.f32 %v3542, %v3862
        %v3935 = vmul.f32 %v3544, %v3863
        %v3936 = vmul.f32 %v3546, %v3864
        %v3937 = vmul.f32 %v3548, %v3865
        %v3938 = vmul.f32 %v3550, %v3866
        %v3939 = vmul.f32 %v3552, %v3867
        %v3940 = vmul.f32 %v3554, %v3868
        %v3941 = vmul.f32 %v3556, %v3869
        %v3942 = vmul.f32 %v3558, %v3870
        %v3943 = vmul.f32 %v3560, %v3871
        %v3944 = vmul.f32 %v3562, %v3872
        %v3945 = vmul.f32 %v3564, %v3873
        %v3946 = vmul.f32 %v3566, %v3874
        %v3947 = vmul.f32 %v3568, %v3875
        %v3948 = vmul.f32 %v3570, %v3876
        %v3949 = vmul.f32 %v3572, %v3877
        %v3950 = vmul.f32 %v3574, %v3878
        %v3951 = vmul.f32 %v3576, %v3879
        %v3952 = vmul.f32 %v3578, %v3880
        %v3953 = vmul.f32 %v3580, %v3881
        %v3954 = vmul.f32 %v3582, %v3882
        %v3955 = vmul.f32 %v3584, %v3883
        %v3956 = vmul.f32 %v3586, %v3884
        %v3957 = vmul.f32 %v3588, %v3885
        %v3958 = vmul.f32 %v3590, %v3886
        %v3959 = vmul.f32 %v3592, %v3887
        %v3960 = vmul.f32 %v3594, %v3888
        %v3961 = vmul.f32 %v3596, %v3889
        %v3962 = vmul.f32 %v3598, %v3890
        %v3963 = vmul.f32 %v3600, %v3891
        %v3964 = vmul.f32 %v3602, %v3892
        %v3965 = vmul.f32 %v3604, %v3893
        %v3966 = vmul.f32 %v3606, %v3894
        %v3967 = vpack.c.bf16 %v3896, %v3895
        %v3968 = vpack.c.bf16 %v3898, %v3897
        %v3969 = vpack.c.bf16 %v3900, %v3899
        %v3970 = vpack.c.bf16 %v3902, %v3901
        %v3971 = vpack.c.bf16 %v3904, %v3903
        %v3972 = vpack.c.bf16 %v3906, %v3905
        %v3973 = vpack.c.bf16 %v3908, %v3907
        %v3974 = vpack.c.bf16 %v3910, %v3909
        %v3975 = vpack.c.bf16 %v3912, %v3911
        %v3976 = vpack.c.bf16 %v3914, %v3913
        %v3977 = vpack.c.bf16 %v3916, %v3915
        %v3978 = vpack.c.bf16 %v3918, %v3917
        %v3979 = vpack.c.bf16 %v3920, %v3919
        %v3980 = vpack.c.bf16 %v3922, %v3921
        %v3981 = vpack.c.bf16 %v3924, %v3923
        %v3982 = vpack.c.bf16 %v3926, %v3925
        %v3983 = vpack.c.bf16 %v3928, %v3927
        %v3984 = vpack.c.bf16 %v3930, %v3929
        %v3985 = vpack.c.bf16 %v3932, %v3931
        %v3986 = vpack.c.bf16 %v3934, %v3933
        %v3987 = vpack.c.bf16 %v3936, %v3935
        %v3988 = vpack.c.bf16 %v3938, %v3937
        %v3989 = vpack.c.bf16 %v3940, %v3939
        %v3990 = vpack.c.bf16 %v3942, %v3941
        %v3991 = vpack.c.bf16 %v3944, %v3943
        %v3992 = vpack.c.bf16 %v3946, %v3945
        %v3993 = vpack.c.bf16 %v3948, %v3947
        %v3994 = vpack.c.bf16 %v3950, %v3949
        %v3995 = vpack.c.bf16 %v3952, %v3951
        %v3996 = vpack.c.bf16 %v3954, %v3953
        %v3997 = vpack.c.bf16 %v3956, %v3955
        %v3998 = vpack.c.bf16 %v3958, %v3957
        %v3999 = vpack.c.bf16 %v3960, %v3959
        %v4000 = vpack.c.bf16 %v3962, %v3961
        %v4001 = vpack.c.bf16 %v3964, %v3963
        %v4002 = vpack.c.bf16 %v3966, %v3965
        %v4003 = vpack.c.bf16 %v965, %v963
        %v4004 = vpack.c.bf16 %v989, %v987
        %v4005 = vpack.c.bf16 %v1013, %v1011
        %v4006 = vpack.c.bf16 %v1037, %v1035
        %v4007 = vpack.c.bf16 %v1061, %v1059
        %v4008 = vpack.c.bf16 %v1093, %v1091
        %v4009 = vpack.c.bf16 %v1117, %v1115
        %v4010 = vpack.c.bf16 %v570, %v566
        %v4011 = vpack.c.bf16 %v969, %v967
        %v4012 = vpack.c.bf16 %v993, %v991
        %v4013 = vpack.c.bf16 %v1017, %v1015
        %v4014 = vpack.c.bf16 %v1041, %v1039
        %v4015 = vpack.c.bf16 %v1065, %v1063
        %v4016 = vpack.c.bf16 %v1097, %v1095
        %v4017 = vpack.c.bf16 %v1121, %v1119
        %v4018 = vpack.c.bf16 %v580, %v576
        %v4019 = vpack.c.bf16 %v973, %v971
        %v4020 = vpack.c.bf16 %v997, %v995
        %v4021 = vpack.c.bf16 %v1021, %v1019
        %v4022 = vpack.c.bf16 %v1045, %v1043
        %v4023 = vpack.c.bf16 %v1069, %v1067
        %v4024 = vpack.c.bf16 %v1101, %v1099
        %v4025 = vpack.c.bf16 %v1125, %v1123
        %v4026 = vpack.c.bf16 %v590, %v586
        %v4027 = vpack.c.bf16 %v977, %v975
        %v4028 = vpack.c.bf16 %v1001, %v999
        %v4029 = vpack.c.bf16 %v1025, %v1023
        %v4030 = vpack.c.bf16 %v1049, %v1047
        %v4031 = vpack.c.bf16 %v1073, %v1071
        %v4032 = vpack.c.bf16 %v1105, %v1103
        %v4033 = vpack.c.bf16 %v1129, %v1127
        %v4034 = vpack.c.bf16 %v600, %v596
        %4035 = vrot.lane.b32.xlu0 %v1181, 96
        %v4036 = vpop.permute.xlu0 %4035
        %v4039 = vsel %vm1209, %v3967, 0
        %4041 = vmatprep.subr.bf16.mxu0 0
        %4042 = vmatpush1.bf16.msra.mxu0 %v4036
        %4043 = vmatprep.subr.bf16.mxu0 0
        %4044 = vmatpush1.bf16.msra.mxu0 0
        %4045 = vmatprep.subr.bf16.mxu0 0
        %4046 = vmatpush1.bf16.msra.mxu0 0
        %4047 = vmatprep.subr.bf16.mxu0 0
        %4048 = vmatpush1.bf16.msra.mxu0 0
        %4049 = vmatprep.subr.bf16.mxu0 0
        %4050 = vmatpush1.bf16.msra.mxu0 0
        %4051 = vmatprep.subr.bf16.mxu0 0
        %4052 = vmatpush1.bf16.msra.mxu0 0
        %4053 = vmatprep.subr.bf16.mxu0 0
        %4054 = vmatpush1.bf16.msra.mxu0 0
        %4055 = vmatprep.subr.bf16.mxu0 0
        %4056 = vmatpush1.bf16.msra.mxu0 0
        %4057 = vmatprep.subr.bf16.mxu0 0
        %4058 = vmatpush1.bf16.msra.mxu0 0
        %4059 = vmatprep.subr.bf16.mxu0 0
        %4060 = vmatpush1.bf16.msra.mxu0 0
        %4061 = vmatprep.subr.bf16.mxu0 0
        %4062 = vmatpush1.bf16.msra.mxu0 0
        %4063 = vmatprep.subr.bf16.mxu0 0
        %4064 = vmatpush1.bf16.msra.mxu0 0
        %4065 = vmatprep.subr.bf16.mxu0 0
        %4066 = vmatpush1.bf16.msra.mxu0 0
        %4067 = vmatprep.subr.bf16.mxu0 0
        %4068 = vmatpush1.bf16.msra.mxu0 0
        %4069 = vmatprep.subr.bf16.mxu0 0
        %4070 = vmatpush1.bf16.msra.mxu0 0
        %4071 = vmatprep.subr.bf16.mxu0 0
        %4072 = vmatpush1.bf16.msra.mxu0 0
        %4073 = vmatprep.mubr.bf16.mxu0 0
        %4074 = vmatmul.mubr.bf16.gmra.mrb[0].mxu0 %v4039
        %v4075 = vpop.f32.mrb[0].mxu0
        %v4076 = vadd.f32 0.0, %v4075
        %v4077 = vpop.f32.mrb[0].mxu0
        %v4078 = vpop.f32.mrb[0].mxu0
        %v4079 = vadd.f32 0.0, %v4078
        %v4080 = vpop.f32.mrb[0].mxu0
        %4081 = vdwg.mxu0
        %4083 = vrot.lane.b32.xlu0 %v4003, 96
        %v4084 = vpop.permute.xlu0 %4083
        %v4087 = vsel %vm1209, %v3968, 0
        %4089 = vmatprep.subr.bf16.mxu0 0
        %4090 = vmatpush1.bf16.msra.mxu0 %v4084
        %4091 = vmatprep.subr.bf16.mxu0 0
        %4092 = vmatpush1.bf16.msra.mxu0 0
        %4093 = vmatprep.subr.bf16.mxu0 0
        %4094 = vmatpush1.bf16.msra.mxu0 0
        %4095 = vmatprep.subr.bf16.mxu0 0
        %4096 = vmatpush1.bf16.msra.mxu0 0
        %4097 = vmatprep.subr.bf16.mxu0 0
        %4098 = vmatpush1.bf16.msra.mxu0 0
        %4099 = vmatprep.subr.bf16.mxu0 0
        %4100 = vmatpush1.bf16.msra.mxu0 0
        %4101 = vmatprep.subr.bf16.mxu0 0
        %4102 = vmatpush1.bf16.msra.mxu0 0
        %4103 = vmatprep.subr.bf16.mxu0 0
        %4104 = vmatpush1.bf16.msra.mxu0 0
        %4105 = vmatprep.subr.bf16.mxu0 0
        %4106 = vmatpush1.bf16.msra.mxu0 0
        %4107 = vmatprep.subr.bf16.mxu0 0
        %4108 = vmatpush1.bf16.msra.mxu0 0
        %4109 = vmatprep.subr.bf16.mxu0 0
        %4110 = vmatpush1.bf16.msra.mxu0 0
        %4111 = vmatprep.subr.bf16.mxu0 0
        %4112 = vmatpush1.bf16.msra.mxu0 0
        %4113 = vmatprep.subr.bf16.mxu0 0
        %4114 = vmatpush1.bf16.msra.mxu0 0
        %4115 = vmatprep.subr.bf16.mxu0 0
        %4116 = vmatpush1.bf16.msra.mxu0 0
        %4117 = vmatprep.subr.bf16.mxu0 0
        %4118 = vmatpush1.bf16.msra.mxu0 0
        %4119 = vmatprep.subr.bf16.mxu0 0
        %4120 = vmatpush1.bf16.msra.mxu0 0
        %4121 = vmatprep.mubr.bf16.mxu0 0
        %4122 = vmatmul.mubr.bf16.gmra.mrb[0].mxu0 %v4087
        %v4123 = vpop.f32.mrb[0].mxu0
        %v4124 = vadd.f32 0.0, %v4123
        %v4125 = vpop.f32.mrb[0].mxu0
        %v4126 = vpop.f32.mrb[0].mxu0
        %v4127 = vadd.f32 0.0, %v4126
        %v4128 = vpop.f32.mrb[0].mxu0
        %4129 = vdwg.mxu0
        %4131 = vrot.lane.b32.xlu0 %v4004, 96
        %v4132 = vpop.permute.xlu0 %4131
        %v4135 = vsel %vm1209, %v3969, 0
        %4137 = vmatprep.subr.bf16.mxu0 0
        %4138 = vmatpush1.bf16.msra.mxu0 %v4132
        %4139 = vmatprep.subr.bf16.mxu0 0
        %4140 = vmatpush1.bf16.msra.mxu0 0
        %4141 = vmatprep.subr.bf16.mxu0 0
        %4142 = vmatpush1.bf16.msra.mxu0 0
        %4143 = vmatprep.subr.bf16.mxu0 0
        %4144 = vmatpush1.bf16.msra.mxu0 0
        %4145 = vmatprep.subr.bf16.mxu0 0
        %4146 = vmatpush1.bf16.msra.mxu0 0
        %4147 = vmatprep.subr.bf16.mxu0 0
        %4148 = vmatpush1.bf16.msra.mxu0 0
        %4149 = vmatprep.subr.bf16.mxu0 0
        %4150 = vmatpush1.bf16.msra.mxu0 0
        %4151 = vmatprep.subr.bf16.mxu0 0
        %4152 = vmatpush1.bf16.msra.mxu0 0
        %4153 = vmatprep.subr.bf16.mxu0 0
        %4154 = vmatpush1.bf16.msra.mxu0 0
        %4155 = vmatprep.subr.bf16.mxu0 0
        %4156 = vmatpush1.bf16.msra.mxu0 0
        %4157 = vmatprep.subr.bf16.mxu0 0
        %4158 = vmatpush1.bf16.msra.mxu0 0
        %4159 = vmatprep.subr.bf16.mxu0 0
        %4160 = vmatpush1.bf16.msra.mxu0 0
        %4161 = vmatprep.subr.bf16.mxu0 0
        %4162 = vmatpush1.bf16.msra.mxu0 0
        %4163 = vmatprep.subr.bf16.mxu0 0
        %4164 = vmatpush1.bf16.msra.mxu0 0
        %4165 = vmatprep.subr.bf16.mxu0 0
        %4166 = vmatpush1.bf16.msra.mxu0 0
        %4167 = vmatprep.subr.bf16.mxu0 0
        %4168 = vmatpush1.bf16.msra.mxu0 0
        %4169 = vmatprep.mubr.bf16.mxu0 0
        %4170 = vmatmul.mubr.bf16.gmra.mrb[0].mxu0 %v4135
        %v4171 = vpop.f32.mrb[0].mxu0
        %v4172 = vadd.f32 0.0, %v4171
        %v4173 = vpop.f32.mrb[0].mxu0
        %v4174 = vpop.f32.mrb[0].mxu0
        %v4175 = vadd.f32 0.0, %v4174
        %v4176 = vpop.f32.mrb[0].mxu0
        %4177 = vdwg.mxu0
        %4179 = vrot.lane.b32.xlu0 %v4005, 96
        %v4180 = vpop.permute.xlu0 %4179
        %v4183 = vsel %vm1209, %v3970, 0
        %4185 = vmatprep.subr.bf16.mxu0 0
        %4186 = vmatpush1.bf16.msra.mxu0 %v4180
        %4187 = vmatprep.subr.bf16.mxu0 0
        %4188 = vmatpush1.bf16.msra.mxu0 0
        %4189 = vmatprep.subr.bf16.mxu0 0
        %4190 = vmatpush1.bf16.msra.mxu0 0
        %4191 = vmatprep.subr.bf16.mxu0 0
        %4192 = vmatpush1.bf16.msra.mxu0 0
        %4193 = vmatprep.subr.bf16.mxu0 0
        %4194 = vmatpush1.bf16.msra.mxu0 0
        %4195 = vmatprep.subr.bf16.mxu0 0
        %4196 = vmatpush1.bf16.msra.mxu0 0
        %4197 = vmatprep.subr.bf16.mxu0 0
        %4198 = vmatpush1.bf16.msra.mxu0 0
        %4199 = vmatprep.subr.bf16.mxu0 0
        %4200 = vmatpush1.bf16.msra.mxu0 0
        %4201 = vmatprep.subr.bf16.mxu0 0
        %4202 = vmatpush1.bf16.msra.mxu0 0
        %4203 = vmatprep.subr.bf16.mxu0 0
        %4204 = vmatpush1.bf16.msra.mxu0 0
        %4205 = vmatprep.subr.bf16.mxu0 0
        %4206 = vmatpush1.bf16.msra.mxu0 0
        %4207 = vmatprep.subr.bf16.mxu0 0
        %4208 = vmatpush1.bf16.msra.mxu0 0
        %4209 = vmatprep.subr.bf16.mxu0 0
        %4210 = vmatpush1.bf16.msra.mxu0 0
        %4211 = vmatprep.subr.bf16.mxu0 0
        %4212 = vmatpush1.bf16.msra.mxu0 0
        %4213 = vmatprep.subr.bf16.mxu0 0
        %4214 = vmatpush1.bf16.msra.mxu0 0
        %4215 = vmatprep.subr.bf16.mxu0 0
        %4216 = vmatpush1.bf16.msra.mxu0 0
        %4217 = vmatprep.mubr.bf16.mxu0 0
        %4218 = vmatmul.mubr.bf16.gmra.mrb[0].mxu0 %v4183
        %v4219 = vpop.f32.mrb[0].mxu0
        %v4220 = vadd.f32 0.0, %v4219
        %v4221 = vpop.f32.mrb[0].mxu0
        %v4222 = vpop.f32.mrb[0].mxu0
        %v4223 = vadd.f32 0.0, %v4222
        %v4224 = vpop.f32.mrb[0].mxu0
        %4225 = vdwg.mxu0
        %4227 = vrot.lane.b32.xlu0 %v4006, 96
        %v4228 = vpop.permute.xlu0 %4227
        %v4231 = vsel %vm1209, %v3971, 0
        %4233 = vmatprep.subr.bf16.mxu0 0
        %4234 = vmatpush1.bf16.msra.mxu0 %v4228
        %4235 = vmatprep.subr.bf16.mxu0 0
        %4236 = vmatpush1.bf16.msra.mxu0 0
        %4237 = vmatprep.subr.bf16.mxu0 0
        %4238 = vmatpush1.bf16.msra.mxu0 0
        %4239 = vmatprep.subr.bf16.mxu0 0
        %4240 = vmatpush1.bf16.msra.mxu0 0
        %4241 = vmatprep.subr.bf16.mxu0 0
        %4242 = vmatpush1.bf16.msra.mxu0 0
        %4243 = vmatprep.subr.bf16.mxu0 0
        %4244 = vmatpush1.bf16.msra.mxu0 0
        %4245 = vmatprep.subr.bf16.mxu0 0
        %4246 = vmatpush1.bf16.msra.mxu0 0
        %4247 = vmatprep.subr.bf16.mxu0 0
        %4248 = vmatpush1.bf16.msra.mxu0 0
        %4249 = vmatprep.subr.bf16.mxu0 0
        %4250 = vmatpush1.bf16.msra.mxu0 0
        %4251 = vmatprep.subr.bf16.mxu0 0
        %4252 = vmatpush1.bf16.msra.mxu0 0
        %4253 = vmatprep.subr.bf16.mxu0 0
        %4254 = vmatpush1.bf16.msra.mxu0 0
        %4255 = vmatprep.subr.bf16.mxu0 0
        %4256 = vmatpush1.bf16.msra.mxu0 0
        %4257 = vmatprep.subr.bf16.mxu0 0
        %4258 = vmatpush1.bf16.msra.mxu0 0
        %4259 = vmatprep.subr.bf16.mxu0 0
        %4260 = vmatpush1.bf16.msra.mxu0 0
        %4261 = vmatprep.subr.bf16.mxu0 0
        %4262 = vmatpush1.bf16.msra.mxu0 0
        %4263 = vmatprep.subr.bf16.mxu0 0
        %4264 = vmatpush1.bf16.msra.mxu0 0
        %4265 = vmatprep.mubr.bf16.mxu0 0
        %4266 = vmatmul.mubr.bf16.gmra.mrb[0].mxu0 %v4231
        %v4267 = vpop.f32.mrb[0].mxu0
        %v4268 = vadd.f32 0.0, %v4267
        %v4269 = vpop.f32.mrb[0].mxu0
        %v4270 = vpop.f32.mrb[0].mxu0
        %v4271 = vadd.f32 0.0, %v4270
        %v4272 = vpop.f32.mrb[0].mxu0
        %4273 = vdwg.mxu0
        %4275 = vrot.lane.b32.xlu0 %v4007, 96
        %v4276 = vpop.permute.xlu0 %4275
        %v4279 = vsel %vm1209, %v3972, 0
        %4281 = vmatprep.subr.bf16.mxu0 0
        %4282 = vmatpush1.bf16.msra.mxu0 %v4276
        %4283 = vmatprep.subr.bf16.mxu0 0
        %4284 = vmatpush1.bf16.msra.mxu0 0
        %4285 = vmatprep.subr.bf16.mxu0 0
        %4286 = vmatpush1.bf16.msra.mxu0 0
        %4287 = vmatprep.subr.bf16.mxu0 0
        %4288 = vmatpush1.bf16.msra.mxu0 0
        %4289 = vmatprep.subr.bf16.mxu0 0
        %4290 = vmatpush1.bf16.msra.mxu0 0
        %4291 = vmatprep.subr.bf16.mxu0 0
        %4292 = vmatpush1.bf16.msra.mxu0 0
        %4293 = vmatprep.subr.bf16.mxu0 0
        %4294 = vmatpush1.bf16.msra.mxu0 0
        %4295 = vmatprep.subr.bf16.mxu0 0
        %4296 = vmatpush1.bf16.msra.mxu0 0
        %4297 = vmatprep.subr.bf16.mxu0 0
        %4298 = vmatpush1.bf16.msra.mxu0 0
        %4299 = vmatprep.subr.bf16.mxu0 0
        %4300 = vmatpush1.bf16.msra.mxu0 0
        %4301 = vmatprep.subr.bf16.mxu0 0
        %4302 = vmatpush1.bf16.msra.mxu0 0
        %4303 = vmatprep.subr.bf16.mxu0 0
        %4304 = vmatpush1.bf16.msra.mxu0 0
        %4305 = vmatprep.subr.bf16.mxu0 0
        %4306 = vmatpush1.bf16.msra.mxu0 0
        %4307 = vmatprep.subr.bf16.mxu0 0
        %4308 = vmatpush1.bf16.msra.mxu0 0
        %4309 = vmatprep.subr.bf16.mxu0 0
        %4310 = vmatpush1.bf16.msra.mxu0 0
        %4311 = vmatprep.subr.bf16.mxu0 0
        %4312 = vmatpush1.bf16.msra.mxu0 0
        %4313 = vmatprep.mubr.bf16.mxu0 0
        %4314 = vmatmul.mubr.bf16.gmra.mrb[0].mxu0 %v4279
        %v4315 = vpop.f32.mrb[0].mxu0
        %v4316 = vadd.f32 0.0, %v4315
        %v4317 = vpop.f32.mrb[0].mxu0
        %v4318 = vpop.f32.mrb[0].mxu0
        %v4319 = vadd.f32 0.0, %v4318
        %v4320 = vpop.f32.mrb[0].mxu0
        %4321 = vdwg.mxu0
        %4323 = vrot.lane.b32.xlu0 %v4008, 96
        %v4324 = vpop.permute.xlu0 %4323
        %v4327 = vsel %vm1209, %v3973, 0
        %4329 = vmatprep.subr.bf16.mxu0 0
        %4330 = vmatpush1.bf16.msra.mxu0 %v4324
        %4331 = vmatprep.subr.bf16.mxu0 0
        %4332 = vmatpush1.bf16.msra.mxu0 0
        %4333 = vmatprep.subr.bf16.mxu0 0
        %4334 = vmatpush1.bf16.msra.mxu0 0
        %4335 = vmatprep.subr.bf16.mxu0 0
        %4336 = vmatpush1.bf16.msra.mxu0 0
        %4337 = vmatprep.subr.bf16.mxu0 0
        %4338 = vmatpush1.bf16.msra.mxu0 0
        %4339 = vmatprep.subr.bf16.mxu0 0
        %4340 = vmatpush1.bf16.msra.mxu0 0
        %4341 = vmatprep.subr.bf16.mxu0 0
        %4342 = vmatpush1.bf16.msra.mxu0 0
        %4343 = vmatprep.subr.bf16.mxu0 0
        %4344 = vmatpush1.bf16.msra.mxu0 0
        %4345 = vmatprep.subr.bf16.mxu0 0
        %4346 = vmatpush1.bf16.msra.mxu0 0
        %4347 = vmatprep.subr.bf16.mxu0 0
        %4348 = vmatpush1.bf16.msra.mxu0 0
        %4349 = vmatprep.subr.bf16.mxu0 0
        %4350 = vmatpush1.bf16.msra.mxu0 0
        %4351 = vmatprep.subr.bf16.mxu0 0
        %4352 = vmatpush1.bf16.msra.mxu0 0
        %4353 = vmatprep.subr.bf16.mxu0 0
        %4354 = vmatpush1.bf16.msra.mxu0 0
        %4355 = vmatprep.subr.bf16.mxu0 0
        %4356 = vmatpush1.bf16.msra.mxu0 0
        %4357 = vmatprep.subr.bf16.mxu0 0
        %4358 = vmatpush1.bf16.msra.mxu0 0
        %4359 = vmatprep.subr.bf16.mxu0 0
        %4360 = vmatpush1.bf16.msra.mxu0 0
        %4361 = vmatprep.mubr.bf16.mxu0 0
        %4362 = vmatmul.mubr.bf16.gmra.mrb[0].mxu0 %v4327
        %v4363 = vpop.f32.mrb[0].mxu0
        %v4364 = vadd.f32 0.0, %v4363
        %v4365 = vpop.f32.mrb[0].mxu0
        %v4366 = vpop.f32.mrb[0].mxu0
        %v4367 = vadd.f32 0.0, %v4366
        %v4368 = vpop.f32.mrb[0].mxu0
        %4369 = vdwg.mxu0
        %4371 = vrot.lane.b32.xlu0 %v4009, 96
        %v4372 = vpop.permute.xlu0 %4371
        %v4375 = vsel %vm1209, %v3974, 0
        %4377 = vmatprep.subr.bf16.mxu0 0
        %4378 = vmatpush1.bf16.msra.mxu0 %v4372
        %4379 = vmatprep.subr.bf16.mxu0 0
        %4380 = vmatpush1.bf16.msra.mxu0 0
        %4381 = vmatprep.subr.bf16.mxu0 0
        %4382 = vmatpush1.bf16.msra.mxu0 0
        %4383 = vmatprep.subr.bf16.mxu0 0
        %4384 = vmatpush1.bf16.msra.mxu0 0
        %4385 = vmatprep.subr.bf16.mxu0 0
        %4386 = vmatpush1.bf16.msra.mxu0 0
        %4387 = vmatprep.subr.bf16.mxu0 0
        %4388 = vmatpush1.bf16.msra.mxu0 0
        %4389 = vmatprep.subr.bf16.mxu0 0
        %4390 = vmatpush1.bf16.msra.mxu0 0
        %4391 = vmatprep.subr.bf16.mxu0 0
        %4392 = vmatpush1.bf16.msra.mxu0 0
        %4393 = vmatprep.subr.bf16.mxu0 0
        %4394 = vmatpush1.bf16.msra.mxu0 0
        %4395 = vmatprep.subr.bf16.mxu0 0
        %4396 = vmatpush1.bf16.msra.mxu0 0
        %4397 = vmatprep.subr.bf16.mxu0 0
        %4398 = vmatpush1.bf16.msra.mxu0 0
        %4399 = vmatprep.subr.bf16.mxu0 0
        %4400 = vmatpush1.bf16.msra.mxu0 0
        %4401 = vmatprep.subr.bf16.mxu0 0
        %4402 = vmatpush1.bf16.msra.mxu0 0
        %4403 = vmatprep.subr.bf16.mxu0 0
        %4404 = vmatpush1.bf16.msra.mxu0 0
        %4405 = vmatprep.subr.bf16.mxu0 0
        %4406 = vmatpush1.bf16.msra.mxu0 0
        %4407 = vmatprep.subr.bf16.mxu0 0
        %4408 = vmatpush1.bf16.msra.mxu0 0
        %4409 = vmatprep.mubr.bf16.mxu0 0
        %4410 = vmatmul.mubr.bf16.gmra.mrb[0].mxu0 %v4375
        %v4411 = vpop.f32.mrb[0].mxu0
        %v4412 = vadd.f32 0.0, %v4411
        %v4413 = vpop.f32.mrb[0].mxu0
        %v4414 = vpop.f32.mrb[0].mxu0
        %v4415 = vadd.f32 0.0, %v4414
        %v4416 = vpop.f32.mrb[0].mxu0
        %4417 = vdwg.mxu0
        %4419 = vrot.lane.b32.xlu0 %v4010, 96
        %v4420 = vpop.permute.xlu0 %4419
        %v4423 = vsel %vm1209, %v3975, 0
        %4425 = vmatprep.subr.bf16.mxu0 0
        %4426 = vmatpush1.bf16.msra.mxu0 %v4420
        %4427 = vmatprep.subr.bf16.mxu0 0
        %4428 = vmatpush1.bf16.msra.mxu0 0
        %4429 = vmatprep.subr.bf16.mxu0 0
        %4430 = vmatpush1.bf16.msra.mxu0 0
        %4431 = vmatprep.subr.bf16.mxu0 0
        %4432 = vmatpush1.bf16.msra.mxu0 0
        %4433 = vmatprep.subr.bf16.mxu0 0
        %4434 = vmatpush1.bf16.msra.mxu0 0
        %4435 = vmatprep.subr.bf16.mxu0 0
        %4436 = vmatpush1.bf16.msra.mxu0 0
        %4437 = vmatprep.subr.bf16.mxu0 0
        %4438 = vmatpush1.bf16.msra.mxu0 0
        %4439 = vmatprep.subr.bf16.mxu0 0
        %4440 = vmatpush1.bf16.msra.mxu0 0
        %4441 = vmatprep.subr.bf16.mxu0 0
        %4442 = vmatpush1.bf16.msra.mxu0 0
        %4443 = vmatprep.subr.bf16.mxu0 0
        %4444 = vmatpush1.bf16.msra.mxu0 0
        %4445 = vmatprep.subr.bf16.mxu0 0
        %4446 = vmatpush1.bf16.msra.mxu0 0
        %4447 = vmatprep.subr.bf16.mxu0 0
        %4448 = vmatpush1.bf16.msra.mxu0 0
        %4449 = vmatprep.subr.bf16.mxu0 0
        %4450 = vmatpush1.bf16.msra.mxu0 0
        %4451 = vmatprep.subr.bf16.mxu0 0
        %4452 = vmatpush1.bf16.msra.mxu0 0
        %4453 = vmatprep.subr.bf16.mxu0 0
        %4454 = vmatpush1.bf16.msra.mxu0 0
        %4455 = vmatprep.subr.bf16.mxu0 0
        %4456 = vmatpush1.bf16.msra.mxu0 0
        %4457 = vmatprep.mubr.bf16.mxu0 0
        %4458 = vmatmul.mubr.bf16.gmra.mrb[0].mxu0 %v4423
        %v4459 = vpop.f32.mrb[0].mxu0
        %v4460 = vadd.f32 0.0, %v4459
        %v4461 = vpop.f32.mrb[0].mxu0
        %v4462 = vpop.f32.mrb[0].mxu0
        %v4463 = vadd.f32 0.0, %v4462
        %v4464 = vpop.f32.mrb[0].mxu0
        %4465 = vdwg.mxu0
        %4466 = vrot.lane.b32.xlu0 %v1189, 96
        %v4467 = vpop.permute.xlu0 %4466
        %v4470 = vsel %vm1209, %v3976, 0
        %4472 = vmatprep.subr.bf16.mxu0 0
        %4473 = vmatpush1.bf16.msra.mxu0 %v4467
        %4474 = vmatprep.subr.bf16.mxu0 0
        %4475 = vmatpush1.bf16.msra.mxu0 0
        %4476 = vmatprep.subr.bf16.mxu0 0
        %4477 = vmatpush1.bf16.msra.mxu0 0
        %4478 = vmatprep.subr.bf16.mxu0 0
        %4479 = vmatpush1.bf16.msra.mxu0 0
        %4480 = vmatprep.subr.bf16.mxu0 0
        %4481 = vmatpush1.bf16.msra.mxu0 0
        %4482 = vmatprep.subr.bf16.mxu0 0
        %4483 = vmatpush1.bf16.msra.mxu0 0
        %4484 = vmatprep.subr.bf16.mxu0 0
        %4485 = vmatpush1.bf16.msra.mxu0 0
        %4486 = vmatprep.subr.bf16.mxu0 0
        %4487 = vmatpush1.bf16.msra.mxu0 0
        %4488 = vmatprep.subr.bf16.mxu0 0
        %4489 = vmatpush1.bf16.msra.mxu0 0
        %4490 = vmatprep.subr.bf16.mxu0 0
        %4491 = vmatpush1.bf16.msra.mxu0 0
        %4492 = vmatprep.subr.bf16.mxu0 0
        %4493 = vmatpush1.bf16.msra.mxu0 0
        %4494 = vmatprep.subr.bf16.mxu0 0
        %4495 = vmatpush1.bf16.msra.mxu0 0
        %4496 = vmatprep.subr.bf16.mxu0 0
        %4497 = vmatpush1.bf16.msra.mxu0 0
        %4498 = vmatprep.subr.bf16.mxu0 0
        %4499 = vmatpush1.bf16.msra.mxu0 0
        %4500 = vmatprep.subr.bf16.mxu0 0
        %4501 = vmatpush1.bf16.msra.mxu0 0
        %4502 = vmatprep.subr.bf16.mxu0 0
        %4503 = vmatpush1.bf16.msra.mxu0 0
        %4504 = vmatprep.mubr.bf16.mxu0 0
        %4505 = vmatmul.mubr.bf16.gmra.mrb[0].mxu0 %v4470
        %v4506 = vpop.f32.mrb[0].mxu0
        %v4507 = vadd.f32 0.0, %v4506
        %v4508 = vpop.f32.mrb[0].mxu0
        %v4509 = vpop.f32.mrb[0].mxu0
        %v4510 = vadd.f32 0.0, %v4509
        %v4511 = vpop.f32.mrb[0].mxu0
        %4512 = vdwg.mxu0
        %4514 = vrot.lane.b32.xlu0 %v4011, 96
        %v4515 = vpop.permute.xlu0 %4514
        %v4518 = vsel %vm1209, %v3977, 0
        %4520 = vmatprep.subr.bf16.mxu0 0
        %4521 = vmatpush1.bf16.msra.mxu0 %v4515
        %4522 = vmatprep.subr.bf16.mxu0 0
        %4523 = vmatpush1.bf16.msra.mxu0 0
        %4524 = vmatprep.subr.bf16.mxu0 0
        %4525 = vmatpush1.bf16.msra.mxu0 0
        %4526 = vmatprep.subr.bf16.mxu0 0
        %4527 = vmatpush1.bf16.msra.mxu0 0
        %4528 = vmatprep.subr.bf16.mxu0 0
        %4529 = vmatpush1.bf16.msra.mxu0 0
        %4530 = vmatprep.subr.bf16.mxu0 0
        %4531 = vmatpush1.bf16.msra.mxu0 0
        %4532 = vmatprep.subr.bf16.mxu0 0
        %4533 = vmatpush1.bf16.msra.mxu0 0
        %4534 = vmatprep.subr.bf16.mxu0 0
        %4535 = vmatpush1.bf16.msra.mxu0 0
        %4536 = vmatprep.subr.bf16.mxu0 0
        %4537 = vmatpush1.bf16.msra.mxu0 0
        %4538 = vmatprep.subr.bf16.mxu0 0
        %4539 = vmatpush1.bf16.msra.mxu0 0
        %4540 = vmatprep.subr.bf16.mxu0 0
        %4541 = vmatpush1.bf16.msra.mxu0 0
        %4542 = vmatprep.subr.bf16.mxu0 0
        %4543 = vmatpush1.bf16.msra.mxu0 0
        %4544 = vmatprep.subr.bf16.mxu0 0
        %4545 = vmatpush1.bf16.msra.mxu0 0
        %4546 = vmatprep.subr.bf16.mxu0 0
        %4547 = vmatpush1.bf16.msra.mxu0 0
        %4548 = vmatprep.subr.bf16.mxu0 0
        %4549 = vmatpush1.bf16.msra.mxu0 0
        %4550 = vmatprep.subr.bf16.mxu0 0
        %4551 = vmatpush1.bf16.msra.mxu0 0
        %4552 = vmatprep.mubr.bf16.mxu0 0
        %4553 = vmatmul.mubr.bf16.gmra.mrb[0].mxu0 %v4518
        %v4554 = vpop.f32.mrb[0].mxu0
        %v4555 = vadd.f32 0.0, %v4554
        %v4556 = vpop.f32.mrb[0].mxu0
        %v4557 = vpop.f32.mrb[0].mxu0
        %v4558 = vadd.f32 0.0, %v4557
        %v4559 = vpop.f32.mrb[0].mxu0
        %4560 = vdwg.mxu0
        %4562 = vrot.lane.b32.xlu0 %v4012, 96
        %v4563 = vpop.permute.xlu0 %4562
        %v4566 = vsel %vm1209, %v3978, 0
        %4568 = vmatprep.subr.bf16.mxu0 0
        %4569 = vmatpush1.bf16.msra.mxu0 %v4563
        %4570 = vmatprep.subr.bf16.mxu0 0
        %4571 = vmatpush1.bf16.msra.mxu0 0
        %4572 = vmatprep.subr.bf16.mxu0 0
        %4573 = vmatpush1.bf16.msra.mxu0 0
        %4574 = vmatprep.subr.bf16.mxu0 0
        %4575 = vmatpush1.bf16.msra.mxu0 0
        %4576 = vmatprep.subr.bf16.mxu0 0
        %4577 = vmatpush1.bf16.msra.mxu0 0
        %4578 = vmatprep.subr.bf16.mxu0 0
        %4579 = vmatpush1.bf16.msra.mxu0 0
        %4580 = vmatprep.subr.bf16.mxu0 0
        %4581 = vmatpush1.bf16.msra.mxu0 0
        %4582 = vmatprep.subr.bf16.mxu0 0
        %4583 = vmatpush1.bf16.msra.mxu0 0
        %4584 = vmatprep.subr.bf16.mxu0 0
        %4585 = vmatpush1.bf16.msra.mxu0 0
        %4586 = vmatprep.subr.bf16.mxu0 0
        %4587 = vmatpush1.bf16.msra.mxu0 0
        %4588 = vmatprep.subr.bf16.mxu0 0
        %4589 = vmatpush1.bf16.msra.mxu0 0
        %4590 = vmatprep.subr.bf16.mxu0 0
        %4591 = vmatpush1.bf16.msra.mxu0 0
        %4592 = vmatprep.subr.bf16.mxu0 0
        %4593 = vmatpush1.bf16.msra.mxu0 0
        %4594 = vmatprep.subr.bf16.mxu0 0
        %4595 = vmatpush1.bf16.msra.mxu0 0
        %4596 = vmatprep.subr.bf16.mxu0 0
        %4597 = vmatpush1.bf16.msra.mxu0 0
        %4598 = vmatprep.subr.bf16.mxu0 0
        %4599 = vmatpush1.bf16.msra.mxu0 0
        %4600 = vmatprep.mubr.bf16.mxu0 0
        %4601 = vmatmul.mubr.bf16.gmra.mrb[0].mxu0 %v4566
        %v4602 = vpop.f32.mrb[0].mxu0
        %v4603 = vadd.f32 0.0, %v4602
        %v4604 = vpop.f32.mrb[0].mxu0
        %v4605 = vpop.f32.mrb[0].mxu0
        %v4606 = vadd.f32 0.0, %v4605
        %v4607 = vpop.f32.mrb[0].mxu0
        %4608 = vdwg.mxu0
        %4610 = vrot.lane.b32.xlu0 %v4013, 96
        %v4611 = vpop.permute.xlu0 %4610
        %v4614 = vsel %vm1209, %v3979, 0
        %4616 = vmatprep.subr.bf16.mxu0 0
        %4617 = vmatpush1.bf16.msra.mxu0 %v4611
        %4618 = vmatprep.subr.bf16.mxu0 0
        %4619 = vmatpush1.bf16.msra.mxu0 0
        %4620 = vmatprep.subr.bf16.mxu0 0
        %4621 = vmatpush1.bf16.msra.mxu0 0
        %4622 = vmatprep.subr.bf16.mxu0 0
        %4623 = vmatpush1.bf16.msra.mxu0 0
        %4624 = vmatprep.subr.bf16.mxu0 0
        %4625 = vmatpush1.bf16.msra.mxu0 0
        %4626 = vmatprep.subr.bf16.mxu0 0
        %4627 = vmatpush1.bf16.msra.mxu0 0
        %4628 = vmatprep.subr.bf16.mxu0 0
        %4629 = vmatpush1.bf16.msra.mxu0 0
        %4630 = vmatprep.subr.bf16.mxu0 0
        %4631 = vmatpush1.bf16.msra.mxu0 0
        %4632 = vmatprep.subr.bf16.mxu0 0
        %4633 = vmatpush1.bf16.msra.mxu0 0
        %4634 = vmatprep.subr.bf16.mxu0 0
        %4635 = vmatpush1.bf16.msra.mxu0 0
        %4636 = vmatprep.subr.bf16.mxu0 0
        %4637 = vmatpush1.bf16.msra.mxu0 0
        %4638 = vmatprep.subr.bf16.mxu0 0
        %4639 = vmatpush1.bf16.msra.mxu0 0
        %4640 = vmatprep.subr.bf16.mxu0 0
        %4641 = vmatpush1.bf16.msra.mxu0 0
        %4642 = vmatprep.subr.bf16.mxu0 0
        %4643 = vmatpush1.bf16.msra.mxu0 0
        %4644 = vmatprep.subr.bf16.mxu0 0
        %4645 = vmatpush1.bf16.msra.mxu0 0
        %4646 = vmatprep.subr.bf16.mxu0 0
        %4647 = vmatpush1.bf16.msra.mxu0 0
        %4648 = vmatprep.mubr.bf16.mxu0 0
        %4649 = vmatmul.mubr.bf16.gmra.mrb[0].mxu0 %v4614
        %v4650 = vpop.f32.mrb[0].mxu0
        %v4651 = vadd.f32 0.0, %v4650
        %v4652 = vpop.f32.mrb[0].mxu0
        %v4653 = vpop.f32.mrb[0].mxu0
        %v4654 = vadd.f32 0.0, %v4653
        %v4655 = vpop.f32.mrb[0].mxu0
        %4656 = vdwg.mxu0
        %4658 = vrot.lane.b32.xlu0 %v4014, 96
        %v4659 = vpop.permute.xlu0 %4658
        %v4662 = vsel %vm1209, %v3980, 0
        %4664 = vmatprep.subr.bf16.mxu0 0
        %4665 = vmatpush1.bf16.msra.mxu0 %v4659
        %4666 = vmatprep.subr.bf16.mxu0 0
        %4667 = vmatpush1.bf16.msra.mxu0 0
        %4668 = vmatprep.subr.bf16.mxu0 0
        %4669 = vmatpush1.bf16.msra.mxu0 0
        %4670 = vmatprep.subr.bf16.mxu0 0
        %4671 = vmatpush1.bf16.msra.mxu0 0
        %4672 = vmatprep.subr.bf16.mxu0 0
        %4673 = vmatpush1.bf16.msra.mxu0 0
        %4674 = vmatprep.subr.bf16.mxu0 0
        %4675 = vmatpush1.bf16.msra.mxu0 0
        %4676 = vmatprep.subr.bf16.mxu0 0
        %4677 = vmatpush1.bf16.msra.mxu0 0
        %4678 = vmatprep.subr.bf16.mxu0 0
        %4679 = vmatpush1.bf16.msra.mxu0 0
        %4680 = vmatprep.subr.bf16.mxu0 0
        %4681 = vmatpush1.bf16.msra.mxu0 0
        %4682 = vmatprep.subr.bf16.mxu0 0
        %4683 = vmatpush1.bf16.msra.mxu0 0
        %4684 = vmatprep.subr.bf16.mxu0 0
        %4685 = vmatpush1.bf16.msra.mxu0 0
        %4686 = vmatprep.subr.bf16.mxu0 0
        %4687 = vmatpush1.bf16.msra.mxu0 0
        %4688 = vmatprep.subr.bf16.mxu0 0
        %4689 = vmatpush1.bf16.msra.mxu0 0
        %4690 = vmatprep.subr.bf16.mxu0 0
        %4691 = vmatpush1.bf16.msra.mxu0 0
        %4692 = vmatprep.subr.bf16.mxu0 0
        %4693 = vmatpush1.bf16.msra.mxu0 0
        %4694 = vmatprep.subr.bf16.mxu0 0
        %4695 = vmatpush1.bf16.msra.mxu0 0
        %4696 = vmatprep.mubr.bf16.mxu0 0
        %4697 = vmatmul.mubr.bf16.gmra.mrb[0].mxu0 %v4662
        %v4698 = vpop.f32.mrb[0].mxu0
        %v4699 = vadd.f32 0.0, %v4698
        %v4700 = vpop.f32.mrb[0].mxu0
        %v4701 = vpop.f32.mrb[0].mxu0
        %v4702 = vadd.f32 0.0, %v4701
        %v4703 = vpop.f32.mrb[0].mxu0
        %4704 = vdwg.mxu0
        %4706 = vrot.lane.b32.xlu0 %v4015, 96
        %v4707 = vpop.permute.xlu0 %4706
        %v4710 = vsel %vm1209, %v3981, 0
        %4712 = vmatprep.subr.bf16.mxu0 0
        %4713 = vmatpush1.bf16.msra.mxu0 %v4707
        %4714 = vmatprep.subr.bf16.mxu0 0
        %4715 = vmatpush1.bf16.msra.mxu0 0
        %4716 = vmatprep.subr.bf16.mxu0 0
        %4717 = vmatpush1.bf16.msra.mxu0 0
        %4718 = vmatprep.subr.bf16.mxu0 0
        %4719 = vmatpush1.bf16.msra.mxu0 0
        %4720 = vmatprep.subr.bf16.mxu0 0
        %4721 = vmatpush1.bf16.msra.mxu0 0
        %4722 = vmatprep.subr.bf16.mxu0 0
        %4723 = vmatpush1.bf16.msra.mxu0 0
        %4724 = vmatprep.subr.bf16.mxu0 0
        %4725 = vmatpush1.bf16.msra.mxu0 0
        %4726 = vmatprep.subr.bf16.mxu0 0
        %4727 = vmatpush1.bf16.msra.mxu0 0
        %4728 = vmatprep.subr.bf16.mxu0 0
        %4729 = vmatpush1.bf16.msra.mxu0 0
        %4730 = vmatprep.subr.bf16.mxu0 0
        %4731 = vmatpush1.bf16.msra.mxu0 0
        %4732 = vmatprep.subr.bf16.mxu0 0
        %4733 = vmatpush1.bf16.msra.mxu0 0
        %4734 = vmatprep.subr.bf16.mxu0 0
        %4735 = vmatpush1.bf16.msra.mxu0 0
        %4736 = vmatprep.subr.bf16.mxu0 0
        %4737 = vmatpush1.bf16.msra.mxu0 0
        %4738 = vmatprep.subr.bf16.mxu0 0
        %4739 = vmatpush1.bf16.msra.mxu0 0
        %4740 = vmatprep.subr.bf16.mxu0 0
        %4741 = vmatpush1.bf16.msra.mxu0 0
        %4742 = vmatprep.subr.bf16.mxu0 0
        %4743 = vmatpush1.bf16.msra.mxu0 0
        %4744 = vmatprep.mubr.bf16.mxu0 0
        %4745 = vmatmul.mubr.bf16.gmra.mrb[0].mxu0 %v4710
        %v4746 = vpop.f32.mrb[0].mxu0
        %v4747 = vadd.f32 0.0, %v4746
        %v4748 = vpop.f32.mrb[0].mxu0
        %v4749 = vpop.f32.mrb[0].mxu0
        %v4750 = vadd.f32 0.0, %v4749
        %v4751 = vpop.f32.mrb[0].mxu0
        %4752 = vdwg.mxu0
        %4754 = vrot.lane.b32.xlu0 %v4016, 96
        %v4755 = vpop.permute.xlu0 %4754
        %v4758 = vsel %vm1209, %v3982, 0
        %4760 = vmatprep.subr.bf16.mxu0 0
        %4761 = vmatpush1.bf16.msra.mxu0 %v4755
        %4762 = vmatprep.subr.bf16.mxu0 0
        %4763 = vmatpush1.bf16.msra.mxu0 0
        %4764 = vmatprep.subr.bf16.mxu0 0
        %4765 = vmatpush1.bf16.msra.mxu0 0
        %4766 = vmatprep.subr.bf16.mxu0 0
        %4767 = vmatpush1.bf16.msra.mxu0 0
        %4768 = vmatprep.subr.bf16.mxu0 0
        %4769 = vmatpush1.bf16.msra.mxu0 0
        %4770 = vmatprep.subr.bf16.mxu0 0
        %4771 = vmatpush1.bf16.msra.mxu0 0
        %4772 = vmatprep.subr.bf16.mxu0 0
        %4773 = vmatpush1.bf16.msra.mxu0 0
        %4774 = vmatprep.subr.bf16.mxu0 0
        %4775 = vmatpush1.bf16.msra.mxu0 0
        %4776 = vmatprep.subr.bf16.mxu0 0
        %4777 = vmatpush1.bf16.msra.mxu0 0
        %4778 = vmatprep.subr.bf16.mxu0 0
        %4779 = vmatpush1.bf16.msra.mxu0 0
        %4780 = vmatprep.subr.bf16.mxu0 0
        %4781 = vmatpush1.bf16.msra.mxu0 0
        %4782 = vmatprep.subr.bf16.mxu0 0
        %4783 = vmatpush1.bf16.msra.mxu0 0
        %4784 = vmatprep.subr.bf16.mxu0 0
        %4785 = vmatpush1.bf16.msra.mxu0 0
        %4786 = vmatprep.subr.bf16.mxu0 0
        %4787 = vmatpush1.bf16.msra.mxu0 0
        %4788 = vmatprep.subr.bf16.mxu0 0
        %4789 = vmatpush1.bf16.msra.mxu0 0
        %4790 = vmatprep.subr.bf16.mxu0 0
        %4791 = vmatpush1.bf16.msra.mxu0 0
        %4792 = vmatprep.mubr.bf16.mxu0 0
        %4793 = vmatmul.mubr.bf16.gmra.mrb[0].mxu0 %v4758
        %v4794 = vpop.f32.mrb[0].mxu0
        %v4795 = vadd.f32 0.0, %v4794
        %v4796 = vpop.f32.mrb[0].mxu0
        %v4797 = vpop.f32.mrb[0].mxu0
        %v4798 = vadd.f32 0.0, %v4797
        %v4799 = vpop.f32.mrb[0].mxu0
        %4800 = vdwg.mxu0
        %4802 = vrot.lane.b32.xlu0 %v4017, 96
        %v4803 = vpop.permute.xlu0 %4802
        %v4806 = vsel %vm1209, %v3983, 0
        %4808 = vmatprep.subr.bf16.mxu0 0
        %4809 = vmatpush1.bf16.msra.mxu0 %v4803
        %4810 = vmatprep.subr.bf16.mxu0 0
        %4811 = vmatpush1.bf16.msra.mxu0 0
        %4812 = vmatprep.subr.bf16.mxu0 0
        %4813 = vmatpush1.bf16.msra.mxu0 0
        %4814 = vmatprep.subr.bf16.mxu0 0
        %4815 = vmatpush1.bf16.msra.mxu0 0
        %4816 = vmatprep.subr.bf16.mxu0 0
        %4817 = vmatpush1.bf16.msra.mxu0 0
        %4818 = vmatprep.subr.bf16.mxu0 0
        %4819 = vmatpush1.bf16.msra.mxu0 0
        %4820 = vmatprep.subr.bf16.mxu0 0
        %4821 = vmatpush1.bf16.msra.mxu0 0
        %4822 = vmatprep.subr.bf16.mxu0 0
        %4823 = vmatpush1.bf16.msra.mxu0 0
        %4824 = vmatprep.subr.bf16.mxu0 0
        %4825 = vmatpush1.bf16.msra.mxu0 0
        %4826 = vmatprep.subr.bf16.mxu0 0
        %4827 = vmatpush1.bf16.msra.mxu0 0
        %4828 = vmatprep.subr.bf16.mxu0 0
        %4829 = vmatpush1.bf16.msra.mxu0 0
        %4830 = vmatprep.subr.bf16.mxu0 0
        %4831 = vmatpush1.bf16.msra.mxu0 0
        %4832 = vmatprep.subr.bf16.mxu0 0
        %4833 = vmatpush1.bf16.msra.mxu0 0
        %4834 = vmatprep.subr.bf16.mxu0 0
        %4835 = vmatpush1.bf16.msra.mxu0 0
        %4836 = vmatprep.subr.bf16.mxu0 0
        %4837 = vmatpush1.bf16.msra.mxu0 0
        %4838 = vmatprep.subr.bf16.mxu0 0
        %4839 = vmatpush1.bf16.msra.mxu0 0
        %4840 = vmatprep.mubr.bf16.mxu0 0
        %4841 = vmatmul.mubr.bf16.gmra.mrb[0].mxu0 %v4806
        %v4842 = vpop.f32.mrb[0].mxu0
        %v4843 = vadd.f32 0.0, %v4842
        %v4844 = vpop.f32.mrb[0].mxu0
        %v4845 = vpop.f32.mrb[0].mxu0
        %v4846 = vadd.f32 0.0, %v4845
        %v4847 = vpop.f32.mrb[0].mxu0
        %4848 = vdwg.mxu0
        %4850 = vrot.lane.b32.xlu0 %v4018, 96
        %v4851 = vpop.permute.xlu0 %4850
        %v4854 = vsel %vm1209, %v3984, 0
        %4856 = vmatprep.subr.bf16.mxu0 0
        %4857 = vmatpush1.bf16.msra.mxu0 %v4851
        %4858 = vmatprep.subr.bf16.mxu0 0
        %4859 = vmatpush1.bf16.msra.mxu0 0
        %4860 = vmatprep.subr.bf16.mxu0 0
        %4861 = vmatpush1.bf16.msra.mxu0 0
        %4862 = vmatprep.subr.bf16.mxu0 0
        %4863 = vmatpush1.bf16.msra.mxu0 0
        %4864 = vmatprep.subr.bf16.mxu0 0
        %4865 = vmatpush1.bf16.msra.mxu0 0
        %4866 = vmatprep.subr.bf16.mxu0 0
        %4867 = vmatpush1.bf16.msra.mxu0 0
        %4868 = vmatprep.subr.bf16.mxu0 0
        %4869 = vmatpush1.bf16.msra.mxu0 0
        %4870 = vmatprep.subr.bf16.mxu0 0
        %4871 = vmatpush1.bf16.msra.mxu0 0
        %4872 = vmatprep.subr.bf16.mxu0 0
        %4873 = vmatpush1.bf16.msra.mxu0 0
        %4874 = vmatprep.subr.bf16.mxu0 0
        %4875 = vmatpush1.bf16.msra.mxu0 0
        %4876 = vmatprep.subr.bf16.mxu0 0
        %4877 = vmatpush1.bf16.msra.mxu0 0
        %4878 = vmatprep.subr.bf16.mxu0 0
        %4879 = vmatpush1.bf16.msra.mxu0 0
        %4880 = vmatprep.subr.bf16.mxu0 0
        %4881 = vmatpush1.bf16.msra.mxu0 0
        %4882 = vmatprep.subr.bf16.mxu0 0
        %4883 = vmatpush1.bf16.msra.mxu0 0
        %4884 = vmatprep.subr.bf16.mxu0 0
        %4885 = vmatpush1.bf16.msra.mxu0 0
        %4886 = vmatprep.subr.bf16.mxu0 0
        %4887 = vmatpush1.bf16.msra.mxu0 0
        %4888 = vmatprep.mubr.bf16.mxu0 0
        %4889 = vmatmul.mubr.bf16.gmra.mrb[0].mxu0 %v4854
        %v4890 = vpop.f32.mrb[0].mxu0
        %v4891 = vadd.f32 0.0, %v4890
        %v4892 = vpop.f32.mrb[0].mxu0
        %v4893 = vpop.f32.mrb[0].mxu0
        %v4894 = vadd.f32 0.0, %v4893
        %v4895 = vpop.f32.mrb[0].mxu0
        %4896 = vdwg.mxu0
        %4897 = vrot.lane.b32.xlu0 %v1197, 96
        %v4898 = vpop.permute.xlu0 %4897
        %v4901 = vsel %vm1209, %v3985, 0
        %4903 = vmatprep.subr.bf16.mxu0 0
        %4904 = vmatpush1.bf16.msra.mxu0 %v4898
        %4905 = vmatprep.subr.bf16.mxu0 0
        %4906 = vmatpush1.bf16.msra.mxu0 0
        %4907 = vmatprep.subr.bf16.mxu0 0
        %4908 = vmatpush1.bf16.msra.mxu0 0
        %4909 = vmatprep.subr.bf16.mxu0 0
        %4910 = vmatpush1.bf16.msra.mxu0 0
        %4911 = vmatprep.subr.bf16.mxu0 0
        %4912 = vmatpush1.bf16.msra.mxu0 0
        %4913 = vmatprep.subr.bf16.mxu0 0
        %4914 = vmatpush1.bf16.msra.mxu0 0
        %4915 = vmatprep.subr.bf16.mxu0 0
        %4916 = vmatpush1.bf16.msra.mxu0 0
        %4917 = vmatprep.subr.bf16.mxu0 0
        %4918 = vmatpush1.bf16.msra.mxu0 0
        %4919 = vmatprep.subr.bf16.mxu0 0
        %4920 = vmatpush1.bf16.msra.mxu0 0
        %4921 = vmatprep.subr.bf16.mxu0 0
        %4922 = vmatpush1.bf16.msra.mxu0 0
        %4923 = vmatprep.subr.bf16.mxu0 0
        %4924 = vmatpush1.bf16.msra.mxu0 0
        %4925 = vmatprep.subr.bf16.mxu0 0
        %4926 = vmatpush1.bf16.msra.mxu0 0
        %4927 = vmatprep.subr.bf16.mxu0 0
        %4928 = vmatpush1.bf16.msra.mxu0 0
        %4929 = vmatprep.subr.bf16.mxu0 0
        %4930 = vmatpush1.bf16.msra.mxu0 0
        %4931 = vmatprep.subr.bf16.mxu0 0
        %4932 = vmatpush1.bf16.msra.mxu0 0
        %4933 = vmatprep.subr.bf16.mxu0 0
        %4934 = vmatpush1.bf16.msra.mxu0 0
        %4935 = vmatprep.mubr.bf16.mxu0 0
        %4936 = vmatmul.mubr.bf16.gmra.mrb[0].mxu0 %v4901
        %v4937 = vpop.f32.mrb[0].mxu0
        %v4938 = vadd.f32 0.0, %v4937
        %v4939 = vpop.f32.mrb[0].mxu0
        %v4940 = vpop.f32.mrb[0].mxu0
        %v4941 = vadd.f32 0.0, %v4940
        %v4942 = vpop.f32.mrb[0].mxu0
        %4943 = vdwg.mxu0
        %4945 = vrot.lane.b32.xlu0 %v4019, 96
        %v4946 = vpop.permute.xlu0 %4945
        %v4949 = vsel %vm1209, %v3986, 0
        %4951 = vmatprep.subr.bf16.mxu0 0
        %4952 = vmatpush1.bf16.msra.mxu0 %v4946
        %4953 = vmatprep.subr.bf16.mxu0 0
        %4954 = vmatpush1.bf16.msra.mxu0 0
        %4955 = vmatprep.subr.bf16.mxu0 0
        %4956 = vmatpush1.bf16.msra.mxu0 0
        %4957 = vmatprep.subr.bf16.mxu0 0
        %4958 = vmatpush1.bf16.msra.mxu0 0
        %4959 = vmatprep.subr.bf16.mxu0 0
        %4960 = vmatpush1.bf16.msra.mxu0 0
        %4961 = vmatprep.subr.bf16.mxu0 0
        %4962 = vmatpush1.bf16.msra.mxu0 0
        %4963 = vmatprep.subr.bf16.mxu0 0
        %4964 = vmatpush1.bf16.msra.mxu0 0
        %4965 = vmatprep.subr.bf16.mxu0 0
        %4966 = vmatpush1.bf16.msra.mxu0 0
        %4967 = vmatprep.subr.bf16.mxu0 0
        %4968 = vmatpush1.bf16.msra.mxu0 0
        %4969 = vmatprep.subr.bf16.mxu0 0
        %4970 = vmatpush1.bf16.msra.mxu0 0
        %4971 = vmatprep.subr.bf16.mxu0 0
        %4972 = vmatpush1.bf16.msra.mxu0 0
        %4973 = vmatprep.subr.bf16.mxu0 0
        %4974 = vmatpush1.bf16.msra.mxu0 0
        %4975 = vmatprep.subr.bf16.mxu0 0
        %4976 = vmatpush1.bf16.msra.mxu0 0
        %4977 = vmatprep.subr.bf16.mxu0 0
        %4978 = vmatpush1.bf16.msra.mxu0 0
        %4979 = vmatprep.subr.bf16.mxu0 0
        %4980 = vmatpush1.bf16.msra.mxu0 0
        %4981 = vmatprep.subr.bf16.mxu0 0
        %4982 = vmatpush1.bf16.msra.mxu0 0
        %4983 = vmatprep.mubr.bf16.mxu0 0
        %4984 = vmatmul.mubr.bf16.gmra.mrb[0].mxu0 %v4949
        %v4985 = vpop.f32.mrb[0].mxu0
        %v4986 = vadd.f32 0.0, %v4985
        %v4987 = vpop.f32.mrb[0].mxu0
        %v4988 = vpop.f32.mrb[0].mxu0
        %v4989 = vadd.f32 0.0, %v4988
        %v4990 = vpop.f32.mrb[0].mxu0
        %4991 = vdwg.mxu0
        %4993 = vrot.lane.b32.xlu0 %v4020, 96
        %v4994 = vpop.permute.xlu0 %4993
        %v4997 = vsel %vm1209, %v3987, 0
        %4999 = vmatprep.subr.bf16.mxu0 0
        %5000 = vmatpush1.bf16.msra.mxu0 %v4994
        %5001 = vmatprep.subr.bf16.mxu0 0
        %5002 = vmatpush1.bf16.msra.mxu0 0
        %5003 = vmatprep.subr.bf16.mxu0 0
        %5004 = vmatpush1.bf16.msra.mxu0 0
        %5005 = vmatprep.subr.bf16.mxu0 0
        %5006 = vmatpush1.bf16.msra.mxu0 0
        %5007 = vmatprep.subr.bf16.mxu0 0
        %5008 = vmatpush1.bf16.msra.mxu0 0
        %5009 = vmatprep.subr.bf16.mxu0 0
        %5010 = vmatpush1.bf16.msra.mxu0 0
        %5011 = vmatprep.subr.bf16.mxu0 0
        %5012 = vmatpush1.bf16.msra.mxu0 0
        %5013 = vmatprep.subr.bf16.mxu0 0
        %5014 = vmatpush1.bf16.msra.mxu0 0
        %5015 = vmatprep.subr.bf16.mxu0 0
        %5016 = vmatpush1.bf16.msra.mxu0 0
        %5017 = vmatprep.subr.bf16.mxu0 0
        %5018 = vmatpush1.bf16.msra.mxu0 0
        %5019 = vmatprep.subr.bf16.mxu0 0
        %5020 = vmatpush1.bf16.msra.mxu0 0
        %5021 = vmatprep.subr.bf16.mxu0 0
        %5022 = vmatpush1.bf16.msra.mxu0 0
        %5023 = vmatprep.subr.bf16.mxu0 0
        %5024 = vmatpush1.bf16.msra.mxu0 0
        %5025 = vmatprep.subr.bf16.mxu0 0
        %5026 = vmatpush1.bf16.msra.mxu0 0
        %5027 = vmatprep.subr.bf16.mxu0 0
        %5028 = vmatpush1.bf16.msra.mxu0 0
        %5029 = vmatprep.subr.bf16.mxu0 0
        %5030 = vmatpush1.bf16.msra.mxu0 0
        %5031 = vmatprep.mubr.bf16.mxu0 0
        %5032 = vmatmul.mubr.bf16.gmra.mrb[0].mxu0 %v4997
        %v5033 = vpop.f32.mrb[0].mxu0
        %v5034 = vadd.f32 0.0, %v5033
        %v5035 = vpop.f32.mrb[0].mxu0
        %v5036 = vpop.f32.mrb[0].mxu0
        %v5037 = vadd.f32 0.0, %v5036
        %v5038 = vpop.f32.mrb[0].mxu0
        %5039 = vdwg.mxu0
        %5041 = vrot.lane.b32.xlu0 %v4021, 96
        %v5042 = vpop.permute.xlu0 %5041
        %v5045 = vsel %vm1209, %v3988, 0
        %5047 = vmatprep.subr.bf16.mxu0 0
        %5048 = vmatpush1.bf16.msra.mxu0 %v5042
        %5049 = vmatprep.subr.bf16.mxu0 0
        %5050 = vmatpush1.bf16.msra.mxu0 0
        %5051 = vmatprep.subr.bf16.mxu0 0
        %5052 = vmatpush1.bf16.msra.mxu0 0
        %5053 = vmatprep.subr.bf16.mxu0 0
        %5054 = vmatpush1.bf16.msra.mxu0 0
        %5055 = vmatprep.subr.bf16.mxu0 0
        %5056 = vmatpush1.bf16.msra.mxu0 0
        %5057 = vmatprep.subr.bf16.mxu0 0
        %5058 = vmatpush1.bf16.msra.mxu0 0
        %5059 = vmatprep.subr.bf16.mxu0 0
        %5060 = vmatpush1.bf16.msra.mxu0 0
        %5061 = vmatprep.subr.bf16.mxu0 0
        %5062 = vmatpush1.bf16.msra.mxu0 0
        %5063 = vmatprep.subr.bf16.mxu0 0
        %5064 = vmatpush1.bf16.msra.mxu0 0
        %5065 = vmatprep.subr.bf16.mxu0 0
        %5066 = vmatpush1.bf16.msra.mxu0 0
        %5067 = vmatprep.subr.bf16.mxu0 0
        %5068 = vmatpush1.bf16.msra.mxu0 0
        %5069 = vmatprep.subr.bf16.mxu0 0
        %5070 = vmatpush1.bf16.msra.mxu0 0
        %5071 = vmatprep.subr.bf16.mxu0 0
        %5072 = vmatpush1.bf16.msra.mxu0 0
        %5073 = vmatprep.subr.bf16.mxu0 0
        %5074 = vmatpush1.bf16.msra.mxu0 0
        %5075 = vmatprep.subr.bf16.mxu0 0
        %5076 = vmatpush1.bf16.msra.mxu0 0
        %5077 = vmatprep.subr.bf16.mxu0 0
        %5078 = vmatpush1.bf16.msra.mxu0 0
        %5079 = vmatprep.mubr.bf16.mxu0 0
        %5080 = vmatmul.mubr.bf16.gmra.mrb[0].mxu0 %v5045
        %v5081 = vpop.f32.mrb[0].mxu0
        %v5082 = vadd.f32 0.0, %v5081
        %v5083 = vpop.f32.mrb[0].mxu0
        %v5084 = vpop.f32.mrb[0].mxu0
        %v5085 = vadd.f32 0.0, %v5084
        %v5086 = vpop.f32.mrb[0].mxu0
        %5087 = vdwg.mxu0
        %5089 = vrot.lane.b32.xlu0 %v4022, 96
        %v5090 = vpop.permute.xlu0 %5089
        %v5093 = vsel %vm1209, %v3989, 0
        %5095 = vmatprep.subr.bf16.mxu0 0
        %5096 = vmatpush1.bf16.msra.mxu0 %v5090
        %5097 = vmatprep.subr.bf16.mxu0 0
        %5098 = vmatpush1.bf16.msra.mxu0 0
        %5099 = vmatprep.subr.bf16.mxu0 0
        %5100 = vmatpush1.bf16.msra.mxu0 0
        %5101 = vmatprep.subr.bf16.mxu0 0
        %5102 = vmatpush1.bf16.msra.mxu0 0
        %5103 = vmatprep.subr.bf16.mxu0 0
        %5104 = vmatpush1.bf16.msra.mxu0 0
        %5105 = vmatprep.subr.bf16.mxu0 0
        %5106 = vmatpush1.bf16.msra.mxu0 0
        %5107 = vmatprep.subr.bf16.mxu0 0
        %5108 = vmatpush1.bf16.msra.mxu0 0
        %5109 = vmatprep.subr.bf16.mxu0 0
        %5110 = vmatpush1.bf16.msra.mxu0 0
        %5111 = vmatprep.subr.bf16.mxu0 0
        %5112 = vmatpush1.bf16.msra.mxu0 0
        %5113 = vmatprep.subr.bf16.mxu0 0
        %5114 = vmatpush1.bf16.msra.mxu0 0
        %5115 = vmatprep.subr.bf16.mxu0 0
        %5116 = vmatpush1.bf16.msra.mxu0 0
        %5117 = vmatprep.subr.bf16.mxu0 0
        %5118 = vmatpush1.bf16.msra.mxu0 0
        %5119 = vmatprep.subr.bf16.mxu0 0
        %5120 = vmatpush1.bf16.msra.mxu0 0
        %5121 = vmatprep.subr.bf16.mxu0 0
        %5122 = vmatpush1.bf16.msra.mxu0 0
        %5123 = vmatprep.subr.bf16.mxu0 0
        %5124 = vmatpush1.bf16.msra.mxu0 0
        %5125 = vmatprep.subr.bf16.mxu0 0
        %5126 = vmatpush1.bf16.msra.mxu0 0
        %5127 = vmatprep.mubr.bf16.mxu0 0
        %5128 = vmatmul.mubr.bf16.gmra.mrb[0].mxu0 %v5093
        %v5129 = vpop.f32.mrb[0].mxu0
        %v5130 = vadd.f32 0.0, %v5129
        %v5131 = vpop.f32.mrb[0].mxu0
        %v5132 = vpop.f32.mrb[0].mxu0
        %v5133 = vadd.f32 0.0, %v5132
        %v5134 = vpop.f32.mrb[0].mxu0
        %5135 = vdwg.mxu0
        %5137 = vrot.lane.b32.xlu0 %v4023, 96
        %v5138 = vpop.permute.xlu0 %5137
        %v5141 = vsel %vm1209, %v3990, 0
        %5143 = vmatprep.subr.bf16.mxu0 0
        %5144 = vmatpush1.bf16.msra.mxu0 %v5138
        %5145 = vmatprep.subr.bf16.mxu0 0
        %5146 = vmatpush1.bf16.msra.mxu0 0
        %5147 = vmatprep.subr.bf16.mxu0 0
        %5148 = vmatpush1.bf16.msra.mxu0 0
        %5149 = vmatprep.subr.bf16.mxu0 0
        %5150 = vmatpush1.bf16.msra.mxu0 0
        %5151 = vmatprep.subr.bf16.mxu0 0
        %5152 = vmatpush1.bf16.msra.mxu0 0
        %5153 = vmatprep.subr.bf16.mxu0 0
        %5154 = vmatpush1.bf16.msra.mxu0 0
        %5155 = vmatprep.subr.bf16.mxu0 0
        %5156 = vmatpush1.bf16.msra.mxu0 0
        %5157 = vmatprep.subr.bf16.mxu0 0
        %5158 = vmatpush1.bf16.msra.mxu0 0
        %5159 = vmatprep.subr.bf16.mxu0 0
        %5160 = vmatpush1.bf16.msra.mxu0 0
        %5161 = vmatprep.subr.bf16.mxu0 0
        %5162 = vmatpush1.bf16.msra.mxu0 0
        %5163 = vmatprep.subr.bf16.mxu0 0
        %5164 = vmatpush1.bf16.msra.mxu0 0
        %5165 = vmatprep.subr.bf16.mxu0 0
        %5166 = vmatpush1.bf16.msra.mxu0 0
        %5167 = vmatprep.subr.bf16.mxu0 0
        %5168 = vmatpush1.bf16.msra.mxu0 0
        %5169 = vmatprep.subr.bf16.mxu0 0
        %5170 = vmatpush1.bf16.msra.mxu0 0
        %5171 = vmatprep.subr.bf16.mxu0 0
        %5172 = vmatpush1.bf16.msra.mxu0 0
        %5173 = vmatprep.subr.bf16.mxu0 0
        %5174 = vmatpush1.bf16.msra.mxu0 0
        %5175 = vmatprep.mubr.bf16.mxu0 0
        %5176 = vmatmul.mubr.bf16.gmra.mrb[0].mxu0 %v5141
        %v5177 = vpop.f32.mrb[0].mxu0
        %v5178 = vadd.f32 0.0, %v5177
        %v5179 = vpop.f32.mrb[0].mxu0
        %v5180 = vpop.f32.mrb[0].mxu0
        %v5181 = vadd.f32 0.0, %v5180
        %v5182 = vpop.f32.mrb[0].mxu0
        %5183 = vdwg.mxu0
        %5185 = vrot.lane.b32.xlu0 %v4024, 96
        %v5186 = vpop.permute.xlu0 %5185
        %v5189 = vsel %vm1209, %v3991, 0
        %5191 = vmatprep.subr.bf16.mxu0 0
        %5192 = vmatpush1.bf16.msra.mxu0 %v5186
        %5193 = vmatprep.subr.bf16.mxu0 0
        %5194 = vmatpush1.bf16.msra.mxu0 0
        %5195 = vmatprep.subr.bf16.mxu0 0
        %5196 = vmatpush1.bf16.msra.mxu0 0
        %5197 = vmatprep.subr.bf16.mxu0 0
        %5198 = vmatpush1.bf16.msra.mxu0 0
        %5199 = vmatprep.subr.bf16.mxu0 0
        %5200 = vmatpush1.bf16.msra.mxu0 0
        %5201 = vmatprep.subr.bf16.mxu0 0
        %5202 = vmatpush1.bf16.msra.mxu0 0
        %5203 = vmatprep.subr.bf16.mxu0 0
        %5204 = vmatpush1.bf16.msra.mxu0 0
        %5205 = vmatprep.subr.bf16.mxu0 0
        %5206 = vmatpush1.bf16.msra.mxu0 0
        %5207 = vmatprep.subr.bf16.mxu0 0
        %5208 = vmatpush1.bf16.msra.mxu0 0
        %5209 = vmatprep.subr.bf16.mxu0 0
        %5210 = vmatpush1.bf16.msra.mxu0 0
        %5211 = vmatprep.subr.bf16.mxu0 0
        %5212 = vmatpush1.bf16.msra.mxu0 0
        %5213 = vmatprep.subr.bf16.mxu0 0
        %5214 = vmatpush1.bf16.msra.mxu0 0
        %5215 = vmatprep.subr.bf16.mxu0 0
        %5216 = vmatpush1.bf16.msra.mxu0 0
        %5217 = vmatprep.subr.bf16.mxu0 0
        %5218 = vmatpush1.bf16.msra.mxu0 0
        %5219 = vmatprep.subr.bf16.mxu0 0
        %5220 = vmatpush1.bf16.msra.mxu0 0
        %5221 = vmatprep.subr.bf16.mxu0 0
        %5222 = vmatpush1.bf16.msra.mxu0 0
        %5223 = vmatprep.mubr.bf16.mxu0 0
        %5224 = vmatmul.mubr.bf16.gmra.mrb[0].mxu0 %v5189
        %v5225 = vpop.f32.mrb[0].mxu0
        %v5226 = vadd.f32 0.0, %v5225
        %v5227 = vpop.f32.mrb[0].mxu0
        %v5228 = vpop.f32.mrb[0].mxu0
        %v5229 = vadd.f32 0.0, %v5228
        %v5230 = vpop.f32.mrb[0].mxu0
        %5231 = vdwg.mxu0
        %5233 = vrot.lane.b32.xlu0 %v4025, 96
        %v5234 = vpop.permute.xlu0 %5233
        %v5237 = vsel %vm1209, %v3992, 0
        %5239 = vmatprep.subr.bf16.mxu0 0
        %5240 = vmatpush1.bf16.msra.mxu0 %v5234
        %5241 = vmatprep.subr.bf16.mxu0 0
        %5242 = vmatpush1.bf16.msra.mxu0 0
        %5243 = vmatprep.subr.bf16.mxu0 0
        %5244 = vmatpush1.bf16.msra.mxu0 0
        %5245 = vmatprep.subr.bf16.mxu0 0
        %5246 = vmatpush1.bf16.msra.mxu0 0
        %5247 = vmatprep.subr.bf16.mxu0 0
        %5248 = vmatpush1.bf16.msra.mxu0 0
        %5249 = vmatprep.subr.bf16.mxu0 0
        %5250 = vmatpush1.bf16.msra.mxu0 0
        %5251 = vmatprep.subr.bf16.mxu0 0
        %5252 = vmatpush1.bf16.msra.mxu0 0
        %5253 = vmatprep.subr.bf16.mxu0 0
        %5254 = vmatpush1.bf16.msra.mxu0 0
        %5255 = vmatprep.subr.bf16.mxu0 0
        %5256 = vmatpush1.bf16.msra.mxu0 0
        %5257 = vmatprep.subr.bf16.mxu0 0
        %5258 = vmatpush1.bf16.msra.mxu0 0
        %5259 = vmatprep.subr.bf16.mxu0 0
        %5260 = vmatpush1.bf16.msra.mxu0 0
        %5261 = vmatprep.subr.bf16.mxu0 0
        %5262 = vmatpush1.bf16.msra.mxu0 0
        %5263 = vmatprep.subr.bf16.mxu0 0
        %5264 = vmatpush1.bf16.msra.mxu0 0
        %5265 = vmatprep.subr.bf16.mxu0 0
        %5266 = vmatpush1.bf16.msra.mxu0 0
        %5267 = vmatprep.subr.bf16.mxu0 0
        %5268 = vmatpush1.bf16.msra.mxu0 0
        %5269 = vmatprep.subr.bf16.mxu0 0
        %5270 = vmatpush1.bf16.msra.mxu0 0
        %5271 = vmatprep.mubr.bf16.mxu0 0
        %5272 = vmatmul.mubr.bf16.gmra.mrb[0].mxu0 %v5237
        %v5273 = vpop.f32.mrb[0].mxu0
        %v5274 = vadd.f32 0.0, %v5273
        %v5275 = vpop.f32.mrb[0].mxu0
        %v5276 = vpop.f32.mrb[0].mxu0
        %v5277 = vadd.f32 0.0, %v5276
        %v5278 = vpop.f32.mrb[0].mxu0
        %5279 = vdwg.mxu0
        %5281 = vrot.lane.b32.xlu0 %v4026, 96
        %v5282 = vpop.permute.xlu0 %5281
        %v5285 = vsel %vm1209, %v3993, 0
        %5287 = vmatprep.subr.bf16.mxu0 0
        %5288 = vmatpush1.bf16.msra.mxu0 %v5282
        %5289 = vmatprep.subr.bf16.mxu0 0
        %5290 = vmatpush1.bf16.msra.mxu0 0
        %5291 = vmatprep.subr.bf16.mxu0 0
        %5292 = vmatpush1.bf16.msra.mxu0 0
        %5293 = vmatprep.subr.bf16.mxu0 0
        %5294 = vmatpush1.bf16.msra.mxu0 0
        %5295 = vmatprep.subr.bf16.mxu0 0
        %5296 = vmatpush1.bf16.msra.mxu0 0
        %5297 = vmatprep.subr.bf16.mxu0 0
        %5298 = vmatpush1.bf16.msra.mxu0 0
        %5299 = vmatprep.subr.bf16.mxu0 0
        %5300 = vmatpush1.bf16.msra.mxu0 0
        %5301 = vmatprep.subr.bf16.mxu0 0
        %5302 = vmatpush1.bf16.msra.mxu0 0
        %5303 = vmatprep.subr.bf16.mxu0 0
        %5304 = vmatpush1.bf16.msra.mxu0 0
        %5305 = vmatprep.subr.bf16.mxu0 0
        %5306 = vmatpush1.bf16.msra.mxu0 0
        %5307 = vmatprep.subr.bf16.mxu0 0
        %5308 = vmatpush1.bf16.msra.mxu0 0
        %5309 = vmatprep.subr.bf16.mxu0 0
        %5310 = vmatpush1.bf16.msra.mxu0 0
        %5311 = vmatprep.subr.bf16.mxu0 0
        %5312 = vmatpush1.bf16.msra.mxu0 0
        %5313 = vmatprep.subr.bf16.mxu0 0
        %5314 = vmatpush1.bf16.msra.mxu0 0
        %5315 = vmatprep.subr.bf16.mxu0 0
        %5316 = vmatpush1.bf16.msra.mxu0 0
        %5317 = vmatprep.subr.bf16.mxu0 0
        %5318 = vmatpush1.bf16.msra.mxu0 0
        %5319 = vmatprep.mubr.bf16.mxu0 0
        %5320 = vmatmul.mubr.bf16.gmra.mrb[0].mxu0 %v5285
        %v5321 = vpop.f32.mrb[0].mxu0
        %v5322 = vadd.f32 0.0, %v5321
        %v5323 = vpop.f32.mrb[0].mxu0
        %v5324 = vpop.f32.mrb[0].mxu0
        %v5325 = vadd.f32 0.0, %v5324
        %v5326 = vpop.f32.mrb[0].mxu0
        %5327 = vdwg.mxu0
        %5328 = vrot.lane.b32.xlu0 %v1205, 96
        %v5329 = vpop.permute.xlu0 %5328
        %v5332 = vsel %vm1209, %v3994, 0
        %5334 = vmatprep.subr.bf16.mxu0 0
        %5335 = vmatpush1.bf16.msra.mxu0 %v5329
        %5336 = vmatprep.subr.bf16.mxu0 0
        %5337 = vmatpush1.bf16.msra.mxu0 0
        %5338 = vmatprep.subr.bf16.mxu0 0
        %5339 = vmatpush1.bf16.msra.mxu0 0
        %5340 = vmatprep.subr.bf16.mxu0 0
        %5341 = vmatpush1.bf16.msra.mxu0 0
        %5342 = vmatprep.subr.bf16.mxu0 0
        %5343 = vmatpush1.bf16.msra.mxu0 0
        %5344 = vmatprep.subr.bf16.mxu0 0
        %5345 = vmatpush1.bf16.msra.mxu0 0
        %5346 = vmatprep.subr.bf16.mxu0 0
        %5347 = vmatpush1.bf16.msra.mxu0 0
        %5348 = vmatprep.subr.bf16.mxu0 0
        %5349 = vmatpush1.bf16.msra.mxu0 0
        %5350 = vmatprep.subr.bf16.mxu0 0
        %5351 = vmatpush1.bf16.msra.mxu0 0
        %5352 = vmatprep.subr.bf16.mxu0 0
        %5353 = vmatpush1.bf16.msra.mxu0 0
        %5354 = vmatprep.subr.bf16.mxu0 0
        %5355 = vmatpush1.bf16.msra.mxu0 0
        %5356 = vmatprep.subr.bf16.mxu0 0
        %5357 = vmatpush1.bf16.msra.mxu0 0
        %5358 = vmatprep.subr.bf16.mxu0 0
        %5359 = vmatpush1.bf16.msra.mxu0 0
        %5360 = vmatprep.subr.bf16.mxu0 0
        %5361 = vmatpush1.bf16.msra.mxu0 0
        %5362 = vmatprep.subr.bf16.mxu0 0
        %5363 = vmatpush1.bf16.msra.mxu0 0
        %5364 = vmatprep.subr.bf16.mxu0 0
        %5365 = vmatpush1.bf16.msra.mxu0 0
        %5366 = vmatprep.mubr.bf16.mxu0 0
        %5367 = vmatmul.mubr.bf16.gmra.mrb[0].mxu0 %v5332
        %v5368 = vpop.f32.mrb[0].mxu0
        %v5369 = vadd.f32 0.0, %v5368
        %v5370 = vpop.f32.mrb[0].mxu0
        %v5371 = vpop.f32.mrb[0].mxu0
        %v5372 = vadd.f32 0.0, %v5371
        %v5373 = vpop.f32.mrb[0].mxu0
        %5374 = vdwg.mxu0
        %5376 = vrot.lane.b32.xlu0 %v4027, 96
        %v5377 = vpop.permute.xlu0 %5376
        %v5380 = vsel %vm1209, %v3995, 0
        %5382 = vmatprep.subr.bf16.mxu0 0
        %5383 = vmatpush1.bf16.msra.mxu0 %v5377
        %5384 = vmatprep.subr.bf16.mxu0 0
        %5385 = vmatpush1.bf16.msra.mxu0 0
        %5386 = vmatprep.subr.bf16.mxu0 0
        %5387 = vmatpush1.bf16.msra.mxu0 0
        %5388 = vmatprep.subr.bf16.mxu0 0
        %5389 = vmatpush1.bf16.msra.mxu0 0
        %5390 = vmatprep.subr.bf16.mxu0 0
        %5391 = vmatpush1.bf16.msra.mxu0 0
        %5392 = vmatprep.subr.bf16.mxu0 0
        %5393 = vmatpush1.bf16.msra.mxu0 0
        %5394 = vmatprep.subr.bf16.mxu0 0
        %5395 = vmatpush1.bf16.msra.mxu0 0
        %5396 = vmatprep.subr.bf16.mxu0 0
        %5397 = vmatpush1.bf16.msra.mxu0 0
        %5398 = vmatprep.subr.bf16.mxu0 0
        %5399 = vmatpush1.bf16.msra.mxu0 0
        %5400 = vmatprep.subr.bf16.mxu0 0
        %5401 = vmatpush1.bf16.msra.mxu0 0
        %5402 = vmatprep.subr.bf16.mxu0 0
        %5403 = vmatpush1.bf16.msra.mxu0 0
        %5404 = vmatprep.subr.bf16.mxu0 0
        %5405 = vmatpush1.bf16.msra.mxu0 0
        %5406 = vmatprep.subr.bf16.mxu0 0
        %5407 = vmatpush1.bf16.msra.mxu0 0
        %5408 = vmatprep.subr.bf16.mxu0 0
        %5409 = vmatpush1.bf16.msra.mxu0 0
        %5410 = vmatprep.subr.bf16.mxu0 0
        %5411 = vmatpush1.bf16.msra.mxu0 0
        %5412 = vmatprep.subr.bf16.mxu0 0
        %5413 = vmatpush1.bf16.msra.mxu0 0
        %5414 = vmatprep.mubr.bf16.mxu0 0
        %5415 = vmatmul.mubr.bf16.gmra.mrb[0].mxu0 %v5380
        %v5416 = vpop.f32.mrb[0].mxu0
        %v5417 = vadd.f32 0.0, %v5416
        %v5418 = vpop.f32.mrb[0].mxu0
        %v5419 = vpop.f32.mrb[0].mxu0
        %v5420 = vadd.f32 0.0, %v5419
        %v5421 = vpop.f32.mrb[0].mxu0
        %5422 = vdwg.mxu0
        %5424 = vrot.lane.b32.xlu0 %v4028, 96
        %v5425 = vpop.permute.xlu0 %5424
        %v5428 = vsel %vm1209, %v3996, 0
        %5430 = vmatprep.subr.bf16.mxu0 0
        %5431 = vmatpush1.bf16.msra.mxu0 %v5425
        %5432 = vmatprep.subr.bf16.mxu0 0
        %5433 = vmatpush1.bf16.msra.mxu0 0
        %5434 = vmatprep.subr.bf16.mxu0 0
        %5435 = vmatpush1.bf16.msra.mxu0 0
        %5436 = vmatprep.subr.bf16.mxu0 0
        %5437 = vmatpush1.bf16.msra.mxu0 0
        %5438 = vmatprep.subr.bf16.mxu0 0
        %5439 = vmatpush1.bf16.msra.mxu0 0
        %5440 = vmatprep.subr.bf16.mxu0 0
        %5441 = vmatpush1.bf16.msra.mxu0 0
        %5442 = vmatprep.subr.bf16.mxu0 0
        %5443 = vmatpush1.bf16.msra.mxu0 0
        %5444 = vmatprep.subr.bf16.mxu0 0
        %5445 = vmatpush1.bf16.msra.mxu0 0
        %5446 = vmatprep.subr.bf16.mxu0 0
        %5447 = vmatpush1.bf16.msra.mxu0 0
        %5448 = vmatprep.subr.bf16.mxu0 0
        %5449 = vmatpush1.bf16.msra.mxu0 0
        %5450 = vmatprep.subr.bf16.mxu0 0
        %5451 = vmatpush1.bf16.msra.mxu0 0
        %5452 = vmatprep.subr.bf16.mxu0 0
        %5453 = vmatpush1.bf16.msra.mxu0 0
        %5454 = vmatprep.subr.bf16.mxu0 0
        %5455 = vmatpush1.bf16.msra.mxu0 0
        %5456 = vmatprep.subr.bf16.mxu0 0
        %5457 = vmatpush1.bf16.msra.mxu0 0
        %5458 = vmatprep.subr.bf16.mxu0 0
        %5459 = vmatpush1.bf16.msra.mxu0 0
        %5460 = vmatprep.subr.bf16.mxu0 0
        %5461 = vmatpush1.bf16.msra.mxu0 0
        %5462 = vmatprep.mubr.bf16.mxu0 0
        %5463 = vmatmul.mubr.bf16.gmra.mrb[0].mxu0 %v5428
        %v5464 = vpop.f32.mrb[0].mxu0
        %v5465 = vadd.f32 0.0, %v5464
        %v5466 = vpop.f32.mrb[0].mxu0
        %v5467 = vpop.f32.mrb[0].mxu0
        %v5468 = vadd.f32 0.0, %v5467
        %v5469 = vpop.f32.mrb[0].mxu0
        %5470 = vdwg.mxu0
        %5472 = vrot.lane.b32.xlu0 %v4029, 96
        %v5473 = vpop.permute.xlu0 %5472
        %v5476 = vsel %vm1209, %v3997, 0
        %5478 = vmatprep.subr.bf16.mxu0 0
        %5479 = vmatpush1.bf16.msra.mxu0 %v5473
        %5480 = vmatprep.subr.bf16.mxu0 0
        %5481 = vmatpush1.bf16.msra.mxu0 0
        %5482 = vmatprep.subr.bf16.mxu0 0
        %5483 = vmatpush1.bf16.msra.mxu0 0
        %5484 = vmatprep.subr.bf16.mxu0 0
        %5485 = vmatpush1.bf16.msra.mxu0 0
        %5486 = vmatprep.subr.bf16.mxu0 0
        %5487 = vmatpush1.bf16.msra.mxu0 0
        %5488 = vmatprep.subr.bf16.mxu0 0
        %5489 = vmatpush1.bf16.msra.mxu0 0
        %5490 = vmatprep.subr.bf16.mxu0 0
        %5491 = vmatpush1.bf16.msra.mxu0 0
        %5492 = vmatprep.subr.bf16.mxu0 0
        %5493 = vmatpush1.bf16.msra.mxu0 0
        %5494 = vmatprep.subr.bf16.mxu0 0
        %5495 = vmatpush1.bf16.msra.mxu0 0
        %5496 = vmatprep.subr.bf16.mxu0 0
        %5497 = vmatpush1.bf16.msra.mxu0 0
        %5498 = vmatprep.subr.bf16.mxu0 0
        %5499 = vmatpush1.bf16.msra.mxu0 0
        %5500 = vmatprep.subr.bf16.mxu0 0
        %5501 = vmatpush1.bf16.msra.mxu0 0
        %5502 = vmatprep.subr.bf16.mxu0 0
        %5503 = vmatpush1.bf16.msra.mxu0 0
        %5504 = vmatprep.subr.bf16.mxu0 0
        %5505 = vmatpush1.bf16.msra.mxu0 0
        %5506 = vmatprep.subr.bf16.mxu0 0
        %5507 = vmatpush1.bf16.msra.mxu0 0
        %5508 = vmatprep.subr.bf16.mxu0 0
        %5509 = vmatpush1.bf16.msra.mxu0 0
        %5510 = vmatprep.mubr.bf16.mxu0 0
        %5511 = vmatmul.mubr.bf16.gmra.mrb[0].mxu0 %v5476
        %v5512 = vpop.f32.mrb[0].mxu0
        %v5513 = vadd.f32 0.0, %v5512
        %v5514 = vpop.f32.mrb[0].mxu0
        %v5515 = vpop.f32.mrb[0].mxu0
        %v5516 = vadd.f32 0.0, %v5515
        %v5517 = vpop.f32.mrb[0].mxu0
        %5518 = vdwg.mxu0
        %5520 = vrot.lane.b32.xlu0 %v4030, 96
        %v5521 = vpop.permute.xlu0 %5520
        %v5524 = vsel %vm1209, %v3998, 0
        %5526 = vmatprep.subr.bf16.mxu0 0
        %5527 = vmatpush1.bf16.msra.mxu0 %v5521
        %5528 = vmatprep.subr.bf16.mxu0 0
        %5529 = vmatpush1.bf16.msra.mxu0 0
        %5530 = vmatprep.subr.bf16.mxu0 0
        %5531 = vmatpush1.bf16.msra.mxu0 0
        %5532 = vmatprep.subr.bf16.mxu0 0
        %5533 = vmatpush1.bf16.msra.mxu0 0
        %5534 = vmatprep.subr.bf16.mxu0 0
        %5535 = vmatpush1.bf16.msra.mxu0 0
        %5536 = vmatprep.subr.bf16.mxu0 0
        %5537 = vmatpush1.bf16.msra.mxu0 0
        %5538 = vmatprep.subr.bf16.mxu0 0
        %5539 = vmatpush1.bf16.msra.mxu0 0
        %5540 = vmatprep.subr.bf16.mxu0 0
        %5541 = vmatpush1.bf16.msra.mxu0 0
        %5542 = vmatprep.subr.bf16.mxu0 0
        %5543 = vmatpush1.bf16.msra.mxu0 0
        %5544 = vmatprep.subr.bf16.mxu0 0
        %5545 = vmatpush1.bf16.msra.mxu0 0
        %5546 = vmatprep.subr.bf16.mxu0 0
        %5547 = vmatpush1.bf16.msra.mxu0 0
        %5548 = vmatprep.subr.bf16.mxu0 0
        %5549 = vmatpush1.bf16.msra.mxu0 0
        %5550 = vmatprep.subr.bf16.mxu0 0
        %5551 = vmatpush1.bf16.msra.mxu0 0
        %5552 = vmatprep.subr.bf16.mxu0 0
        %5553 = vmatpush1.bf16.msra.mxu0 0
        %5554 = vmatprep.subr.bf16.mxu0 0
        %5555 = vmatpush1.bf16.msra.mxu0 0
        %5556 = vmatprep.subr.bf16.mxu0 0
        %5557 = vmatpush1.bf16.msra.mxu0 0
        %5558 = vmatprep.mubr.bf16.mxu0 0
        %5559 = vmatmul.mubr.bf16.gmra.mrb[0].mxu0 %v5524
        %v5560 = vpop.f32.mrb[0].mxu0
        %v5561 = vadd.f32 0.0, %v5560
        %v5562 = vpop.f32.mrb[0].mxu0
        %v5563 = vpop.f32.mrb[0].mxu0
        %v5564 = vadd.f32 0.0, %v5563
        %v5565 = vpop.f32.mrb[0].mxu0
        %5566 = vdwg.mxu0
        %5568 = vrot.lane.b32.xlu0 %v4031, 96
        %v5569 = vpop.permute.xlu0 %5568
        %v5572 = vsel %vm1209, %v3999, 0
        %5574 = vmatprep.subr.bf16.mxu0 0
        %5575 = vmatpush1.bf16.msra.mxu0 %v5569
        %5576 = vmatprep.subr.bf16.mxu0 0
        %5577 = vmatpush1.bf16.msra.mxu0 0
        %5578 = vmatprep.subr.bf16.mxu0 0
        %5579 = vmatpush1.bf16.msra.mxu0 0
        %5580 = vmatprep.subr.bf16.mxu0 0
        %5581 = vmatpush1.bf16.msra.mxu0 0
        %5582 = vmatprep.subr.bf16.mxu0 0
        %5583 = vmatpush1.bf16.msra.mxu0 0
        %5584 = vmatprep.subr.bf16.mxu0 0
        %5585 = vmatpush1.bf16.msra.mxu0 0
        %5586 = vmatprep.subr.bf16.mxu0 0
        %5587 = vmatpush1.bf16.msra.mxu0 0
        %5588 = vmatprep.subr.bf16.mxu0 0
        %5589 = vmatpush1.bf16.msra.mxu0 0
        %5590 = vmatprep.subr.bf16.mxu0 0
        %5591 = vmatpush1.bf16.msra.mxu0 0
        %5592 = vmatprep.subr.bf16.mxu0 0
        %5593 = vmatpush1.bf16.msra.mxu0 0
        %5594 = vmatprep.subr.bf16.mxu0 0
        %5595 = vmatpush1.bf16.msra.mxu0 0
        %5596 = vmatprep.subr.bf16.mxu0 0
        %5597 = vmatpush1.bf16.msra.mxu0 0
        %5598 = vmatprep.subr.bf16.mxu0 0
        %5599 = vmatpush1.bf16.msra.mxu0 0
        %5600 = vmatprep.subr.bf16.mxu0 0
        %5601 = vmatpush1.bf16.msra.mxu0 0
        %5602 = vmatprep.subr.bf16.mxu0 0
        %5603 = vmatpush1.bf16.msra.mxu0 0
        %5604 = vmatprep.subr.bf16.mxu0 0
        %5605 = vmatpush1.bf16.msra.mxu0 0
        %5606 = vmatprep.mubr.bf16.mxu0 0
        %5607 = vmatmul.mubr.bf16.gmra.mrb[0].mxu0 %v5572
        %v5608 = vpop.f32.mrb[0].mxu0
        %v5609 = vadd.f32 0.0, %v5608
        %v5610 = vpop.f32.mrb[0].mxu0
        %v5611 = vpop.f32.mrb[0].mxu0
        %v5612 = vadd.f32 0.0, %v5611
        %v5613 = vpop.f32.mrb[0].mxu0
        %5614 = vdwg.mxu0
        %5616 = vrot.lane.b32.xlu0 %v4032, 96
        %v5617 = vpop.permute.xlu0 %5616
        %v5620 = vsel %vm1209, %v4000, 0
        %5622 = vmatprep.subr.bf16.mxu0 0
        %5623 = vmatpush1.bf16.msra.mxu0 %v5617
        %5624 = vmatprep.subr.bf16.mxu0 0
        %5625 = vmatpush1.bf16.msra.mxu0 0
        %5626 = vmatprep.subr.bf16.mxu0 0
        %5627 = vmatpush1.bf16.msra.mxu0 0
        %5628 = vmatprep.subr.bf16.mxu0 0
        %5629 = vmatpush1.bf16.msra.mxu0 0
        %5630 = vmatprep.subr.bf16.mxu0 0
        %5631 = vmatpush1.bf16.msra.mxu0 0
        %5632 = vmatprep.subr.bf16.mxu0 0
        %5633 = vmatpush1.bf16.msra.mxu0 0
        %5634 = vmatprep.subr.bf16.mxu0 0
        %5635 = vmatpush1.bf16.msra.mxu0 0
        %5636 = vmatprep.subr.bf16.mxu0 0
        %5637 = vmatpush1.bf16.msra.mxu0 0
        %5638 = vmatprep.subr.bf16.mxu0 0
        %5639 = vmatpush1.bf16.msra.mxu0 0
        %5640 = vmatprep.subr.bf16.mxu0 0
        %5641 = vmatpush1.bf16.msra.mxu0 0
        %5642 = vmatprep.subr.bf16.mxu0 0
        %5643 = vmatpush1.bf16.msra.mxu0 0
        %5644 = vmatprep.subr.bf16.mxu0 0
        %5645 = vmatpush1.bf16.msra.mxu0 0
        %5646 = vmatprep.subr.bf16.mxu0 0
        %5647 = vmatpush1.bf16.msra.mxu0 0
        %5648 = vmatprep.subr.bf16.mxu0 0
        %5649 = vmatpush1.bf16.msra.mxu0 0
        %5650 = vmatprep.subr.bf16.mxu0 0
        %5651 = vmatpush1.bf16.msra.mxu0 0
        %5652 = vmatprep.subr.bf16.mxu0 0
        %5653 = vmatpush1.bf16.msra.mxu0 0
        %5654 = vmatprep.mubr.bf16.mxu0 0
        %5655 = vmatmul.mubr.bf16.gmra.mrb[0].mxu0 %v5620
        %v5656 = vpop.f32.mrb[0].mxu0
        %v5657 = vadd.f32 0.0, %v5656
        %v5658 = vpop.f32.mrb[0].mxu0
        %v5659 = vpop.f32.mrb[0].mxu0
        %v5660 = vadd.f32 0.0, %v5659
        %v5661 = vpop.f32.mrb[0].mxu0
        %5662 = vdwg.mxu0
        %5664 = vrot.lane.b32.xlu0 %v4033, 96
        %v5665 = vpop.permute.xlu0 %5664
        %v5668 = vsel %vm1209, %v4001, 0
        %5670 = vmatprep.subr.bf16.mxu0 0
        %5671 = vmatpush1.bf16.msra.mxu0 %v5665
        %5672 = vmatprep.subr.bf16.mxu0 0
        %5673 = vmatpush1.bf16.msra.mxu0 0
        %5674 = vmatprep.subr.bf16.mxu0 0
        %5675 = vmatpush1.bf16.msra.mxu0 0
        %5676 = vmatprep.subr.bf16.mxu0 0
        %5677 = vmatpush1.bf16.msra.mxu0 0
        %5678 = vmatprep.subr.bf16.mxu0 0
        %5679 = vmatpush1.bf16.msra.mxu0 0
        %5680 = vmatprep.subr.bf16.mxu0 0
        %5681 = vmatpush1.bf16.msra.mxu0 0
        %5682 = vmatprep.subr.bf16.mxu0 0
        %5683 = vmatpush1.bf16.msra.mxu0 0
        %5684 = vmatprep.subr.bf16.mxu0 0
        %5685 = vmatpush1.bf16.msra.mxu0 0
        %5686 = vmatprep.subr.bf16.mxu0 0
        %5687 = vmatpush1.bf16.msra.mxu0 0
        %5688 = vmatprep.subr.bf16.mxu0 0
        %5689 = vmatpush1.bf16.msra.mxu0 0
        %5690 = vmatprep.subr.bf16.mxu0 0
        %5691 = vmatpush1.bf16.msra.mxu0 0
        %5692 = vmatprep.subr.bf16.mxu0 0
        %5693 = vmatpush1.bf16.msra.mxu0 0
        %5694 = vmatprep.subr.bf16.mxu0 0
        %5695 = vmatpush1.bf16.msra.mxu0 0
        %5696 = vmatprep.subr.bf16.mxu0 0
        %5697 = vmatpush1.bf16.msra.mxu0 0
        %5698 = vmatprep.subr.bf16.mxu0 0
        %5699 = vmatpush1.bf16.msra.mxu0 0
        %5700 = vmatprep.subr.bf16.mxu0 0
        %5701 = vmatpush1.bf16.msra.mxu0 0
        %5702 = vmatprep.mubr.bf16.mxu0 0
        %5703 = vmatmul.mubr.bf16.gmra.mrb[0].mxu0 %v5668
        %v5704 = vpop.f32.mrb[0].mxu0
        %v5705 = vadd.f32 0.0, %v5704
        %v5706 = vpop.f32.mrb[0].mxu0
        %v5707 = vpop.f32.mrb[0].mxu0
        %v5708 = vadd.f32 0.0, %v5707
        %v5709 = vpop.f32.mrb[0].mxu0
        %5710 = vdwg.mxu0
        %5712 = vrot.lane.b32.xlu0 %v4034, 96
        %v5713 = vpop.permute.xlu0 %5712
        %v5716 = vsel %vm1209, %v4002, 0
        %5718 = vmatprep.subr.bf16.mxu0 0
        %5719 = vmatpush1.bf16.msra.mxu0 %v5713
        %5720 = vmatprep.subr.bf16.mxu0 0
        %5721 = vmatpush1.bf16.msra.mxu0 0
        %5722 = vmatprep.subr.bf16.mxu0 0
        %5723 = vmatpush1.bf16.msra.mxu0 0
        %5724 = vmatprep.subr.bf16.mxu0 0
        %5725 = vmatpush1.bf16.msra.mxu0 0
        %5726 = vmatprep.subr.bf16.mxu0 0
        %5727 = vmatpush1.bf16.msra.mxu0 0
        %5728 = vmatprep.subr.bf16.mxu0 0
        %5729 = vmatpush1.bf16.msra.mxu0 0
        %5730 = vmatprep.subr.bf16.mxu0 0
        %5731 = vmatpush1.bf16.msra.mxu0 0
        %5732 = vmatprep.subr.bf16.mxu0 0
        %5733 = vmatpush1.bf16.msra.mxu0 0
        %5734 = vmatprep.subr.bf16.mxu0 0
        %5735 = vmatpush1.bf16.msra.mxu0 0
        %5736 = vmatprep.subr.bf16.mxu0 0
        %5737 = vmatpush1.bf16.msra.mxu0 0
        %5738 = vmatprep.subr.bf16.mxu0 0
        %5739 = vmatpush1.bf16.msra.mxu0 0
        %5740 = vmatprep.subr.bf16.mxu0 0
        %5741 = vmatpush1.bf16.msra.mxu0 0
        %5742 = vmatprep.subr.bf16.mxu0 0
        %5743 = vmatpush1.bf16.msra.mxu0 0
        %5744 = vmatprep.subr.bf16.mxu0 0
        %5745 = vmatpush1.bf16.msra.mxu0 0
        %5746 = vmatprep.subr.bf16.mxu0 0
        %5747 = vmatpush1.bf16.msra.mxu0 0
        %5748 = vmatprep.subr.bf16.mxu0 0
        %5749 = vmatpush1.bf16.msra.mxu0 0
        %5750 = vmatprep.mubr.bf16.mxu0 0
        %5751 = vmatmul.mubr.bf16.gmra.mrb[0].mxu0 %v5716
        %v5752 = vpop.f32.mrb[0].mxu0
        %v5753 = vadd.f32 0.0, %v5752
        %v5754 = vpop.f32.mrb[0].mxu0
        %v5755 = vpop.f32.mrb[0].mxu0
        %v5756 = vadd.f32 0.0, %v5755
        %v5757 = vpop.f32.mrb[0].mxu0
        %5758 = vdwg.mxu0
        %v5759 = vsel %vm1209, %v4076, 0.0
        %v5760 = vsel %vm1209, %v4220, 0.0
        %v5761 = vadd.f32 %v5759, %v5760
        %v5762 = vsel %vm1209, %v4364, 0.0
        %v5763 = vadd.f32 %v5761, %v5762
        %v5764 = vsel %vm1209, %v4079, 0.0
        %v5765 = vsel %vm1209, %v4223, 0.0
        %v5766 = vadd.f32 %v5764, %v5765
        %v5767 = vsel %vm1209, %v4367, 0.0
        %v5768 = vadd.f32 %v5766, %v5767
        %v5769 = vsel %vm1209, %v4124, 0.0
        %v5770 = vsel %vm1209, %v4268, 0.0
        %v5771 = vadd.f32 %v5769, %v5770
        %v5772 = vsel %vm1209, %v4412, 0.0
        %v5773 = vadd.f32 %v5771, %v5772
        %v5774 = vsel %vm1209, %v4127, 0.0
        %v5775 = vsel %vm1209, %v4271, 0.0
        %v5776 = vadd.f32 %v5774, %v5775
        %v5777 = vsel %vm1209, %v4415, 0.0
        %v5778 = vadd.f32 %v5776, %v5777
        %v5779 = vsel %vm1209, %v4172, 0.0
        %v5780 = vsel %vm1209, %v4316, 0.0
        %v5781 = vadd.f32 %v5779, %v5780
        %v5782 = vsel %vm1209, %v4460, 0.0
        %v5783 = vadd.f32 %v5781, %v5782
        %v5784 = vsel %vm1209, %v4175, 0.0
        %v5785 = vsel %vm1209, %v4319, 0.0
        %v5786 = vadd.f32 %v5784, %v5785
        %v5787 = vsel %vm1209, %v4463, 0.0
        %v5788 = vadd.f32 %v5786, %v5787
        %v5789 = vsel %vm1209, %v4507, 0.0
        %v5790 = vsel %vm1209, %v4651, 0.0
        %v5791 = vadd.f32 %v5789, %v5790
        %v5792 = vsel %vm1209, %v4795, 0.0
        %v5793 = vadd.f32 %v5791, %v5792
        %v5794 = vsel %vm1209, %v4510, 0.0
        %v5795 = vsel %vm1209, %v4654, 0.0
        %v5796 = vadd.f32 %v5794, %v5795
        %v5797 = vsel %vm1209, %v4798, 0.0
        %v5798 = vadd.f32 %v5796, %v5797
        %v5799 = vsel %vm1209, %v4555, 0.0
        %v5800 = vsel %vm1209, %v4699, 0.0
        %v5801 = vadd.f32 %v5799, %v5800
        %v5802 = vsel %vm1209, %v4843, 0.0
        %v5803 = vadd.f32 %v5801, %v5802
        %v5804 = vsel %vm1209, %v4558, 0.0
        %v5805 = vsel %vm1209, %v4702, 0.0
        %v5806 = vadd.f32 %v5804, %v5805
        %v5807 = vsel %vm1209, %v4846, 0.0
        %v5808 = vadd.f32 %v5806, %v5807
        %v5809 = vsel %vm1209, %v4603, 0.0
        %v5810 = vsel %vm1209, %v4747, 0.0
        %v5811 = vadd.f32 %v5809, %v5810
        %v5812 = vsel %vm1209, %v4891, 0.0
        %v5813 = vadd.f32 %v5811, %v5812
        %v5814 = vsel %vm1209, %v4606, 0.0
        %v5815 = vsel %vm1209, %v4750, 0.0
        %v5816 = vadd.f32 %v5814, %v5815
        %v5817 = vsel %vm1209, %v4894, 0.0
        %v5818 = vadd.f32 %v5816, %v5817
        %v5819 = vsel %vm1209, %v4938, 0.0
        %v5820 = vsel %vm1209, %v5082, 0.0
        %v5821 = vadd.f32 %v5819, %v5820
        %v5822 = vsel %vm1209, %v5226, 0.0
        %v5823 = vadd.f32 %v5821, %v5822
        %v5824 = vsel %vm1209, %v4941, 0.0
        %v5825 = vsel %vm1209, %v5085, 0.0
        %v5826 = vadd.f32 %v5824, %v5825
        %v5827 = vsel %vm1209, %v5229, 0.0
        %v5828 = vadd.f32 %v5826, %v5827
        %v5829 = vsel %vm1209, %v4986, 0.0
        %v5830 = vsel %vm1209, %v5130, 0.0
        %v5831 = vadd.f32 %v5829, %v5830
        %v5832 = vsel %vm1209, %v5274, 0.0
        %v5833 = vadd.f32 %v5831, %v5832
        %v5834 = vsel %vm1209, %v4989, 0.0
        %v5835 = vsel %vm1209, %v5133, 0.0
        %v5836 = vadd.f32 %v5834, %v5835
        %v5837 = vsel %vm1209, %v5277, 0.0
        %v5838 = vadd.f32 %v5836, %v5837
        %v5839 = vsel %vm1209, %v5034, 0.0
        %v5840 = vsel %vm1209, %v5178, 0.0
        %v5841 = vadd.f32 %v5839, %v5840
        %v5842 = vsel %vm1209, %v5322, 0.0
        %v5843 = vadd.f32 %v5841, %v5842
        %v5844 = vsel %vm1209, %v5037, 0.0
        %v5845 = vsel %vm1209, %v5181, 0.0
        %v5846 = vadd.f32 %v5844, %v5845
        %v5847 = vsel %vm1209, %v5325, 0.0
        %v5848 = vadd.f32 %v5846, %v5847
        %v5849 = vsel %vm1209, %v5369, 0.0
        %v5850 = vsel %vm1209, %v5513, 0.0
        %v5851 = vadd.f32 %v5849, %v5850
        %v5852 = vsel %vm1209, %v5657, 0.0
        %v5853 = vadd.f32 %v5851, %v5852
        %v5854 = vsel %vm1209, %v5372, 0.0
        %v5855 = vsel %vm1209, %v5516, 0.0
        %v5856 = vadd.f32 %v5854, %v5855
        %v5857 = vsel %vm1209, %v5660, 0.0
        %v5858 = vadd.f32 %v5856, %v5857
        %v5859 = vsel %vm1209, %v5417, 0.0
        %v5860 = vsel %vm1209, %v5561, 0.0
        %v5861 = vadd.f32 %v5859, %v5860
        %v5862 = vsel %vm1209, %v5705, 0.0
        %v5863 = vadd.f32 %v5861, %v5862
        %v5864 = vsel %vm1209, %v5420, 0.0
        %v5865 = vsel %vm1209, %v5564, 0.0
        %v5866 = vadd.f32 %v5864, %v5865
        %v5867 = vsel %vm1209, %v5708, 0.0
        %v5868 = vadd.f32 %v5866, %v5867
        %v5869 = vsel %vm1209, %v5465, 0.0
        %v5870 = vsel %vm1209, %v5609, 0.0
        %v5871 = vadd.f32 %v5869, %v5870
        %v5872 = vsel %vm1209, %v5753, 0.0
        %v5873 = vadd.f32 %v5871, %v5872
        %v5874 = vsel %vm1209, %v5468, 0.0
        %v5875 = vsel %vm1209, %v5612, 0.0
        %v5876 = vadd.f32 %v5874, %v5875
        %v5877 = vsel %vm1209, %v5756, 0.0
        %v5878 = vadd.f32 %v5876, %v5877
        %v5879 = vmax.f32 %v5763, 0.0
        %v5880 = vmax.f32 %v5768, 0.0
        %v5881 = vmax.f32 %v5773, 0.0
        %v5882 = vmax.f32 %v5778, 0.0
        %v5883 = vmax.f32 %v5783, 0.0
        %v5884 = vmax.f32 %v5788, 0.0
        %v5885 = vmax.f32 %v5793, 0.0
        %v5886 = vmax.f32 %v5798, 0.0
        %v5887 = vmax.f32 %v5803, 0.0
        %v5888 = vmax.f32 %v5808, 0.0
        %v5889 = vmax.f32 %v5813, 0.0
        %v5890 = vmax.f32 %v5818, 0.0
        %v5891 = vmax.f32 %v5823, 0.0
        %v5892 = vmax.f32 %v5828, 0.0
        %v5893 = vmax.f32 %v5833, 0.0
        %v5894 = vmax.f32 %v5838, 0.0
        %v5895 = vmax.f32 %v5843, 0.0
        %v5896 = vmax.f32 %v5848, 0.0
        %v5897 = vmax.f32 %v5853, 0.0
        %v5898 = vmax.f32 %v5858, 0.0
        %v5899 = vmax.f32 %v5863, 0.0
        %v5900 = vmax.f32 %v5868, 0.0
        %v5901 = vmax.f32 %v5873, 0.0
        %v5902 = vmax.f32 %v5878, 0.0
        %v5903 = vpack.c.bf16 %v5880, %v5879
        %v5904 = vpack.c.bf16 %v5886, %v5885
        %v5905 = vpack.c.bf16 %v5892, %v5891
        %v5906 = vpack.c.bf16 %v5898, %v5897
        %v5907 = vld [vmem:[#allocation8] sm:$0xf]
        %v5908 = vld [vmem:[#allocation8 + $0x4] sm:$0xf]
        %v5909 = vpack.c.bf16 %v5882, %v5881
        %v5910 = vpack.c.bf16 %v5888, %v5887
        %v5911 = vpack.c.bf16 %v5894, %v5893
        %v5912 = vpack.c.bf16 %v5900, %v5899
        %s5913 = scalar_lea.vmem [#allocation8], 8
        %v5914 = vld [vmem:[%s5913] sm:$0xf]
        %v5915 = vld [vmem:[%s5913 + $0x4] sm:$0xf]
        %v5918 = vunpack.c.l.b16 %v5914
        %v5919 = vunpack.c.l.b16 %v5915
        %v5920 = vpack.c.b16 %v5919, %v5918
        %v5923 = vsel %vm1209, %v5909, 0
        %v5926 = vsel %vm1209, %v5910, 0
        %v5929 = vsel %vm1209, %v5911, 0
        %v5932 = vsel %vm1209, %v5912, 0
        %5934 = vmatprep.subr.bf16.mxu0 0
        %5935 = vmatpush1.bf16.msra.mxu0 %v5920
        %5936 = vmatprep.subr.bf16.mxu0 0
        %5937 = vmatpush1.bf16.msra.mxu0 0
        %5938 = vmatprep.subr.bf16.mxu0 0
        %5939 = vmatpush1.bf16.msra.mxu0 0
        %5940 = vmatprep.subr.bf16.mxu0 0
        %5941 = vmatpush1.bf16.msra.mxu0 0
        %5942 = vmatprep.subr.bf16.mxu0 0
        %5943 = vmatpush1.bf16.msra.mxu0 0
        %5944 = vmatprep.subr.bf16.mxu0 0
        %5945 = vmatpush1.bf16.msra.mxu0 0
        %5946 = vmatprep.subr.bf16.mxu0 0
        %5947 = vmatpush1.bf16.msra.mxu0 0
        %5948 = vmatprep.subr.bf16.mxu0 0
        %5949 = vmatpush1.bf16.msra.mxu0 0
        %5950 = vmatprep.subr.bf16.mxu0 0
        %5951 = vmatpush1.bf16.msra.mxu0 0
        %5952 = vmatprep.subr.bf16.mxu0 0
        %5953 = vmatpush1.bf16.msra.mxu0 0
        %5954 = vmatprep.subr.bf16.mxu0 0
        %5955 = vmatpush1.bf16.msra.mxu0 0
        %5956 = vmatprep.subr.bf16.mxu0 0
        %5957 = vmatpush1.bf16.msra.mxu0 0
        %5958 = vmatprep.subr.bf16.mxu0 0
        %5959 = vmatpush1.bf16.msra.mxu0 0
        %5960 = vmatprep.subr.bf16.mxu0 0
        %5961 = vmatpush1.bf16.msra.mxu0 0
        %5962 = vmatprep.subr.bf16.mxu0 0
        %5963 = vmatpush1.bf16.msra.mxu0 0
        %5964 = vmatprep.subr.bf16.mxu0 0
        %5965 = vmatpush1.bf16.msra.mxu0 0
        %5966 = vmatprep.mubr.bf16.mxu0 0
        %5967 = vmatmul.mubr.bf16.gmra.mrb[0].mxu0 %v5923
        %v5968 = vpop.f32.mrb[0].mxu0
        %v5969 = vadd.f32 0.0, %v5968
        %v5970 = vpop.f32.mrb[0].mxu0
        %v5971 = vpop.f32.mrb[0].mxu0
        %v5972 = vadd.f32 0.0, %v5971
        %v5973 = vpop.f32.mrb[0].mxu0
        %5974 = vmatprep.mubr.bf16.mxu0 0
        %5975 = vmatmul.mubr.bf16.gmra.mrb[0].mxu0 %v5926
        %v5976 = vpop.f32.mrb[0].mxu0
        %v5977 = vadd.f32 0.0, %v5976
        %v5978 = vpop.f32.mrb[0].mxu0
        %v5979 = vpop.f32.mrb[0].mxu0
        %v5980 = vadd.f32 0.0, %v5979
        %v5981 = vpop.f32.mrb[0].mxu0
        %5982 = vmatprep.mubr.bf16.mxu0 0
        %5983 = vmatmul.mubr.bf16.gmra.mrb[0].mxu0 %v5929
        %v5984 = vpop.f32.mrb[0].mxu0
        %v5985 = vadd.f32 0.0, %v5984
        %v5986 = vpop.f32.mrb[0].mxu0
        %v5987 = vpop.f32.mrb[0].mxu0
        %v5988 = vadd.f32 0.0, %v5987
        %v5989 = vpop.f32.mrb[0].mxu0
        %5990 = vmatprep.mubr.bf16.mxu0 0
        %5991 = vmatmul.mubr.bf16.gmra.mrb[0].mxu0 %v5932
        %v5992 = vpop.f32.mrb[0].mxu0
        %v5993 = vadd.f32 0.0, %v5992
        %v5994 = vpop.f32.mrb[0].mxu0
        %v5995 = vpop.f32.mrb[0].mxu0
        %v5996 = vadd.f32 0.0, %v5995
        %v5997 = vpop.f32.mrb[0].mxu0
        %5998 = vdwg.mxu0
        %v6001 = vunpack.c.l.b16 %v5907
        %v6002 = vunpack.c.l.b16 %v5908
        %v6003 = vpack.c.b16 %v6002, %v6001
        %v6006 = vsel %vm1209, %v5903, 0
        %v6009 = vsel %vm1209, %v5904, 0
        %v6012 = vsel %vm1209, %v5905, 0
        %v6015 = vsel %vm1209, %v5906, 0
        %6017 = vmatprep.subr.bf16.mxu0 0
        %6018 = vmatpush1.bf16.msra.mxu0 %v6003
        %6019 = vmatprep.subr.bf16.mxu0 0
        %6020 = vmatpush1.bf16.msra.mxu0 0
        %6021 = vmatprep.subr.bf16.mxu0 0
        %6022 = vmatpush1.bf16.msra.mxu0 0
        %6023 = vmatprep.subr.bf16.mxu0 0
        %6024 = vmatpush1.bf16.msra.mxu0 0
        %6025 = vmatprep.subr.bf16.mxu0 0
        %6026 = vmatpush1.bf16.msra.mxu0 0
        %6027 = vmatprep.subr.bf16.mxu0 0
        %6028 = vmatpush1.bf16.msra.mxu0 0
        %6029 = vmatprep.subr.bf16.mxu0 0
        %6030 = vmatpush1.bf16.msra.mxu0 0
        %6031 = vmatprep.subr.bf16.mxu0 0
        %6032 = vmatpush1.bf16.msra.mxu0 0
        %6033 = vmatprep.subr.bf16.mxu0 0
        %6034 = vmatpush1.bf16.msra.mxu0 0
        %6035 = vmatprep.subr.bf16.mxu0 0
        %6036 = vmatpush1.bf16.msra.mxu0 0
        %6037 = vmatprep.subr.bf16.mxu0 0
        %6038 = vmatpush1.bf16.msra.mxu0 0
        %6039 = vmatprep.subr.bf16.mxu0 0
        %6040 = vmatpush1.bf16.msra.mxu0 0
        %6041 = vmatprep.subr.bf16.mxu0 0
        %6042 = vmatpush1.bf16.msra.mxu0 0
        %6043 = vmatprep.subr.bf16.mxu0 0
        %6044 = vmatpush1.bf16.msra.mxu0 0
        %6045 = vmatprep.subr.bf16.mxu0 0
        %6046 = vmatpush1.bf16.msra.mxu0 0
        %6047 = vmatprep.subr.bf16.mxu0 0
        %6048 = vmatpush1.bf16.msra.mxu0 0
        %6049 = vmatprep.mubr.bf16.mxu0 0
        %6050 = vmatmul.mubr.bf16.gmra.mrb[0].mxu0 %v6006
        %v6051 = vpop.f32.mrb[0].mxu0
        %v6052 = vadd.f32 %v5969, %v6051
        %v6053 = vpop.f32.mrb[0].mxu0
        %v6054 = vpop.f32.mrb[0].mxu0
        %v6055 = vadd.f32 %v5972, %v6054
        %v6056 = vpop.f32.mrb[0].mxu0
        %6057 = vmatprep.mubr.bf16.mxu0 0
        %6058 = vmatmul.mubr.bf16.gmra.mrb[0].mxu0 %v6009
        %v6059 = vpop.f32.mrb[0].mxu0
        %v6060 = vadd.f32 %v5977, %v6059
        %v6061 = vpop.f32.mrb[0].mxu0
        %v6062 = vpop.f32.mrb[0].mxu0
        %v6063 = vadd.f32 %v5980, %v6062
        %v6064 = vpop.f32.mrb[0].mxu0
        %6065 = vmatprep.mubr.bf16.mxu0 0
        %6066 = vmatmul.mubr.bf16.gmra.mrb[0].mxu0 %v6012
        %v6067 = vpop.f32.mrb[0].mxu0
        %v6068 = vadd.f32 %v5985, %v6067
        %v6069 = vpop.f32.mrb[0].mxu0
        %v6070 = vpop.f32.mrb[0].mxu0
        %v6071 = vadd.f32 %v5988, %v6070
        %v6072 = vpop.f32.mrb[0].mxu0
        %6073 = vmatprep.mubr.bf16.mxu0 0
        %6074 = vmatmul.mubr.bf16.gmra.mrb[0].mxu0 %v6015
        %v6075 = vpop.f32.mrb[0].mxu0
        %v6076 = vadd.f32 %v5993, %v6075
        %v6077 = vpop.f32.mrb[0].mxu0
        %v6078 = vpop.f32.mrb[0].mxu0
        %v6079 = vadd.f32 %v5996, %v6078
        %v6080 = vpop.f32.mrb[0].mxu0
        %6081 = vdwg.mxu0
        %v6082 = vpack.c.bf16 %v5884, %v5883
        %v6083 = vpack.c.bf16 %v5890, %v5889
        %v6084 = vpack.c.bf16 %v5896, %v5895
        %v6085 = vpack.c.bf16 %v5902, %v5901
        %s6086 = scalar_lea.vmem [#allocation8], 16
        %v6087 = vld [vmem:[%s6086] sm:$0xf]
        %v6088 = vld [vmem:[%s6086 + $0x4] sm:$0xf]
        %v6091 = vunpack.c.l.b16 %v6087
        %v6092 = vunpack.c.l.b16 %v6088
        %v6093 = vpack.c.b16 %v6092, %v6091
        %v6096 = vsel %vm1209, %v6082, 0
        %v6099 = vsel %vm1209, %v6083, 0
        %v6102 = vsel %vm1209, %v6084, 0
        %v6105 = vsel %vm1209, %v6085, 0
        %6107 = vmatprep.subr.bf16.mxu0 0
        %6108 = vmatpush1.bf16.msra.mxu0 %v6093
        %6109 = vmatprep.subr.bf16.mxu0 0
        %6110 = vmatpush1.bf16.msra.mxu0 0
        %6111 = vmatprep.subr.bf16.mxu0 0
        %6112 = vmatpush1.bf16.msra.mxu0 0
        %6113 = vmatprep.subr.bf16.mxu0 0
        %6114 = vmatpush1.bf16.msra.mxu0 0
        %6115 = vmatprep.subr.bf16.mxu0 0
        %6116 = vmatpush1.bf16.msra.mxu0 0
        %6117 = vmatprep.subr.bf16.mxu0 0
        %6118 = vmatpush1.bf16.msra.mxu0 0
        %6119 = vmatprep.subr.bf16.mxu0 0
        %6120 = vmatpush1.bf16.msra.mxu0 0
        %6121 = vmatprep.subr.bf16.mxu0 0
        %6122 = vmatpush1.bf16.msra.mxu0 0
        %6123 = vmatprep.subr.bf16.mxu0 0
        %6124 = vmatpush1.bf16.msra.mxu0 0
        %6125 = vmatprep.subr.bf16.mxu0 0
        %6126 = vmatpush1.bf16.msra.mxu0 0
        %6127 = vmatprep.subr.bf16.mxu0 0
        %6128 = vmatpush1.bf16.msra.mxu0 0
        %6129 = vmatprep.subr.bf16.mxu0 0
        %6130 = vmatpush1.bf16.msra.mxu0 0
        %6131 = vmatprep.subr.bf16.mxu0 0
        %6132 = vmatpush1.bf16.msra.mxu0 0
        %6133 = vmatprep.subr.bf16.mxu0 0
        %6134 = vmatpush1.bf16.msra.mxu0 0
        %6135 = vmatprep.subr.bf16.mxu0 0
        %6136 = vmatpush1.bf16.msra.mxu0 0
        %6137 = vmatprep.subr.bf16.mxu0 0
        %6138 = vmatpush1.bf16.msra.mxu0 0
        %6139 = vmatprep.mubr.bf16.mxu0 0
        %6140 = vmatmul.mubr.bf16.gmra.mrb[0].mxu0 %v6096
        %v6141 = vpop.f32.mrb[0].mxu0
        %v6142 = vadd.f32 0.0, %v6141
        %v6143 = vpop.f32.mrb[0].mxu0
        %v6144 = vpop.f32.mrb[0].mxu0
        %v6145 = vadd.f32 0.0, %v6144
        %v6146 = vpop.f32.mrb[0].mxu0
        %6147 = vmatprep.mubr.bf16.mxu0 0
        %6148 = vmatmul.mubr.bf16.gmra.mrb[0].mxu0 %v6099
        %v6149 = vpop.f32.mrb[0].mxu0
        %v6150 = vadd.f32 0.0, %v6149
        %v6151 = vpop.f32.mrb[0].mxu0
        %v6152 = vpop.f32.mrb[0].mxu0
        %v6153 = vadd.f32 0.0, %v6152
        %v6154 = vpop.f32.mrb[0].mxu0
        %6155 = vmatprep.mubr.bf16.mxu0 0
        %6156 = vmatmul.mubr.bf16.gmra.mrb[0].mxu0 %v6102
        %v6157 = vpop.f32.mrb[0].mxu0
        %v6158 = vadd.f32 0.0, %v6157
        %v6159 = vpop.f32.mrb[0].mxu0
        %v6160 = vpop.f32.mrb[0].mxu0
        %v6161 = vadd.f32 0.0, %v6160
        %v6162 = vpop.f32.mrb[0].mxu0
        %6163 = vmatprep.mubr.bf16.mxu0 0
        %6164 = vmatmul.mubr.bf16.gmra.mrb[0].mxu0 %v6105
        %v6165 = vpop.f32.mrb[0].mxu0
        %v6166 = vadd.f32 0.0, %v6165
        %v6167 = vpop.f32.mrb[0].mxu0
        %v6168 = vpop.f32.mrb[0].mxu0
        %v6169 = vadd.f32 0.0, %v6168
        %v6170 = vpop.f32.mrb[0].mxu0
        %6171 = vdwg.mxu0
        %v6172 = vadd.f32 %v6052, %v6142
        %v6173 = vadd.f32 %v6055, %v6145
        %v6174 = vadd.f32 %v6060, %v6150
        %v6175 = vadd.f32 %v6063, %v6153
        %v6176 = vadd.f32 %v6068, %v6158
        %v6177 = vadd.f32 %v6071, %v6161
        %v6178 = vadd.f32 %v6076, %v6166
        %v6179 = vadd.f32 %v6079, %v6169
        %v6180 = vld [vmem:[%s5] sm:$0x1]
        %v6181 = vld [vmem:[%s5 + $0x1] sm:$0x1]
        %v6182 = vadd.f32 %v359, %v6172
        %v6183 = vadd.f32 %v360, %v6173
        %v6184 = vadd.f32 %v361, %v6174
        %v6185 = vadd.f32 %v362, %v6175
        %v6186 = vadd.f32 %v363, %v6176
        %v6187 = vadd.f32 %v364, %v6177
        %v6188 = vadd.f32 %v365, %v6178
        %v6189 = vadd.f32 %v366, %v6179
        %v6190 = vsel %vm443, %v6182, 0.0
        %6191 = vadd.xlane.f32.xlu0 %v6190
        %v6192 = vpop.xlane.xlu0 %6191
        %v6193 = vsel %vm443, %v6183, 0.0
        %6194 = vadd.xlane.f32.xlu0 %v6193
        %v6195 = vpop.xlane.xlu0 %6194
        %v6196 = vsel %vm443, %v6184, 0.0
        %6197 = vadd.xlane.f32.xlu0 %v6196
        %v6198 = vpop.xlane.xlu0 %6197
        %v6199 = vsel %vm443, %v6185, 0.0
        %6200 = vadd.xlane.f32.xlu0 %v6199
        %v6201 = vpop.xlane.xlu0 %6200
        %v6202 = vsel %vm443, %v6186, 0.0
        %6203 = vadd.xlane.f32.xlu0 %v6202
        %v6204 = vpop.xlane.xlu0 %6203
        %v6205 = vsel %vm443, %v6187, 0.0
        %6206 = vadd.xlane.f32.xlu0 %v6205
        %v6207 = vpop.xlane.xlu0 %6206
        %v6208 = vsel %vm443, %v6188, 0.0
        %6209 = vadd.xlane.f32.xlu0 %v6208
        %v6210 = vpop.xlane.xlu0 %6209
        %v6211 = vsel %vm443, %v6189, 0.0
        %6212 = vadd.xlane.f32.xlu0 %v6211
        %v6213 = vpop.xlane.xlu0 %6212
        %v6214 = vrcp.pop 48.0
        %v6215 = vmul.f32 %v6192, %v6214
        %v6216 = vmul.f32 %v6195, %v6214
        %v6217 = vmul.f32 %v6198, %v6214
        %v6218 = vmul.f32 %v6201, %v6214
        %v6219 = vmul.f32 %v6204, %v6214
        %v6220 = vmul.f32 %v6207, %v6214
        %v6221 = vmul.f32 %v6210, %v6214
        %v6222 = vmul.f32 %v6213, %v6214
        %v6223 = vsub.f32 %v6182, %v6215
        %v6224 = vsub.f32 %v6183, %v6216
        %v6225 = vsub.f32 %v6184, %v6217
        %v6226 = vsub.f32 %v6185, %v6218
        %v6227 = vsub.f32 %v6186, %v6219
        %v6228 = vsub.f32 %v6187, %v6220
        %v6229 = vsub.f32 %v6188, %v6221
        %v6230 = vsub.f32 %v6189, %v6222
        %v6231 = vmul.f32 %v6223, %v6223
        %v6232 = vmul.f32 %v6224, %v6224
        %v6233 = vmul.f32 %v6225, %v6225
        %v6234 = vmul.f32 %v6226, %v6226
        %v6235 = vmul.f32 %v6227, %v6227
        %v6236 = vmul.f32 %v6228, %v6228
        %v6237 = vmul.f32 %v6229, %v6229
        %v6238 = vmul.f32 %v6230, %v6230
        %v6239 = vsel %vm443, %v6231, 0.0
        %6240 = vadd.xlane.f32.xlu0 %v6239
        %v6241 = vpop.xlane.xlu0 %6240
        %v6242 = vsel %vm443, %v6232, 0.0
        %6243 = vadd.xlane.f32.xlu0 %v6242
        %v6244 = vpop.xlane.xlu0 %6243
        %v6245 = vsel %vm443, %v6233, 0.0
        %6246 = vadd.xlane.f32.xlu0 %v6245
        %v6247 = vpop.xlane.xlu0 %6246
        %v6248 = vsel %vm443, %v6234, 0.0
        %6249 = vadd.xlane.f32.xlu0 %v6248
        %v6250 = vpop.xlane.xlu0 %6249
        %v6251 = vsel %vm443, %v6235, 0.0
        %6252 = vadd.xlane.f32.xlu0 %v6251
        %v6253 = vpop.xlane.xlu0 %6252
        %v6254 = vsel %vm443, %v6236, 0.0
        %6255 = vadd.xlane.f32.xlu0 %v6254
        %v6256 = vpop.xlane.xlu0 %6255
        %v6257 = vsel %vm443, %v6237, 0.0
        %6258 = vadd.xlane.f32.xlu0 %v6257
        %v6259 = vpop.xlane.xlu0 %6258
        %v6260 = vsel %vm443, %v6238, 0.0
        %6261 = vadd.xlane.f32.xlu0 %v6260
        %v6262 = vpop.xlane.xlu0 %6261
        %v6263 = vmul.f32 %v6241, %v6214
        %v6264 = vmul.f32 %v6244, %v6214
        %v6265 = vmul.f32 %v6247, %v6214
        %v6266 = vmul.f32 %v6250, %v6214
        %v6267 = vmul.f32 %v6253, %v6214
        %v6268 = vmul.f32 %v6256, %v6214
        %v6269 = vmul.f32 %v6259, %v6214
        %v6270 = vmul.f32 %v6262, %v6214
        %v6271 = vadd.f32 %v6263, 1e-05
        %v6272 = vadd.f32 %v6264, 1e-05
        %v6273 = vadd.f32 %v6265, 1e-05
        %v6274 = vadd.f32 %v6266, 1e-05
        %v6275 = vadd.f32 %v6267, 1e-05
        %v6276 = vadd.f32 %v6268, 1e-05
        %v6277 = vadd.f32 %v6269, 1e-05
        %v6278 = vadd.f32 %v6270, 1e-05
        %v6279 = vrsqrt.pop %v6271
        %v6280 = vrsqrt.pop %v6272
        %v6281 = vrsqrt.pop %v6273
        %v6282 = vrsqrt.pop %v6274
        %v6283 = vrsqrt.pop %v6275
        %v6284 = vrsqrt.pop %v6276
        %v6285 = vrsqrt.pop %v6277
        %v6286 = vrsqrt.pop %v6278
        %v6287 = vmul.f32 %v6223, %v6279
        %v6288 = vmul.f32 %v6224, %v6280
        %v6289 = vmul.f32 %v6225, %v6281
        %v6290 = vmul.f32 %v6226, %v6282
        %v6291 = vmul.f32 %v6227, %v6283
        %v6292 = vmul.f32 %v6228, %v6284
        %v6293 = vmul.f32 %v6229, %v6285
        %v6294 = vmul.f32 %v6230, %v6286
        %v6295 = vlaneseq
        %v6296 = vshrl.u32 %v6295, 7
        %v6297 = vsub.s32 0, %v6296
        %v6298 = vrot.slane %v6180, %v6297
        %v6299 = vmul.f32 %v6287, %v6298
        %v6300 = vmul.f32 %v6288, %v6298
        %v6301 = vmul.f32 %v6289, %v6298
        %v6302 = vmul.f32 %v6290, %v6298
        %v6303 = vmul.f32 %v6291, %v6298
        %v6304 = vmul.f32 %v6292, %v6298
        %v6305 = vmul.f32 %v6293, %v6298
        %v6306 = vmul.f32 %v6294, %v6298
        %v6307 = vlaneseq
        %v6308 = vshrl.u32 %v6307, 7
        %v6309 = vsub.s32 0, %v6308
        %v6310 = vrot.slane %v6181, %v6309
        %v6311 = vadd.f32 %v6299, %v6310
        %v6312 = vadd.f32 %v6300, %v6310
        %v6313 = vadd.f32 %v6301, %v6310
        %v6314 = vadd.f32 %v6302, %v6310
        %v6315 = vadd.f32 %v6303, %v6310
        %v6316 = vadd.f32 %v6304, %v6310
        %v6317 = vadd.f32 %v6305, %v6310
        %v6318 = vadd.f32 %v6306, %v6310
        %v6319 = vld [vmem:[%s5 + $0x2] sm:$0x1]
        %v6320 = vld [vmem:[%s5 + $0x3] sm:$0x1]
        %v6321 = vld [vmem:[%s5 + $0x4] sm:$0x1]
        %v6322 = vld [vmem:[#allocation10] sm:$0xf]
        %v6323 = vld [vmem:[#allocation10 + $0x4] sm:$0xf]
        %v6324 = vld [vmem:[#allocation10 + $0x8] sm:$0xf]
        %v6325 = vld [vmem:[#allocation10 + $0xc] sm:$0xf]
        %v6326 = vld [vmem:[#allocation10 + $0x10] sm:$0xf]
        %v6327 = vld [vmem:[#allocation10 + $0x14] sm:$0xf]
        %v6328 = vld [vmem:[#allocation10 + $0x18] sm:$0xf]
        %v6329 = vld [vmem:[#allocation10 + $0x1c] sm:$0xf]
        %v6330 = vld [vmem:[#allocation10 + $0x20] sm:$0xf]
        %v6331 = vld [vmem:[#allocation10 + $0x24] sm:$0xf]
        %v6332 = vld [vmem:[#allocation10 + $0x28] sm:$0xf]
        %v6333 = vld [vmem:[#allocation10 + $0x2c] sm:$0xf]
        %v6334 = vld [vmem:[#allocation10 + $0x30] sm:$0xf]
        %v6335 = vld [vmem:[#allocation10 + $0x34] sm:$0xf]
        %v6336 = vld [vmem:[#allocation10 + $0x38] sm:$0xf]
        %v6337 = vld [vmem:[#allocation10 + $0x3c] sm:$0xf]
        %v6338 = vld [vmem:[#allocation10 + $0x40] sm:$0xf]
        %v6339 = vld [vmem:[#allocation10 + $0x44] sm:$0xf]
        %v6340 = vld [vmem:[#allocation10 + $0x48] sm:$0xf]
        %v6341 = vld [vmem:[#allocation10 + $0x4c] sm:$0xf]
        %v6342 = vld [vmem:[#allocation10 + $0x50] sm:$0xf]
        %v6343 = vld [vmem:[#allocation10 + $0x54] sm:$0xf]
        %v6344 = vld [vmem:[#allocation10 + $0x58] sm:$0xf]
        %v6345 = vld [vmem:[#allocation10 + $0x5c] sm:$0xf]
        %v6346 = vld [vmem:[#allocation10 + $0x60] sm:$0xf]
        %v6347 = vld [vmem:[#allocation10 + $0x64] sm:$0xf]
        %v6348 = vld [vmem:[#allocation10 + $0x68] sm:$0xf]
        %v6349 = vld [vmem:[#allocation10 + $0x6c] sm:$0xf]
        %v6350 = vld [vmem:[#allocation10 + $0x70] sm:$0xf]
        %v6351 = vld [vmem:[#allocation10 + $0x74] sm:$0xf]
        %v6352 = vld [vmem:[#allocation10 + $0x78] sm:$0xf]
        %v6353 = vld [vmem:[#allocation10 + $0x7c] sm:$0xf]
        %v6354 = vld [vmem:[#allocation10 + $0x80] sm:$0xf]
        %v6355 = vld [vmem:[#allocation10 + $0x84] sm:$0xf]
        %v6356 = vld [vmem:[#allocation10 + $0x88] sm:$0xf]
        %v6357 = vld [vmem:[#allocation10 + $0x8c] sm:$0xf]
        %v6358 = vld [vmem:[#allocation10 + $0x90] sm:$0xf]
        %v6359 = vld [vmem:[#allocation10 + $0x94] sm:$0xf]
        %v6360 = vpack.c.bf16 %v6312, %v6311
        %v6361 = vpack.c.bf16 %v6314, %v6313
        %v6362 = vpack.c.bf16 %v6316, %v6315
        %v6363 = vpack.c.bf16 %v6318, %v6317
        %v6364 = vlaneseq
        %v6365 = vshrl.u32 %v6364, 7
        %v6366 = vsub.s32 0, %v6365
        %v6367 = vrot.slane %v6319, %v6366
        %v6374 = vunpack.c.l.b16 %v6322
        %v6375 = vunpack.c.l.b16 %v6323
        %v6376 = vunpack.c.l.b16 %v6324
        %v6377 = vunpack.c.l.b16 %v6325
        %v6378 = vunpack.c.l.b16 %v6326
        %v6379 = vunpack.c.l.b16 %v6327
        %v6380 = vpack.c.b16 %v6375, %v6374
        %v6381 = vpack.c.b16 %v6377, %v6376
        %v6382 = vpack.c.b16 %v6379, %v6378
        %v6387 = vsel %vm443, %v6360, 0
        %v6390 = vsel %vm443, %v6361, 0
        %v6393 = vsel %vm443, %v6362, 0
        %v6396 = vsel %vm443, %v6363, 0
        %6398 = vmatprep.subr.bf16.mxu0 0
        %6399 = vmatpush1.bf16.msra.mxu0 %v6380
        %6400 = vmatprep.subr.bf16.mxu0 0
        %6401 = vmatpush1.bf16.msra.mxu0 %v6381
        %6402 = vmatprep.subr.bf16.mxu0 0
        %6403 = vmatpush1.bf16.msra.mxu0 %v6382
        %6404 = vmatprep.subr.bf16.mxu0 0
        %6405 = vmatpush1.bf16.msra.mxu0 0
        %6406 = vmatprep.subr.bf16.mxu0 0
        %6407 = vmatpush1.bf16.msra.mxu0 0
        %6408 = vmatprep.subr.bf16.mxu0 0
        %6409 = vmatpush1.bf16.msra.mxu0 0
        %6410 = vmatprep.subr.bf16.mxu0 0
        %6411 = vmatpush1.bf16.msra.mxu0 0
        %6412 = vmatprep.subr.bf16.mxu0 0
        %6413 = vmatpush1.bf16.msra.mxu0 0
        %6414 = vmatprep.subr.bf16.mxu0 0
        %6415 = vmatpush1.bf16.msra.mxu0 0
        %6416 = vmatprep.subr.bf16.mxu0 0
        %6417 = vmatpush1.bf16.msra.mxu0 0
        %6418 = vmatprep.subr.bf16.mxu0 0
        %6419 = vmatpush1.bf16.msra.mxu0 0
        %6420 = vmatprep.subr.bf16.mxu0 0
        %6421 = vmatpush1.bf16.msra.mxu0 0
        %6422 = vmatprep.subr.bf16.mxu0 0
        %6423 = vmatpush1.bf16.msra.mxu0 0
        %6424 = vmatprep.subr.bf16.mxu0 0
        %6425 = vmatpush1.bf16.msra.mxu0 0
        %6426 = vmatprep.subr.bf16.mxu0 0
        %6427 = vmatpush1.bf16.msra.mxu0 0
        %6428 = vmatprep.subr.bf16.mxu0 0
        %6429 = vmatpush1.bf16.msra.mxu0 0
        %6430 = vmatprep.mubr.bf16.mxu0 0
        %6431 = vmatmul.mubr.bf16.gmra.mrb[0].mxu0 %v6387
        %v6432 = vpop.f32.mrb[0].mxu0
        %v6433 = vadd.f32 %v6367, %v6432
        %v6434 = vpop.f32.mrb[0].mxu0
        %v6435 = vpop.f32.mrb[0].mxu0
        %v6436 = vadd.f32 %v6367, %v6435
        %v6437 = vpop.f32.mrb[0].mxu0
        %6438 = vmatprep.mubr.bf16.mxu0 0
        %6439 = vmatmul.mubr.bf16.gmra.mrb[0].mxu0 %v6390
        %v6440 = vpop.f32.mrb[0].mxu0
        %v6441 = vadd.f32 %v6367, %v6440
        %v6442 = vpop.f32.mrb[0].mxu0
        %v6443 = vpop.f32.mrb[0].mxu0
        %v6444 = vadd.f32 %v6367, %v6443
        %v6445 = vpop.f32.mrb[0].mxu0
        %6446 = vmatprep.mubr.bf16.mxu0 0
        %6447 = vmatmul.mubr.bf16.gmra.mrb[0].mxu0 %v6393
        %v6448 = vpop.f32.mrb[0].mxu0
        %v6449 = vadd.f32 %v6367, %v6448
        %v6450 = vpop.f32.mrb[0].mxu0
        %v6451 = vpop.f32.mrb[0].mxu0
        %v6452 = vadd.f32 %v6367, %v6451
        %v6453 = vpop.f32.mrb[0].mxu0
        %6454 = vmatprep.mubr.bf16.mxu0 0
        %6455 = vmatmul.mubr.bf16.gmra.mrb[0].mxu0 %v6396
        %v6456 = vpop.f32.mrb[0].mxu0
        %v6457 = vadd.f32 %v6367, %v6456
        %v6458 = vpop.f32.mrb[0].mxu0
        %v6459 = vpop.f32.mrb[0].mxu0
        %v6460 = vadd.f32 %v6367, %v6459
        %v6461 = vpop.f32.mrb[0].mxu0
        %6462 = vdwg.mxu0
        %v6463 = vmax.f32 %v6433, 0.0
        %v6464 = vmax.f32 %v6436, 0.0
        %v6465 = vmax.f32 %v6441, 0.0
        %v6466 = vmax.f32 %v6444, 0.0
        %v6467 = vmax.f32 %v6449, 0.0
        %v6468 = vmax.f32 %v6452, 0.0
        %v6469 = vmax.f32 %v6457, 0.0
        %v6470 = vmax.f32 %v6460, 0.0
        %v6471 = vpack.c.bf16 %v6464, %v6463
        %v6472 = vpack.c.bf16 %v6466, %v6465
        %v6473 = vpack.c.bf16 %v6468, %v6467
        %v6474 = vpack.c.bf16 %v6470, %v6469
        %v6475 = vlaneseq
        %v6476 = vshrl.u32 %v6475, 7
        %v6477 = vsub.s32 0, %v6476
        %v6478 = vrot.slane %v6320, %v6477
        %v6495 = vunpack.c.l.b16 %v6328
        %v6496 = vunpack.c.l.b16 %v6329
        %v6497 = vunpack.c.l.b16 %v6330
        %v6498 = vunpack.c.l.b16 %v6331
        %v6499 = vunpack.c.l.b16 %v6332
        %v6500 = vunpack.c.l.b16 %v6333
        %v6501 = vunpack.c.l.b16 %v6334
        %v6502 = vunpack.c.l.b16 %v6335
        %v6503 = vunpack.c.l.b16 %v6336
        %v6504 = vunpack.c.l.b16 %v6337
        %v6505 = vunpack.c.l.b16 %v6338
        %v6506 = vunpack.c.l.b16 %v6339
        %v6507 = vunpack.c.l.b16 %v6340
        %v6508 = vunpack.c.l.b16 %v6341
        %v6509 = vunpack.c.l.b16 %v6342
        %v6510 = vunpack.c.l.b16 %v6343
        %v6511 = vpack.c.b16 %v6496, %v6495
        %v6512 = vpack.c.b16 %v6498, %v6497
        %v6513 = vpack.c.b16 %v6500, %v6499
        %v6514 = vpack.c.b16 %v6502, %v6501
        %v6515 = vpack.c.b16 %v6504, %v6503
        %v6516 = vpack.c.b16 %v6506, %v6505
        %v6517 = vpack.c.b16 %v6508, %v6507
        %v6518 = vpack.c.b16 %v6510, %v6509
        %6527 = vmatprep.subr.bf16.mxu0 0
        %6528 = vmatpush1.bf16.msra.mxu0 %v6511
        %6529 = vmatprep.subr.bf16.mxu0 0
        %6530 = vmatpush1.bf16.msra.mxu0 %v6512
        %6531 = vmatprep.subr.bf16.mxu0 0
        %6532 = vmatpush1.bf16.msra.mxu0 %v6513
        %6533 = vmatprep.subr.bf16.mxu0 0
        %6534 = vmatpush1.bf16.msra.mxu0 %v6514
        %6535 = vmatprep.subr.bf16.mxu0 0
        %6536 = vmatpush1.bf16.msra.mxu0 %v6515
        %6537 = vmatprep.subr.bf16.mxu0 0
        %6538 = vmatpush1.bf16.msra.mxu0 %v6516
        %6539 = vmatprep.subr.bf16.mxu0 0
        %6540 = vmatpush1.bf16.msra.mxu0 %v6517
        %6541 = vmatprep.subr.bf16.mxu0 0
        %6542 = vmatpush1.bf16.msra.mxu0 %v6518
        %6543 = vmatprep.subr.bf16.mxu0 0
        %6544 = vmatpush1.bf16.msra.mxu0 0
        %6545 = vmatprep.subr.bf16.mxu0 0
        %6546 = vmatpush1.bf16.msra.mxu0 0
        %6547 = vmatprep.subr.bf16.mxu0 0
        %6548 = vmatpush1.bf16.msra.mxu0 0
        %6549 = vmatprep.subr.bf16.mxu0 0
        %6550 = vmatpush1.bf16.msra.mxu0 0
        %6551 = vmatprep.subr.bf16.mxu0 0
        %6552 = vmatpush1.bf16.msra.mxu0 0
        %6553 = vmatprep.subr.bf16.mxu0 0
        %6554 = vmatpush1.bf16.msra.mxu0 0
        %6555 = vmatprep.subr.bf16.mxu0 0
        %6556 = vmatpush1.bf16.msra.mxu0 0
        %6557 = vmatprep.subr.bf16.mxu0 0
        %6558 = vmatpush1.bf16.msra.mxu0 0
        %6559 = vmatprep.mubr.bf16.mxu0 0
        %6560 = vmatmul.mubr.bf16.gmra.mrb[0].mxu0 %v6471
        %v6561 = vpop.f32.mrb[0].mxu0
        %v6562 = vadd.f32 %v6478, %v6561
        %v6563 = vpop.f32.mrb[0].mxu0
        %v6564 = vpop.f32.mrb[0].mxu0
        %v6565 = vadd.f32 %v6478, %v6564
        %v6566 = vpop.f32.mrb[0].mxu0
        %6567 = vmatprep.mubr.bf16.mxu0 0
        %6568 = vmatmul.mubr.bf16.gmra.mrb[0].mxu0 %v6472
        %v6569 = vpop.f32.mrb[0].mxu0
        %v6570 = vadd.f32 %v6478, %v6569
        %v6571 = vpop.f32.mrb[0].mxu0
        %v6572 = vpop.f32.mrb[0].mxu0
        %v6573 = vadd.f32 %v6478, %v6572
        %v6574 = vpop.f32.mrb[0].mxu0
        %6575 = vmatprep.mubr.bf16.mxu0 0
        %6576 = vmatmul.mubr.bf16.gmra.mrb[0].mxu0 %v6473
        %v6577 = vpop.f32.mrb[0].mxu0
        %v6578 = vadd.f32 %v6478, %v6577
        %v6579 = vpop.f32.mrb[0].mxu0
        %v6580 = vpop.f32.mrb[0].mxu0
        %v6581 = vadd.f32 %v6478, %v6580
        %v6582 = vpop.f32.mrb[0].mxu0
        %6583 = vmatprep.mubr.bf16.mxu0 0
        %6584 = vmatmul.mubr.bf16.gmra.mrb[0].mxu0 %v6474
        %v6585 = vpop.f32.mrb[0].mxu0
        %v6586 = vadd.f32 %v6478, %v6585
        %v6587 = vpop.f32.mrb[0].mxu0
        %v6588 = vpop.f32.mrb[0].mxu0
        %v6589 = vadd.f32 %v6478, %v6588
        %v6590 = vpop.f32.mrb[0].mxu0
        %6591 = vdwg.mxu0
        %v6592 = vmax.f32 %v6562, 0.0
        %v6593 = vmax.f32 %v6565, 0.0
        %v6594 = vmax.f32 %v6570, 0.0
        %v6595 = vmax.f32 %v6573, 0.0
        %v6596 = vmax.f32 %v6578, 0.0
        %v6597 = vmax.f32 %v6581, 0.0
        %v6598 = vmax.f32 %v6586, 0.0
        %v6599 = vmax.f32 %v6589, 0.0
        %v6600 = vpack.c.bf16 %v6593, %v6592
        %v6601 = vpack.c.bf16 %v6595, %v6594
        %v6602 = vpack.c.bf16 %v6597, %v6596
        %v6603 = vpack.c.bf16 %v6599, %v6598
        %v6604 = vlaneseq
        %v6605 = vshrl.u32 %v6604, 7
        %v6606 = vsub.s32 0, %v6605
        %v6607 = vrot.slane %v6321, %v6606
        %v6624 = vunpack.c.l.b16 %v6344
        %v6625 = vunpack.c.l.b16 %v6345
        %v6626 = vunpack.c.l.b16 %v6346
        %v6627 = vunpack.c.l.b16 %v6347
        %v6628 = vunpack.c.l.b16 %v6348
        %v6629 = vunpack.c.l.b16 %v6349
        %v6630 = vunpack.c.l.b16 %v6350
        %v6631 = vunpack.c.l.b16 %v6351
        %v6632 = vunpack.c.l.b16 %v6352
        %v6633 = vunpack.c.l.b16 %v6353
        %v6634 = vunpack.c.l.b16 %v6354
        %v6635 = vunpack.c.l.b16 %v6355
        %v6636 = vunpack.c.l.b16 %v6356
        %v6637 = vunpack.c.l.b16 %v6357
        %v6638 = vunpack.c.l.b16 %v6358
        %v6639 = vunpack.c.l.b16 %v6359
        %v6640 = vpack.c.b16 %v6625, %v6624
        %v6641 = vpack.c.b16 %v6627, %v6626
        %v6642 = vpack.c.b16 %v6629, %v6628
        %v6643 = vpack.c.b16 %v6631, %v6630
        %v6644 = vpack.c.b16 %v6633, %v6632
        %v6645 = vpack.c.b16 %v6635, %v6634
        %v6646 = vpack.c.b16 %v6637, %v6636
        %v6647 = vpack.c.b16 %v6639, %v6638
        %6656 = vmatprep.subr.bf16.mxu0 0
        %6657 = vmatpush1.bf16.msra.mxu0 %v6640
        %6658 = vmatprep.subr.bf16.mxu0 0
        %6659 = vmatpush1.bf16.msra.mxu0 %v6641
        %6660 = vmatprep.subr.bf16.mxu0 0
        %6661 = vmatpush1.bf16.msra.mxu0 %v6642
        %6662 = vmatprep.subr.bf16.mxu0 0
        %6663 = vmatpush1.bf16.msra.mxu0 %v6643
        %6664 = vmatprep.subr.bf16.mxu0 0
        %6665 = vmatpush1.bf16.msra.mxu0 %v6644
        %6666 = vmatprep.subr.bf16.mxu0 0
        %6667 = vmatpush1.bf16.msra.mxu0 %v6645
        %6668 = vmatprep.subr.bf16.mxu0 0
        %6669 = vmatpush1.bf16.msra.mxu0 %v6646
        %6670 = vmatprep.subr.bf16.mxu0 0
        %6671 = vmatpush1.bf16.msra.mxu0 %v6647
        %6672 = vmatprep.subr.bf16.mxu0 0
        %6673 = vmatpush1.bf16.msra.mxu0 0
        %6674 = vmatprep.subr.bf16.mxu0 0
        %6675 = vmatpush1.bf16.msra.mxu0 0
        %6676 = vmatprep.subr.bf16.mxu0 0
        %6677 = vmatpush1.bf16.msra.mxu0 0
        %6678 = vmatprep.subr.bf16.mxu0 0
        %6679 = vmatpush1.bf16.msra.mxu0 0
        %6680 = vmatprep.subr.bf16.mxu0 0
        %6681 = vmatpush1.bf16.msra.mxu0 0
        %6682 = vmatprep.subr.bf16.mxu0 0
        %6683 = vmatpush1.bf16.msra.mxu0 0
        %6684 = vmatprep.subr.bf16.mxu0 0
        %6685 = vmatpush1.bf16.msra.mxu0 0
        %6686 = vmatprep.subr.bf16.mxu0 0
        %6687 = vmatpush1.bf16.msra.mxu0 0
        %6688 = vmatprep.mubr.bf16.mxu0 0
        %6689 = vmatmul.mubr.bf16.gmra.mrb[0].mxu0 %v6600
        %v6690 = vpop.f32.mrb[0].mxu0
        %v6691 = vadd.f32 %v6607, %v6690
        %v6692 = vpop.f32.mrb[0].mxu0
        %v6693 = vpop.f32.mrb[0].mxu0
        %v6694 = vadd.f32 %v6607, %v6693
        %v6695 = vpop.f32.mrb[0].mxu0
        %6696 = vmatprep.mubr.bf16.mxu0 0
        %6697 = vmatmul.mubr.bf16.gmra.mrb[0].mxu0 %v6601
        %v6698 = vpop.f32.mrb[0].mxu0
        %v6699 = vadd.f32 %v6607, %v6698
        %v6700 = vpop.f32.mrb[0].mxu0
        %v6701 = vpop.f32.mrb[0].mxu0
        %v6702 = vadd.f32 %v6607, %v6701
        %v6703 = vpop.f32.mrb[0].mxu0
        %6704 = vmatprep.mubr.bf16.mxu0 0
        %6705 = vmatmul.mubr.bf16.gmra.mrb[0].mxu0 %v6602
        %v6706 = vpop.f32.mrb[0].mxu0
        %v6707 = vadd.f32 %v6607, %v6706
        %v6708 = vpop.f32.mrb[0].mxu0
        %v6709 = vpop.f32.mrb[0].mxu0
        %v6710 = vadd.f32 %v6607, %v6709
        %v6711 = vpop.f32.mrb[0].mxu0
        %6712 = vmatprep.mubr.bf16.mxu0 0
        %6713 = vmatmul.mubr.bf16.gmra.mrb[0].mxu0 %v6603
        %v6714 = vpop.f32.mrb[0].mxu0
        %v6715 = vadd.f32 %v6607, %v6714
        %v6716 = vpop.f32.mrb[0].mxu0
        %v6717 = vpop.f32.mrb[0].mxu0
        %v6718 = vadd.f32 %v6607, %v6717
        %v6719 = vpop.f32.mrb[0].mxu0
        %6720 = vdwg.mxu0
        %v6721 = vld [vmem:[%s5 + $0x5] sm:$0x1]
        %v6722 = vld [vmem:[%s5 + $0x6] sm:$0x1]
        %v6723 = vadd.f32 %v6311, %v6691
        %v6724 = vadd.f32 %v6312, %v6694
        %v6725 = vadd.f32 %v6313, %v6699
        %v6726 = vadd.f32 %v6314, %v6702
        %v6727 = vadd.f32 %v6315, %v6707
        %v6728 = vadd.f32 %v6316, %v6710
        %v6729 = vadd.f32 %v6317, %v6715
        %v6730 = vadd.f32 %v6318, %v6718
        %v6731 = vsel %vm443, %v6723, 0.0
        %6732 = vadd.xlane.f32.xlu0 %v6731
        %v6733 = vpop.xlane.xlu0 %6732
        %v6734 = vsel %vm443, %v6724, 0.0
        %6735 = vadd.xlane.f32.xlu0 %v6734
        %v6736 = vpop.xlane.xlu0 %6735
        %v6737 = vsel %vm443, %v6725, 0.0
        %6738 = vadd.xlane.f32.xlu0 %v6737
        %v6739 = vpop.xlane.xlu0 %6738
        %v6740 = vsel %vm443, %v6726, 0.0
        %6741 = vadd.xlane.f32.xlu0 %v6740
        %v6742 = vpop.xlane.xlu0 %6741
        %v6743 = vsel %vm443, %v6727, 0.0
        %6744 = vadd.xlane.f32.xlu0 %v6743
        %v6745 = vpop.xlane.xlu0 %6744
        %v6746 = vsel %vm443, %v6728, 0.0
        %6747 = vadd.xlane.f32.xlu0 %v6746
        %v6748 = vpop.xlane.xlu0 %6747
        %v6749 = vsel %vm443, %v6729, 0.0
        %6750 = vadd.xlane.f32.xlu0 %v6749
        %v6751 = vpop.xlane.xlu0 %6750
        %v6752 = vsel %vm443, %v6730, 0.0
        %6753 = vadd.xlane.f32.xlu0 %v6752
        %v6754 = vpop.xlane.xlu0 %6753
        %v6755 = vmul.f32 %v6733, %v6214
        %v6756 = vmul.f32 %v6736, %v6214
        %v6757 = vmul.f32 %v6739, %v6214
        %v6758 = vmul.f32 %v6742, %v6214
        %v6759 = vmul.f32 %v6745, %v6214
        %v6760 = vmul.f32 %v6748, %v6214
        %v6761 = vmul.f32 %v6751, %v6214
        %v6762 = vmul.f32 %v6754, %v6214
        %v6763 = vsub.f32 %v6723, %v6755
        %v6764 = vsub.f32 %v6724, %v6756
        %v6765 = vsub.f32 %v6725, %v6757
        %v6766 = vsub.f32 %v6726, %v6758
        %v6767 = vsub.f32 %v6727, %v6759
        %v6768 = vsub.f32 %v6728, %v6760
        %v6769 = vsub.f32 %v6729, %v6761
        %v6770 = vsub.f32 %v6730, %v6762
        %v6771 = vmul.f32 %v6763, %v6763
        %v6772 = vmul.f32 %v6764, %v6764
        %v6773 = vmul.f32 %v6765, %v6765
        %v6774 = vmul.f32 %v6766, %v6766
        %v6775 = vmul.f32 %v6767, %v6767
        %v6776 = vmul.f32 %v6768, %v6768
        %v6777 = vmul.f32 %v6769, %v6769
        %v6778 = vmul.f32 %v6770, %v6770
        %v6779 = vsel %vm443, %v6771, 0.0
        %6780 = vadd.xlane.f32.xlu0 %v6779
        %v6781 = vpop.xlane.xlu0 %6780
        %v6782 = vsel %vm443, %v6772, 0.0
        %6783 = vadd.xlane.f32.xlu0 %v6782
        %v6784 = vpop.xlane.xlu0 %6783
        %v6785 = vsel %vm443, %v6773, 0.0
        %6786 = vadd.xlane.f32.xlu0 %v6785
        %v6787 = vpop.xlane.xlu0 %6786
        %v6788 = vsel %vm443, %v6774, 0.0
        %6789 = vadd.xlane.f32.xlu0 %v6788
        %v6790 = vpop.xlane.xlu0 %6789
        %v6791 = vsel %vm443, %v6775, 0.0
        %6792 = vadd.xlane.f32.xlu0 %v6791
        %v6793 = vpop.xlane.xlu0 %6792
        %v6794 = vsel %vm443, %v6776, 0.0
        %6795 = vadd.xlane.f32.xlu0 %v6794
        %v6796 = vpop.xlane.xlu0 %6795
        %v6797 = vsel %vm443, %v6777, 0.0
        %6798 = vadd.xlane.f32.xlu0 %v6797
        %v6799 = vpop.xlane.xlu0 %6798
        %v6800 = vsel %vm443, %v6778, 0.0
        %6801 = vadd.xlane.f32.xlu0 %v6800
        %v6802 = vpop.xlane.xlu0 %6801
        %v6803 = vmul.f32 %v6781, %v6214
        %v6804 = vmul.f32 %v6784, %v6214
        %v6805 = vmul.f32 %v6787, %v6214
        %v6806 = vmul.f32 %v6790, %v6214
        %v6807 = vmul.f32 %v6793, %v6214
        %v6808 = vmul.f32 %v6796, %v6214
        %v6809 = vmul.f32 %v6799, %v6214
        %v6810 = vmul.f32 %v6802, %v6214
        %v6811 = vadd.f32 %v6803, 1e-05
        %v6812 = vadd.f32 %v6804, 1e-05
        %v6813 = vadd.f32 %v6805, 1e-05
        %v6814 = vadd.f32 %v6806, 1e-05
        %v6815 = vadd.f32 %v6807, 1e-05
        %v6816 = vadd.f32 %v6808, 1e-05
        %v6817 = vadd.f32 %v6809, 1e-05
        %v6818 = vadd.f32 %v6810, 1e-05
        %v6819 = vrsqrt.pop %v6811
        %v6820 = vrsqrt.pop %v6812
        %v6821 = vrsqrt.pop %v6813
        %v6822 = vrsqrt.pop %v6814
        %v6823 = vrsqrt.pop %v6815
        %v6824 = vrsqrt.pop %v6816
        %v6825 = vrsqrt.pop %v6817
        %v6826 = vrsqrt.pop %v6818
        %v6827 = vmul.f32 %v6763, %v6819
        %v6828 = vmul.f32 %v6764, %v6820
        %v6829 = vmul.f32 %v6765, %v6821
        %v6830 = vmul.f32 %v6766, %v6822
        %v6831 = vmul.f32 %v6767, %v6823
        %v6832 = vmul.f32 %v6768, %v6824
        %v6833 = vmul.f32 %v6769, %v6825
        %v6834 = vmul.f32 %v6770, %v6826
        %v6835 = vlaneseq
        %v6836 = vshrl.u32 %v6835, 7
        %v6837 = vsub.s32 0, %v6836
        %v6838 = vrot.slane %v6721, %v6837
        %v6839 = vmul.f32 %v6827, %v6838
        %v6840 = vmul.f32 %v6828, %v6838
        %v6841 = vmul.f32 %v6829, %v6838
        %v6842 = vmul.f32 %v6830, %v6838
        %v6843 = vmul.f32 %v6831, %v6838
        %v6844 = vmul.f32 %v6832, %v6838
        %v6845 = vmul.f32 %v6833, %v6838
        %v6846 = vmul.f32 %v6834, %v6838
        %v6847 = vlaneseq
        %v6848 = vshrl.u32 %v6847, 7
        %v6849 = vsub.s32 0, %v6848
        %v6850 = vrot.slane %v6722, %v6849
        %v6851 = vadd.f32 %v6839, %v6850
        %v6852 = vadd.f32 %v6840, %v6850
        %v6853 = vadd.f32 %v6841, %v6850
        %v6854 = vadd.f32 %v6842, %v6850
        %v6855 = vadd.f32 %v6843, %v6850
        %v6856 = vadd.f32 %v6844, %v6850
        %v6857 = vadd.f32 %v6845, %v6850
        %v6858 = vadd.f32 %v6846, %v6850
        %6859 = vst.msk [vmem:[%s354] sm:$0xff] %vm443, %v6851
        %6860 = vst.msk [vmem:[%s354 + $0x8] sm:$0xff] %vm443, %v6852
        %6861 = vst.msk [vmem:[%s354 + $0x10] sm:$0xff] %vm443, %v6853
        %6862 = vst.msk [vmem:[%s354 + $0x18] sm:$0xff] %vm443, %v6854
        %6863 = vst.msk [vmem:[%s354 + $0x20] sm:$0xff] %vm443, %v6855
        %6864 = vst.msk [vmem:[%s354 + $0x28] sm:$0xff] %vm443, %v6856
        %6865 = vst.msk [vmem:[%s354 + $0x30] sm:$0xff] %vm443, %v6857
        %6866 = vst.msk [vmem:[%s354 + $0x38] sm:$0xff] %vm443, %v6858
        %s6867 = sand.u32 %s171, 1
        %s6868 = scalar_lea.sflag [#allocation4], %s6867
        %s6869 = sand.u32 %s171, 1
        %s6870 = smul.addr %s6869, 64
        %s6871 = scalar_lea.vmem [#allocation11], %s6870
        // Predicated region
        $region65: #{tpu_custom_call.1} parent=43 // pred_check
          %p6872 = pneg %p181
        $region66: #{tpu_custom_call.1} parent=43 // pred_check_branch
          %6874 = sbr.rel (%p6872) target = $region68
        $region67: #{tpu_custom_call.1} parent=43 // pred_region
          %s6875 = smul.u32 4, %s27
          %s6877 = ssub.s32 1024, 1024
          %6878 = vsyncadd %s6868, %s6877
          %s6879 = smul.addr %s6875, 2
          %s6880 = smul.addr %s6879, 128
          %s6881 = scalar_lea.hbm %s6, %s6880
          %s6882 = sshll.u32 %s6871, 4
          %s6883 = int_to_ptr.vmem [resolvable:$true] %s6882
          %6888 = dma.vmem_to_hbm [thread:$0]  %s6883, 1024, %s6881, %s6868, 128, 128, 8
        $region68: #{tpu_custom_call.1} parent=43 // pred_fallthru
          _
      $region44: #{tpu_custom_call.1} parent=5 // pred_fallthru
        _
      %p6889 = scmp.le.s32.totalorder 2, %s22
      // Predicated region
      $region69: #{tpu_custom_call.1} parent=5 // pred_check
        %p6890 = pneg %p6889
      $region70: #{tpu_custom_call.1} parent=5 // pred_check_branch
        %6892 = sbr.rel (%p6890) target = $region72
      $region71: #{tpu_custom_call.1} parent=5 // pred_region
        %s6893 = ssub.s32 %s22, 2
        // Predicated region
        $region73: #{tpu_custom_call.1} parent=71 // pred_check
          %p6894 = pneg %p187
        $region74: #{tpu_custom_call.1} parent=71 // pred_check_branch
          %6896 = sbr.rel (%p6894) target = $region76
        $region75: #{tpu_custom_call.1} parent=71 // pred_region
          %s6897 = sand.u32 %s172, 1
          %s6898 = scalar_lea.sflag [#allocation4], %s6897
          %s6899 = sand.u32 %s172, 1
          %s6900 = smul.addr %s6899, 64
          %s6901 = scalar_lea.vmem [#allocation11], %s6900
          %6902 = dma.done %s6898, 1024
        $region76: #{tpu_custom_call.1} parent=71 // pred_fallthru
          _
      $region72: #{tpu_custom_call.1} parent=5 // pred_fallthru
        _
    $region6: #{tpu_custom_call.1} parent=1 // loop_footer
      %s26 = sadd.s32 1, %s22
    $region7: #{tpu_custom_call.1} parent=1 // loop_footer_branch
      %21 = sbr.rel target = $region3
    $region8: #{tpu_custom_call.1} parent=1 // loop_exit
      _
    %6903 = vsyncpa [#allocation3], 1
    %s6904 = scalar_lea.sflag [#allocation3], 1
    %6905 = vsyncpa %s6904, 1
    %6906 = vsyncpa [#allocation6], 1
    %s6907 = scalar_lea.sflag [#allocation6], 1
    %6908 = vsyncpa %s6907, 1
    %6909 = vsyncpa [#allocation9], 1
    %6910 = vsyncpa [#allocation4], 1
    %s6911 = scalar_lea.sflag [#allocation4], 1
    %6912 = vsyncpa %s6911, 1

</llo_original>
